<compile_context>
chip_gen: v6e
topology: v6e:2x2x1
jax: 0.10.0
libtpu: 0.0.40
codegen_flags: <defaults>
</compile_context>

<pallas_src>
import jax
import jax.numpy as jnp
from jax.experimental import pallas as pl
from jax.experimental.pallas import tpu as pltpu


NUM_FEATURES = 2048   # fixed by Linear(2048, 1024) in the module
HIDDEN = 1024
NUM_CLASSES = 10
LEAKY_SLOPE = 0.01    # nn.LeakyReLU default


def _pool_fc1_kernel(x_ref, w1_ref, b1_ref, h_ref):
    """Grid axis 0 splits HIDDEN (output dim of Linear #1) into chunks.

    x_ref  : (B, HW, C)  bf16 pre-pool feature map (full array every step)
    w1_ref : (C, tn)     bf16 column chunk of Linear(2048,1024) weight
    b1_ref : (1, tn)     f32 bias chunk
    h_ref  : (B, tn)     f32 post-LeakyReLU hidden chunk (lane-dense output)

    NOTE: the 1/HW scale, bias and activation are applied unconditionally per
    grid step; this is correct only because each step covers the full HW
    reduction and owns a disjoint output chunk.  If an HW (reduction) grid
    axis is ever added, move them behind a pl.when(last-step) guard with an
    f32 accumulator.
    """
    # Sum-pool over the spatial axis with f32 accumulation; the 1/HW mean
    # scale is applied once on the (B, tn) matmul result instead of per
    # spatial element.
    pooled = jnp.sum(x_ref[...].astype(jnp.float32), axis=1)          # (B, C)

    acc = jnp.dot(pooled.astype(w1_ref.dtype), w1_ref[...],
                  preferred_element_type=jnp.float32)                 # (B, tn)

    h = acc * (1.0 / x_ref.shape[1]) + b1_ref[...]                    # mean + bias
    h_ref[...] = jnp.where(h > 0, h, LEAKY_SLOPE * h).astype(h_ref.dtype)


def _default_tn(h1):
    """tn = h1 (single grid step) on single-TC chips (v5e/v6e); tn = h1 // 2
    on 2-TC chips (v7x) so the 'parallel' grid axis shards W1 across cores."""
    try:
        kind = jax.devices()[0].device_kind.lower()
        two_tc = "v7" in kind
    except Exception:  # pragma: no cover - defensive, fall back to 1 step
        two_tc = False
    tn = h1 // 2 if two_tc else h1
    if tn % 128 != 0 or h1 % tn != 0:
        tn = h1
    return tn


def resnext_head(x, w1, b1, w2, b2, *, tn=None):
    """x: (B, HW, C=2048) pre-pool feature map. Returns (B, num_classes).

    x and w1 should be supplied already in their streaming dtype (bf16 for
    best HBM bandwidth); the kernel streams them as-is (no per-call casts)
    and accumulates in f32.
    """
    B, HW, C = x.shape
    H1 = w1.shape[1]
    if tn is None:
        tn = _default_tn(H1)
    assert H1 % tn == 0 and tn % 128 == 0

    h = pl.pallas_call(
        _pool_fc1_kernel,
        out_shape=jax.ShapeDtypeStruct((B, H1), jnp.float32),
        grid_spec=pltpu.PrefetchScalarGridSpec(
            num_scalar_prefetch=0,
            grid=(H1 // tn,),                                   # 1 step (v5e/v6e) or 2 (v7x)
            in_specs=[
                pl.BlockSpec((B, HW, C), lambda j: (0, 0, 0)),  # whole feature map
                pl.BlockSpec((C, tn),    lambda j: (0, j)),     # W1 column chunk
                pl.BlockSpec((1, tn),    lambda j: (0, j)),     # b1 chunk
            ],
            out_specs=pl.BlockSpec((B, tn), lambda j: (0, j)),  # lane-dense h chunk
        ),
        compiler_params=pltpu.CompilerParams(
            # Chunks are fully independent -> megacore-shardable on v7x
            # (2 TCs); degenerate single-step grid on v5e/v6e.  No vmem_limit
            # override: bf16 footprint (<10 MB double-buffered) fits the
            # default scoped VMEM on every generation.
            dimension_semantics=("parallel",),
        ),
    )(x, w1, b1)

    # Classifier tail Linear(1024, num_classes): tiny (B,1024)@(1024,10) with a
    # lane-sparse NC=10 output -> cheaper as a plain XLA epilogue than as
    # masked partial stores inside the kernel.
    # TODO(synk): W1's HBM->VMEM DMA could additionally be prefetched behind
    #             the conv trunk via a cross-call future; out of scope here.
    return h @ w2 + b2[0]


def reference_head(x, w1, b1, w2, b2):
    pooled = jnp.mean(x, axis=1)                               # adaptive avg pool
    h = pooled @ w1 + b1[0]                                    # Linear(2048,1024)
    h = jnp.where(h > 0, h, LEAKY_SLOPE * h)                   # LeakyReLU
    return h @ w2 + b2[0]                                      # Linear(1024, NC)


if __name__ == "__main__":
    key = jax.random.PRNGKey(0)
    k_x, k_w1, k_b1, k_w2, k_b2 = jax.random.split(key, 5)

    B, H, W = 2, 7, 7                 # typical post-trunk spatial size
    HW = H * W

    # Pre-pool feature map, channels-last (see layout comment above).
    x_f32 = jax.random.normal(k_x, (B, HW, NUM_FEATURES), dtype=jnp.float32)

    # Deterministic nn.Linear-style init (uniform +/- 1/sqrt(fan_in)).
    lim1 = 1.0 / jnp.sqrt(jnp.float32(NUM_FEATURES))
    lim2 = 1.0 / jnp.sqrt(jnp.float32(HIDDEN))
    w1_f32 = jax.random.uniform(k_w1, (NUM_FEATURES, HIDDEN), jnp.float32, -lim1, lim1)
    b1 = jax.random.uniform(k_b1, (1, HIDDEN), jnp.float32, -lim1, lim1)
    w2 = jax.random.uniform(k_w2, (HIDDEN, NUM_CLASSES), jnp.float32, -lim2, lim2)
    b2 = jax.random.uniform(k_b2, (1, NUM_CLASSES), jnp.float32, -lim2, lim2)

    # Persistent bf16 copies: cast ONCE at "model load" time, outside the
    # forward path, so the per-call kernel sees no cast round-trip in HBM.
    x = jax.block_until_ready(x_f32.astype(jnp.bfloat16))
    w1 = jax.block_until_ready(w1_f32.astype(jnp.bfloat16))

    out = resnext_head(x, w1, b1, w2, b2)
    out = jax.block_until_ready(out)

    ref = reference_head(x_f32, w1_f32, b1, w2, b2)
    assert out.shape == (B, NUM_CLASSES)
    # bf16 streaming of x/W1 (f32 accumulation) => ~1e-4 abs error vs f32 ref.
    assert jnp.allclose(out, ref, atol=1e-2, rtol=1e-2)

    print("KERNEL_OK")
</pallas_src>

<mosaic_0001>
module attributes {stable_mosaic.version = 11 : i64} {
  func.func @_pool_fc1_kernel(%arg0: i32, %arg1: memref<2x49x2048xbf16, #tpu.memory_space<vmem>>, %arg2: memref<2048x1024xbf16, #tpu.memory_space<vmem>>, %arg3: memref<1x1024xf32, #tpu.memory_space<vmem>>, %arg4: memref<2x1024xf32, #tpu.memory_space<vmem>>) attributes {dimension_semantics = [#tpu.dimension_semantics<parallel>], iteration_bounds = array<i64: 1>, scalar_prefetch = 0 : i64, scratch_operands = 0 : i64, tpu.core_type = #tpu.core_type<tc>, window_params = [{pipeline_mode = #tpu.pipeline_mode<synchronous>, transform_indices = @transform_0, window_bounds = array<i64: 2, 49, 2048>}, {transform_indices = @transform_1, window_bounds = array<i64: 2048, 1024>}, {transform_indices = @transform_2, window_bounds = array<i64: 1, 1024>}, {transform_indices = @transform_3, window_bounds = array<i64: 2, 1024>}]} {
    %c0 = arith.constant 0 : index
    %c0_0 = arith.constant 0 : index
    %c0_1 = arith.constant 0 : index
    %0 = vector.load %arg1[%c0, %c0_0, %c0_1] : memref<2x49x2048xbf16, #tpu.memory_space<vmem>>, vector<2x49x2048xbf16>
    %1 = arith.extf %0 : vector<2x49x2048xbf16> to vector<2x49x2048xf32>
    %cst = arith.constant dense<0.000000e+00> : vector<2x2048xf32>
    %2 = vector.multi_reduction <add>, %1, %cst [1] : vector<2x49x2048xf32> to vector<2x2048xf32>
    %3 = arith.truncf %2 : vector<2x2048xf32> to vector<2x2048xbf16>
    %c0_2 = arith.constant 0 : index
    %c0_3 = arith.constant 0 : index
    %4 = vector.load %arg2[%c0_2, %c0_3] : memref<2048x1024xbf16, #tpu.memory_space<vmem>>, vector<2048x1024xbf16>
    %cst_4 = arith.constant dense<0.000000e+00> : vector<2x1024xf32>
    %5 = tpu.matmul %3, %4, %cst_4 {dimension_numbers = #tpu.dot_dimension_numbers<[1], [0], [0], [1], [0, 0, 1, 1], [], []>} : vector<2x2048xbf16>, vector<2048x1024xbf16>, vector<2x1024xf32> -> vector<2x1024xf32>
    %cst_5 = arith.constant 0.0204081628 : f32
    %6 = vector.broadcast %cst_5 : f32 to vector<2x1024xf32>
    %7 = arith.mulf %5, %6 : vector<2x1024xf32>
    %c0_6 = arith.constant 0 : index
    %c0_7 = arith.constant 0 : index
    %8 = vector.load %arg3[%c0_6, %c0_7] : memref<1x1024xf32, #tpu.memory_space<vmem>>, vector<1x1024xf32>
    %9 = vector.broadcast %8 : vector<1x1024xf32> to vector<2x1024xf32>
    %10 = arith.addf %7, %9 : vector<2x1024xf32>
    %cst_8 = arith.constant 0.000000e+00 : f32
    %11 = vector.broadcast %cst_8 : f32 to vector<2x1024xf32>
    %12 = arith.cmpf ogt, %10, %11 : vector<2x1024xf32>
    %cst_9 = arith.constant 0.00999999977 : f32
    %13 = vector.broadcast %cst_9 : f32 to vector<2x1024xf32>
    %14 = arith.mulf %13, %10 : vector<2x1024xf32>
    %15 = arith.select %12, %10, %14 : vector<2x1024xi1>, vector<2x1024xf32>
    %c0_10 = arith.constant 0 : index
    %c0_11 = arith.constant 0 : index
    %16 = vector.load %arg4[%c0_10, %c0_11] : memref<2x1024xf32, #tpu.memory_space<vmem>>, vector<2x1024xf32>
    tpu.vector_store %arg4[%c0_10, %c0_11], %15 {strides = array<i32>} : memref<2x1024xf32, #tpu.memory_space<vmem>>, vector<2x1024xf32>,
    return
  }
  func.func @transform_0(%arg0: i32) -> (i32, i32, i32) {
    %c0_i32 = arith.constant 0 : i32
    %c0_i32_0 = arith.constant 0 : i32
    %c0_i32_1 = arith.constant 0 : i32
    %c0_i32_2 = arith.constant 0 : i32
    return %c0_i32, %c0_i32_0, %c0_i32_1 : i32, i32, i32
  }
  func.func @transform_1(%arg0: i32) -> (i32, i32) {
    %c0_i32 = arith.constant 0 : i32
    %c0_i32_0 = arith.constant 0 : i32
    return %c0_i32, %arg0 : i32, i32
  }
  func.func @transform_2(%arg0: i32) -> (i32, i32) {
    %c0_i32 = arith.constant 0 : i32
    %c0_i32_0 = arith.constant 0 : i32
    return %c0_i32, %arg0 : i32, i32
  }
  func.func @transform_3(%arg0: i32) -> (i32, i32) {
    %c0_i32 = arith.constant 0 : i32
    %c0_i32_0 = arith.constant 0 : i32
    return %c0_i32, %arg0 : i32, i32
  }
}

</mosaic_0001>

<llo_original>
// kernel: tpu_custom_call.1
$region0: #{tpu_custom_call.1}
  #allocation0 [shape = 'u32[]', space=smem, size = 0x4, offset = 0x4, fixed_abs, tag = 'smem constant byte address 0x4 - core index']
  #allocation1 [shape = 'u32[144,128]{1,0:T(1,128)}', space=vmem, size = 0x12000, scoped, tag = 'internal scratch']
  %s0 = inlined_call_operand.vmem [shape: bf16[2,49,2048], index: 0, kind: input, shape index: {}]
  %s1 = inlined_call_operand.hbm [shape: bf16[2048,1024], index: 1, kind: input, shape index: {}]
  %s2 = inlined_call_operand.hbm [shape: f32[1,1024], index: 2, kind: input, shape index: {}]
  %s3 = inlined_call_operand.hbm [shape: f32[2,1024], index: 3, kind: output, shape index: {}]
  %s4 = sld [smem:[#allocation0]]
  $region30: #{tpu_custom_call.1} parent=0
    _
  %s6 = ssub.s32 1, %s4
  %s7 = scalar_select 0, %s6, %s4
  $region1: #{tpu_custom_call.1} parent=0
    #allocation2 [shape = 'u8[4194304]{0}', space=vmem, size = 0x400000, scoped, tag = 'input window, operand 1, single buffered']
    #allocation3 [shape = 's32[1]{0}', space=sflag, size = 0x4, scoped, tag = 'scoped memory for tpu_custom_call.1']
    #allocation4 [shape = 's32[1]{0}', space=sflag, size = 0x4, scoped, tag = 'scoped memory for tpu_custom_call.1']
    #allocation5 [shape = 'u8[4096]{0}', space=vmem, size = 0x1000, scoped, tag = 'input window, operand 2, single buffered']
    #allocation6 [shape = 's32[1]{0}', space=sflag, size = 0x4, scoped, tag = 'scoped memory for tpu_custom_call.1']
    #allocation7 [shape = 'u8[8192]{0}', space=vmem, size = 0x2000, scoped, tag = 'output window, operand 0, single buffered']
    %8 = vsyncpa [#allocation3], 0
    %9 = vsyncpa [#allocation6], 0
    %10 = vsyncpa [#allocation4], 0
    // Predicated region
    $region2: #{tpu_custom_call.1} parent=1 // pred_check
      _
    $region3: #{tpu_custom_call.1} parent=1 // pred_check_branch
      %12 = sbr.rel (0) target = $region5
    $region4: #{tpu_custom_call.1} parent=1 // pred_region
      _
    $region5: #{tpu_custom_call.1} parent=1 // pred_fallthru
      _
    // Predicated region
    $region6: #{tpu_custom_call.1} parent=1 // pred_check
      _
    $region7: #{tpu_custom_call.1} parent=1 // pred_check_branch
      %14 = sbr.rel (0) target = $region9
    $region8: #{tpu_custom_call.1} parent=1 // pred_region
      %s16 = ssub.s32 131072, 131072
      %17 = vsyncadd [#allocation3], %s16
      %s18 = sshll.u32 [#allocation2], 4
      %s19 = int_to_ptr.vmem [resolvable:$true] %s18
      %24 = dma.hbm_to_vmem [thread:$0]  %s1, 131072, %s19, [#allocation3], 512, 512, 32
    $region9: #{tpu_custom_call.1} parent=1 // pred_fallthru
      _
    // Predicated region
    $region10: #{tpu_custom_call.1} parent=1 // pred_check
      _
    $region11: #{tpu_custom_call.1} parent=1 // pred_check_branch
      %26 = sbr.rel (0) target = $region13
    $region12: #{tpu_custom_call.1} parent=1 // pred_region
      %s28 = ssub.s32 128, 128
      %29 = vsyncadd [#allocation6], %s28
      %s31 = sshll.u32 [#allocation5], 4
      %s32 = int_to_ptr.vmem [resolvable:$true] %s31
      %34 = dma.hbm_to_vmem [thread:$0]  %s2, 128, %s32, [#allocation6]
    $region13: #{tpu_custom_call.1} parent=1 // pred_fallthru
      _
    // Predicated region
    $region14: #{tpu_custom_call.1} parent=1 // pred_check
      _
    $region15: #{tpu_custom_call.1} parent=1 // pred_check_branch
      %36 = sbr.rel (0) target = $region17
    $region16: #{tpu_custom_call.1} parent=1 // pred_region
      %37 = dma.done [#allocation3], 131072
    $region17: #{tpu_custom_call.1} parent=1 // pred_fallthru
      _
    // Predicated region
    $region18: #{tpu_custom_call.1} parent=1 // pred_check
      _
    $region19: #{tpu_custom_call.1} parent=1 // pred_check_branch
      %39 = sbr.rel (0) target = $region21
    $region20: #{tpu_custom_call.1} parent=1 // pred_region
      %40 = dma.done [#allocation6], 128
    $region21: #{tpu_custom_call.1} parent=1 // pred_fallthru
      _
    %v41 = vld [vmem:[%s0] sm:$0xff]
    %v42 = vld [vmem:[%s0 + $0x8] sm:$0xff]
    %v43 = vld [vmem:[%s0 + $0x10] sm:$0xff]
    %v44 = vld [vmem:[%s0 + $0x18] sm:$0xff]
    %v45 = vld [vmem:[%s0 + $0x20] sm:$0xff]
    %v46 = vld [vmem:[%s0 + $0x28] sm:$0xff]
    %v47 = vld [vmem:[%s0 + $0x30] sm:$0xff]
    %v48 = vld [vmem:[%s0 + $0x38] sm:$0xff]
    %v49 = vld [vmem:[%s0 + $0x40] sm:$0xff]
    %v50 = vld [vmem:[%s0 + $0x48] sm:$0xff]
    %v51 = vld [vmem:[%s0 + $0x50] sm:$0xff]
    %v52 = vld [vmem:[%s0 + $0x58] sm:$0xff]
    %v53 = vld [vmem:[%s0 + $0x60] sm:$0xff]
    %v54 = vld [vmem:[%s0 + $0x68] sm:$0xff]
    %v55 = vld [vmem:[%s0 + $0x70] sm:$0xff]
    %v56 = vld [vmem:[%s0 + $0x78] sm:$0xff]
    %v57 = vld [vmem:[%s0 + $0x80] sm:$0xff]
    %v58 = vld [vmem:[%s0 + $0x88] sm:$0xff]
    %v59 = vld [vmem:[%s0 + $0x90] sm:$0xff]
    %v60 = vld [vmem:[%s0 + $0x98] sm:$0xff]
    %v61 = vld [vmem:[%s0 + $0xa0] sm:$0xff]
    %v62 = vld [vmem:[%s0 + $0xa8] sm:$0xff]
    %v63 = vld [vmem:[%s0 + $0xb0] sm:$0xff]
    %v64 = vld [vmem:[%s0 + $0xb8] sm:$0xff]
    %v65 = vld [vmem:[%s0 + $0xc0] sm:$0xff]
    %v66 = vld [vmem:[%s0 + $0xc8] sm:$0xff]
    %v67 = vld [vmem:[%s0 + $0xd0] sm:$0xff]
    %v68 = vld [vmem:[%s0 + $0xd8] sm:$0xff]
    %v69 = vld [vmem:[%s0 + $0xe0] sm:$0xff]
    %v70 = vld [vmem:[%s0 + $0xe8] sm:$0xff]
    %v71 = vld [vmem:[%s0 + $0xf0] sm:$0xff]
    %v72 = vld [vmem:[%s0 + $0xf8] sm:$0xff]
    %v73 = vld [vmem:[%s0 + $0x100] sm:$0xff]
    %v74 = vld [vmem:[%s0 + $0x108] sm:$0xff]
    %v75 = vld [vmem:[%s0 + $0x110] sm:$0xff]
    %v76 = vld [vmem:[%s0 + $0x118] sm:$0xff]
    %v77 = vld [vmem:[%s0 + $0x120] sm:$0xff]
    %v78 = vld [vmem:[%s0 + $0x128] sm:$0xff]
    %v79 = vld [vmem:[%s0 + $0x130] sm:$0xff]
    %v80 = vld [vmem:[%s0 + $0x138] sm:$0xff]
    %v81 = vld [vmem:[%s0 + $0x140] sm:$0xff]
    %v82 = vld [vmem:[%s0 + $0x148] sm:$0xff]
    %v83 = vld [vmem:[%s0 + $0x150] sm:$0xff]
    %v84 = vld [vmem:[%s0 + $0x158] sm:$0xff]
    %v85 = vld [vmem:[%s0 + $0x160] sm:$0xff]
    %v86 = vld [vmem:[%s0 + $0x168] sm:$0xff]
    %v87 = vld [vmem:[%s0 + $0x170] sm:$0xff]
    %v88 = vld [vmem:[%s0 + $0x178] sm:$0xff]
    %v89 = vld [vmem:[%s0 + $0x180] sm:$0x11]
    %v90 = vld [vmem:[%s0 + $0x188] sm:$0x11]
    %v91 = vld [vmem:[%s0 + $0x190] sm:$0x11]
    %v92 = vld [vmem:[%s0 + $0x198] sm:$0x11]
    %v93 = vld [vmem:[%s0 + $0x1a0] sm:$0x11]
    %v94 = vld [vmem:[%s0 + $0x1a8] sm:$0x11]
    %v95 = vld [vmem:[%s0 + $0x1b0] sm:$0x11]
    %v96 = vld [vmem:[%s0 + $0x1b8] sm:$0x11]
    %v97 = vld [vmem:[%s0 + $0x1c0] sm:$0xff]
    %v98 = vld [vmem:[%s0 + $0x1c8] sm:$0xff]
    %v99 = vld [vmem:[%s0 + $0x1d0] sm:$0xff]
    %v100 = vld [vmem:[%s0 + $0x1d8] sm:$0xff]
    %v101 = vld [vmem:[%s0 + $0x1e0] sm:$0xff]
    %v102 = vld [vmem:[%s0 + $0x1e8] sm:$0xff]
    %v103 = vld [vmem:[%s0 + $0x1f0] sm:$0xff]
    %v104 = vld [vmem:[%s0 + $0x1f8] sm:$0xff]
    %v105 = vld [vmem:[%s0 + $0x200] sm:$0xff]
    %v106 = vld [vmem:[%s0 + $0x208] sm:$0xff]
    %v107 = vld [vmem:[%s0 + $0x210] sm:$0xff]
    %v108 = vld [vmem:[%s0 + $0x218] sm:$0xff]
    %v109 = vld [vmem:[%s0 + $0x220] sm:$0xff]
    %v110 = vld [vmem:[%s0 + $0x228] sm:$0xff]
    %v111 = vld [vmem:[%s0 + $0x230] sm:$0xff]
    %v112 = vld [vmem:[%s0 + $0x238] sm:$0xff]
    %v113 = vld [vmem:[%s0 + $0x240] sm:$0xff]
    %v114 = vld [vmem:[%s0 + $0x248] sm:$0xff]
    %v115 = vld [vmem:[%s0 + $0x250] sm:$0xff]
    %v116 = vld [vmem:[%s0 + $0x258] sm:$0xff]
    %v117 = vld [vmem:[%s0 + $0x260] sm:$0xff]
    %v118 = vld [vmem:[%s0 + $0x268] sm:$0xff]
    %v119 = vld [vmem:[%s0 + $0x270] sm:$0xff]
    %v120 = vld [vmem:[%s0 + $0x278] sm:$0xff]
    %v121 = vld [vmem:[%s0 + $0x280] sm:$0xff]
    %v122 = vld [vmem:[%s0 + $0x288] sm:$0xff]
    %v123 = vld [vmem:[%s0 + $0x290] sm:$0xff]
    %v124 = vld [vmem:[%s0 + $0x298] sm:$0xff]
    %v125 = vld [vmem:[%s0 + $0x2a0] sm:$0xff]
    %v126 = vld [vmem:[%s0 + $0x2a8] sm:$0xff]
    %v127 = vld [vmem:[%s0 + $0x2b0] sm:$0xff]
    %v128 = vld [vmem:[%s0 + $0x2b8] sm:$0xff]
    %v129 = vld [vmem:[%s0 + $0x2c0] sm:$0xff]
    %v130 = vld [vmem:[%s0 + $0x2c8] sm:$0xff]
    %v131 = vld [vmem:[%s0 + $0x2d0] sm:$0xff]
    %v132 = vld [vmem:[%s0 + $0x2d8] sm:$0xff]
    %v133 = vld [vmem:[%s0 + $0x2e0] sm:$0xff]
    %v134 = vld [vmem:[%s0 + $0x2e8] sm:$0xff]
    %v135 = vld [vmem:[%s0 + $0x2f0] sm:$0xff]
    %v136 = vld [vmem:[%s0 + $0x2f8] sm:$0xff]
    %v137 = vld [vmem:[%s0 + $0x300] sm:$0xff]
    %v138 = vld [vmem:[%s0 + $0x308] sm:$0xff]
    %v139 = vld [vmem:[%s0 + $0x310] sm:$0xff]
    %v140 = vld [vmem:[%s0 + $0x318] sm:$0xff]
    %v141 = vld [vmem:[%s0 + $0x320] sm:$0xff]
    %v142 = vld [vmem:[%s0 + $0x328] sm:$0xff]
    %v143 = vld [vmem:[%s0 + $0x330] sm:$0xff]
    %v144 = vld [vmem:[%s0 + $0x338] sm:$0xff]
    %v145 = vld [vmem:[%s0 + $0x340] sm:$0x11]
    %v146 = vld [vmem:[%s0 + $0x348] sm:$0x11]
    %v147 = vld [vmem:[%s0 + $0x350] sm:$0x11]
    %v148 = vld [vmem:[%s0 + $0x358] sm:$0x11]
    %v149 = vld [vmem:[%s0 + $0x360] sm:$0x11]
    %v150 = vld [vmem:[%s0 + $0x368] sm:$0x11]
    %v151 = vld [vmem:[%s0 + $0x370] sm:$0x11]
    %v152 = vld [vmem:[%s0 + $0x378] sm:$0x11]
    %v153 = vunpack.c.l.bf16 %v41
    %v154 = vunpack.c.h.bf16 %v41
    %v155 = vunpack.c.l.bf16 %v42
    %v156 = vunpack.c.h.bf16 %v42
    %v157 = vunpack.c.l.bf16 %v43
    %v158 = vunpack.c.h.bf16 %v43
    %v159 = vunpack.c.l.bf16 %v44
    %v160 = vunpack.c.h.bf16 %v44
    %v161 = vunpack.c.l.bf16 %v45
    %v162 = vunpack.c.h.bf16 %v45
    %v163 = vunpack.c.l.bf16 %v46
    %v164 = vunpack.c.h.bf16 %v46
    %v165 = vunpack.c.l.bf16 %v47
    %v166 = vunpack.c.h.bf16 %v47
    %v167 = vunpack.c.l.bf16 %v48
    %v168 = vunpack.c.h.bf16 %v48
    %v169 = vunpack.c.l.bf16 %v49
    %v170 = vunpack.c.h.bf16 %v49
    %v171 = vunpack.c.l.bf16 %v50
    %v172 = vunpack.c.h.bf16 %v50
    %v173 = vunpack.c.l.bf16 %v51
    %v174 = vunpack.c.h.bf16 %v51
    %v175 = vunpack.c.l.bf16 %v52
    %v176 = vunpack.c.h.bf16 %v52
    %v177 = vunpack.c.l.bf16 %v53
    %v178 = vunpack.c.h.bf16 %v53
    %v179 = vunpack.c.l.bf16 %v54
    %v180 = vunpack.c.h.bf16 %v54
    %v181 = vunpack.c.l.bf16 %v55
    %v182 = vunpack.c.h.bf16 %v55
    %v183 = vunpack.c.l.bf16 %v56
    %v184 = vunpack.c.h.bf16 %v56
    %v185 = vunpack.c.l.bf16 %v57
    %v186 = vunpack.c.h.bf16 %v57
    %v187 = vunpack.c.l.bf16 %v58
    %v188 = vunpack.c.h.bf16 %v58
    %v189 = vunpack.c.l.bf16 %v59
    %v190 = vunpack.c.h.bf16 %v59
    %v191 = vunpack.c.l.bf16 %v60
    %v192 = vunpack.c.h.bf16 %v60
    %v193 = vunpack.c.l.bf16 %v61
    %v194 = vunpack.c.h.bf16 %v61
    %v195 = vunpack.c.l.bf16 %v62
    %v196 = vunpack.c.h.bf16 %v62
    %v197 = vunpack.c.l.bf16 %v63
    %v198 = vunpack.c.h.bf16 %v63
    %v199 = vunpack.c.l.bf16 %v64
    %v200 = vunpack.c.h.bf16 %v64
    %v201 = vunpack.c.l.bf16 %v65
    %v202 = vunpack.c.h.bf16 %v65
    %v203 = vunpack.c.l.bf16 %v66
    %v204 = vunpack.c.h.bf16 %v66
    %v205 = vunpack.c.l.bf16 %v67
    %v206 = vunpack.c.h.bf16 %v67
    %v207 = vunpack.c.l.bf16 %v68
    %v208 = vunpack.c.h.bf16 %v68
    %v209 = vunpack.c.l.bf16 %v69
    %v210 = vunpack.c.h.bf16 %v69
    %v211 = vunpack.c.l.bf16 %v70
    %v212 = vunpack.c.h.bf16 %v70
    %v213 = vunpack.c.l.bf16 %v71
    %v214 = vunpack.c.h.bf16 %v71
    %v215 = vunpack.c.l.bf16 %v72
    %v216 = vunpack.c.h.bf16 %v72
    %v217 = vunpack.c.l.bf16 %v73
    %v218 = vunpack.c.h.bf16 %v73
    %v219 = vunpack.c.l.bf16 %v74
    %v220 = vunpack.c.h.bf16 %v74
    %v221 = vunpack.c.l.bf16 %v75
    %v222 = vunpack.c.h.bf16 %v75
    %v223 = vunpack.c.l.bf16 %v76
    %v224 = vunpack.c.h.bf16 %v76
    %v225 = vunpack.c.l.bf16 %v77
    %v226 = vunpack.c.h.bf16 %v77
    %v227 = vunpack.c.l.bf16 %v78
    %v228 = vunpack.c.h.bf16 %v78
    %v229 = vunpack.c.l.bf16 %v79
    %v230 = vunpack.c.h.bf16 %v79
    %v231 = vunpack.c.l.bf16 %v80
    %v232 = vunpack.c.h.bf16 %v80
    %v233 = vunpack.c.l.bf16 %v81
    %v234 = vunpack.c.h.bf16 %v81
    %v235 = vunpack.c.l.bf16 %v82
    %v236 = vunpack.c.h.bf16 %v82
    %v237 = vunpack.c.l.bf16 %v83
    %v238 = vunpack.c.h.bf16 %v83
    %v239 = vunpack.c.l.bf16 %v84
    %v240 = vunpack.c.h.bf16 %v84
    %v241 = vunpack.c.l.bf16 %v85
    %v242 = vunpack.c.h.bf16 %v85
    %v243 = vunpack.c.l.bf16 %v86
    %v244 = vunpack.c.h.bf16 %v86
    %v245 = vunpack.c.l.bf16 %v87
    %v246 = vunpack.c.h.bf16 %v87
    %v247 = vunpack.c.l.bf16 %v88
    %v248 = vunpack.c.h.bf16 %v88
    %v249 = vunpack.c.l.bf16 %v89
    %v250 = vunpack.c.h.bf16 %v89
    %v251 = vunpack.c.l.bf16 %v90
    %v252 = vunpack.c.h.bf16 %v90
    %v253 = vunpack.c.l.bf16 %v91
    %v254 = vunpack.c.h.bf16 %v91
    %v255 = vunpack.c.l.bf16 %v92
    %v256 = vunpack.c.h.bf16 %v92
    %v257 = vunpack.c.l.bf16 %v93
    %v258 = vunpack.c.h.bf16 %v93
    %v259 = vunpack.c.l.bf16 %v94
    %v260 = vunpack.c.h.bf16 %v94
    %v261 = vunpack.c.l.bf16 %v95
    %v262 = vunpack.c.h.bf16 %v95
    %v263 = vunpack.c.l.bf16 %v96
    %v264 = vunpack.c.h.bf16 %v96
    %v265 = vunpack.c.l.bf16 %v97
    %v266 = vunpack.c.h.bf16 %v97
    %v267 = vunpack.c.l.bf16 %v98
    %v268 = vunpack.c.h.bf16 %v98
    %v269 = vunpack.c.l.bf16 %v99
    %v270 = vunpack.c.h.bf16 %v99
    %v271 = vunpack.c.l.bf16 %v100
    %v272 = vunpack.c.h.bf16 %v100
    %v273 = vunpack.c.l.bf16 %v101
    %v274 = vunpack.c.h.bf16 %v101
    %v275 = vunpack.c.l.bf16 %v102
    %v276 = vunpack.c.h.bf16 %v102
    %v277 = vunpack.c.l.bf16 %v103
    %v278 = vunpack.c.h.bf16 %v103
    %v279 = vunpack.c.l.bf16 %v104
    %v280 = vunpack.c.h.bf16 %v104
    %v281 = vunpack.c.l.bf16 %v105
    %v282 = vunpack.c.h.bf16 %v105
    %v283 = vunpack.c.l.bf16 %v106
    %v284 = vunpack.c.h.bf16 %v106
    %v285 = vunpack.c.l.bf16 %v107
    %v286 = vunpack.c.h.bf16 %v107
    %v287 = vunpack.c.l.bf16 %v108
    %v288 = vunpack.c.h.bf16 %v108
    %v289 = vunpack.c.l.bf16 %v109
    %v290 = vunpack.c.h.bf16 %v109
    %v291 = vunpack.c.l.bf16 %v110
    %v292 = vunpack.c.h.bf16 %v110
    %v293 = vunpack.c.l.bf16 %v111
    %v294 = vunpack.c.h.bf16 %v111
    %v295 = vunpack.c.l.bf16 %v112
    %v296 = vunpack.c.h.bf16 %v112
    %v297 = vunpack.c.l.bf16 %v113
    %v298 = vunpack.c.h.bf16 %v113
    %v299 = vunpack.c.l.bf16 %v114
    %v300 = vunpack.c.h.bf16 %v114
    %v301 = vunpack.c.l.bf16 %v115
    %v302 = vunpack.c.h.bf16 %v115
    %v303 = vunpack.c.l.bf16 %v116
    %v304 = vunpack.c.h.bf16 %v116
    %v305 = vunpack.c.l.bf16 %v117
    %v306 = vunpack.c.h.bf16 %v117
    %v307 = vunpack.c.l.bf16 %v118
    %v308 = vunpack.c.h.bf16 %v118
    %v309 = vunpack.c.l.bf16 %v119
    %v310 = vunpack.c.h.bf16 %v119
    %v311 = vunpack.c.l.bf16 %v120
    %v312 = vunpack.c.h.bf16 %v120
    %v313 = vunpack.c.l.bf16 %v121
    %v314 = vunpack.c.h.bf16 %v121
    %v315 = vunpack.c.l.bf16 %v122
    %v316 = vunpack.c.h.bf16 %v122
    %v317 = vunpack.c.l.bf16 %v123
    %v318 = vunpack.c.h.bf16 %v123
    %v319 = vunpack.c.l.bf16 %v124
    %v320 = vunpack.c.h.bf16 %v124
    %v321 = vunpack.c.l.bf16 %v125
    %v322 = vunpack.c.h.bf16 %v125
    %v323 = vunpack.c.l.bf16 %v126
    %v324 = vunpack.c.h.bf16 %v126
    %v325 = vunpack.c.l.bf16 %v127
    %v326 = vunpack.c.h.bf16 %v127
    %v327 = vunpack.c.l.bf16 %v128
    %v328 = vunpack.c.h.bf16 %v128
    %v329 = vunpack.c.l.bf16 %v129
    %v330 = vunpack.c.h.bf16 %v129
    %v331 = vunpack.c.l.bf16 %v130
    %v332 = vunpack.c.h.bf16 %v130
    %v333 = vunpack.c.l.bf16 %v131
    %v334 = vunpack.c.h.bf16 %v131
    %v335 = vunpack.c.l.bf16 %v132
    %v336 = vunpack.c.h.bf16 %v132
    %v337 = vunpack.c.l.bf16 %v133
    %v338 = vunpack.c.h.bf16 %v133
    %v339 = vunpack.c.l.bf16 %v134
    %v340 = vunpack.c.h.bf16 %v134
    %v341 = vunpack.c.l.bf16 %v135
    %v342 = vunpack.c.h.bf16 %v135
    %v343 = vunpack.c.l.bf16 %v136
    %v344 = vunpack.c.h.bf16 %v136
    %v345 = vunpack.c.l.bf16 %v137
    %v346 = vunpack.c.h.bf16 %v137
    %v347 = vunpack.c.l.bf16 %v138
    %v348 = vunpack.c.h.bf16 %v138
    %v349 = vunpack.c.l.bf16 %v139
    %v350 = vunpack.c.h.bf16 %v139
    %v351 = vunpack.c.l.bf16 %v140
    %v352 = vunpack.c.h.bf16 %v140
    %v353 = vunpack.c.l.bf16 %v141
    %v354 = vunpack.c.h.bf16 %v141
    %v355 = vunpack.c.l.bf16 %v142
    %v356 = vunpack.c.h.bf16 %v142
    %v357 = vunpack.c.l.bf16 %v143
    %v358 = vunpack.c.h.bf16 %v143
    %v359 = vunpack.c.l.bf16 %v144
    %v360 = vunpack.c.h.bf16 %v144
    %v361 = vunpack.c.l.bf16 %v145
    %v362 = vunpack.c.h.bf16 %v145
    %v363 = vunpack.c.l.bf16 %v146
    %v364 = vunpack.c.h.bf16 %v146
    %v365 = vunpack.c.l.bf16 %v147
    %v366 = vunpack.c.h.bf16 %v147
    %v367 = vunpack.c.l.bf16 %v148
    %v368 = vunpack.c.h.bf16 %v148
    %v369 = vunpack.c.l.bf16 %v149
    %v370 = vunpack.c.h.bf16 %v149
    %v371 = vunpack.c.l.bf16 %v150
    %v372 = vunpack.c.h.bf16 %v150
    %v373 = vunpack.c.l.bf16 %v151
    %v374 = vunpack.c.h.bf16 %v151
    %v375 = vunpack.c.l.bf16 %v152
    %v376 = vunpack.c.h.bf16 %v152
    %v377 = vadd.f32 %v153, %v169
    %v378 = vadd.f32 %v377, %v185
    %v379 = vadd.f32 %v378, %v201
    %v380 = vadd.f32 %v379, %v217
    %v381 = vadd.f32 %v380, %v233
    %vm382 = vcmask 1040384
    %v383 = vsel %vm382, %v249, 0.0
    %v384 = vadd.f32 %v381, %v383
    %v385 = vrot.slane %v384, 4
    %v386 = vadd.f32 %v384, %v385
    %v387 = vrot.slane %v386, 2
    %v388 = vadd.f32 %v386, %v387
    %v389 = vrot.slane %v388, 1
    %v390 = vadd.f32 %v388, %v389
    %v391 = vadd.f32 %v154, %v170
    %v392 = vadd.f32 %v391, %v186
    %v393 = vadd.f32 %v392, %v202
    %v394 = vadd.f32 %v393, %v218
    %v395 = vadd.f32 %v394, %v234
    %v396 = vsel %vm382, %v250, 0.0
    %v397 = vadd.f32 %v395, %v396
    %v398 = vrot.slane %v397, 4
    %v399 = vadd.f32 %v397, %v398
    %v400 = vrot.slane %v399, 2
    %v401 = vadd.f32 %v399, %v400
    %v402 = vrot.slane %v401, 1
    %v403 = vadd.f32 %v401, %v402
    %v404 = vadd.f32 %v155, %v171
    %v405 = vadd.f32 %v404, %v187
    %v406 = vadd.f32 %v405, %v203
    %v407 = vadd.f32 %v406, %v219
    %v408 = vadd.f32 %v407, %v235
    %v409 = vsel %vm382, %v251, 0.0
    %v410 = vadd.f32 %v408, %v409
    %v411 = vrot.slane %v410, 4
    %v412 = vadd.f32 %v410, %v411
    %v413 = vrot.slane %v412, 2
    %v414 = vadd.f32 %v412, %v413
    %v415 = vrot.slane %v414, 1
    %v416 = vadd.f32 %v414, %v415
    %v417 = vadd.f32 %v156, %v172
    %v418 = vadd.f32 %v417, %v188
    %v419 = vadd.f32 %v418, %v204
    %v420 = vadd.f32 %v419, %v220
    %v421 = vadd.f32 %v420, %v236
    %v422 = vsel %vm382, %v252, 0.0
    %v423 = vadd.f32 %v421, %v422
    %v424 = vrot.slane %v423, 4
    %v425 = vadd.f32 %v423, %v424
    %v426 = vrot.slane %v425, 2
    %v427 = vadd.f32 %v425, %v426
    %v428 = vrot.slane %v427, 1
    %v429 = vadd.f32 %v427, %v428
    %v430 = vadd.f32 %v157, %v173
    %v431 = vadd.f32 %v430, %v189
    %v432 = vadd.f32 %v431, %v205
    %v433 = vadd.f32 %v432, %v221
    %v434 = vadd.f32 %v433, %v237
    %v435 = vsel %vm382, %v253, 0.0
    %v436 = vadd.f32 %v434, %v435
    %v437 = vrot.slane %v436, 4
    %v438 = vadd.f32 %v436, %v437
    %v439 = vrot.slane %v438, 2
    %v440 = vadd.f32 %v438, %v439
    %v441 = vrot.slane %v440, 1
    %v442 = vadd.f32 %v440, %v441
    %v443 = vadd.f32 %v158, %v174
    %v444 = vadd.f32 %v443, %v190
    %v445 = vadd.f32 %v444, %v206
    %v446 = vadd.f32 %v445, %v222
    %v447 = vadd.f32 %v446, %v238
    %v448 = vsel %vm382, %v254, 0.0
    %v449 = vadd.f32 %v447, %v448
    %v450 = vrot.slane %v449, 4
    %v451 = vadd.f32 %v449, %v450
    %v452 = vrot.slane %v451, 2
    %v453 = vadd.f32 %v451, %v452
    %v454 = vrot.slane %v453, 1
    %v455 = vadd.f32 %v453, %v454
    %v456 = vadd.f32 %v159, %v175
    %v457 = vadd.f32 %v456, %v191
    %v458 = vadd.f32 %v457, %v207
    %v459 = vadd.f32 %v458, %v223
    %v460 = vadd.f32 %v459, %v239
    %v461 = vsel %vm382, %v255, 0.0
    %v462 = vadd.f32 %v460, %v461
    %v463 = vrot.slane %v462, 4
    %v464 = vadd.f32 %v462, %v463
    %v465 = vrot.slane %v464, 2
    %v466 = vadd.f32 %v464, %v465
    %v467 = vrot.slane %v466, 1
    %v468 = vadd.f32 %v466, %v467
    %v469 = vadd.f32 %v160, %v176
    %v470 = vadd.f32 %v469, %v192
    %v471 = vadd.f32 %v470, %v208
    %v472 = vadd.f32 %v471, %v224
    %v473 = vadd.f32 %v472, %v240
    %v474 = vsel %vm382, %v256, 0.0
    %v475 = vadd.f32 %v473, %v474
    %v476 = vrot.slane %v475, 4
    %v477 = vadd.f32 %v475, %v476
    %v478 = vrot.slane %v477, 2
    %v479 = vadd.f32 %v477, %v478
    %v480 = vrot.slane %v479, 1
    %v481 = vadd.f32 %v479, %v480
    %v482 = vadd.f32 %v161, %v177
    %v483 = vadd.f32 %v482, %v193
    %v484 = vadd.f32 %v483, %v209
    %v485 = vadd.f32 %v484, %v225
    %v486 = vadd.f32 %v485, %v241
    %v487 = vsel %vm382, %v257, 0.0
    %v488 = vadd.f32 %v486, %v487
    %v489 = vrot.slane %v488, 4
    %v490 = vadd.f32 %v488, %v489
    %v491 = vrot.slane %v490, 2
    %v492 = vadd.f32 %v490, %v491
    %v493 = vrot.slane %v492, 1
    %v494 = vadd.f32 %v492, %v493
    %v495 = vadd.f32 %v162, %v178
    %v496 = vadd.f32 %v495, %v194
    %v497 = vadd.f32 %v496, %v210
    %v498 = vadd.f32 %v497, %v226
    %v499 = vadd.f32 %v498, %v242
    %v500 = vsel %vm382, %v258, 0.0
    %v501 = vadd.f32 %v499, %v500
    %v502 = vrot.slane %v501, 4
    %v503 = vadd.f32 %v501, %v502
    %v504 = vrot.slane %v503, 2
    %v505 = vadd.f32 %v503, %v504
    %v506 = vrot.slane %v505, 1
    %v507 = vadd.f32 %v505, %v506
    %v508 = vadd.f32 %v163, %v179
    %v509 = vadd.f32 %v508, %v195
    %v510 = vadd.f32 %v509, %v211
    %v511 = vadd.f32 %v510, %v227
    %v512 = vadd.f32 %v511, %v243
    %v513 = vsel %vm382, %v259, 0.0
    %v514 = vadd.f32 %v512, %v513
    %v515 = vrot.slane %v514, 4
    %v516 = vadd.f32 %v514, %v515
    %v517 = vrot.slane %v516, 2
    %v518 = vadd.f32 %v516, %v517
    %v519 = vrot.slane %v518, 1
    %v520 = vadd.f32 %v518, %v519
    %v521 = vadd.f32 %v164, %v180
    %v522 = vadd.f32 %v521, %v196
    %v523 = vadd.f32 %v522, %v212
    %v524 = vadd.f32 %v523, %v228
    %v525 = vadd.f32 %v524, %v244
    %v526 = vsel %vm382, %v260, 0.0
    %v527 = vadd.f32 %v525, %v526
    %v528 = vrot.slane %v527, 4
    %v529 = vadd.f32 %v527, %v528
    %v530 = vrot.slane %v529, 2
    %v531 = vadd.f32 %v529, %v530
    %v532 = vrot.slane %v531, 1
    %v533 = vadd.f32 %v531, %v532
    %v534 = vadd.f32 %v165, %v181
    %v535 = vadd.f32 %v534, %v197
    %v536 = vadd.f32 %v535, %v213
    %v537 = vadd.f32 %v536, %v229
    %v538 = vadd.f32 %v537, %v245
    %v539 = vsel %vm382, %v261, 0.0
    %v540 = vadd.f32 %v538, %v539
    %v541 = vrot.slane %v540, 4
    %v542 = vadd.f32 %v540, %v541
    %v543 = vrot.slane %v542, 2
    %v544 = vadd.f32 %v542, %v543
    %v545 = vrot.slane %v544, 1
    %v546 = vadd.f32 %v544, %v545
    %v547 = vadd.f32 %v166, %v182
    %v548 = vadd.f32 %v547, %v198
    %v549 = vadd.f32 %v548, %v214
    %v550 = vadd.f32 %v549, %v230
    %v551 = vadd.f32 %v550, %v246
    %v552 = vsel %vm382, %v262, 0.0
    %v553 = vadd.f32 %v551, %v552
    %v554 = vrot.slane %v553, 4
    %v555 = vadd.f32 %v553, %v554
    %v556 = vrot.slane %v555, 2
    %v557 = vadd.f32 %v555, %v556
    %v558 = vrot.slane %v557, 1
    %v559 = vadd.f32 %v557, %v558
    %v560 = vadd.f32 %v167, %v183
    %v561 = vadd.f32 %v560, %v199
    %v562 = vadd.f32 %v561, %v215
    %v563 = vadd.f32 %v562, %v231
    %v564 = vadd.f32 %v563, %v247
    %v565 = vsel %vm382, %v263, 0.0
    %v566 = vadd.f32 %v564, %v565
    %v567 = vrot.slane %v566, 4
    %v568 = vadd.f32 %v566, %v567
    %v569 = vrot.slane %v568, 2
    %v570 = vadd.f32 %v568, %v569
    %v571 = vrot.slane %v570, 1
    %v572 = vadd.f32 %v570, %v571
    %v573 = vadd.f32 %v168, %v184
    %v574 = vadd.f32 %v573, %v200
    %v575 = vadd.f32 %v574, %v216
    %v576 = vadd.f32 %v575, %v232
    %v577 = vadd.f32 %v576, %v248
    %v578 = vsel %vm382, %v264, 0.0
    %v579 = vadd.f32 %v577, %v578
    %v580 = vrot.slane %v579, 4
    %v581 = vadd.f32 %v579, %v580
    %v582 = vrot.slane %v581, 2
    %v583 = vadd.f32 %v581, %v582
    %v584 = vrot.slane %v583, 1
    %v585 = vadd.f32 %v583, %v584
    %v586 = vadd.f32 %v265, %v281
    %v587 = vadd.f32 %v586, %v297
    %v588 = vadd.f32 %v587, %v313
    %v589 = vadd.f32 %v588, %v329
    %v590 = vadd.f32 %v589, %v345
    %v591 = vsel %vm382, %v361, 0.0
    %v592 = vadd.f32 %v590, %v591
    %v593 = vrot.slane %v592, 4
    %v594 = vadd.f32 %v592, %v593
    %v595 = vrot.slane %v594, 2
    %v596 = vadd.f32 %v594, %v595
    %v597 = vrot.slane %v596, 1
    %v598 = vadd.f32 %v596, %v597
    %v599 = vadd.f32 %v266, %v282
    %v600 = vadd.f32 %v599, %v298
    %v601 = vadd.f32 %v600, %v314
    %v602 = vadd.f32 %v601, %v330
    %v603 = vadd.f32 %v602, %v346
    %v604 = vsel %vm382, %v362, 0.0
    %v605 = vadd.f32 %v603, %v604
    %v606 = vrot.slane %v605, 4
    %v607 = vadd.f32 %v605, %v606
    %v608 = vrot.slane %v607, 2
    %v609 = vadd.f32 %v607, %v608
    %v610 = vrot.slane %v609, 1
    %v611 = vadd.f32 %v609, %v610
    %v612 = vadd.f32 %v267, %v283
    %v613 = vadd.f32 %v612, %v299
    %v614 = vadd.f32 %v613, %v315
    %v615 = vadd.f32 %v614, %v331
    %v616 = vadd.f32 %v615, %v347
    %v617 = vsel %vm382, %v363, 0.0
    %v618 = vadd.f32 %v616, %v617
    %v619 = vrot.slane %v618, 4
    %v620 = vadd.f32 %v618, %v619
    %v621 = vrot.slane %v620, 2
    %v622 = vadd.f32 %v620, %v621
    %v623 = vrot.slane %v622, 1
    %v624 = vadd.f32 %v622, %v623
    %v625 = vadd.f32 %v268, %v284
    %v626 = vadd.f32 %v625, %v300
    %v627 = vadd.f32 %v626, %v316
    %v628 = vadd.f32 %v627, %v332
    %v629 = vadd.f32 %v628, %v348
    %v630 = vsel %vm382, %v364, 0.0
    %v631 = vadd.f32 %v629, %v630
    %v632 = vrot.slane %v631, 4
    %v633 = vadd.f32 %v631, %v632
    %v634 = vrot.slane %v633, 2
    %v635 = vadd.f32 %v633, %v634
    %v636 = vrot.slane %v635, 1
    %v637 = vadd.f32 %v635, %v636
    %v638 = vadd.f32 %v269, %v285
    %v639 = vadd.f32 %v638, %v301
    %v640 = vadd.f32 %v639, %v317
    %v641 = vadd.f32 %v640, %v333
    %v642 = vadd.f32 %v641, %v349
    %v643 = vsel %vm382, %v365, 0.0
    %v644 = vadd.f32 %v642, %v643
    %v645 = vrot.slane %v644, 4
    %v646 = vadd.f32 %v644, %v645
    %v647 = vrot.slane %v646, 2
    %v648 = vadd.f32 %v646, %v647
    %v649 = vrot.slane %v648, 1
    %v650 = vadd.f32 %v648, %v649
    %v651 = vadd.f32 %v270, %v286
    %v652 = vadd.f32 %v651, %v302
    %v653 = vadd.f32 %v652, %v318
    %v654 = vadd.f32 %v653, %v334
    %v655 = vadd.f32 %v654, %v350
    %v656 = vsel %vm382, %v366, 0.0
    %v657 = vadd.f32 %v655, %v656
    %v658 = vrot.slane %v657, 4
    %v659 = vadd.f32 %v657, %v658
    %v660 = vrot.slane %v659, 2
    %v661 = vadd.f32 %v659, %v660
    %v662 = vrot.slane %v661, 1
    %v663 = vadd.f32 %v661, %v662
    %v664 = vadd.f32 %v271, %v287
    %v665 = vadd.f32 %v664, %v303
    %v666 = vadd.f32 %v665, %v319
    %v667 = vadd.f32 %v666, %v335
    %v668 = vadd.f32 %v667, %v351
    %v669 = vsel %vm382, %v367, 0.0
    %v670 = vadd.f32 %v668, %v669
    %v671 = vrot.slane %v670, 4
    %v672 = vadd.f32 %v670, %v671
    %v673 = vrot.slane %v672, 2
    %v674 = vadd.f32 %v672, %v673
    %v675 = vrot.slane %v674, 1
    %v676 = vadd.f32 %v674, %v675
    %v677 = vadd.f32 %v272, %v288
    %v678 = vadd.f32 %v677, %v304
    %v679 = vadd.f32 %v678, %v320
    %v680 = vadd.f32 %v679, %v336
    %v681 = vadd.f32 %v680, %v352
    %v682 = vsel %vm382, %v368, 0.0
    %v683 = vadd.f32 %v681, %v682
    %v684 = vrot.slane %v683, 4
    %v685 = vadd.f32 %v683, %v684
    %v686 = vrot.slane %v685, 2
    %v687 = vadd.f32 %v685, %v686
    %v688 = vrot.slane %v687, 1
    %v689 = vadd.f32 %v687, %v688
    %v690 = vadd.f32 %v273, %v289
    %v691 = vadd.f32 %v690, %v305
    %v692 = vadd.f32 %v691, %v321
    %v693 = vadd.f32 %v692, %v337
    %v694 = vadd.f32 %v693, %v353
    %v695 = vsel %vm382, %v369, 0.0
    %v696 = vadd.f32 %v694, %v695
    %v697 = vrot.slane %v696, 4
    %v698 = vadd.f32 %v696, %v697
    %v699 = vrot.slane %v698, 2
    %v700 = vadd.f32 %v698, %v699
    %v701 = vrot.slane %v700, 1
    %v702 = vadd.f32 %v700, %v701
    %v703 = vadd.f32 %v274, %v290
    %v704 = vadd.f32 %v703, %v306
    %v705 = vadd.f32 %v704, %v322
    %v706 = vadd.f32 %v705, %v338
    %v707 = vadd.f32 %v706, %v354
    %v708 = vsel %vm382, %v370, 0.0
    %v709 = vadd.f32 %v707, %v708
    %v710 = vrot.slane %v709, 4
    %v711 = vadd.f32 %v709, %v710
    %v712 = vrot.slane %v711, 2
    %v713 = vadd.f32 %v711, %v712
    %v714 = vrot.slane %v713, 1
    %v715 = vadd.f32 %v713, %v714
    %v716 = vadd.f32 %v275, %v291
    %v717 = vadd.f32 %v716, %v307
    %v718 = vadd.f32 %v717, %v323
    %v719 = vadd.f32 %v718, %v339
    %v720 = vadd.f32 %v719, %v355
    %v721 = vsel %vm382, %v371, 0.0
    %v722 = vadd.f32 %v720, %v721
    %v723 = vrot.slane %v722, 4
    %v724 = vadd.f32 %v722, %v723
    %v725 = vrot.slane %v724, 2
    %v726 = vadd.f32 %v724, %v725
    %v727 = vrot.slane %v726, 1
    %v728 = vadd.f32 %v726, %v727
    %v729 = vadd.f32 %v276, %v292
    %v730 = vadd.f32 %v729, %v308
    %v731 = vadd.f32 %v730, %v324
    %v732 = vadd.f32 %v731, %v340
    %v733 = vadd.f32 %v732, %v356
    %v734 = vsel %vm382, %v372, 0.0
    %v735 = vadd.f32 %v733, %v734
    %v736 = vrot.slane %v735, 4
    %v737 = vadd.f32 %v735, %v736
    %v738 = vrot.slane %v737, 2
    %v739 = vadd.f32 %v737, %v738
    %v740 = vrot.slane %v739, 1
    %v741 = vadd.f32 %v739, %v740
    %v742 = vadd.f32 %v277, %v293
    %v743 = vadd.f32 %v742, %v309
    %v744 = vadd.f32 %v743, %v325
    %v745 = vadd.f32 %v744, %v341
    %v746 = vadd.f32 %v745, %v357
    %v747 = vsel %vm382, %v373, 0.0
    %v748 = vadd.f32 %v746, %v747
    %v749 = vrot.slane %v748, 4
    %v750 = vadd.f32 %v748, %v749
    %v751 = vrot.slane %v750, 2
    %v752 = vadd.f32 %v750, %v751
    %v753 = vrot.slane %v752, 1
    %v754 = vadd.f32 %v752, %v753
    %v755 = vadd.f32 %v278, %v294
    %v756 = vadd.f32 %v755, %v310
    %v757 = vadd.f32 %v756, %v326
    %v758 = vadd.f32 %v757, %v342
    %v759 = vadd.f32 %v758, %v358
    %v760 = vsel %vm382, %v374, 0.0
    %v761 = vadd.f32 %v759, %v760
    %v762 = vrot.slane %v761, 4
    %v763 = vadd.f32 %v761, %v762
    %v764 = vrot.slane %v763, 2
    %v765 = vadd.f32 %v763, %v764
    %v766 = vrot.slane %v765, 1
    %v767 = vadd.f32 %v765, %v766
    %v768 = vadd.f32 %v279, %v295
    %v769 = vadd.f32 %v768, %v311
    %v770 = vadd.f32 %v769, %v327
    %v771 = vadd.f32 %v770, %v343
    %v772 = vadd.f32 %v771, %v359
    %v773 = vsel %vm382, %v375, 0.0
    %v774 = vadd.f32 %v772, %v773
    %v775 = vrot.slane %v774, 4
    %v776 = vadd.f32 %v774, %v775
    %v777 = vrot.slane %v776, 2
    %v778 = vadd.f32 %v776, %v777
    %v779 = vrot.slane %v778, 1
    %v780 = vadd.f32 %v778, %v779
    %v781 = vadd.f32 %v280, %v296
    %v782 = vadd.f32 %v781, %v312
    %v783 = vadd.f32 %v782, %v328
    %v784 = vadd.f32 %v783, %v344
    %v785 = vadd.f32 %v784, %v360
    %v786 = vsel %vm382, %v376, 0.0
    %v787 = vadd.f32 %v785, %v786
    %v788 = vrot.slane %v787, 4
    %v789 = vadd.f32 %v787, %v788
    %v790 = vrot.slane %v789, 2
    %v791 = vadd.f32 %v789, %v790
    %v792 = vrot.slane %v791, 1
    %v793 = vadd.f32 %v791, %v792
    %v794 = vpack.c.bf16 %v390, %v390
    %v795 = vpack.c.bf16 %v403, %v403
    %v796 = vpack.c.bf16 %v416, %v416
    %v797 = vpack.c.bf16 %v429, %v429
    %v798 = vpack.c.bf16 %v442, %v442
    %v799 = vpack.c.bf16 %v455, %v455
    %v800 = vpack.c.bf16 %v468, %v468
    %v801 = vpack.c.bf16 %v481, %v481
    %v802 = vpack.c.bf16 %v494, %v494
    %v803 = vpack.c.bf16 %v507, %v507
    %v804 = vpack.c.bf16 %v520, %v520
    %v805 = vpack.c.bf16 %v533, %v533
    %v806 = vpack.c.bf16 %v546, %v546
    %v807 = vpack.c.bf16 %v559, %v559
    %v808 = vpack.c.bf16 %v572, %v572
    %v809 = vpack.c.bf16 %v585, %v585
    %v810 = vpack.c.bf16 %v598, %v598
    %v811 = vpack.c.bf16 %v611, %v611
    %v812 = vpack.c.bf16 %v624, %v624
    %v813 = vpack.c.bf16 %v637, %v637
    %v814 = vpack.c.bf16 %v650, %v650
    %v815 = vpack.c.bf16 %v663, %v663
    %v816 = vpack.c.bf16 %v676, %v676
    %v817 = vpack.c.bf16 %v689, %v689
    %v818 = vpack.c.bf16 %v702, %v702
    %v819 = vpack.c.bf16 %v715, %v715
    %v820 = vpack.c.bf16 %v728, %v728
    %v821 = vpack.c.bf16 %v741, %v741
    %v822 = vpack.c.bf16 %v754, %v754
    %v823 = vpack.c.bf16 %v767, %v767
    %v824 = vpack.c.bf16 %v780, %v780
    %v825 = vpack.c.bf16 %v793, %v793
    %v826 = vld [vmem:[#allocation2] sm:$0xff]
    %v827 = vld [vmem:[#allocation2 + $0x8] sm:$0xff]
    %v828 = vld [vmem:[#allocation2 + $0x10] sm:$0xff]
    %v829 = vld [vmem:[#allocation2 + $0x18] sm:$0xff]
    %v830 = vld [vmem:[#allocation2 + $0x20] sm:$0xff]
    %v831 = vld [vmem:[#allocation2 + $0x28] sm:$0xff]
    %v832 = vld [vmem:[#allocation2 + $0x30] sm:$0xff]
    %v833 = vld [vmem:[#allocation2 + $0x38] sm:$0xff]
    %v834 = vld [vmem:[#allocation2 + $0x40] sm:$0xff]
    %v835 = vld [vmem:[#allocation2 + $0x48] sm:$0xff]
    %v836 = vld [vmem:[#allocation2 + $0x50] sm:$0xff]
    %v837 = vld [vmem:[#allocation2 + $0x58] sm:$0xff]
    %v838 = vld [vmem:[#allocation2 + $0x60] sm:$0xff]
    %v839 = vld [vmem:[#allocation2 + $0x68] sm:$0xff]
    %v840 = vld [vmem:[#allocation2 + $0x70] sm:$0xff]
    %v841 = vld [vmem:[#allocation2 + $0x78] sm:$0xff]
    %v842 = vld [vmem:[#allocation2 + $0x80] sm:$0xff]
    %v843 = vld [vmem:[#allocation2 + $0x88] sm:$0xff]
    %v844 = vld [vmem:[#allocation2 + $0x90] sm:$0xff]
    %v845 = vld [vmem:[#allocation2 + $0x98] sm:$0xff]
    %v846 = vld [vmem:[#allocation2 + $0xa0] sm:$0xff]
    %v847 = vld [vmem:[#allocation2 + $0xa8] sm:$0xff]
    %v848 = vld [vmem:[#allocation2 + $0xb0] sm:$0xff]
    %v849 = vld [vmem:[#allocation2 + $0xb8] sm:$0xff]
    %v850 = vld [vmem:[#allocation2 + $0xc0] sm:$0xff]
    %v851 = vld [vmem:[#allocation2 + $0xc8] sm:$0xff]
    %v852 = vld [vmem:[#allocation2 + $0xd0] sm:$0xff]
    %v853 = vld [vmem:[#allocation2 + $0xd8] sm:$0xff]
    %v854 = vld [vmem:[#allocation2 + $0xe0] sm:$0xff]
    %v855 = vld [vmem:[#allocation2 + $0xe8] sm:$0xff]
    %v856 = vld [vmem:[#allocation2 + $0xf0] sm:$0xff]
    %v857 = vld [vmem:[#allocation2 + $0xf8] sm:$0xff]
    %v858 = vld [vmem:[#allocation2 + $0x100] sm:$0xff]
    %v859 = vld [vmem:[#allocation2 + $0x108] sm:$0xff]
    %v860 = vld [vmem:[#allocation2 + $0x110] sm:$0xff]
    %v861 = vld [vmem:[#allocation2 + $0x118] sm:$0xff]
    %v862 = vld [vmem:[#allocation2 + $0x120] sm:$0xff]
    %v863 = vld [vmem:[#allocation2 + $0x128] sm:$0xff]
    %v864 = vld [vmem:[#allocation2 + $0x130] sm:$0xff]
    %v865 = vld [vmem:[#allocation2 + $0x138] sm:$0xff]
    %v866 = vld [vmem:[#allocation2 + $0x140] sm:$0xff]
    %v867 = vld [vmem:[#allocation2 + $0x148] sm:$0xff]
    %v868 = vld [vmem:[#allocation2 + $0x150] sm:$0xff]
    %v869 = vld [vmem:[#allocation2 + $0x158] sm:$0xff]
    %v870 = vld [vmem:[#allocation2 + $0x160] sm:$0xff]
    %v871 = vld [vmem:[#allocation2 + $0x168] sm:$0xff]
    %v872 = vld [vmem:[#allocation2 + $0x170] sm:$0xff]
    %v873 = vld [vmem:[#allocation2 + $0x178] sm:$0xff]
    %v874 = vld [vmem:[#allocation2 + $0x180] sm:$0xff]
    %v875 = vld [vmem:[#allocation2 + $0x188] sm:$0xff]
    %v876 = vld [vmem:[#allocation2 + $0x190] sm:$0xff]
    %v877 = vld [vmem:[#allocation2 + $0x198] sm:$0xff]
    %v878 = vld [vmem:[#allocation2 + $0x1a0] sm:$0xff]
    %v879 = vld [vmem:[#allocation2 + $0x1a8] sm:$0xff]
    %v880 = vld [vmem:[#allocation2 + $0x1b0] sm:$0xff]
    %v881 = vld [vmem:[#allocation2 + $0x1b8] sm:$0xff]
    %v882 = vld [vmem:[#allocation2 + $0x1c0] sm:$0xff]
    %v883 = vld [vmem:[#allocation2 + $0x1c8] sm:$0xff]
    %v884 = vld [vmem:[#allocation2 + $0x1d0] sm:$0xff]
    %v885 = vld [vmem:[#allocation2 + $0x1d8] sm:$0xff]
    %v886 = vld [vmem:[#allocation2 + $0x1e0] sm:$0xff]
    %v887 = vld [vmem:[#allocation2 + $0x1e8] sm:$0xff]
    %v888 = vld [vmem:[#allocation2 + $0x1f0] sm:$0xff]
    %v889 = vld [vmem:[#allocation2 + $0x1f8] sm:$0xff]
    %v890 = vld [vmem:[#allocation2 + $0x200] sm:$0xff]
    %v891 = vld [vmem:[#allocation2 + $0x208] sm:$0xff]
    %v892 = vld [vmem:[#allocation2 + $0x210] sm:$0xff]
    %v893 = vld [vmem:[#allocation2 + $0x218] sm:$0xff]
    %v894 = vld [vmem:[#allocation2 + $0x220] sm:$0xff]
    %v895 = vld [vmem:[#allocation2 + $0x228] sm:$0xff]
    %v896 = vld [vmem:[#allocation2 + $0x230] sm:$0xff]
    %v897 = vld [vmem:[#allocation2 + $0x238] sm:$0xff]
    %v898 = vld [vmem:[#allocation2 + $0x240] sm:$0xff]
    %v899 = vld [vmem:[#allocation2 + $0x248] sm:$0xff]
    %v900 = vld [vmem:[#allocation2 + $0x250] sm:$0xff]
    %v901 = vld [vmem:[#allocation2 + $0x258] sm:$0xff]
    %v902 = vld [vmem:[#allocation2 + $0x260] sm:$0xff]
    %v903 = vld [vmem:[#allocation2 + $0x268] sm:$0xff]
    %v904 = vld [vmem:[#allocation2 + $0x270] sm:$0xff]
    %v905 = vld [vmem:[#allocation2 + $0x278] sm:$0xff]
    %v906 = vld [vmem:[#allocation2 + $0x280] sm:$0xff]
    %v907 = vld [vmem:[#allocation2 + $0x288] sm:$0xff]
    %v908 = vld [vmem:[#allocation2 + $0x290] sm:$0xff]
    %v909 = vld [vmem:[#allocation2 + $0x298] sm:$0xff]
    %v910 = vld [vmem:[#allocation2 + $0x2a0] sm:$0xff]
    %v911 = vld [vmem:[#allocation2 + $0x2a8] sm:$0xff]
    %v912 = vld [vmem:[#allocation2 + $0x2b0] sm:$0xff]
    %v913 = vld [vmem:[#allocation2 + $0x2b8] sm:$0xff]
    %v914 = vld [vmem:[#allocation2 + $0x2c0] sm:$0xff]
    %v915 = vld [vmem:[#allocation2 + $0x2c8] sm:$0xff]
    %v916 = vld [vmem:[#allocation2 + $0x2d0] sm:$0xff]
    %v917 = vld [vmem:[#allocation2 + $0x2d8] sm:$0xff]
    %v918 = vld [vmem:[#allocation2 + $0x2e0] sm:$0xff]
    %v919 = vld [vmem:[#allocation2 + $0x2e8] sm:$0xff]
    %v920 = vld [vmem:[#allocation2 + $0x2f0] sm:$0xff]
    %v921 = vld [vmem:[#allocation2 + $0x2f8] sm:$0xff]
    %v922 = vld [vmem:[#allocation2 + $0x300] sm:$0xff]
    %v923 = vld [vmem:[#allocation2 + $0x308] sm:$0xff]
    %v924 = vld [vmem:[#allocation2 + $0x310] sm:$0xff]
    %v925 = vld [vmem:[#allocation2 + $0x318] sm:$0xff]
    %v926 = vld [vmem:[#allocation2 + $0x320] sm:$0xff]
    %v927 = vld [vmem:[#allocation2 + $0x328] sm:$0xff]
    %v928 = vld [vmem:[#allocation2 + $0x330] sm:$0xff]
    %v929 = vld [vmem:[#allocation2 + $0x338] sm:$0xff]
    %v930 = vld [vmem:[#allocation2 + $0x340] sm:$0xff]
    %v931 = vld [vmem:[#allocation2 + $0x348] sm:$0xff]
    %v932 = vld [vmem:[#allocation2 + $0x350] sm:$0xff]
    %v933 = vld [vmem:[#allocation2 + $0x358] sm:$0xff]
    %v934 = vld [vmem:[#allocation2 + $0x360] sm:$0xff]
    %v935 = vld [vmem:[#allocation2 + $0x368] sm:$0xff]
    %v936 = vld [vmem:[#allocation2 + $0x370] sm:$0xff]
    %v937 = vld [vmem:[#allocation2 + $0x378] sm:$0xff]
    %v938 = vld [vmem:[#allocation2 + $0x380] sm:$0xff]
    %v939 = vld [vmem:[#allocation2 + $0x388] sm:$0xff]
    %v940 = vld [vmem:[#allocation2 + $0x390] sm:$0xff]
    %v941 = vld [vmem:[#allocation2 + $0x398] sm:$0xff]
    %v942 = vld [vmem:[#allocation2 + $0x3a0] sm:$0xff]
    %v943 = vld [vmem:[#allocation2 + $0x3a8] sm:$0xff]
    %v944 = vld [vmem:[#allocation2 + $0x3b0] sm:$0xff]
    %v945 = vld [vmem:[#allocation2 + $0x3b8] sm:$0xff]
    %v946 = vld [vmem:[#allocation2 + $0x3c0] sm:$0xff]
    %v947 = vld [vmem:[#allocation2 + $0x3c8] sm:$0xff]
    %v948 = vld [vmem:[#allocation2 + $0x3d0] sm:$0xff]
    %v949 = vld [vmem:[#allocation2 + $0x3d8] sm:$0xff]
    %v950 = vld [vmem:[#allocation2 + $0x3e0] sm:$0xff]
    %v951 = vld [vmem:[#allocation2 + $0x3e8] sm:$0xff]
    %v952 = vld [vmem:[#allocation2 + $0x3f0] sm:$0xff]
    %v953 = vld [vmem:[#allocation2 + $0x3f8] sm:$0xff]
    %v954 = vld [vmem:[#allocation2 + $0x400] sm:$0xff]
    %v955 = vld [vmem:[#allocation2 + $0x408] sm:$0xff]
    %v956 = vld [vmem:[#allocation2 + $0x410] sm:$0xff]
    %v957 = vld [vmem:[#allocation2 + $0x418] sm:$0xff]
    %v958 = vld [vmem:[#allocation2 + $0x420] sm:$0xff]
    %v959 = vld [vmem:[#allocation2 + $0x428] sm:$0xff]
    %v960 = vld [vmem:[#allocation2 + $0x430] sm:$0xff]
    %v961 = vld [vmem:[#allocation2 + $0x438] sm:$0xff]
    %v962 = vld [vmem:[#allocation2 + $0x440] sm:$0xff]
    %v963 = vld [vmem:[#allocation2 + $0x448] sm:$0xff]
    %v964 = vld [vmem:[#allocation2 + $0x450] sm:$0xff]
    %v965 = vld [vmem:[#allocation2 + $0x458] sm:$0xff]
    %v966 = vld [vmem:[#allocation2 + $0x460] sm:$0xff]
    %v967 = vld [vmem:[#allocation2 + $0x468] sm:$0xff]
    %v968 = vld [vmem:[#allocation2 + $0x470] sm:$0xff]
    %v969 = vld [vmem:[#allocation2 + $0x478] sm:$0xff]
    %v970 = vld [vmem:[#allocation2 + $0x480] sm:$0xff]
    %v971 = vld [vmem:[#allocation2 + $0x488] sm:$0xff]
    %v972 = vld [vmem:[#allocation2 + $0x490] sm:$0xff]
    %v973 = vld [vmem:[#allocation2 + $0x498] sm:$0xff]
    %v974 = vld [vmem:[#allocation2 + $0x4a0] sm:$0xff]
    %v975 = vld [vmem:[#allocation2 + $0x4a8] sm:$0xff]
    %v976 = vld [vmem:[#allocation2 + $0x4b0] sm:$0xff]
    %v977 = vld [vmem:[#allocation2 + $0x4b8] sm:$0xff]
    %v978 = vld [vmem:[#allocation2 + $0x4c0] sm:$0xff]
    %v979 = vld [vmem:[#allocation2 + $0x4c8] sm:$0xff]
    %v980 = vld [vmem:[#allocation2 + $0x4d0] sm:$0xff]
    %v981 = vld [vmem:[#allocation2 + $0x4d8] sm:$0xff]
    %v982 = vld [vmem:[#allocation2 + $0x4e0] sm:$0xff]
    %v983 = vld [vmem:[#allocation2 + $0x4e8] sm:$0xff]
    %v984 = vld [vmem:[#allocation2 + $0x4f0] sm:$0xff]
    %v985 = vld [vmem:[#allocation2 + $0x4f8] sm:$0xff]
    %v986 = vld [vmem:[#allocation2 + $0x500] sm:$0xff]
    %v987 = vld [vmem:[#allocation2 + $0x508] sm:$0xff]
    %v988 = vld [vmem:[#allocation2 + $0x510] sm:$0xff]
    %v989 = vld [vmem:[#allocation2 + $0x518] sm:$0xff]
    %v990 = vld [vmem:[#allocation2 + $0x520] sm:$0xff]
    %v991 = vld [vmem:[#allocation2 + $0x528] sm:$0xff]
    %v992 = vld [vmem:[#allocation2 + $0x530] sm:$0xff]
    %v993 = vld [vmem:[#allocation2 + $0x538] sm:$0xff]
    %v994 = vld [vmem:[#allocation2 + $0x540] sm:$0xff]
    %v995 = vld [vmem:[#allocation2 + $0x548] sm:$0xff]
    %v996 = vld [vmem:[#allocation2 + $0x550] sm:$0xff]
    %v997 = vld [vmem:[#allocation2 + $0x558] sm:$0xff]
    %v998 = vld [vmem:[#allocation2 + $0x560] sm:$0xff]
    %v999 = vld [vmem:[#allocation2 + $0x568] sm:$0xff]
    %v1000 = vld [vmem:[#allocation2 + $0x570] sm:$0xff]
    %v1001 = vld [vmem:[#allocation2 + $0x578] sm:$0xff]
    %v1002 = vld [vmem:[#allocation2 + $0x580] sm:$0xff]
    %v1003 = vld [vmem:[#allocation2 + $0x588] sm:$0xff]
    %v1004 = vld [vmem:[#allocation2 + $0x590] sm:$0xff]
    %v1005 = vld [vmem:[#allocation2 + $0x598] sm:$0xff]
    %v1006 = vld [vmem:[#allocation2 + $0x5a0] sm:$0xff]
    %v1007 = vld [vmem:[#allocation2 + $0x5a8] sm:$0xff]
    %v1008 = vld [vmem:[#allocation2 + $0x5b0] sm:$0xff]
    %v1009 = vld [vmem:[#allocation2 + $0x5b8] sm:$0xff]
    %v1010 = vld [vmem:[#allocation2 + $0x5c0] sm:$0xff]
    %v1011 = vld [vmem:[#allocation2 + $0x5c8] sm:$0xff]
    %v1012 = vld [vmem:[#allocation2 + $0x5d0] sm:$0xff]
    %v1013 = vld [vmem:[#allocation2 + $0x5d8] sm:$0xff]
    %v1014 = vld [vmem:[#allocation2 + $0x5e0] sm:$0xff]
    %v1015 = vld [vmem:[#allocation2 + $0x5e8] sm:$0xff]
    %v1016 = vld [vmem:[#allocation2 + $0x5f0] sm:$0xff]
    %v1017 = vld [vmem:[#allocation2 + $0x5f8] sm:$0xff]
    %v1018 = vld [vmem:[#allocation2 + $0x600] sm:$0xff]
    %v1019 = vld [vmem:[#allocation2 + $0x608] sm:$0xff]
    %v1020 = vld [vmem:[#allocation2 + $0x610] sm:$0xff]
    %v1021 = vld [vmem:[#allocation2 + $0x618] sm:$0xff]
    %v1022 = vld [vmem:[#allocation2 + $0x620] sm:$0xff]
    %v1023 = vld [vmem:[#allocation2 + $0x628] sm:$0xff]
    %v1024 = vld [vmem:[#allocation2 + $0x630] sm:$0xff]
    %v1025 = vld [vmem:[#allocation2 + $0x638] sm:$0xff]
    %v1026 = vld [vmem:[#allocation2 + $0x640] sm:$0xff]
    %v1027 = vld [vmem:[#allocation2 + $0x648] sm:$0xff]
    %v1028 = vld [vmem:[#allocation2 + $0x650] sm:$0xff]
    %v1029 = vld [vmem:[#allocation2 + $0x658] sm:$0xff]
    %v1030 = vld [vmem:[#allocation2 + $0x660] sm:$0xff]
    %v1031 = vld [vmem:[#allocation2 + $0x668] sm:$0xff]
    %v1032 = vld [vmem:[#allocation2 + $0x670] sm:$0xff]
    %v1033 = vld [vmem:[#allocation2 + $0x678] sm:$0xff]
    %v1034 = vld [vmem:[#allocation2 + $0x680] sm:$0xff]
    %v1035 = vld [vmem:[#allocation2 + $0x688] sm:$0xff]
    %v1036 = vld [vmem:[#allocation2 + $0x690] sm:$0xff]
    %v1037 = vld [vmem:[#allocation2 + $0x698] sm:$0xff]
    %v1038 = vld [vmem:[#allocation2 + $0x6a0] sm:$0xff]
    %v1039 = vld [vmem:[#allocation2 + $0x6a8] sm:$0xff]
    %v1040 = vld [vmem:[#allocation2 + $0x6b0] sm:$0xff]
    %v1041 = vld [vmem:[#allocation2 + $0x6b8] sm:$0xff]
    %v1042 = vld [vmem:[#allocation2 + $0x6c0] sm:$0xff]
    %v1043 = vld [vmem:[#allocation2 + $0x6c8] sm:$0xff]
    %v1044 = vld [vmem:[#allocation2 + $0x6d0] sm:$0xff]
    %v1045 = vld [vmem:[#allocation2 + $0x6d8] sm:$0xff]
    %v1046 = vld [vmem:[#allocation2 + $0x6e0] sm:$0xff]
    %v1047 = vld [vmem:[#allocation2 + $0x6e8] sm:$0xff]
    %v1048 = vld [vmem:[#allocation2 + $0x6f0] sm:$0xff]
    %v1049 = vld [vmem:[#allocation2 + $0x6f8] sm:$0xff]
    %v1050 = vld [vmem:[#allocation2 + $0x700] sm:$0xff]
    %v1051 = vld [vmem:[#allocation2 + $0x708] sm:$0xff]
    %v1052 = vld [vmem:[#allocation2 + $0x710] sm:$0xff]
    %v1053 = vld [vmem:[#allocation2 + $0x718] sm:$0xff]
    %v1054 = vld [vmem:[#allocation2 + $0x720] sm:$0xff]
    %v1055 = vld [vmem:[#allocation2 + $0x728] sm:$0xff]
    %v1056 = vld [vmem:[#allocation2 + $0x730] sm:$0xff]
    %v1057 = vld [vmem:[#allocation2 + $0x738] sm:$0xff]
    %v1058 = vld [vmem:[#allocation2 + $0x740] sm:$0xff]
    %v1059 = vld [vmem:[#allocation2 + $0x748] sm:$0xff]
    %v1060 = vld [vmem:[#allocation2 + $0x750] sm:$0xff]
    %v1061 = vld [vmem:[#allocation2 + $0x758] sm:$0xff]
    %v1062 = vld [vmem:[#allocation2 + $0x760] sm:$0xff]
    %v1063 = vld [vmem:[#allocation2 + $0x768] sm:$0xff]
    %v1064 = vld [vmem:[#allocation2 + $0x770] sm:$0xff]
    %v1065 = vld [vmem:[#allocation2 + $0x778] sm:$0xff]
    %v1066 = vld [vmem:[#allocation2 + $0x780] sm:$0xff]
    %v1067 = vld [vmem:[#allocation2 + $0x788] sm:$0xff]
    %v1068 = vld [vmem:[#allocation2 + $0x790] sm:$0xff]
    %v1069 = vld [vmem:[#allocation2 + $0x798] sm:$0xff]
    %v1070 = vld [vmem:[#allocation2 + $0x7a0] sm:$0xff]
    %v1071 = vld [vmem:[#allocation2 + $0x7a8] sm:$0xff]
    %v1072 = vld [vmem:[#allocation2 + $0x7b0] sm:$0xff]
    %v1073 = vld [vmem:[#allocation2 + $0x7b8] sm:$0xff]
    %v1074 = vld [vmem:[#allocation2 + $0x7c0] sm:$0xff]
    %v1075 = vld [vmem:[#allocation2 + $0x7c8] sm:$0xff]
    %v1076 = vld [vmem:[#allocation2 + $0x7d0] sm:$0xff]
    %v1077 = vld [vmem:[#allocation2 + $0x7d8] sm:$0xff]
    %v1078 = vld [vmem:[#allocation2 + $0x7e0] sm:$0xff]
    %v1079 = vld [vmem:[#allocation2 + $0x7e8] sm:$0xff]
    %v1080 = vld [vmem:[#allocation2 + $0x7f0] sm:$0xff]
    %v1081 = vld [vmem:[#allocation2 + $0x7f8] sm:$0xff]
    %v1082 = vld [vmem:[#allocation2 + $0x800] sm:$0xff]
    %v1083 = vld [vmem:[#allocation2 + $0x808] sm:$0xff]
    %v1084 = vld [vmem:[#allocation2 + $0x810] sm:$0xff]
    %v1085 = vld [vmem:[#allocation2 + $0x818] sm:$0xff]
    %v1086 = vld [vmem:[#allocation2 + $0x820] sm:$0xff]
    %v1087 = vld [vmem:[#allocation2 + $0x828] sm:$0xff]
    %v1088 = vld [vmem:[#allocation2 + $0x830] sm:$0xff]
    %v1089 = vld [vmem:[#allocation2 + $0x838] sm:$0xff]
    %v1090 = vld [vmem:[#allocation2 + $0x840] sm:$0xff]
    %v1091 = vld [vmem:[#allocation2 + $0x848] sm:$0xff]
    %v1092 = vld [vmem:[#allocation2 + $0x850] sm:$0xff]
    %v1093 = vld [vmem:[#allocation2 + $0x858] sm:$0xff]
    %v1094 = vld [vmem:[#allocation2 + $0x860] sm:$0xff]
    %v1095 = vld [vmem:[#allocation2 + $0x868] sm:$0xff]
    %v1096 = vld [vmem:[#allocation2 + $0x870] sm:$0xff]
    %v1097 = vld [vmem:[#allocation2 + $0x878] sm:$0xff]
    %v1098 = vld [vmem:[#allocation2 + $0x880] sm:$0xff]
    %v1099 = vld [vmem:[#allocation2 + $0x888] sm:$0xff]
    %v1100 = vld [vmem:[#allocation2 + $0x890] sm:$0xff]
    %v1101 = vld [vmem:[#allocation2 + $0x898] sm:$0xff]
    %v1102 = vld [vmem:[#allocation2 + $0x8a0] sm:$0xff]
    %v1103 = vld [vmem:[#allocation2 + $0x8a8] sm:$0xff]
    %v1104 = vld [vmem:[#allocation2 + $0x8b0] sm:$0xff]
    %v1105 = vld [vmem:[#allocation2 + $0x8b8] sm:$0xff]
    %v1106 = vld [vmem:[#allocation2 + $0x8c0] sm:$0xff]
    %v1107 = vld [vmem:[#allocation2 + $0x8c8] sm:$0xff]
    %v1108 = vld [vmem:[#allocation2 + $0x8d0] sm:$0xff]
    %v1109 = vld [vmem:[#allocation2 + $0x8d8] sm:$0xff]
    %v1110 = vld [vmem:[#allocation2 + $0x8e0] sm:$0xff]
    %v1111 = vld [vmem:[#allocation2 + $0x8e8] sm:$0xff]
    %v1112 = vld [vmem:[#allocation2 + $0x8f0] sm:$0xff]
    %v1113 = vld [vmem:[#allocation2 + $0x8f8] sm:$0xff]
    %v1114 = vld [vmem:[#allocation2 + $0x900] sm:$0xff]
    %v1115 = vld [vmem:[#allocation2 + $0x908] sm:$0xff]
    %v1116 = vld [vmem:[#allocation2 + $0x910] sm:$0xff]
    %v1117 = vld [vmem:[#allocation2 + $0x918] sm:$0xff]
    %v1118 = vld [vmem:[#allocation2 + $0x920] sm:$0xff]
    %v1119 = vld [vmem:[#allocation2 + $0x928] sm:$0xff]
    %v1120 = vld [vmem:[#allocation2 + $0x930] sm:$0xff]
    %v1121 = vld [vmem:[#allocation2 + $0x938] sm:$0xff]
    %v1122 = vld [vmem:[#allocation2 + $0x940] sm:$0xff]
    %v1123 = vld [vmem:[#allocation2 + $0x948] sm:$0xff]
    %v1124 = vld [vmem:[#allocation2 + $0x950] sm:$0xff]
    %v1125 = vld [vmem:[#allocation2 + $0x958] sm:$0xff]
    %v1126 = vld [vmem:[#allocation2 + $0x960] sm:$0xff]
    %v1127 = vld [vmem:[#allocation2 + $0x968] sm:$0xff]
    %v1128 = vld [vmem:[#allocation2 + $0x970] sm:$0xff]
    %v1129 = vld [vmem:[#allocation2 + $0x978] sm:$0xff]
    %v1130 = vld [vmem:[#allocation2 + $0x980] sm:$0xff]
    %v1131 = vld [vmem:[#allocation2 + $0x988] sm:$0xff]
    %v1132 = vld [vmem:[#allocation2 + $0x990] sm:$0xff]
    %v1133 = vld [vmem:[#allocation2 + $0x998] sm:$0xff]
    %v1134 = vld [vmem:[#allocation2 + $0x9a0] sm:$0xff]
    %v1135 = vld [vmem:[#allocation2 + $0x9a8] sm:$0xff]
    %v1136 = vld [vmem:[#allocation2 + $0x9b0] sm:$0xff]
    %v1137 = vld [vmem:[#allocation2 + $0x9b8] sm:$0xff]
    %v1138 = vld [vmem:[#allocation2 + $0x9c0] sm:$0xff]
    %v1139 = vld [vmem:[#allocation2 + $0x9c8] sm:$0xff]
    %v1140 = vld [vmem:[#allocation2 + $0x9d0] sm:$0xff]
    %v1141 = vld [vmem:[#allocation2 + $0x9d8] sm:$0xff]
    %v1142 = vld [vmem:[#allocation2 + $0x9e0] sm:$0xff]
    %v1143 = vld [vmem:[#allocation2 + $0x9e8] sm:$0xff]
    %v1144 = vld [vmem:[#allocation2 + $0x9f0] sm:$0xff]
    %v1145 = vld [vmem:[#allocation2 + $0x9f8] sm:$0xff]
    %v1146 = vld [vmem:[#allocation2 + $0xa00] sm:$0xff]
    %v1147 = vld [vmem:[#allocation2 + $0xa08] sm:$0xff]
    %v1148 = vld [vmem:[#allocation2 + $0xa10] sm:$0xff]
    %v1149 = vld [vmem:[#allocation2 + $0xa18] sm:$0xff]
    %v1150 = vld [vmem:[#allocation2 + $0xa20] sm:$0xff]
    %v1151 = vld [vmem:[#allocation2 + $0xa28] sm:$0xff]
    %v1152 = vld [vmem:[#allocation2 + $0xa30] sm:$0xff]
    %v1153 = vld [vmem:[#allocation2 + $0xa38] sm:$0xff]
    %v1154 = vld [vmem:[#allocation2 + $0xa40] sm:$0xff]
    %v1155 = vld [vmem:[#allocation2 + $0xa48] sm:$0xff]
    %v1156 = vld [vmem:[#allocation2 + $0xa50] sm:$0xff]
    %v1157 = vld [vmem:[#allocation2 + $0xa58] sm:$0xff]
    %v1158 = vld [vmem:[#allocation2 + $0xa60] sm:$0xff]
    %v1159 = vld [vmem:[#allocation2 + $0xa68] sm:$0xff]
    %v1160 = vld [vmem:[#allocation2 + $0xa70] sm:$0xff]
    %v1161 = vld [vmem:[#allocation2 + $0xa78] sm:$0xff]
    %v1162 = vld [vmem:[#allocation2 + $0xa80] sm:$0xff]
    %v1163 = vld [vmem:[#allocation2 + $0xa88] sm:$0xff]
    %v1164 = vld [vmem:[#allocation2 + $0xa90] sm:$0xff]
    %v1165 = vld [vmem:[#allocation2 + $0xa98] sm:$0xff]
    %v1166 = vld [vmem:[#allocation2 + $0xaa0] sm:$0xff]
    %v1167 = vld [vmem:[#allocation2 + $0xaa8] sm:$0xff]
    %v1168 = vld [vmem:[#allocation2 + $0xab0] sm:$0xff]
    %v1169 = vld [vmem:[#allocation2 + $0xab8] sm:$0xff]
    %v1170 = vld [vmem:[#allocation2 + $0xac0] sm:$0xff]
    %v1171 = vld [vmem:[#allocation2 + $0xac8] sm:$0xff]
    %v1172 = vld [vmem:[#allocation2 + $0xad0] sm:$0xff]
    %v1173 = vld [vmem:[#allocation2 + $0xad8] sm:$0xff]
    %v1174 = vld [vmem:[#allocation2 + $0xae0] sm:$0xff]
    %v1175 = vld [vmem:[#allocation2 + $0xae8] sm:$0xff]
    %v1176 = vld [vmem:[#allocation2 + $0xaf0] sm:$0xff]
    %v1177 = vld [vmem:[#allocation2 + $0xaf8] sm:$0xff]
    %v1178 = vld [vmem:[#allocation2 + $0xb00] sm:$0xff]
    %v1179 = vld [vmem:[#allocation2 + $0xb08] sm:$0xff]
    %v1180 = vld [vmem:[#allocation2 + $0xb10] sm:$0xff]
    %v1181 = vld [vmem:[#allocation2 + $0xb18] sm:$0xff]
    %v1182 = vld [vmem:[#allocation2 + $0xb20] sm:$0xff]
    %v1183 = vld [vmem:[#allocation2 + $0xb28] sm:$0xff]
    %v1184 = vld [vmem:[#allocation2 + $0xb30] sm:$0xff]
    %v1185 = vld [vmem:[#allocation2 + $0xb38] sm:$0xff]
    %v1186 = vld [vmem:[#allocation2 + $0xb40] sm:$0xff]
    %v1187 = vld [vmem:[#allocation2 + $0xb48] sm:$0xff]
    %v1188 = vld [vmem:[#allocation2 + $0xb50] sm:$0xff]
    %v1189 = vld [vmem:[#allocation2 + $0xb58] sm:$0xff]
    %v1190 = vld [vmem:[#allocation2 + $0xb60] sm:$0xff]
    %v1191 = vld [vmem:[#allocation2 + $0xb68] sm:$0xff]
    %v1192 = vld [vmem:[#allocation2 + $0xb70] sm:$0xff]
    %v1193 = vld [vmem:[#allocation2 + $0xb78] sm:$0xff]
    %v1194 = vld [vmem:[#allocation2 + $0xb80] sm:$0xff]
    %v1195 = vld [vmem:[#allocation2 + $0xb88] sm:$0xff]
    %v1196 = vld [vmem:[#allocation2 + $0xb90] sm:$0xff]
    %v1197 = vld [vmem:[#allocation2 + $0xb98] sm:$0xff]
    %v1198 = vld [vmem:[#allocation2 + $0xba0] sm:$0xff]
    %v1199 = vld [vmem:[#allocation2 + $0xba8] sm:$0xff]
    %v1200 = vld [vmem:[#allocation2 + $0xbb0] sm:$0xff]
    %v1201 = vld [vmem:[#allocation2 + $0xbb8] sm:$0xff]
    %v1202 = vld [vmem:[#allocation2 + $0xbc0] sm:$0xff]
    %v1203 = vld [vmem:[#allocation2 + $0xbc8] sm:$0xff]
    %v1204 = vld [vmem:[#allocation2 + $0xbd0] sm:$0xff]
    %v1205 = vld [vmem:[#allocation2 + $0xbd8] sm:$0xff]
    %v1206 = vld [vmem:[#allocation2 + $0xbe0] sm:$0xff]
    %v1207 = vld [vmem:[#allocation2 + $0xbe8] sm:$0xff]
    %v1208 = vld [vmem:[#allocation2 + $0xbf0] sm:$0xff]
    %v1209 = vld [vmem:[#allocation2 + $0xbf8] sm:$0xff]
    %v1210 = vld [vmem:[#allocation2 + $0xc00] sm:$0xff]
    %v1211 = vld [vmem:[#allocation2 + $0xc08] sm:$0xff]
    %v1212 = vld [vmem:[#allocation2 + $0xc10] sm:$0xff]
    %v1213 = vld [vmem:[#allocation2 + $0xc18] sm:$0xff]
    %v1214 = vld [vmem:[#allocation2 + $0xc20] sm:$0xff]
    %v1215 = vld [vmem:[#allocation2 + $0xc28] sm:$0xff]
    %v1216 = vld [vmem:[#allocation2 + $0xc30] sm:$0xff]
    %v1217 = vld [vmem:[#allocation2 + $0xc38] sm:$0xff]
    %v1218 = vld [vmem:[#allocation2 + $0xc40] sm:$0xff]
    %v1219 = vld [vmem:[#allocation2 + $0xc48] sm:$0xff]
    %v1220 = vld [vmem:[#allocation2 + $0xc50] sm:$0xff]
    %v1221 = vld [vmem:[#allocation2 + $0xc58] sm:$0xff]
    %v1222 = vld [vmem:[#allocation2 + $0xc60] sm:$0xff]
    %v1223 = vld [vmem:[#allocation2 + $0xc68] sm:$0xff]
    %v1224 = vld [vmem:[#allocation2 + $0xc70] sm:$0xff]
    %v1225 = vld [vmem:[#allocation2 + $0xc78] sm:$0xff]
    %v1226 = vld [vmem:[#allocation2 + $0xc80] sm:$0xff]
    %v1227 = vld [vmem:[#allocation2 + $0xc88] sm:$0xff]
    %v1228 = vld [vmem:[#allocation2 + $0xc90] sm:$0xff]
    %v1229 = vld [vmem:[#allocation2 + $0xc98] sm:$0xff]
    %v1230 = vld [vmem:[#allocation2 + $0xca0] sm:$0xff]
    %v1231 = vld [vmem:[#allocation2 + $0xca8] sm:$0xff]
    %v1232 = vld [vmem:[#allocation2 + $0xcb0] sm:$0xff]
    %v1233 = vld [vmem:[#allocation2 + $0xcb8] sm:$0xff]
    %v1234 = vld [vmem:[#allocation2 + $0xcc0] sm:$0xff]
    %v1235 = vld [vmem:[#allocation2 + $0xcc8] sm:$0xff]
    %v1236 = vld [vmem:[#allocation2 + $0xcd0] sm:$0xff]
    %v1237 = vld [vmem:[#allocation2 + $0xcd8] sm:$0xff]
    %v1238 = vld [vmem:[#allocation2 + $0xce0] sm:$0xff]
    %v1239 = vld [vmem:[#allocation2 + $0xce8] sm:$0xff]
    %v1240 = vld [vmem:[#allocation2 + $0xcf0] sm:$0xff]
    %v1241 = vld [vmem:[#allocation2 + $0xcf8] sm:$0xff]
    %v1242 = vld [vmem:[#allocation2 + $0xd00] sm:$0xff]
    %v1243 = vld [vmem:[#allocation2 + $0xd08] sm:$0xff]
    %v1244 = vld [vmem:[#allocation2 + $0xd10] sm:$0xff]
    %v1245 = vld [vmem:[#allocation2 + $0xd18] sm:$0xff]
    %v1246 = vld [vmem:[#allocation2 + $0xd20] sm:$0xff]
    %v1247 = vld [vmem:[#allocation2 + $0xd28] sm:$0xff]
    %v1248 = vld [vmem:[#allocation2 + $0xd30] sm:$0xff]
    %v1249 = vld [vmem:[#allocation2 + $0xd38] sm:$0xff]
    %v1250 = vld [vmem:[#allocation2 + $0xd40] sm:$0xff]
    %v1251 = vld [vmem:[#allocation2 + $0xd48] sm:$0xff]
    %v1252 = vld [vmem:[#allocation2 + $0xd50] sm:$0xff]
    %v1253 = vld [vmem:[#allocation2 + $0xd58] sm:$0xff]
    %v1254 = vld [vmem:[#allocation2 + $0xd60] sm:$0xff]
    %v1255 = vld [vmem:[#allocation2 + $0xd68] sm:$0xff]
    %v1256 = vld [vmem:[#allocation2 + $0xd70] sm:$0xff]
    %v1257 = vld [vmem:[#allocation2 + $0xd78] sm:$0xff]
    %v1258 = vld [vmem:[#allocation2 + $0xd80] sm:$0xff]
    %v1259 = vld [vmem:[#allocation2 + $0xd88] sm:$0xff]
    %v1260 = vld [vmem:[#allocation2 + $0xd90] sm:$0xff]
    %v1261 = vld [vmem:[#allocation2 + $0xd98] sm:$0xff]
    %v1262 = vld [vmem:[#allocation2 + $0xda0] sm:$0xff]
    %v1263 = vld [vmem:[#allocation2 + $0xda8] sm:$0xff]
    %v1264 = vld [vmem:[#allocation2 + $0xdb0] sm:$0xff]
    %v1265 = vld [vmem:[#allocation2 + $0xdb8] sm:$0xff]
    %v1266 = vld [vmem:[#allocation2 + $0xdc0] sm:$0xff]
    %v1267 = vld [vmem:[#allocation2 + $0xdc8] sm:$0xff]
    %v1268 = vld [vmem:[#allocation2 + $0xdd0] sm:$0xff]
    %v1269 = vld [vmem:[#allocation2 + $0xdd8] sm:$0xff]
    %v1270 = vld [vmem:[#allocation2 + $0xde0] sm:$0xff]
    %v1271 = vld [vmem:[#allocation2 + $0xde8] sm:$0xff]
    %v1272 = vld [vmem:[#allocation2 + $0xdf0] sm:$0xff]
    %v1273 = vld [vmem:[#allocation2 + $0xdf8] sm:$0xff]
    %v1274 = vld [vmem:[#allocation2 + $0xe00] sm:$0xff]
    %v1275 = vld [vmem:[#allocation2 + $0xe08] sm:$0xff]
    %v1276 = vld [vmem:[#allocation2 + $0xe10] sm:$0xff]
    %v1277 = vld [vmem:[#allocation2 + $0xe18] sm:$0xff]
    %v1278 = vld [vmem:[#allocation2 + $0xe20] sm:$0xff]
    %v1279 = vld [vmem:[#allocation2 + $0xe28] sm:$0xff]
    %v1280 = vld [vmem:[#allocation2 + $0xe30] sm:$0xff]
    %v1281 = vld [vmem:[#allocation2 + $0xe38] sm:$0xff]
    %v1282 = vld [vmem:[#allocation2 + $0xe40] sm:$0xff]
    %v1283 = vld [vmem:[#allocation2 + $0xe48] sm:$0xff]
    %v1284 = vld [vmem:[#allocation2 + $0xe50] sm:$0xff]
    %v1285 = vld [vmem:[#allocation2 + $0xe58] sm:$0xff]
    %v1286 = vld [vmem:[#allocation2 + $0xe60] sm:$0xff]
    %v1287 = vld [vmem:[#allocation2 + $0xe68] sm:$0xff]
    %v1288 = vld [vmem:[#allocation2 + $0xe70] sm:$0xff]
    %v1289 = vld [vmem:[#allocation2 + $0xe78] sm:$0xff]
    %v1290 = vld [vmem:[#allocation2 + $0xe80] sm:$0xff]
    %v1291 = vld [vmem:[#allocation2 + $0xe88] sm:$0xff]
    %v1292 = vld [vmem:[#allocation2 + $0xe90] sm:$0xff]
    %v1293 = vld [vmem:[#allocation2 + $0xe98] sm:$0xff]
    %v1294 = vld [vmem:[#allocation2 + $0xea0] sm:$0xff]
    %v1295 = vld [vmem:[#allocation2 + $0xea8] sm:$0xff]
    %v1296 = vld [vmem:[#allocation2 + $0xeb0] sm:$0xff]
    %v1297 = vld [vmem:[#allocation2 + $0xeb8] sm:$0xff]
    %v1298 = vld [vmem:[#allocation2 + $0xec0] sm:$0xff]
    %v1299 = vld [vmem:[#allocation2 + $0xec8] sm:$0xff]
    %v1300 = vld [vmem:[#allocation2 + $0xed0] sm:$0xff]
    %v1301 = vld [vmem:[#allocation2 + $0xed8] sm:$0xff]
    %v1302 = vld [vmem:[#allocation2 + $0xee0] sm:$0xff]
    %v1303 = vld [vmem:[#allocation2 + $0xee8] sm:$0xff]
    %v1304 = vld [vmem:[#allocation2 + $0xef0] sm:$0xff]
    %v1305 = vld [vmem:[#allocation2 + $0xef8] sm:$0xff]
    %v1306 = vld [vmem:[#allocation2 + $0xf00] sm:$0xff]
    %v1307 = vld [vmem:[#allocation2 + $0xf08] sm:$0xff]
    %v1308 = vld [vmem:[#allocation2 + $0xf10] sm:$0xff]
    %v1309 = vld [vmem:[#allocation2 + $0xf18] sm:$0xff]
    %v1310 = vld [vmem:[#allocation2 + $0xf20] sm:$0xff]
    %v1311 = vld [vmem:[#allocation2 + $0xf28] sm:$0xff]
    %v1312 = vld [vmem:[#allocation2 + $0xf30] sm:$0xff]
    %v1313 = vld [vmem:[#allocation2 + $0xf38] sm:$0xff]
    %v1314 = vld [vmem:[#allocation2 + $0xf40] sm:$0xff]
    %v1315 = vld [vmem:[#allocation2 + $0xf48] sm:$0xff]
    %v1316 = vld [vmem:[#allocation2 + $0xf50] sm:$0xff]
    %v1317 = vld [vmem:[#allocation2 + $0xf58] sm:$0xff]
    %v1318 = vld [vmem:[#allocation2 + $0xf60] sm:$0xff]
    %v1319 = vld [vmem:[#allocation2 + $0xf68] sm:$0xff]
    %v1320 = vld [vmem:[#allocation2 + $0xf70] sm:$0xff]
    %v1321 = vld [vmem:[#allocation2 + $0xf78] sm:$0xff]
    %v1322 = vld [vmem:[#allocation2 + $0xf80] sm:$0xff]
    %v1323 = vld [vmem:[#allocation2 + $0xf88] sm:$0xff]
    %v1324 = vld [vmem:[#allocation2 + $0xf90] sm:$0xff]
    %v1325 = vld [vmem:[#allocation2 + $0xf98] sm:$0xff]
    %v1326 = vld [vmem:[#allocation2 + $0xfa0] sm:$0xff]
    %v1327 = vld [vmem:[#allocation2 + $0xfa8] sm:$0xff]
    %v1328 = vld [vmem:[#allocation2 + $0xfb0] sm:$0xff]
    %v1329 = vld [vmem:[#allocation2 + $0xfb8] sm:$0xff]
    %v1330 = vld [vmem:[#allocation2 + $0xfc0] sm:$0xff]
    %v1331 = vld [vmem:[#allocation2 + $0xfc8] sm:$0xff]
    %v1332 = vld [vmem:[#allocation2 + $0xfd0] sm:$0xff]
    %v1333 = vld [vmem:[#allocation2 + $0xfd8] sm:$0xff]
    %v1334 = vld [vmem:[#allocation2 + $0xfe0] sm:$0xff]
    %v1335 = vld [vmem:[#allocation2 + $0xfe8] sm:$0xff]
    %v1336 = vld [vmem:[#allocation2 + $0xff0] sm:$0xff]
    %v1337 = vld [vmem:[#allocation2 + $0xff8] sm:$0xff]
    %v1338 = vld [vmem:[#allocation2 + $0x1000] sm:$0xff]
    %v1339 = vld [vmem:[#allocation2 + $0x1008] sm:$0xff]
    %v1340 = vld [vmem:[#allocation2 + $0x1010] sm:$0xff]
    %v1341 = vld [vmem:[#allocation2 + $0x1018] sm:$0xff]
    %v1342 = vld [vmem:[#allocation2 + $0x1020] sm:$0xff]
    %v1343 = vld [vmem:[#allocation2 + $0x1028] sm:$0xff]
    %v1344 = vld [vmem:[#allocation2 + $0x1030] sm:$0xff]
    %v1345 = vld [vmem:[#allocation2 + $0x1038] sm:$0xff]
    %v1346 = vld [vmem:[#allocation2 + $0x1040] sm:$0xff]
    %v1347 = vld [vmem:[#allocation2 + $0x1048] sm:$0xff]
    %v1348 = vld [vmem:[#allocation2 + $0x1050] sm:$0xff]
    %v1349 = vld [vmem:[#allocation2 + $0x1058] sm:$0xff]
    %v1350 = vld [vmem:[#allocation2 + $0x1060] sm:$0xff]
    %v1351 = vld [vmem:[#allocation2 + $0x1068] sm:$0xff]
    %v1352 = vld [vmem:[#allocation2 + $0x1070] sm:$0xff]
    %v1353 = vld [vmem:[#allocation2 + $0x1078] sm:$0xff]
    %v1354 = vld [vmem:[#allocation2 + $0x1080] sm:$0xff]
    %v1355 = vld [vmem:[#allocation2 + $0x1088] sm:$0xff]
    %v1356 = vld [vmem:[#allocation2 + $0x1090] sm:$0xff]
    %v1357 = vld [vmem:[#allocation2 + $0x1098] sm:$0xff]
    %v1358 = vld [vmem:[#allocation2 + $0x10a0] sm:$0xff]
    %v1359 = vld [vmem:[#allocation2 + $0x10a8] sm:$0xff]
    %v1360 = vld [vmem:[#allocation2 + $0x10b0] sm:$0xff]
    %v1361 = vld [vmem:[#allocation2 + $0x10b8] sm:$0xff]
    %v1362 = vld [vmem:[#allocation2 + $0x10c0] sm:$0xff]
    %v1363 = vld [vmem:[#allocation2 + $0x10c8] sm:$0xff]
    %v1364 = vld [vmem:[#allocation2 + $0x10d0] sm:$0xff]
    %v1365 = vld [vmem:[#allocation2 + $0x10d8] sm:$0xff]
    %v1366 = vld [vmem:[#allocation2 + $0x10e0] sm:$0xff]
    %v1367 = vld [vmem:[#allocation2 + $0x10e8] sm:$0xff]
    %v1368 = vld [vmem:[#allocation2 + $0x10f0] sm:$0xff]
    %v1369 = vld [vmem:[#allocation2 + $0x10f8] sm:$0xff]
    %v1370 = vld [vmem:[#allocation2 + $0x1100] sm:$0xff]
    %v1371 = vld [vmem:[#allocation2 + $0x1108] sm:$0xff]
    %v1372 = vld [vmem:[#allocation2 + $0x1110] sm:$0xff]
    %v1373 = vld [vmem:[#allocation2 + $0x1118] sm:$0xff]
    %v1374 = vld [vmem:[#allocation2 + $0x1120] sm:$0xff]
    %v1375 = vld [vmem:[#allocation2 + $0x1128] sm:$0xff]
    %v1376 = vld [vmem:[#allocation2 + $0x1130] sm:$0xff]
    %v1377 = vld [vmem:[#allocation2 + $0x1138] sm:$0xff]
    %v1378 = vld [vmem:[#allocation2 + $0x1140] sm:$0xff]
    %v1379 = vld [vmem:[#allocation2 + $0x1148] sm:$0xff]
    %v1380 = vld [vmem:[#allocation2 + $0x1150] sm:$0xff]
    %v1381 = vld [vmem:[#allocation2 + $0x1158] sm:$0xff]
    %v1382 = vld [vmem:[#allocation2 + $0x1160] sm:$0xff]
    %v1383 = vld [vmem:[#allocation2 + $0x1168] sm:$0xff]
    %v1384 = vld [vmem:[#allocation2 + $0x1170] sm:$0xff]
    %v1385 = vld [vmem:[#allocation2 + $0x1178] sm:$0xff]
    %v1386 = vld [vmem:[#allocation2 + $0x1180] sm:$0xff]
    %v1387 = vld [vmem:[#allocation2 + $0x1188] sm:$0xff]
    %v1388 = vld [vmem:[#allocation2 + $0x1190] sm:$0xff]
    %v1389 = vld [vmem:[#allocation2 + $0x1198] sm:$0xff]
    %v1390 = vld [vmem:[#allocation2 + $0x11a0] sm:$0xff]
    %v1391 = vld [vmem:[#allocation2 + $0x11a8] sm:$0xff]
    %v1392 = vld [vmem:[#allocation2 + $0x11b0] sm:$0xff]
    %v1393 = vld [vmem:[#allocation2 + $0x11b8] sm:$0xff]
    %v1394 = vld [vmem:[#allocation2 + $0x11c0] sm:$0xff]
    %v1395 = vld [vmem:[#allocation2 + $0x11c8] sm:$0xff]
    %v1396 = vld [vmem:[#allocation2 + $0x11d0] sm:$0xff]
    %v1397 = vld [vmem:[#allocation2 + $0x11d8] sm:$0xff]
    %v1398 = vld [vmem:[#allocation2 + $0x11e0] sm:$0xff]
    %v1399 = vld [vmem:[#allocation2 + $0x11e8] sm:$0xff]
    %v1400 = vld [vmem:[#allocation2 + $0x11f0] sm:$0xff]
    %v1401 = vld [vmem:[#allocation2 + $0x11f8] sm:$0xff]
    %v1402 = vld [vmem:[#allocation2 + $0x1200] sm:$0xff]
    %v1403 = vld [vmem:[#allocation2 + $0x1208] sm:$0xff]
    %v1404 = vld [vmem:[#allocation2 + $0x1210] sm:$0xff]
    %v1405 = vld [vmem:[#allocation2 + $0x1218] sm:$0xff]
    %v1406 = vld [vmem:[#allocation2 + $0x1220] sm:$0xff]
    %v1407 = vld [vmem:[#allocation2 + $0x1228] sm:$0xff]
    %v1408 = vld [vmem:[#allocation2 + $0x1230] sm:$0xff]
    %v1409 = vld [vmem:[#allocation2 + $0x1238] sm:$0xff]
    %v1410 = vld [vmem:[#allocation2 + $0x1240] sm:$0xff]
    %v1411 = vld [vmem:[#allocation2 + $0x1248] sm:$0xff]
    %v1412 = vld [vmem:[#allocation2 + $0x1250] sm:$0xff]
    %v1413 = vld [vmem:[#allocation2 + $0x1258] sm:$0xff]
    %v1414 = vld [vmem:[#allocation2 + $0x1260] sm:$0xff]
    %v1415 = vld [vmem:[#allocation2 + $0x1268] sm:$0xff]
    %v1416 = vld [vmem:[#allocation2 + $0x1270] sm:$0xff]
    %v1417 = vld [vmem:[#allocation2 + $0x1278] sm:$0xff]
    %v1418 = vld [vmem:[#allocation2 + $0x1280] sm:$0xff]
    %v1419 = vld [vmem:[#allocation2 + $0x1288] sm:$0xff]
    %v1420 = vld [vmem:[#allocation2 + $0x1290] sm:$0xff]
    %v1421 = vld [vmem:[#allocation2 + $0x1298] sm:$0xff]
    %v1422 = vld [vmem:[#allocation2 + $0x12a0] sm:$0xff]
    %v1423 = vld [vmem:[#allocation2 + $0x12a8] sm:$0xff]
    %v1424 = vld [vmem:[#allocation2 + $0x12b0] sm:$0xff]
    %v1425 = vld [vmem:[#allocation2 + $0x12b8] sm:$0xff]
    %v1426 = vld [vmem:[#allocation2 + $0x12c0] sm:$0xff]
    %v1427 = vld [vmem:[#allocation2 + $0x12c8] sm:$0xff]
    %v1428 = vld [vmem:[#allocation2 + $0x12d0] sm:$0xff]
    %v1429 = vld [vmem:[#allocation2 + $0x12d8] sm:$0xff]
    %v1430 = vld [vmem:[#allocation2 + $0x12e0] sm:$0xff]
    %v1431 = vld [vmem:[#allocation2 + $0x12e8] sm:$0xff]
    %v1432 = vld [vmem:[#allocation2 + $0x12f0] sm:$0xff]
    %v1433 = vld [vmem:[#allocation2 + $0x12f8] sm:$0xff]
    %v1434 = vld [vmem:[#allocation2 + $0x1300] sm:$0xff]
    %v1435 = vld [vmem:[#allocation2 + $0x1308] sm:$0xff]
    %v1436 = vld [vmem:[#allocation2 + $0x1310] sm:$0xff]
    %v1437 = vld [vmem:[#allocation2 + $0x1318] sm:$0xff]
    %v1438 = vld [vmem:[#allocation2 + $0x1320] sm:$0xff]
    %v1439 = vld [vmem:[#allocation2 + $0x1328] sm:$0xff]
    %v1440 = vld [vmem:[#allocation2 + $0x1330] sm:$0xff]
    %v1441 = vld [vmem:[#allocation2 + $0x1338] sm:$0xff]
    %v1442 = vld [vmem:[#allocation2 + $0x1340] sm:$0xff]
    %v1443 = vld [vmem:[#allocation2 + $0x1348] sm:$0xff]
    %v1444 = vld [vmem:[#allocation2 + $0x1350] sm:$0xff]
    %v1445 = vld [vmem:[#allocation2 + $0x1358] sm:$0xff]
    %v1446 = vld [vmem:[#allocation2 + $0x1360] sm:$0xff]
    %v1447 = vld [vmem:[#allocation2 + $0x1368] sm:$0xff]
    %v1448 = vld [vmem:[#allocation2 + $0x1370] sm:$0xff]
    %v1449 = vld [vmem:[#allocation2 + $0x1378] sm:$0xff]
    %v1450 = vld [vmem:[#allocation2 + $0x1380] sm:$0xff]
    %v1451 = vld [vmem:[#allocation2 + $0x1388] sm:$0xff]
    %v1452 = vld [vmem:[#allocation2 + $0x1390] sm:$0xff]
    %v1453 = vld [vmem:[#allocation2 + $0x1398] sm:$0xff]
    %v1454 = vld [vmem:[#allocation2 + $0x13a0] sm:$0xff]
    %v1455 = vld [vmem:[#allocation2 + $0x13a8] sm:$0xff]
    %v1456 = vld [vmem:[#allocation2 + $0x13b0] sm:$0xff]
    %v1457 = vld [vmem:[#allocation2 + $0x13b8] sm:$0xff]
    %v1458 = vld [vmem:[#allocation2 + $0x13c0] sm:$0xff]
    %v1459 = vld [vmem:[#allocation2 + $0x13c8] sm:$0xff]
    %v1460 = vld [vmem:[#allocation2 + $0x13d0] sm:$0xff]
    %v1461 = vld [vmem:[#allocation2 + $0x13d8] sm:$0xff]
    %v1462 = vld [vmem:[#allocation2 + $0x13e0] sm:$0xff]
    %v1463 = vld [vmem:[#allocation2 + $0x13e8] sm:$0xff]
    %v1464 = vld [vmem:[#allocation2 + $0x13f0] sm:$0xff]
    %v1465 = vld [vmem:[#allocation2 + $0x13f8] sm:$0xff]
    %v1466 = vld [vmem:[#allocation2 + $0x1400] sm:$0xff]
    %v1467 = vld [vmem:[#allocation2 + $0x1408] sm:$0xff]
    %v1468 = vld [vmem:[#allocation2 + $0x1410] sm:$0xff]
    %v1469 = vld [vmem:[#allocation2 + $0x1418] sm:$0xff]
    %v1470 = vld [vmem:[#allocation2 + $0x1420] sm:$0xff]
    %v1471 = vld [vmem:[#allocation2 + $0x1428] sm:$0xff]
    %v1472 = vld [vmem:[#allocation2 + $0x1430] sm:$0xff]
    %v1473 = vld [vmem:[#allocation2 + $0x1438] sm:$0xff]
    %v1474 = vld [vmem:[#allocation2 + $0x1440] sm:$0xff]
    %v1475 = vld [vmem:[#allocation2 + $0x1448] sm:$0xff]
    %v1476 = vld [vmem:[#allocation2 + $0x1450] sm:$0xff]
    %v1477 = vld [vmem:[#allocation2 + $0x1458] sm:$0xff]
    %v1478 = vld [vmem:[#allocation2 + $0x1460] sm:$0xff]
    %v1479 = vld [vmem:[#allocation2 + $0x1468] sm:$0xff]
    %v1480 = vld [vmem:[#allocation2 + $0x1470] sm:$0xff]
    %v1481 = vld [vmem:[#allocation2 + $0x1478] sm:$0xff]
    %v1482 = vld [vmem:[#allocation2 + $0x1480] sm:$0xff]
    %v1483 = vld [vmem:[#allocation2 + $0x1488] sm:$0xff]
    %v1484 = vld [vmem:[#allocation2 + $0x1490] sm:$0xff]
    %v1485 = vld [vmem:[#allocation2 + $0x1498] sm:$0xff]
    %v1486 = vld [vmem:[#allocation2 + $0x14a0] sm:$0xff]
    %v1487 = vld [vmem:[#allocation2 + $0x14a8] sm:$0xff]
    %v1488 = vld [vmem:[#allocation2 + $0x14b0] sm:$0xff]
    %v1489 = vld [vmem:[#allocation2 + $0x14b8] sm:$0xff]
    %v1490 = vld [vmem:[#allocation2 + $0x14c0] sm:$0xff]
    %v1491 = vld [vmem:[#allocation2 + $0x14c8] sm:$0xff]
    %v1492 = vld [vmem:[#allocation2 + $0x14d0] sm:$0xff]
    %v1493 = vld [vmem:[#allocation2 + $0x14d8] sm:$0xff]
    %v1494 = vld [vmem:[#allocation2 + $0x14e0] sm:$0xff]
    %v1495 = vld [vmem:[#allocation2 + $0x14e8] sm:$0xff]
    %v1496 = vld [vmem:[#allocation2 + $0x14f0] sm:$0xff]
    %v1497 = vld [vmem:[#allocation2 + $0x14f8] sm:$0xff]
    %v1498 = vld [vmem:[#allocation2 + $0x1500] sm:$0xff]
    %v1499 = vld [vmem:[#allocation2 + $0x1508] sm:$0xff]
    %v1500 = vld [vmem:[#allocation2 + $0x1510] sm:$0xff]
    %v1501 = vld [vmem:[#allocation2 + $0x1518] sm:$0xff]
    %v1502 = vld [vmem:[#allocation2 + $0x1520] sm:$0xff]
    %v1503 = vld [vmem:[#allocation2 + $0x1528] sm:$0xff]
    %v1504 = vld [vmem:[#allocation2 + $0x1530] sm:$0xff]
    %v1505 = vld [vmem:[#allocation2 + $0x1538] sm:$0xff]
    %v1506 = vld [vmem:[#allocation2 + $0x1540] sm:$0xff]
    %v1507 = vld [vmem:[#allocation2 + $0x1548] sm:$0xff]
    %v1508 = vld [vmem:[#allocation2 + $0x1550] sm:$0xff]
    %v1509 = vld [vmem:[#allocation2 + $0x1558] sm:$0xff]
    %v1510 = vld [vmem:[#allocation2 + $0x1560] sm:$0xff]
    %v1511 = vld [vmem:[#allocation2 + $0x1568] sm:$0xff]
    %v1512 = vld [vmem:[#allocation2 + $0x1570] sm:$0xff]
    %v1513 = vld [vmem:[#allocation2 + $0x1578] sm:$0xff]
    %v1514 = vld [vmem:[#allocation2 + $0x1580] sm:$0xff]
    %v1515 = vld [vmem:[#allocation2 + $0x1588] sm:$0xff]
    %v1516 = vld [vmem:[#allocation2 + $0x1590] sm:$0xff]
    %v1517 = vld [vmem:[#allocation2 + $0x1598] sm:$0xff]
    %v1518 = vld [vmem:[#allocation2 + $0x15a0] sm:$0xff]
    %v1519 = vld [vmem:[#allocation2 + $0x15a8] sm:$0xff]
    %v1520 = vld [vmem:[#allocation2 + $0x15b0] sm:$0xff]
    %v1521 = vld [vmem:[#allocation2 + $0x15b8] sm:$0xff]
    %v1522 = vld [vmem:[#allocation2 + $0x15c0] sm:$0xff]
    %v1523 = vld [vmem:[#allocation2 + $0x15c8] sm:$0xff]
    %v1524 = vld [vmem:[#allocation2 + $0x15d0] sm:$0xff]
    %v1525 = vld [vmem:[#allocation2 + $0x15d8] sm:$0xff]
    %v1526 = vld [vmem:[#allocation2 + $0x15e0] sm:$0xff]
    %v1527 = vld [vmem:[#allocation2 + $0x15e8] sm:$0xff]
    %v1528 = vld [vmem:[#allocation2 + $0x15f0] sm:$0xff]
    %v1529 = vld [vmem:[#allocation2 + $0x15f8] sm:$0xff]
    %v1530 = vld [vmem:[#allocation2 + $0x1600] sm:$0xff]
    %v1531 = vld [vmem:[#allocation2 + $0x1608] sm:$0xff]
    %v1532 = vld [vmem:[#allocation2 + $0x1610] sm:$0xff]
    %v1533 = vld [vmem:[#allocation2 + $0x1618] sm:$0xff]
    %v1534 = vld [vmem:[#allocation2 + $0x1620] sm:$0xff]
    %v1535 = vld [vmem:[#allocation2 + $0x1628] sm:$0xff]
    %v1536 = vld [vmem:[#allocation2 + $0x1630] sm:$0xff]
    %v1537 = vld [vmem:[#allocation2 + $0x1638] sm:$0xff]
    %v1538 = vld [vmem:[#allocation2 + $0x1640] sm:$0xff]
    %v1539 = vld [vmem:[#allocation2 + $0x1648] sm:$0xff]
    %v1540 = vld [vmem:[#allocation2 + $0x1650] sm:$0xff]
    %v1541 = vld [vmem:[#allocation2 + $0x1658] sm:$0xff]
    %v1542 = vld [vmem:[#allocation2 + $0x1660] sm:$0xff]
    %v1543 = vld [vmem:[#allocation2 + $0x1668] sm:$0xff]
    %v1544 = vld [vmem:[#allocation2 + $0x1670] sm:$0xff]
    %v1545 = vld [vmem:[#allocation2 + $0x1678] sm:$0xff]
    %v1546 = vld [vmem:[#allocation2 + $0x1680] sm:$0xff]
    %v1547 = vld [vmem:[#allocation2 + $0x1688] sm:$0xff]
    %v1548 = vld [vmem:[#allocation2 + $0x1690] sm:$0xff]
    %v1549 = vld [vmem:[#allocation2 + $0x1698] sm:$0xff]
    %v1550 = vld [vmem:[#allocation2 + $0x16a0] sm:$0xff]
    %v1551 = vld [vmem:[#allocation2 + $0x16a8] sm:$0xff]
    %v1552 = vld [vmem:[#allocation2 + $0x16b0] sm:$0xff]
    %v1553 = vld [vmem:[#allocation2 + $0x16b8] sm:$0xff]
    %v1554 = vld [vmem:[#allocation2 + $0x16c0] sm:$0xff]
    %v1555 = vld [vmem:[#allocation2 + $0x16c8] sm:$0xff]
    %v1556 = vld [vmem:[#allocation2 + $0x16d0] sm:$0xff]
    %v1557 = vld [vmem:[#allocation2 + $0x16d8] sm:$0xff]
    %v1558 = vld [vmem:[#allocation2 + $0x16e0] sm:$0xff]
    %v1559 = vld [vmem:[#allocation2 + $0x16e8] sm:$0xff]
    %v1560 = vld [vmem:[#allocation2 + $0x16f0] sm:$0xff]
    %v1561 = vld [vmem:[#allocation2 + $0x16f8] sm:$0xff]
    %v1562 = vld [vmem:[#allocation2 + $0x1700] sm:$0xff]
    %v1563 = vld [vmem:[#allocation2 + $0x1708] sm:$0xff]
    %v1564 = vld [vmem:[#allocation2 + $0x1710] sm:$0xff]
    %v1565 = vld [vmem:[#allocation2 + $0x1718] sm:$0xff]
    %v1566 = vld [vmem:[#allocation2 + $0x1720] sm:$0xff]
    %v1567 = vld [vmem:[#allocation2 + $0x1728] sm:$0xff]
    %v1568 = vld [vmem:[#allocation2 + $0x1730] sm:$0xff]
    %v1569 = vld [vmem:[#allocation2 + $0x1738] sm:$0xff]
    %v1570 = vld [vmem:[#allocation2 + $0x1740] sm:$0xff]
    %v1571 = vld [vmem:[#allocation2 + $0x1748] sm:$0xff]
    %v1572 = vld [vmem:[#allocation2 + $0x1750] sm:$0xff]
    %v1573 = vld [vmem:[#allocation2 + $0x1758] sm:$0xff]
    %v1574 = vld [vmem:[#allocation2 + $0x1760] sm:$0xff]
    %v1575 = vld [vmem:[#allocation2 + $0x1768] sm:$0xff]
    %v1576 = vld [vmem:[#allocation2 + $0x1770] sm:$0xff]
    %v1577 = vld [vmem:[#allocation2 + $0x1778] sm:$0xff]
    %v1578 = vld [vmem:[#allocation2 + $0x1780] sm:$0xff]
    %v1579 = vld [vmem:[#allocation2 + $0x1788] sm:$0xff]
    %v1580 = vld [vmem:[#allocation2 + $0x1790] sm:$0xff]
    %v1581 = vld [vmem:[#allocation2 + $0x1798] sm:$0xff]
    %v1582 = vld [vmem:[#allocation2 + $0x17a0] sm:$0xff]
    %v1583 = vld [vmem:[#allocation2 + $0x17a8] sm:$0xff]
    %v1584 = vld [vmem:[#allocation2 + $0x17b0] sm:$0xff]
    %v1585 = vld [vmem:[#allocation2 + $0x17b8] sm:$0xff]
    %v1586 = vld [vmem:[#allocation2 + $0x17c0] sm:$0xff]
    %v1587 = vld [vmem:[#allocation2 + $0x17c8] sm:$0xff]
    %v1588 = vld [vmem:[#allocation2 + $0x17d0] sm:$0xff]
    %v1589 = vld [vmem:[#allocation2 + $0x17d8] sm:$0xff]
    %v1590 = vld [vmem:[#allocation2 + $0x17e0] sm:$0xff]
    %v1591 = vld [vmem:[#allocation2 + $0x17e8] sm:$0xff]
    %v1592 = vld [vmem:[#allocation2 + $0x17f0] sm:$0xff]
    %v1593 = vld [vmem:[#allocation2 + $0x17f8] sm:$0xff]
    %v1594 = vld [vmem:[#allocation2 + $0x1800] sm:$0xff]
    %v1595 = vld [vmem:[#allocation2 + $0x1808] sm:$0xff]
    %v1596 = vld [vmem:[#allocation2 + $0x1810] sm:$0xff]
    %v1597 = vld [vmem:[#allocation2 + $0x1818] sm:$0xff]
    %v1598 = vld [vmem:[#allocation2 + $0x1820] sm:$0xff]
    %v1599 = vld [vmem:[#allocation2 + $0x1828] sm:$0xff]
    %v1600 = vld [vmem:[#allocation2 + $0x1830] sm:$0xff]
    %v1601 = vld [vmem:[#allocation2 + $0x1838] sm:$0xff]
    %v1602 = vld [vmem:[#allocation2 + $0x1840] sm:$0xff]
    %v1603 = vld [vmem:[#allocation2 + $0x1848] sm:$0xff]
    %v1604 = vld [vmem:[#allocation2 + $0x1850] sm:$0xff]
    %v1605 = vld [vmem:[#allocation2 + $0x1858] sm:$0xff]
    %v1606 = vld [vmem:[#allocation2 + $0x1860] sm:$0xff]
    %v1607 = vld [vmem:[#allocation2 + $0x1868] sm:$0xff]
    %v1608 = vld [vmem:[#allocation2 + $0x1870] sm:$0xff]
    %v1609 = vld [vmem:[#allocation2 + $0x1878] sm:$0xff]
    %v1610 = vld [vmem:[#allocation2 + $0x1880] sm:$0xff]
    %v1611 = vld [vmem:[#allocation2 + $0x1888] sm:$0xff]
    %v1612 = vld [vmem:[#allocation2 + $0x1890] sm:$0xff]
    %v1613 = vld [vmem:[#allocation2 + $0x1898] sm:$0xff]
    %v1614 = vld [vmem:[#allocation2 + $0x18a0] sm:$0xff]
    %v1615 = vld [vmem:[#allocation2 + $0x18a8] sm:$0xff]
    %v1616 = vld [vmem:[#allocation2 + $0x18b0] sm:$0xff]
    %v1617 = vld [vmem:[#allocation2 + $0x18b8] sm:$0xff]
    %v1618 = vld [vmem:[#allocation2 + $0x18c0] sm:$0xff]
    %v1619 = vld [vmem:[#allocation2 + $0x18c8] sm:$0xff]
    %v1620 = vld [vmem:[#allocation2 + $0x18d0] sm:$0xff]
    %v1621 = vld [vmem:[#allocation2 + $0x18d8] sm:$0xff]
    %v1622 = vld [vmem:[#allocation2 + $0x18e0] sm:$0xff]
    %v1623 = vld [vmem:[#allocation2 + $0x18e8] sm:$0xff]
    %v1624 = vld [vmem:[#allocation2 + $0x18f0] sm:$0xff]
    %v1625 = vld [vmem:[#allocation2 + $0x18f8] sm:$0xff]
    %v1626 = vld [vmem:[#allocation2 + $0x1900] sm:$0xff]
    %v1627 = vld [vmem:[#allocation2 + $0x1908] sm:$0xff]
    %v1628 = vld [vmem:[#allocation2 + $0x1910] sm:$0xff]
    %v1629 = vld [vmem:[#allocation2 + $0x1918] sm:$0xff]
    %v1630 = vld [vmem:[#allocation2 + $0x1920] sm:$0xff]
    %v1631 = vld [vmem:[#allocation2 + $0x1928] sm:$0xff]
    %v1632 = vld [vmem:[#allocation2 + $0x1930] sm:$0xff]
    %v1633 = vld [vmem:[#allocation2 + $0x1938] sm:$0xff]
    %v1634 = vld [vmem:[#allocation2 + $0x1940] sm:$0xff]
    %v1635 = vld [vmem:[#allocation2 + $0x1948] sm:$0xff]
    %v1636 = vld [vmem:[#allocation2 + $0x1950] sm:$0xff]
    %v1637 = vld [vmem:[#allocation2 + $0x1958] sm:$0xff]
    %v1638 = vld [vmem:[#allocation2 + $0x1960] sm:$0xff]
    %v1639 = vld [vmem:[#allocation2 + $0x1968] sm:$0xff]
    %v1640 = vld [vmem:[#allocation2 + $0x1970] sm:$0xff]
    %v1641 = vld [vmem:[#allocation2 + $0x1978] sm:$0xff]
    %v1642 = vld [vmem:[#allocation2 + $0x1980] sm:$0xff]
    %v1643 = vld [vmem:[#allocation2 + $0x1988] sm:$0xff]
    %v1644 = vld [vmem:[#allocation2 + $0x1990] sm:$0xff]
    %v1645 = vld [vmem:[#allocation2 + $0x1998] sm:$0xff]
    %v1646 = vld [vmem:[#allocation2 + $0x19a0] sm:$0xff]
    %v1647 = vld [vmem:[#allocation2 + $0x19a8] sm:$0xff]
    %v1648 = vld [vmem:[#allocation2 + $0x19b0] sm:$0xff]
    %v1649 = vld [vmem:[#allocation2 + $0x19b8] sm:$0xff]
    %v1650 = vld [vmem:[#allocation2 + $0x19c0] sm:$0xff]
    %v1651 = vld [vmem:[#allocation2 + $0x19c8] sm:$0xff]
    %v1652 = vld [vmem:[#allocation2 + $0x19d0] sm:$0xff]
    %v1653 = vld [vmem:[#allocation2 + $0x19d8] sm:$0xff]
    %v1654 = vld [vmem:[#allocation2 + $0x19e0] sm:$0xff]
    %v1655 = vld [vmem:[#allocation2 + $0x19e8] sm:$0xff]
    %v1656 = vld [vmem:[#allocation2 + $0x19f0] sm:$0xff]
    %v1657 = vld [vmem:[#allocation2 + $0x19f8] sm:$0xff]
    %v1658 = vld [vmem:[#allocation2 + $0x1a00] sm:$0xff]
    %v1659 = vld [vmem:[#allocation2 + $0x1a08] sm:$0xff]
    %v1660 = vld [vmem:[#allocation2 + $0x1a10] sm:$0xff]
    %v1661 = vld [vmem:[#allocation2 + $0x1a18] sm:$0xff]
    %v1662 = vld [vmem:[#allocation2 + $0x1a20] sm:$0xff]
    %v1663 = vld [vmem:[#allocation2 + $0x1a28] sm:$0xff]
    %v1664 = vld [vmem:[#allocation2 + $0x1a30] sm:$0xff]
    %v1665 = vld [vmem:[#allocation2 + $0x1a38] sm:$0xff]
    %v1666 = vld [vmem:[#allocation2 + $0x1a40] sm:$0xff]
    %v1667 = vld [vmem:[#allocation2 + $0x1a48] sm:$0xff]
    %v1668 = vld [vmem:[#allocation2 + $0x1a50] sm:$0xff]
    %v1669 = vld [vmem:[#allocation2 + $0x1a58] sm:$0xff]
    %v1670 = vld [vmem:[#allocation2 + $0x1a60] sm:$0xff]
    %v1671 = vld [vmem:[#allocation2 + $0x1a68] sm:$0xff]
    %v1672 = vld [vmem:[#allocation2 + $0x1a70] sm:$0xff]
    %v1673 = vld [vmem:[#allocation2 + $0x1a78] sm:$0xff]
    %v1674 = vld [vmem:[#allocation2 + $0x1a80] sm:$0xff]
    %v1675 = vld [vmem:[#allocation2 + $0x1a88] sm:$0xff]
    %v1676 = vld [vmem:[#allocation2 + $0x1a90] sm:$0xff]
    %v1677 = vld [vmem:[#allocation2 + $0x1a98] sm:$0xff]
    %v1678 = vld [vmem:[#allocation2 + $0x1aa0] sm:$0xff]
    %v1679 = vld [vmem:[#allocation2 + $0x1aa8] sm:$0xff]
    %v1680 = vld [vmem:[#allocation2 + $0x1ab0] sm:$0xff]
    %v1681 = vld [vmem:[#allocation2 + $0x1ab8] sm:$0xff]
    %v1682 = vld [vmem:[#allocation2 + $0x1ac0] sm:$0xff]
    %v1683 = vld [vmem:[#allocation2 + $0x1ac8] sm:$0xff]
    %v1684 = vld [vmem:[#allocation2 + $0x1ad0] sm:$0xff]
    %v1685 = vld [vmem:[#allocation2 + $0x1ad8] sm:$0xff]
    %v1686 = vld [vmem:[#allocation2 + $0x1ae0] sm:$0xff]
    %v1687 = vld [vmem:[#allocation2 + $0x1ae8] sm:$0xff]
    %v1688 = vld [vmem:[#allocation2 + $0x1af0] sm:$0xff]
    %v1689 = vld [vmem:[#allocation2 + $0x1af8] sm:$0xff]
    %v1690 = vld [vmem:[#allocation2 + $0x1b00] sm:$0xff]
    %v1691 = vld [vmem:[#allocation2 + $0x1b08] sm:$0xff]
    %v1692 = vld [vmem:[#allocation2 + $0x1b10] sm:$0xff]
    %v1693 = vld [vmem:[#allocation2 + $0x1b18] sm:$0xff]
    %v1694 = vld [vmem:[#allocation2 + $0x1b20] sm:$0xff]
    %v1695 = vld [vmem:[#allocation2 + $0x1b28] sm:$0xff]
    %v1696 = vld [vmem:[#allocation2 + $0x1b30] sm:$0xff]
    %v1697 = vld [vmem:[#allocation2 + $0x1b38] sm:$0xff]
    %v1698 = vld [vmem:[#allocation2 + $0x1b40] sm:$0xff]
    %v1699 = vld [vmem:[#allocation2 + $0x1b48] sm:$0xff]
    %v1700 = vld [vmem:[#allocation2 + $0x1b50] sm:$0xff]
    %v1701 = vld [vmem:[#allocation2 + $0x1b58] sm:$0xff]
    %v1702 = vld [vmem:[#allocation2 + $0x1b60] sm:$0xff]
    %v1703 = vld [vmem:[#allocation2 + $0x1b68] sm:$0xff]
    %v1704 = vld [vmem:[#allocation2 + $0x1b70] sm:$0xff]
    %v1705 = vld [vmem:[#allocation2 + $0x1b78] sm:$0xff]
    %v1706 = vld [vmem:[#allocation2 + $0x1b80] sm:$0xff]
    %v1707 = vld [vmem:[#allocation2 + $0x1b88] sm:$0xff]
    %v1708 = vld [vmem:[#allocation2 + $0x1b90] sm:$0xff]
    %v1709 = vld [vmem:[#allocation2 + $0x1b98] sm:$0xff]
    %v1710 = vld [vmem:[#allocation2 + $0x1ba0] sm:$0xff]
    %v1711 = vld [vmem:[#allocation2 + $0x1ba8] sm:$0xff]
    %v1712 = vld [vmem:[#allocation2 + $0x1bb0] sm:$0xff]
    %v1713 = vld [vmem:[#allocation2 + $0x1bb8] sm:$0xff]
    %v1714 = vld [vmem:[#allocation2 + $0x1bc0] sm:$0xff]
    %v1715 = vld [vmem:[#allocation2 + $0x1bc8] sm:$0xff]
    %v1716 = vld [vmem:[#allocation2 + $0x1bd0] sm:$0xff]
    %v1717 = vld [vmem:[#allocation2 + $0x1bd8] sm:$0xff]
    %v1718 = vld [vmem:[#allocation2 + $0x1be0] sm:$0xff]
    %v1719 = vld [vmem:[#allocation2 + $0x1be8] sm:$0xff]
    %v1720 = vld [vmem:[#allocation2 + $0x1bf0] sm:$0xff]
    %v1721 = vld [vmem:[#allocation2 + $0x1bf8] sm:$0xff]
    %v1722 = vld [vmem:[#allocation2 + $0x1c00] sm:$0xff]
    %v1723 = vld [vmem:[#allocation2 + $0x1c08] sm:$0xff]
    %v1724 = vld [vmem:[#allocation2 + $0x1c10] sm:$0xff]
    %v1725 = vld [vmem:[#allocation2 + $0x1c18] sm:$0xff]
    %v1726 = vld [vmem:[#allocation2 + $0x1c20] sm:$0xff]
    %v1727 = vld [vmem:[#allocation2 + $0x1c28] sm:$0xff]
    %v1728 = vld [vmem:[#allocation2 + $0x1c30] sm:$0xff]
    %v1729 = vld [vmem:[#allocation2 + $0x1c38] sm:$0xff]
    %v1730 = vld [vmem:[#allocation2 + $0x1c40] sm:$0xff]
    %v1731 = vld [vmem:[#allocation2 + $0x1c48] sm:$0xff]
    %v1732 = vld [vmem:[#allocation2 + $0x1c50] sm:$0xff]
    %v1733 = vld [vmem:[#allocation2 + $0x1c58] sm:$0xff]
    %v1734 = vld [vmem:[#allocation2 + $0x1c60] sm:$0xff]
    %v1735 = vld [vmem:[#allocation2 + $0x1c68] sm:$0xff]
    %v1736 = vld [vmem:[#allocation2 + $0x1c70] sm:$0xff]
    %v1737 = vld [vmem:[#allocation2 + $0x1c78] sm:$0xff]
    %v1738 = vld [vmem:[#allocation2 + $0x1c80] sm:$0xff]
    %v1739 = vld [vmem:[#allocation2 + $0x1c88] sm:$0xff]
    %v1740 = vld [vmem:[#allocation2 + $0x1c90] sm:$0xff]
    %v1741 = vld [vmem:[#allocation2 + $0x1c98] sm:$0xff]
    %v1742 = vld [vmem:[#allocation2 + $0x1ca0] sm:$0xff]
    %v1743 = vld [vmem:[#allocation2 + $0x1ca8] sm:$0xff]
    %v1744 = vld [vmem:[#allocation2 + $0x1cb0] sm:$0xff]
    %v1745 = vld [vmem:[#allocation2 + $0x1cb8] sm:$0xff]
    %v1746 = vld [vmem:[#allocation2 + $0x1cc0] sm:$0xff]
    %v1747 = vld [vmem:[#allocation2 + $0x1cc8] sm:$0xff]
    %v1748 = vld [vmem:[#allocation2 + $0x1cd0] sm:$0xff]
    %v1749 = vld [vmem:[#allocation2 + $0x1cd8] sm:$0xff]
    %v1750 = vld [vmem:[#allocation2 + $0x1ce0] sm:$0xff]
    %v1751 = vld [vmem:[#allocation2 + $0x1ce8] sm:$0xff]
    %v1752 = vld [vmem:[#allocation2 + $0x1cf0] sm:$0xff]
    %v1753 = vld [vmem:[#allocation2 + $0x1cf8] sm:$0xff]
    %v1754 = vld [vmem:[#allocation2 + $0x1d00] sm:$0xff]
    %v1755 = vld [vmem:[#allocation2 + $0x1d08] sm:$0xff]
    %v1756 = vld [vmem:[#allocation2 + $0x1d10] sm:$0xff]
    %v1757 = vld [vmem:[#allocation2 + $0x1d18] sm:$0xff]
    %v1758 = vld [vmem:[#allocation2 + $0x1d20] sm:$0xff]
    %v1759 = vld [vmem:[#allocation2 + $0x1d28] sm:$0xff]
    %v1760 = vld [vmem:[#allocation2 + $0x1d30] sm:$0xff]
    %v1761 = vld [vmem:[#allocation2 + $0x1d38] sm:$0xff]
    %v1762 = vld [vmem:[#allocation2 + $0x1d40] sm:$0xff]
    %v1763 = vld [vmem:[#allocation2 + $0x1d48] sm:$0xff]
    %v1764 = vld [vmem:[#allocation2 + $0x1d50] sm:$0xff]
    %v1765 = vld [vmem:[#allocation2 + $0x1d58] sm:$0xff]
    %v1766 = vld [vmem:[#allocation2 + $0x1d60] sm:$0xff]
    %v1767 = vld [vmem:[#allocation2 + $0x1d68] sm:$0xff]
    %v1768 = vld [vmem:[#allocation2 + $0x1d70] sm:$0xff]
    %v1769 = vld [vmem:[#allocation2 + $0x1d78] sm:$0xff]
    %v1770 = vld [vmem:[#allocation2 + $0x1d80] sm:$0xff]
    %v1771 = vld [vmem:[#allocation2 + $0x1d88] sm:$0xff]
    %v1772 = vld [vmem:[#allocation2 + $0x1d90] sm:$0xff]
    %v1773 = vld [vmem:[#allocation2 + $0x1d98] sm:$0xff]
    %v1774 = vld [vmem:[#allocation2 + $0x1da0] sm:$0xff]
    %v1775 = vld [vmem:[#allocation2 + $0x1da8] sm:$0xff]
    %v1776 = vld [vmem:[#allocation2 + $0x1db0] sm:$0xff]
    %v1777 = vld [vmem:[#allocation2 + $0x1db8] sm:$0xff]
    %v1778 = vld [vmem:[#allocation2 + $0x1dc0] sm:$0xff]
    %v1779 = vld [vmem:[#allocation2 + $0x1dc8] sm:$0xff]
    %v1780 = vld [vmem:[#allocation2 + $0x1dd0] sm:$0xff]
    %v1781 = vld [vmem:[#allocation2 + $0x1dd8] sm:$0xff]
    %v1782 = vld [vmem:[#allocation2 + $0x1de0] sm:$0xff]
    %v1783 = vld [vmem:[#allocation2 + $0x1de8] sm:$0xff]
    %v1784 = vld [vmem:[#allocation2 + $0x1df0] sm:$0xff]
    %v1785 = vld [vmem:[#allocation2 + $0x1df8] sm:$0xff]
    %v1786 = vld [vmem:[#allocation2 + $0x1e00] sm:$0xff]
    %v1787 = vld [vmem:[#allocation2 + $0x1e08] sm:$0xff]
    %v1788 = vld [vmem:[#allocation2 + $0x1e10] sm:$0xff]
    %v1789 = vld [vmem:[#allocation2 + $0x1e18] sm:$0xff]
    %v1790 = vld [vmem:[#allocation2 + $0x1e20] sm:$0xff]
    %v1791 = vld [vmem:[#allocation2 + $0x1e28] sm:$0xff]
    %v1792 = vld [vmem:[#allocation2 + $0x1e30] sm:$0xff]
    %v1793 = vld [vmem:[#allocation2 + $0x1e38] sm:$0xff]
    %v1794 = vld [vmem:[#allocation2 + $0x1e40] sm:$0xff]
    %v1795 = vld [vmem:[#allocation2 + $0x1e48] sm:$0xff]
    %v1796 = vld [vmem:[#allocation2 + $0x1e50] sm:$0xff]
    %v1797 = vld [vmem:[#allocation2 + $0x1e58] sm:$0xff]
    %v1798 = vld [vmem:[#allocation2 + $0x1e60] sm:$0xff]
    %v1799 = vld [vmem:[#allocation2 + $0x1e68] sm:$0xff]
    %v1800 = vld [vmem:[#allocation2 + $0x1e70] sm:$0xff]
    %v1801 = vld [vmem:[#allocation2 + $0x1e78] sm:$0xff]
    %v1802 = vld [vmem:[#allocation2 + $0x1e80] sm:$0xff]
    %v1803 = vld [vmem:[#allocation2 + $0x1e88] sm:$0xff]
    %v1804 = vld [vmem:[#allocation2 + $0x1e90] sm:$0xff]
    %v1805 = vld [vmem:[#allocation2 + $0x1e98] sm:$0xff]
    %v1806 = vld [vmem:[#allocation2 + $0x1ea0] sm:$0xff]
    %v1807 = vld [vmem:[#allocation2 + $0x1ea8] sm:$0xff]
    %v1808 = vld [vmem:[#allocation2 + $0x1eb0] sm:$0xff]
    %v1809 = vld [vmem:[#allocation2 + $0x1eb8] sm:$0xff]
    %v1810 = vld [vmem:[#allocation2 + $0x1ec0] sm:$0xff]
    %v1811 = vld [vmem:[#allocation2 + $0x1ec8] sm:$0xff]
    %v1812 = vld [vmem:[#allocation2 + $0x1ed0] sm:$0xff]
    %v1813 = vld [vmem:[#allocation2 + $0x1ed8] sm:$0xff]
    %v1814 = vld [vmem:[#allocation2 + $0x1ee0] sm:$0xff]
    %v1815 = vld [vmem:[#allocation2 + $0x1ee8] sm:$0xff]
    %v1816 = vld [vmem:[#allocation2 + $0x1ef0] sm:$0xff]
    %v1817 = vld [vmem:[#allocation2 + $0x1ef8] sm:$0xff]
    %v1818 = vld [vmem:[#allocation2 + $0x1f00] sm:$0xff]
    %v1819 = vld [vmem:[#allocation2 + $0x1f08] sm:$0xff]
    %v1820 = vld [vmem:[#allocation2 + $0x1f10] sm:$0xff]
    %v1821 = vld [vmem:[#allocation2 + $0x1f18] sm:$0xff]
    %v1822 = vld [vmem:[#allocation2 + $0x1f20] sm:$0xff]
    %v1823 = vld [vmem:[#allocation2 + $0x1f28] sm:$0xff]
    %v1824 = vld [vmem:[#allocation2 + $0x1f30] sm:$0xff]
    %v1825 = vld [vmem:[#allocation2 + $0x1f38] sm:$0xff]
    %v1826 = vld [vmem:[#allocation2 + $0x1f40] sm:$0xff]
    %v1827 = vld [vmem:[#allocation2 + $0x1f48] sm:$0xff]
    %v1828 = vld [vmem:[#allocation2 + $0x1f50] sm:$0xff]
    %v1829 = vld [vmem:[#allocation2 + $0x1f58] sm:$0xff]
    %v1830 = vld [vmem:[#allocation2 + $0x1f60] sm:$0xff]
    %v1831 = vld [vmem:[#allocation2 + $0x1f68] sm:$0xff]
    %v1832 = vld [vmem:[#allocation2 + $0x1f70] sm:$0xff]
    %v1833 = vld [vmem:[#allocation2 + $0x1f78] sm:$0xff]
    %v1834 = vld [vmem:[#allocation2 + $0x1f80] sm:$0xff]
    %v1835 = vld [vmem:[#allocation2 + $0x1f88] sm:$0xff]
    %v1836 = vld [vmem:[#allocation2 + $0x1f90] sm:$0xff]
    %v1837 = vld [vmem:[#allocation2 + $0x1f98] sm:$0xff]
    %v1838 = vld [vmem:[#allocation2 + $0x1fa0] sm:$0xff]
    %v1839 = vld [vmem:[#allocation2 + $0x1fa8] sm:$0xff]
    %v1840 = vld [vmem:[#allocation2 + $0x1fb0] sm:$0xff]
    %v1841 = vld [vmem:[#allocation2 + $0x1fb8] sm:$0xff]
    %v1842 = vld [vmem:[#allocation2 + $0x1fc0] sm:$0xff]
    %v1843 = vld [vmem:[#allocation2 + $0x1fc8] sm:$0xff]
    %v1844 = vld [vmem:[#allocation2 + $0x1fd0] sm:$0xff]
    %v1845 = vld [vmem:[#allocation2 + $0x1fd8] sm:$0xff]
    %v1846 = vld [vmem:[#allocation2 + $0x1fe0] sm:$0xff]
    %v1847 = vld [vmem:[#allocation2 + $0x1fe8] sm:$0xff]
    %v1848 = vld [vmem:[#allocation2 + $0x1ff0] sm:$0xff]
    %v1849 = vld [vmem:[#allocation2 + $0x1ff8] sm:$0xff]
    %v1882 = vunpack.c.l.b16 %v794
    %v1883 = vunpack.c.l.b16 %v795
    %v1884 = vunpack.c.l.b16 %v796
    %v1885 = vunpack.c.l.b16 %v797
    %v1886 = vunpack.c.l.b16 %v798
    %v1887 = vunpack.c.l.b16 %v799
    %v1888 = vunpack.c.l.b16 %v800
    %v1889 = vunpack.c.l.b16 %v801
    %v1890 = vunpack.c.l.b16 %v802
    %v1891 = vunpack.c.l.b16 %v803
    %v1892 = vunpack.c.l.b16 %v804
    %v1893 = vunpack.c.l.b16 %v805
    %v1894 = vunpack.c.l.b16 %v806
    %v1895 = vunpack.c.l.b16 %v807
    %v1896 = vunpack.c.l.b16 %v808
    %v1897 = vunpack.c.l.b16 %v809
    %v1898 = vunpack.c.l.b16 %v810
    %v1899 = vunpack.c.l.b16 %v811
    %v1900 = vunpack.c.l.b16 %v812
    %v1901 = vunpack.c.l.b16 %v813
    %v1902 = vunpack.c.l.b16 %v814
    %v1903 = vunpack.c.l.b16 %v815
    %v1904 = vunpack.c.l.b16 %v816
    %v1905 = vunpack.c.l.b16 %v817
    %v1906 = vunpack.c.l.b16 %v818
    %v1907 = vunpack.c.l.b16 %v819
    %v1908 = vunpack.c.l.b16 %v820
    %v1909 = vunpack.c.l.b16 %v821
    %v1910 = vunpack.c.l.b16 %v822
    %v1911 = vunpack.c.l.b16 %v823
    %v1912 = vunpack.c.l.b16 %v824
    %v1913 = vunpack.c.l.b16 %v825
    %vm1914 = vcmask 1041409
    %v1915 = vsel %vm1914, %v1898, %v1882
    %v1916 = vsel %vm1914, %v1899, %v1883
    %v1917 = vsel %vm1914, %v1900, %v1884
    %v1918 = vsel %vm1914, %v1901, %v1885
    %v1919 = vsel %vm1914, %v1902, %v1886
    %v1920 = vsel %vm1914, %v1903, %v1887
    %v1921 = vsel %vm1914, %v1904, %v1888
    %v1922 = vsel %vm1914, %v1905, %v1889
    %v1923 = vsel %vm1914, %v1906, %v1890
    %v1924 = vsel %vm1914, %v1907, %v1891
    %v1925 = vsel %vm1914, %v1908, %v1892
    %v1926 = vsel %vm1914, %v1909, %v1893
    %v1927 = vsel %vm1914, %v1910, %v1894
    %v1928 = vsel %vm1914, %v1911, %v1895
    %v1929 = vsel %vm1914, %v1912, %v1896
    %v1930 = vsel %vm1914, %v1913, %v1897
    %v1931 = vpack.c.b16 %v1915, %v1915
    %v1932 = vpack.c.b16 %v1916, %v1916
    %v1933 = vpack.c.b16 %v1917, %v1917
    %v1934 = vpack.c.b16 %v1918, %v1918
    %v1935 = vpack.c.b16 %v1919, %v1919
    %v1936 = vpack.c.b16 %v1920, %v1920
    %v1937 = vpack.c.b16 %v1921, %v1921
    %v1938 = vpack.c.b16 %v1922, %v1922
    %v1939 = vpack.c.b16 %v1923, %v1923
    %v1940 = vpack.c.b16 %v1924, %v1924
    %v1941 = vpack.c.b16 %v1925, %v1925
    %v1942 = vpack.c.b16 %v1926, %v1926
    %v1943 = vpack.c.b16 %v1927, %v1927
    %v1944 = vpack.c.b16 %v1928, %v1928
    %v1945 = vpack.c.b16 %v1929, %v1929
    %v1946 = vpack.c.b16 %v1930, %v1930
    %v2987 = vunpack.c.l.b16 %v826
    %v2988 = vunpack.c.h.b16 %v826
    %v2989 = vunpack.c.l.b16 %v827
    %v2990 = vunpack.c.h.b16 %v827
    %v2991 = vunpack.c.l.b16 %v828
    %v2992 = vunpack.c.h.b16 %v828
    %v2993 = vunpack.c.l.b16 %v829
    %v2994 = vunpack.c.h.b16 %v829
    %v2995 = vunpack.c.l.b16 %v830
    %v2996 = vunpack.c.h.b16 %v830
    %v2997 = vunpack.c.l.b16 %v831
    %v2998 = vunpack.c.h.b16 %v831
    %v2999 = vunpack.c.l.b16 %v832
    %v3000 = vunpack.c.h.b16 %v832
    %v3001 = vunpack.c.l.b16 %v833
    %v3002 = vunpack.c.h.b16 %v833
    %v3003 = vunpack.c.l.b16 %v834
    %v3004 = vunpack.c.h.b16 %v834
    %v3005 = vunpack.c.l.b16 %v835
    %v3006 = vunpack.c.h.b16 %v835
    %v3007 = vunpack.c.l.b16 %v836
    %v3008 = vunpack.c.h.b16 %v836
    %v3009 = vunpack.c.l.b16 %v837
    %v3010 = vunpack.c.h.b16 %v837
    %v3011 = vunpack.c.l.b16 %v838
    %v3012 = vunpack.c.h.b16 %v838
    %v3013 = vunpack.c.l.b16 %v839
    %v3014 = vunpack.c.h.b16 %v839
    %v3015 = vunpack.c.l.b16 %v840
    %v3016 = vunpack.c.h.b16 %v840
    %v3017 = vunpack.c.l.b16 %v841
    %v3018 = vunpack.c.h.b16 %v841
    %v3019 = vunpack.c.l.b16 %v842
    %v3020 = vunpack.c.h.b16 %v842
    %v3021 = vunpack.c.l.b16 %v843
    %v3022 = vunpack.c.h.b16 %v843
    %v3023 = vunpack.c.l.b16 %v844
    %v3024 = vunpack.c.h.b16 %v844
    %v3025 = vunpack.c.l.b16 %v845
    %v3026 = vunpack.c.h.b16 %v845
    %v3027 = vunpack.c.l.b16 %v846
    %v3028 = vunpack.c.h.b16 %v846
    %v3029 = vunpack.c.l.b16 %v847
    %v3030 = vunpack.c.h.b16 %v847
    %v3031 = vunpack.c.l.b16 %v848
    %v3032 = vunpack.c.h.b16 %v848
    %v3033 = vunpack.c.l.b16 %v849
    %v3034 = vunpack.c.h.b16 %v849
    %v3035 = vunpack.c.l.b16 %v850
    %v3036 = vunpack.c.h.b16 %v850
    %v3037 = vunpack.c.l.b16 %v851
    %v3038 = vunpack.c.h.b16 %v851
    %v3039 = vunpack.c.l.b16 %v852
    %v3040 = vunpack.c.h.b16 %v852
    %v3041 = vunpack.c.l.b16 %v853
    %v3042 = vunpack.c.h.b16 %v853
    %v3043 = vunpack.c.l.b16 %v854
    %v3044 = vunpack.c.h.b16 %v854
    %v3045 = vunpack.c.l.b16 %v855
    %v3046 = vunpack.c.h.b16 %v855
    %v3047 = vunpack.c.l.b16 %v856
    %v3048 = vunpack.c.h.b16 %v856
    %v3049 = vunpack.c.l.b16 %v857
    %v3050 = vunpack.c.h.b16 %v857
    %v3051 = vunpack.c.l.b16 %v858
    %v3052 = vunpack.c.h.b16 %v858
    %v3053 = vunpack.c.l.b16 %v859
    %v3054 = vunpack.c.h.b16 %v859
    %v3055 = vunpack.c.l.b16 %v860
    %v3056 = vunpack.c.h.b16 %v860
    %v3057 = vunpack.c.l.b16 %v861
    %v3058 = vunpack.c.h.b16 %v861
    %v3059 = vunpack.c.l.b16 %v862
    %v3060 = vunpack.c.h.b16 %v862
    %v3061 = vunpack.c.l.b16 %v863
    %v3062 = vunpack.c.h.b16 %v863
    %v3063 = vunpack.c.l.b16 %v864
    %v3064 = vunpack.c.h.b16 %v864
    %v3065 = vunpack.c.l.b16 %v865
    %v3066 = vunpack.c.h.b16 %v865
    %v3067 = vunpack.c.l.b16 %v866
    %v3068 = vunpack.c.h.b16 %v866
    %v3069 = vunpack.c.l.b16 %v867
    %v3070 = vunpack.c.h.b16 %v867
    %v3071 = vunpack.c.l.b16 %v868
    %v3072 = vunpack.c.h.b16 %v868
    %v3073 = vunpack.c.l.b16 %v869
    %v3074 = vunpack.c.h.b16 %v869
    %v3075 = vunpack.c.l.b16 %v870
    %v3076 = vunpack.c.h.b16 %v870
    %v3077 = vunpack.c.l.b16 %v871
    %v3078 = vunpack.c.h.b16 %v871
    %v3079 = vunpack.c.l.b16 %v872
    %v3080 = vunpack.c.h.b16 %v872
    %v3081 = vunpack.c.l.b16 %v873
    %v3082 = vunpack.c.h.b16 %v873
    %v3083 = vunpack.c.l.b16 %v874
    %v3084 = vunpack.c.h.b16 %v874
    %v3085 = vunpack.c.l.b16 %v875
    %v3086 = vunpack.c.h.b16 %v875
    %v3087 = vunpack.c.l.b16 %v876
    %v3088 = vunpack.c.h.b16 %v876
    %v3089 = vunpack.c.l.b16 %v877
    %v3090 = vunpack.c.h.b16 %v877
    %v3091 = vunpack.c.l.b16 %v878
    %v3092 = vunpack.c.h.b16 %v878
    %v3093 = vunpack.c.l.b16 %v879
    %v3094 = vunpack.c.h.b16 %v879
    %v3095 = vunpack.c.l.b16 %v880
    %v3096 = vunpack.c.h.b16 %v880
    %v3097 = vunpack.c.l.b16 %v881
    %v3098 = vunpack.c.h.b16 %v881
    %v3099 = vunpack.c.l.b16 %v882
    %v3100 = vunpack.c.h.b16 %v882
    %v3101 = vunpack.c.l.b16 %v883
    %v3102 = vunpack.c.h.b16 %v883
    %v3103 = vunpack.c.l.b16 %v884
    %v3104 = vunpack.c.h.b16 %v884
    %v3105 = vunpack.c.l.b16 %v885
    %v3106 = vunpack.c.h.b16 %v885
    %v3107 = vunpack.c.l.b16 %v886
    %v3108 = vunpack.c.h.b16 %v886
    %v3109 = vunpack.c.l.b16 %v887
    %v3110 = vunpack.c.h.b16 %v887
    %v3111 = vunpack.c.l.b16 %v888
    %v3112 = vunpack.c.h.b16 %v888
    %v3113 = vunpack.c.l.b16 %v889
    %v3114 = vunpack.c.h.b16 %v889
    %v3115 = vunpack.c.l.b16 %v890
    %v3116 = vunpack.c.h.b16 %v890
    %v3117 = vunpack.c.l.b16 %v891
    %v3118 = vunpack.c.h.b16 %v891
    %v3119 = vunpack.c.l.b16 %v892
    %v3120 = vunpack.c.h.b16 %v892
    %v3121 = vunpack.c.l.b16 %v893
    %v3122 = vunpack.c.h.b16 %v893
    %v3123 = vunpack.c.l.b16 %v894
    %v3124 = vunpack.c.h.b16 %v894
    %v3125 = vunpack.c.l.b16 %v895
    %v3126 = vunpack.c.h.b16 %v895
    %v3127 = vunpack.c.l.b16 %v896
    %v3128 = vunpack.c.h.b16 %v896
    %v3129 = vunpack.c.l.b16 %v897
    %v3130 = vunpack.c.h.b16 %v897
    %v3131 = vunpack.c.l.b16 %v898
    %v3132 = vunpack.c.h.b16 %v898
    %v3133 = vunpack.c.l.b16 %v899
    %v3134 = vunpack.c.h.b16 %v899
    %v3135 = vunpack.c.l.b16 %v900
    %v3136 = vunpack.c.h.b16 %v900
    %v3137 = vunpack.c.l.b16 %v901
    %v3138 = vunpack.c.h.b16 %v901
    %v3139 = vunpack.c.l.b16 %v902
    %v3140 = vunpack.c.h.b16 %v902
    %v3141 = vunpack.c.l.b16 %v903
    %v3142 = vunpack.c.h.b16 %v903
    %v3143 = vunpack.c.l.b16 %v904
    %v3144 = vunpack.c.h.b16 %v904
    %v3145 = vunpack.c.l.b16 %v905
    %v3146 = vunpack.c.h.b16 %v905
    %v3147 = vunpack.c.l.b16 %v906
    %v3148 = vunpack.c.h.b16 %v906
    %v3149 = vunpack.c.l.b16 %v907
    %v3150 = vunpack.c.h.b16 %v907
    %v3151 = vunpack.c.l.b16 %v908
    %v3152 = vunpack.c.h.b16 %v908
    %v3153 = vunpack.c.l.b16 %v909
    %v3154 = vunpack.c.h.b16 %v909
    %v3155 = vunpack.c.l.b16 %v910
    %v3156 = vunpack.c.h.b16 %v910
    %v3157 = vunpack.c.l.b16 %v911
    %v3158 = vunpack.c.h.b16 %v911
    %v3159 = vunpack.c.l.b16 %v912
    %v3160 = vunpack.c.h.b16 %v912
    %v3161 = vunpack.c.l.b16 %v913
    %v3162 = vunpack.c.h.b16 %v913
    %v3163 = vunpack.c.l.b16 %v914
    %v3164 = vunpack.c.h.b16 %v914
    %v3165 = vunpack.c.l.b16 %v915
    %v3166 = vunpack.c.h.b16 %v915
    %v3167 = vunpack.c.l.b16 %v916
    %v3168 = vunpack.c.h.b16 %v916
    %v3169 = vunpack.c.l.b16 %v917
    %v3170 = vunpack.c.h.b16 %v917
    %v3171 = vunpack.c.l.b16 %v918
    %v3172 = vunpack.c.h.b16 %v918
    %v3173 = vunpack.c.l.b16 %v919
    %v3174 = vunpack.c.h.b16 %v919
    %v3175 = vunpack.c.l.b16 %v920
    %v3176 = vunpack.c.h.b16 %v920
    %v3177 = vunpack.c.l.b16 %v921
    %v3178 = vunpack.c.h.b16 %v921
    %v3179 = vunpack.c.l.b16 %v922
    %v3180 = vunpack.c.h.b16 %v922
    %v3181 = vunpack.c.l.b16 %v923
    %v3182 = vunpack.c.h.b16 %v923
    %v3183 = vunpack.c.l.b16 %v924
    %v3184 = vunpack.c.h.b16 %v924
    %v3185 = vunpack.c.l.b16 %v925
    %v3186 = vunpack.c.h.b16 %v925
    %v3187 = vunpack.c.l.b16 %v926
    %v3188 = vunpack.c.h.b16 %v926
    %v3189 = vunpack.c.l.b16 %v927
    %v3190 = vunpack.c.h.b16 %v927
    %v3191 = vunpack.c.l.b16 %v928
    %v3192 = vunpack.c.h.b16 %v928
    %v3193 = vunpack.c.l.b16 %v929
    %v3194 = vunpack.c.h.b16 %v929
    %v3195 = vunpack.c.l.b16 %v930
    %v3196 = vunpack.c.h.b16 %v930
    %v3197 = vunpack.c.l.b16 %v931
    %v3198 = vunpack.c.h.b16 %v931
    %v3199 = vunpack.c.l.b16 %v932
    %v3200 = vunpack.c.h.b16 %v932
    %v3201 = vunpack.c.l.b16 %v933
    %v3202 = vunpack.c.h.b16 %v933
    %v3203 = vunpack.c.l.b16 %v934
    %v3204 = vunpack.c.h.b16 %v934
    %v3205 = vunpack.c.l.b16 %v935
    %v3206 = vunpack.c.h.b16 %v935
    %v3207 = vunpack.c.l.b16 %v936
    %v3208 = vunpack.c.h.b16 %v936
    %v3209 = vunpack.c.l.b16 %v937
    %v3210 = vunpack.c.h.b16 %v937
    %v3211 = vunpack.c.l.b16 %v938
    %v3212 = vunpack.c.h.b16 %v938
    %v3213 = vunpack.c.l.b16 %v939
    %v3214 = vunpack.c.h.b16 %v939
    %v3215 = vunpack.c.l.b16 %v940
    %v3216 = vunpack.c.h.b16 %v940
    %v3217 = vunpack.c.l.b16 %v941
    %v3218 = vunpack.c.h.b16 %v941
    %v3219 = vunpack.c.l.b16 %v942
    %v3220 = vunpack.c.h.b16 %v942
    %v3221 = vunpack.c.l.b16 %v943
    %v3222 = vunpack.c.h.b16 %v943
    %v3223 = vunpack.c.l.b16 %v944
    %v3224 = vunpack.c.h.b16 %v944
    %v3225 = vunpack.c.l.b16 %v945
    %v3226 = vunpack.c.h.b16 %v945
    %v3227 = vunpack.c.l.b16 %v946
    %v3228 = vunpack.c.h.b16 %v946
    %v3229 = vunpack.c.l.b16 %v947
    %v3230 = vunpack.c.h.b16 %v947
    %v3231 = vunpack.c.l.b16 %v948
    %v3232 = vunpack.c.h.b16 %v948
    %v3233 = vunpack.c.l.b16 %v949
    %v3234 = vunpack.c.h.b16 %v949
    %v3235 = vunpack.c.l.b16 %v950
    %v3236 = vunpack.c.h.b16 %v950
    %v3237 = vunpack.c.l.b16 %v951
    %v3238 = vunpack.c.h.b16 %v951
    %v3239 = vunpack.c.l.b16 %v952
    %v3240 = vunpack.c.h.b16 %v952
    %v3241 = vunpack.c.l.b16 %v953
    %v3242 = vunpack.c.h.b16 %v953
    %v3243 = vunpack.c.l.b16 %v954
    %v3244 = vunpack.c.h.b16 %v954
    %v3245 = vunpack.c.l.b16 %v955
    %v3246 = vunpack.c.h.b16 %v955
    %v3247 = vunpack.c.l.b16 %v956
    %v3248 = vunpack.c.h.b16 %v956
    %v3249 = vunpack.c.l.b16 %v957
    %v3250 = vunpack.c.h.b16 %v957
    %v3251 = vunpack.c.l.b16 %v958
    %v3252 = vunpack.c.h.b16 %v958
    %v3253 = vunpack.c.l.b16 %v959
    %v3254 = vunpack.c.h.b16 %v959
    %v3255 = vunpack.c.l.b16 %v960
    %v3256 = vunpack.c.h.b16 %v960
    %v3257 = vunpack.c.l.b16 %v961
    %v3258 = vunpack.c.h.b16 %v961
    %v3259 = vunpack.c.l.b16 %v962
    %v3260 = vunpack.c.h.b16 %v962
    %v3261 = vunpack.c.l.b16 %v963
    %v3262 = vunpack.c.h.b16 %v963
    %v3263 = vunpack.c.l.b16 %v964
    %v3264 = vunpack.c.h.b16 %v964
    %v3265 = vunpack.c.l.b16 %v965
    %v3266 = vunpack.c.h.b16 %v965
    %v3267 = vunpack.c.l.b16 %v966
    %v3268 = vunpack.c.h.b16 %v966
    %v3269 = vunpack.c.l.b16 %v967
    %v3270 = vunpack.c.h.b16 %v967
    %v3271 = vunpack.c.l.b16 %v968
    %v3272 = vunpack.c.h.b16 %v968
    %v3273 = vunpack.c.l.b16 %v969
    %v3274 = vunpack.c.h.b16 %v969
    %v3275 = vunpack.c.l.b16 %v970
    %v3276 = vunpack.c.h.b16 %v970
    %v3277 = vunpack.c.l.b16 %v971
    %v3278 = vunpack.c.h.b16 %v971
    %v3279 = vunpack.c.l.b16 %v972
    %v3280 = vunpack.c.h.b16 %v972
    %v3281 = vunpack.c.l.b16 %v973
    %v3282 = vunpack.c.h.b16 %v973
    %v3283 = vunpack.c.l.b16 %v974
    %v3284 = vunpack.c.h.b16 %v974
    %v3285 = vunpack.c.l.b16 %v975
    %v3286 = vunpack.c.h.b16 %v975
    %v3287 = vunpack.c.l.b16 %v976
    %v3288 = vunpack.c.h.b16 %v976
    %v3289 = vunpack.c.l.b16 %v977
    %v3290 = vunpack.c.h.b16 %v977
    %v3291 = vunpack.c.l.b16 %v978
    %v3292 = vunpack.c.h.b16 %v978
    %v3293 = vunpack.c.l.b16 %v979
    %v3294 = vunpack.c.h.b16 %v979
    %v3295 = vunpack.c.l.b16 %v980
    %v3296 = vunpack.c.h.b16 %v980
    %v3297 = vunpack.c.l.b16 %v981
    %v3298 = vunpack.c.h.b16 %v981
    %v3299 = vunpack.c.l.b16 %v982
    %v3300 = vunpack.c.h.b16 %v982
    %v3301 = vunpack.c.l.b16 %v983
    %v3302 = vunpack.c.h.b16 %v983
    %v3303 = vunpack.c.l.b16 %v984
    %v3304 = vunpack.c.h.b16 %v984
    %v3305 = vunpack.c.l.b16 %v985
    %v3306 = vunpack.c.h.b16 %v985
    %v3307 = vunpack.c.l.b16 %v986
    %v3308 = vunpack.c.h.b16 %v986
    %v3309 = vunpack.c.l.b16 %v987
    %v3310 = vunpack.c.h.b16 %v987
    %v3311 = vunpack.c.l.b16 %v988
    %v3312 = vunpack.c.h.b16 %v988
    %v3313 = vunpack.c.l.b16 %v989
    %v3314 = vunpack.c.h.b16 %v989
    %v3315 = vunpack.c.l.b16 %v990
    %v3316 = vunpack.c.h.b16 %v990
    %v3317 = vunpack.c.l.b16 %v991
    %v3318 = vunpack.c.h.b16 %v991
    %v3319 = vunpack.c.l.b16 %v992
    %v3320 = vunpack.c.h.b16 %v992
    %v3321 = vunpack.c.l.b16 %v993
    %v3322 = vunpack.c.h.b16 %v993
    %v3323 = vunpack.c.l.b16 %v994
    %v3324 = vunpack.c.h.b16 %v994
    %v3325 = vunpack.c.l.b16 %v995
    %v3326 = vunpack.c.h.b16 %v995
    %v3327 = vunpack.c.l.b16 %v996
    %v3328 = vunpack.c.h.b16 %v996
    %v3329 = vunpack.c.l.b16 %v997
    %v3330 = vunpack.c.h.b16 %v997
    %v3331 = vunpack.c.l.b16 %v998
    %v3332 = vunpack.c.h.b16 %v998
    %v3333 = vunpack.c.l.b16 %v999
    %v3334 = vunpack.c.h.b16 %v999
    %v3335 = vunpack.c.l.b16 %v1000
    %v3336 = vunpack.c.h.b16 %v1000
    %v3337 = vunpack.c.l.b16 %v1001
    %v3338 = vunpack.c.h.b16 %v1001
    %v3339 = vunpack.c.l.b16 %v1002
    %v3340 = vunpack.c.h.b16 %v1002
    %v3341 = vunpack.c.l.b16 %v1003
    %v3342 = vunpack.c.h.b16 %v1003
    %v3343 = vunpack.c.l.b16 %v1004
    %v3344 = vunpack.c.h.b16 %v1004
    %v3345 = vunpack.c.l.b16 %v1005
    %v3346 = vunpack.c.h.b16 %v1005
    %v3347 = vunpack.c.l.b16 %v1006
    %v3348 = vunpack.c.h.b16 %v1006
    %v3349 = vunpack.c.l.b16 %v1007
    %v3350 = vunpack.c.h.b16 %v1007
    %v3351 = vunpack.c.l.b16 %v1008
    %v3352 = vunpack.c.h.b16 %v1008
    %v3353 = vunpack.c.l.b16 %v1009
    %v3354 = vunpack.c.h.b16 %v1009
    %v3355 = vunpack.c.l.b16 %v1010
    %v3356 = vunpack.c.h.b16 %v1010
    %v3357 = vunpack.c.l.b16 %v1011
    %v3358 = vunpack.c.h.b16 %v1011
    %v3359 = vunpack.c.l.b16 %v1012
    %v3360 = vunpack.c.h.b16 %v1012
    %v3361 = vunpack.c.l.b16 %v1013
    %v3362 = vunpack.c.h.b16 %v1013
    %v3363 = vunpack.c.l.b16 %v1014
    %v3364 = vunpack.c.h.b16 %v1014
    %v3365 = vunpack.c.l.b16 %v1015
    %v3366 = vunpack.c.h.b16 %v1015
    %v3367 = vunpack.c.l.b16 %v1016
    %v3368 = vunpack.c.h.b16 %v1016
    %v3369 = vunpack.c.l.b16 %v1017
    %v3370 = vunpack.c.h.b16 %v1017
    %v3371 = vunpack.c.l.b16 %v1018
    %v3372 = vunpack.c.h.b16 %v1018
    %v3373 = vunpack.c.l.b16 %v1019
    %v3374 = vunpack.c.h.b16 %v1019
    %v3375 = vunpack.c.l.b16 %v1020
    %v3376 = vunpack.c.h.b16 %v1020
    %v3377 = vunpack.c.l.b16 %v1021
    %v3378 = vunpack.c.h.b16 %v1021
    %v3379 = vunpack.c.l.b16 %v1022
    %v3380 = vunpack.c.h.b16 %v1022
    %v3381 = vunpack.c.l.b16 %v1023
    %v3382 = vunpack.c.h.b16 %v1023
    %v3383 = vunpack.c.l.b16 %v1024
    %v3384 = vunpack.c.h.b16 %v1024
    %v3385 = vunpack.c.l.b16 %v1025
    %v3386 = vunpack.c.h.b16 %v1025
    %v3387 = vunpack.c.l.b16 %v1026
    %v3388 = vunpack.c.h.b16 %v1026
    %v3389 = vunpack.c.l.b16 %v1027
    %v3390 = vunpack.c.h.b16 %v1027
    %v3391 = vunpack.c.l.b16 %v1028
    %v3392 = vunpack.c.h.b16 %v1028
    %v3393 = vunpack.c.l.b16 %v1029
    %v3394 = vunpack.c.h.b16 %v1029
    %v3395 = vunpack.c.l.b16 %v1030
    %v3396 = vunpack.c.h.b16 %v1030
    %v3397 = vunpack.c.l.b16 %v1031
    %v3398 = vunpack.c.h.b16 %v1031
    %v3399 = vunpack.c.l.b16 %v1032
    %v3400 = vunpack.c.h.b16 %v1032
    %v3401 = vunpack.c.l.b16 %v1033
    %v3402 = vunpack.c.h.b16 %v1033
    %v3403 = vunpack.c.l.b16 %v1034
    %v3404 = vunpack.c.h.b16 %v1034
    %v3405 = vunpack.c.l.b16 %v1035
    %v3406 = vunpack.c.h.b16 %v1035
    %v3407 = vunpack.c.l.b16 %v1036
    %v3408 = vunpack.c.h.b16 %v1036
    %v3409 = vunpack.c.l.b16 %v1037
    %v3410 = vunpack.c.h.b16 %v1037
    %v3411 = vunpack.c.l.b16 %v1038
    %v3412 = vunpack.c.h.b16 %v1038
    %v3413 = vunpack.c.l.b16 %v1039
    %v3414 = vunpack.c.h.b16 %v1039
    %v3415 = vunpack.c.l.b16 %v1040
    %v3416 = vunpack.c.h.b16 %v1040
    %v3417 = vunpack.c.l.b16 %v1041
    %v3418 = vunpack.c.h.b16 %v1041
    %v3419 = vunpack.c.l.b16 %v1042
    %v3420 = vunpack.c.h.b16 %v1042
    %v3421 = vunpack.c.l.b16 %v1043
    %v3422 = vunpack.c.h.b16 %v1043
    %v3423 = vunpack.c.l.b16 %v1044
    %v3424 = vunpack.c.h.b16 %v1044
    %v3425 = vunpack.c.l.b16 %v1045
    %v3426 = vunpack.c.h.b16 %v1045
    %v3427 = vunpack.c.l.b16 %v1046
    %v3428 = vunpack.c.h.b16 %v1046
    %v3429 = vunpack.c.l.b16 %v1047
    %v3430 = vunpack.c.h.b16 %v1047
    %v3431 = vunpack.c.l.b16 %v1048
    %v3432 = vunpack.c.h.b16 %v1048
    %v3433 = vunpack.c.l.b16 %v1049
    %v3434 = vunpack.c.h.b16 %v1049
    %v3435 = vunpack.c.l.b16 %v1050
    %v3436 = vunpack.c.h.b16 %v1050
    %v3437 = vunpack.c.l.b16 %v1051
    %v3438 = vunpack.c.h.b16 %v1051
    %v3439 = vunpack.c.l.b16 %v1052
    %v3440 = vunpack.c.h.b16 %v1052
    %v3441 = vunpack.c.l.b16 %v1053
    %v3442 = vunpack.c.h.b16 %v1053
    %v3443 = vunpack.c.l.b16 %v1054
    %v3444 = vunpack.c.h.b16 %v1054
    %v3445 = vunpack.c.l.b16 %v1055
    %v3446 = vunpack.c.h.b16 %v1055
    %v3447 = vunpack.c.l.b16 %v1056
    %v3448 = vunpack.c.h.b16 %v1056
    %v3449 = vunpack.c.l.b16 %v1057
    %v3450 = vunpack.c.h.b16 %v1057
    %v3451 = vunpack.c.l.b16 %v1058
    %v3452 = vunpack.c.h.b16 %v1058
    %v3453 = vunpack.c.l.b16 %v1059
    %v3454 = vunpack.c.h.b16 %v1059
    %v3455 = vunpack.c.l.b16 %v1060
    %v3456 = vunpack.c.h.b16 %v1060
    %v3457 = vunpack.c.l.b16 %v1061
    %v3458 = vunpack.c.h.b16 %v1061
    %v3459 = vunpack.c.l.b16 %v1062
    %v3460 = vunpack.c.h.b16 %v1062
    %v3461 = vunpack.c.l.b16 %v1063
    %v3462 = vunpack.c.h.b16 %v1063
    %v3463 = vunpack.c.l.b16 %v1064
    %v3464 = vunpack.c.h.b16 %v1064
    %v3465 = vunpack.c.l.b16 %v1065
    %v3466 = vunpack.c.h.b16 %v1065
    %v3467 = vunpack.c.l.b16 %v1066
    %v3468 = vunpack.c.h.b16 %v1066
    %v3469 = vunpack.c.l.b16 %v1067
    %v3470 = vunpack.c.h.b16 %v1067
    %v3471 = vunpack.c.l.b16 %v1068
    %v3472 = vunpack.c.h.b16 %v1068
    %v3473 = vunpack.c.l.b16 %v1069
    %v3474 = vunpack.c.h.b16 %v1069
    %v3475 = vunpack.c.l.b16 %v1070
    %v3476 = vunpack.c.h.b16 %v1070
    %v3477 = vunpack.c.l.b16 %v1071
    %v3478 = vunpack.c.h.b16 %v1071
    %v3479 = vunpack.c.l.b16 %v1072
    %v3480 = vunpack.c.h.b16 %v1072
    %v3481 = vunpack.c.l.b16 %v1073
    %v3482 = vunpack.c.h.b16 %v1073
    %v3483 = vunpack.c.l.b16 %v1074
    %v3484 = vunpack.c.h.b16 %v1074
    %v3485 = vunpack.c.l.b16 %v1075
    %v3486 = vunpack.c.h.b16 %v1075
    %v3487 = vunpack.c.l.b16 %v1076
    %v3488 = vunpack.c.h.b16 %v1076
    %v3489 = vunpack.c.l.b16 %v1077
    %v3490 = vunpack.c.h.b16 %v1077
    %v3491 = vunpack.c.l.b16 %v1078
    %v3492 = vunpack.c.h.b16 %v1078
    %v3493 = vunpack.c.l.b16 %v1079
    %v3494 = vunpack.c.h.b16 %v1079
    %v3495 = vunpack.c.l.b16 %v1080
    %v3496 = vunpack.c.h.b16 %v1080
    %v3497 = vunpack.c.l.b16 %v1081
    %v3498 = vunpack.c.h.b16 %v1081
    %v3499 = vunpack.c.l.b16 %v1082
    %v3500 = vunpack.c.h.b16 %v1082
    %v3501 = vunpack.c.l.b16 %v1083
    %v3502 = vunpack.c.h.b16 %v1083
    %v3503 = vunpack.c.l.b16 %v1084
    %v3504 = vunpack.c.h.b16 %v1084
    %v3505 = vunpack.c.l.b16 %v1085
    %v3506 = vunpack.c.h.b16 %v1085
    %v3507 = vunpack.c.l.b16 %v1086
    %v3508 = vunpack.c.h.b16 %v1086
    %v3509 = vunpack.c.l.b16 %v1087
    %v3510 = vunpack.c.h.b16 %v1087
    %v3511 = vunpack.c.l.b16 %v1088
    %v3512 = vunpack.c.h.b16 %v1088
    %v3513 = vunpack.c.l.b16 %v1089
    %v3514 = vunpack.c.h.b16 %v1089
    %v3515 = vunpack.c.l.b16 %v1090
    %v3516 = vunpack.c.h.b16 %v1090
    %v3517 = vunpack.c.l.b16 %v1091
    %v3518 = vunpack.c.h.b16 %v1091
    %v3519 = vunpack.c.l.b16 %v1092
    %v3520 = vunpack.c.h.b16 %v1092
    %v3521 = vunpack.c.l.b16 %v1093
    %v3522 = vunpack.c.h.b16 %v1093
    %v3523 = vunpack.c.l.b16 %v1094
    %v3524 = vunpack.c.h.b16 %v1094
    %v3525 = vunpack.c.l.b16 %v1095
    %v3526 = vunpack.c.h.b16 %v1095
    %v3527 = vunpack.c.l.b16 %v1096
    %v3528 = vunpack.c.h.b16 %v1096
    %v3529 = vunpack.c.l.b16 %v1097
    %v3530 = vunpack.c.h.b16 %v1097
    %v3531 = vunpack.c.l.b16 %v1098
    %v3532 = vunpack.c.h.b16 %v1098
    %v3533 = vunpack.c.l.b16 %v1099
    %v3534 = vunpack.c.h.b16 %v1099
    %v3535 = vunpack.c.l.b16 %v1100
    %v3536 = vunpack.c.h.b16 %v1100
    %v3537 = vunpack.c.l.b16 %v1101
    %v3538 = vunpack.c.h.b16 %v1101
    %v3539 = vunpack.c.l.b16 %v1102
    %v3540 = vunpack.c.h.b16 %v1102
    %v3541 = vunpack.c.l.b16 %v1103
    %v3542 = vunpack.c.h.b16 %v1103
    %v3543 = vunpack.c.l.b16 %v1104
    %v3544 = vunpack.c.h.b16 %v1104
    %v3545 = vunpack.c.l.b16 %v1105
    %v3546 = vunpack.c.h.b16 %v1105
    %v3547 = vunpack.c.l.b16 %v1106
    %v3548 = vunpack.c.h.b16 %v1106
    %v3549 = vunpack.c.l.b16 %v1107
    %v3550 = vunpack.c.h.b16 %v1107
    %v3551 = vunpack.c.l.b16 %v1108
    %v3552 = vunpack.c.h.b16 %v1108
    %v3553 = vunpack.c.l.b16 %v1109
    %v3554 = vunpack.c.h.b16 %v1109
    %v3555 = vunpack.c.l.b16 %v1110
    %v3556 = vunpack.c.h.b16 %v1110
    %v3557 = vunpack.c.l.b16 %v1111
    %v3558 = vunpack.c.h.b16 %v1111
    %v3559 = vunpack.c.l.b16 %v1112
    %v3560 = vunpack.c.h.b16 %v1112
    %v3561 = vunpack.c.l.b16 %v1113
    %v3562 = vunpack.c.h.b16 %v1113
    %v3563 = vunpack.c.l.b16 %v1114
    %v3564 = vunpack.c.h.b16 %v1114
    %v3565 = vunpack.c.l.b16 %v1115
    %v3566 = vunpack.c.h.b16 %v1115
    %v3567 = vunpack.c.l.b16 %v1116
    %v3568 = vunpack.c.h.b16 %v1116
    %v3569 = vunpack.c.l.b16 %v1117
    %v3570 = vunpack.c.h.b16 %v1117
    %v3571 = vunpack.c.l.b16 %v1118
    %v3572 = vunpack.c.h.b16 %v1118
    %v3573 = vunpack.c.l.b16 %v1119
    %v3574 = vunpack.c.h.b16 %v1119
    %v3575 = vunpack.c.l.b16 %v1120
    %v3576 = vunpack.c.h.b16 %v1120
    %v3577 = vunpack.c.l.b16 %v1121
    %v3578 = vunpack.c.h.b16 %v1121
    %v3579 = vunpack.c.l.b16 %v1122
    %v3580 = vunpack.c.h.b16 %v1122
    %v3581 = vunpack.c.l.b16 %v1123
    %v3582 = vunpack.c.h.b16 %v1123
    %v3583 = vunpack.c.l.b16 %v1124
    %v3584 = vunpack.c.h.b16 %v1124
    %v3585 = vunpack.c.l.b16 %v1125
    %v3586 = vunpack.c.h.b16 %v1125
    %v3587 = vunpack.c.l.b16 %v1126
    %v3588 = vunpack.c.h.b16 %v1126
    %v3589 = vunpack.c.l.b16 %v1127
    %v3590 = vunpack.c.h.b16 %v1127
    %v3591 = vunpack.c.l.b16 %v1128
    %v3592 = vunpack.c.h.b16 %v1128
    %v3593 = vunpack.c.l.b16 %v1129
    %v3594 = vunpack.c.h.b16 %v1129
    %v3595 = vunpack.c.l.b16 %v1130
    %v3596 = vunpack.c.h.b16 %v1130
    %v3597 = vunpack.c.l.b16 %v1131
    %v3598 = vunpack.c.h.b16 %v1131
    %v3599 = vunpack.c.l.b16 %v1132
    %v3600 = vunpack.c.h.b16 %v1132
    %v3601 = vunpack.c.l.b16 %v1133
    %v3602 = vunpack.c.h.b16 %v1133
    %v3603 = vunpack.c.l.b16 %v1134
    %v3604 = vunpack.c.h.b16 %v1134
    %v3605 = vunpack.c.l.b16 %v1135
    %v3606 = vunpack.c.h.b16 %v1135
    %v3607 = vunpack.c.l.b16 %v1136
    %v3608 = vunpack.c.h.b16 %v1136
    %v3609 = vunpack.c.l.b16 %v1137
    %v3610 = vunpack.c.h.b16 %v1137
    %v3611 = vunpack.c.l.b16 %v1138
    %v3612 = vunpack.c.h.b16 %v1138
    %v3613 = vunpack.c.l.b16 %v1139
    %v3614 = vunpack.c.h.b16 %v1139
    %v3615 = vunpack.c.l.b16 %v1140
    %v3616 = vunpack.c.h.b16 %v1140
    %v3617 = vunpack.c.l.b16 %v1141
    %v3618 = vunpack.c.h.b16 %v1141
    %v3619 = vunpack.c.l.b16 %v1142
    %v3620 = vunpack.c.h.b16 %v1142
    %v3621 = vunpack.c.l.b16 %v1143
    %v3622 = vunpack.c.h.b16 %v1143
    %v3623 = vunpack.c.l.b16 %v1144
    %v3624 = vunpack.c.h.b16 %v1144
    %v3625 = vunpack.c.l.b16 %v1145
    %v3626 = vunpack.c.h.b16 %v1145
    %v3627 = vunpack.c.l.b16 %v1146
    %v3628 = vunpack.c.h.b16 %v1146
    %v3629 = vunpack.c.l.b16 %v1147
    %v3630 = vunpack.c.h.b16 %v1147
    %v3631 = vunpack.c.l.b16 %v1148
    %v3632 = vunpack.c.h.b16 %v1148
    %v3633 = vunpack.c.l.b16 %v1149
    %v3634 = vunpack.c.h.b16 %v1149
    %v3635 = vunpack.c.l.b16 %v1150
    %v3636 = vunpack.c.h.b16 %v1150
    %v3637 = vunpack.c.l.b16 %v1151
    %v3638 = vunpack.c.h.b16 %v1151
    %v3639 = vunpack.c.l.b16 %v1152
    %v3640 = vunpack.c.h.b16 %v1152
    %v3641 = vunpack.c.l.b16 %v1153
    %v3642 = vunpack.c.h.b16 %v1153
    %v3643 = vunpack.c.l.b16 %v1154
    %v3644 = vunpack.c.h.b16 %v1154
    %v3645 = vunpack.c.l.b16 %v1155
    %v3646 = vunpack.c.h.b16 %v1155
    %v3647 = vunpack.c.l.b16 %v1156
    %v3648 = vunpack.c.h.b16 %v1156
    %v3649 = vunpack.c.l.b16 %v1157
    %v3650 = vunpack.c.h.b16 %v1157
    %v3651 = vunpack.c.l.b16 %v1158
    %v3652 = vunpack.c.h.b16 %v1158
    %v3653 = vunpack.c.l.b16 %v1159
    %v3654 = vunpack.c.h.b16 %v1159
    %v3655 = vunpack.c.l.b16 %v1160
    %v3656 = vunpack.c.h.b16 %v1160
    %v3657 = vunpack.c.l.b16 %v1161
    %v3658 = vunpack.c.h.b16 %v1161
    %v3659 = vunpack.c.l.b16 %v1162
    %v3660 = vunpack.c.h.b16 %v1162
    %v3661 = vunpack.c.l.b16 %v1163
    %v3662 = vunpack.c.h.b16 %v1163
    %v3663 = vunpack.c.l.b16 %v1164
    %v3664 = vunpack.c.h.b16 %v1164
    %v3665 = vunpack.c.l.b16 %v1165
    %v3666 = vunpack.c.h.b16 %v1165
    %v3667 = vunpack.c.l.b16 %v1166
    %v3668 = vunpack.c.h.b16 %v1166
    %v3669 = vunpack.c.l.b16 %v1167
    %v3670 = vunpack.c.h.b16 %v1167
    %v3671 = vunpack.c.l.b16 %v1168
    %v3672 = vunpack.c.h.b16 %v1168
    %v3673 = vunpack.c.l.b16 %v1169
    %v3674 = vunpack.c.h.b16 %v1169
    %v3675 = vunpack.c.l.b16 %v1170
    %v3676 = vunpack.c.h.b16 %v1170
    %v3677 = vunpack.c.l.b16 %v1171
    %v3678 = vunpack.c.h.b16 %v1171
    %v3679 = vunpack.c.l.b16 %v1172
    %v3680 = vunpack.c.h.b16 %v1172
    %v3681 = vunpack.c.l.b16 %v1173
    %v3682 = vunpack.c.h.b16 %v1173
    %v3683 = vunpack.c.l.b16 %v1174
    %v3684 = vunpack.c.h.b16 %v1174
    %v3685 = vunpack.c.l.b16 %v1175
    %v3686 = vunpack.c.h.b16 %v1175
    %v3687 = vunpack.c.l.b16 %v1176
    %v3688 = vunpack.c.h.b16 %v1176
    %v3689 = vunpack.c.l.b16 %v1177
    %v3690 = vunpack.c.h.b16 %v1177
    %v3691 = vunpack.c.l.b16 %v1178
    %v3692 = vunpack.c.h.b16 %v1178
    %v3693 = vunpack.c.l.b16 %v1179
    %v3694 = vunpack.c.h.b16 %v1179
    %v3695 = vunpack.c.l.b16 %v1180
    %v3696 = vunpack.c.h.b16 %v1180
    %v3697 = vunpack.c.l.b16 %v1181
    %v3698 = vunpack.c.h.b16 %v1181
    %v3699 = vunpack.c.l.b16 %v1182
    %v3700 = vunpack.c.h.b16 %v1182
    %v3701 = vunpack.c.l.b16 %v1183
    %v3702 = vunpack.c.h.b16 %v1183
    %v3703 = vunpack.c.l.b16 %v1184
    %v3704 = vunpack.c.h.b16 %v1184
    %v3705 = vunpack.c.l.b16 %v1185
    %v3706 = vunpack.c.h.b16 %v1185
    %v3707 = vunpack.c.l.b16 %v1186
    %v3708 = vunpack.c.h.b16 %v1186
    %v3709 = vunpack.c.l.b16 %v1187
    %v3710 = vunpack.c.h.b16 %v1187
    %v3711 = vunpack.c.l.b16 %v1188
    %v3712 = vunpack.c.h.b16 %v1188
    %v3713 = vunpack.c.l.b16 %v1189
    %v3714 = vunpack.c.h.b16 %v1189
    %v3715 = vunpack.c.l.b16 %v1190
    %v3716 = vunpack.c.h.b16 %v1190
    %v3717 = vunpack.c.l.b16 %v1191
    %v3718 = vunpack.c.h.b16 %v1191
    %v3719 = vunpack.c.l.b16 %v1192
    %v3720 = vunpack.c.h.b16 %v1192
    %v3721 = vunpack.c.l.b16 %v1193
    %v3722 = vunpack.c.h.b16 %v1193
    %v3723 = vunpack.c.l.b16 %v1194
    %v3724 = vunpack.c.h.b16 %v1194
    %v3725 = vunpack.c.l.b16 %v1195
    %v3726 = vunpack.c.h.b16 %v1195
    %v3727 = vunpack.c.l.b16 %v1196
    %v3728 = vunpack.c.h.b16 %v1196
    %v3729 = vunpack.c.l.b16 %v1197
    %v3730 = vunpack.c.h.b16 %v1197
    %v3731 = vunpack.c.l.b16 %v1198
    %v3732 = vunpack.c.h.b16 %v1198
    %v3733 = vunpack.c.l.b16 %v1199
    %v3734 = vunpack.c.h.b16 %v1199
    %v3735 = vunpack.c.l.b16 %v1200
    %v3736 = vunpack.c.h.b16 %v1200
    %v3737 = vunpack.c.l.b16 %v1201
    %v3738 = vunpack.c.h.b16 %v1201
    %v3739 = vunpack.c.l.b16 %v1202
    %v3740 = vunpack.c.h.b16 %v1202
    %v3741 = vunpack.c.l.b16 %v1203
    %v3742 = vunpack.c.h.b16 %v1203
    %v3743 = vunpack.c.l.b16 %v1204
    %v3744 = vunpack.c.h.b16 %v1204
    %v3745 = vunpack.c.l.b16 %v1205
    %v3746 = vunpack.c.h.b16 %v1205
    %v3747 = vunpack.c.l.b16 %v1206
    %v3748 = vunpack.c.h.b16 %v1206
    %v3749 = vunpack.c.l.b16 %v1207
    %v3750 = vunpack.c.h.b16 %v1207
    %v3751 = vunpack.c.l.b16 %v1208
    %v3752 = vunpack.c.h.b16 %v1208
    %v3753 = vunpack.c.l.b16 %v1209
    %v3754 = vunpack.c.h.b16 %v1209
    %v3755 = vunpack.c.l.b16 %v1210
    %v3756 = vunpack.c.h.b16 %v1210
    %v3757 = vunpack.c.l.b16 %v1211
    %v3758 = vunpack.c.h.b16 %v1211
    %v3759 = vunpack.c.l.b16 %v1212
    %v3760 = vunpack.c.h.b16 %v1212
    %v3761 = vunpack.c.l.b16 %v1213
    %v3762 = vunpack.c.h.b16 %v1213
    %v3763 = vunpack.c.l.b16 %v1214
    %v3764 = vunpack.c.h.b16 %v1214
    %v3765 = vunpack.c.l.b16 %v1215
    %v3766 = vunpack.c.h.b16 %v1215
    %v3767 = vunpack.c.l.b16 %v1216
    %v3768 = vunpack.c.h.b16 %v1216
    %v3769 = vunpack.c.l.b16 %v1217
    %v3770 = vunpack.c.h.b16 %v1217
    %v3771 = vunpack.c.l.b16 %v1218
    %v3772 = vunpack.c.h.b16 %v1218
    %v3773 = vunpack.c.l.b16 %v1219
    %v3774 = vunpack.c.h.b16 %v1219
    %v3775 = vunpack.c.l.b16 %v1220
    %v3776 = vunpack.c.h.b16 %v1220
    %v3777 = vunpack.c.l.b16 %v1221
    %v3778 = vunpack.c.h.b16 %v1221
    %v3779 = vunpack.c.l.b16 %v1222
    %v3780 = vunpack.c.h.b16 %v1222
    %v3781 = vunpack.c.l.b16 %v1223
    %v3782 = vunpack.c.h.b16 %v1223
    %v3783 = vunpack.c.l.b16 %v1224
    %v3784 = vunpack.c.h.b16 %v1224
    %v3785 = vunpack.c.l.b16 %v1225
    %v3786 = vunpack.c.h.b16 %v1225
    %v3787 = vunpack.c.l.b16 %v1226
    %v3788 = vunpack.c.h.b16 %v1226
    %v3789 = vunpack.c.l.b16 %v1227
    %v3790 = vunpack.c.h.b16 %v1227
    %v3791 = vunpack.c.l.b16 %v1228
    %v3792 = vunpack.c.h.b16 %v1228
    %v3793 = vunpack.c.l.b16 %v1229
    %v3794 = vunpack.c.h.b16 %v1229
    %v3795 = vunpack.c.l.b16 %v1230
    %v3796 = vunpack.c.h.b16 %v1230
    %v3797 = vunpack.c.l.b16 %v1231
    %v3798 = vunpack.c.h.b16 %v1231
    %v3799 = vunpack.c.l.b16 %v1232
    %v3800 = vunpack.c.h.b16 %v1232
    %v3801 = vunpack.c.l.b16 %v1233
    %v3802 = vunpack.c.h.b16 %v1233
    %v3803 = vunpack.c.l.b16 %v1234
    %v3804 = vunpack.c.h.b16 %v1234
    %v3805 = vunpack.c.l.b16 %v1235
    %v3806 = vunpack.c.h.b16 %v1235
    %v3807 = vunpack.c.l.b16 %v1236
    %v3808 = vunpack.c.h.b16 %v1236
    %v3809 = vunpack.c.l.b16 %v1237
    %v3810 = vunpack.c.h.b16 %v1237
    %v3811 = vunpack.c.l.b16 %v1238
    %v3812 = vunpack.c.h.b16 %v1238
    %v3813 = vunpack.c.l.b16 %v1239
    %v3814 = vunpack.c.h.b16 %v1239
    %v3815 = vunpack.c.l.b16 %v1240
    %v3816 = vunpack.c.h.b16 %v1240
    %v3817 = vunpack.c.l.b16 %v1241
    %v3818 = vunpack.c.h.b16 %v1241
    %v3819 = vunpack.c.l.b16 %v1242
    %v3820 = vunpack.c.h.b16 %v1242
    %v3821 = vunpack.c.l.b16 %v1243
    %v3822 = vunpack.c.h.b16 %v1243
    %v3823 = vunpack.c.l.b16 %v1244
    %v3824 = vunpack.c.h.b16 %v1244
    %v3825 = vunpack.c.l.b16 %v1245
    %v3826 = vunpack.c.h.b16 %v1245
    %v3827 = vunpack.c.l.b16 %v1246
    %v3828 = vunpack.c.h.b16 %v1246
    %v3829 = vunpack.c.l.b16 %v1247
    %v3830 = vunpack.c.h.b16 %v1247
    %v3831 = vunpack.c.l.b16 %v1248
    %v3832 = vunpack.c.h.b16 %v1248
    %v3833 = vunpack.c.l.b16 %v1249
    %v3834 = vunpack.c.h.b16 %v1249
    %v3835 = vunpack.c.l.b16 %v1250
    %v3836 = vunpack.c.h.b16 %v1250
    %v3837 = vunpack.c.l.b16 %v1251
    %v3838 = vunpack.c.h.b16 %v1251
    %v3839 = vunpack.c.l.b16 %v1252
    %v3840 = vunpack.c.h.b16 %v1252
    %v3841 = vunpack.c.l.b16 %v1253
    %v3842 = vunpack.c.h.b16 %v1253
    %v3843 = vunpack.c.l.b16 %v1254
    %v3844 = vunpack.c.h.b16 %v1254
    %v3845 = vunpack.c.l.b16 %v1255
    %v3846 = vunpack.c.h.b16 %v1255
    %v3847 = vunpack.c.l.b16 %v1256
    %v3848 = vunpack.c.h.b16 %v1256
    %v3849 = vunpack.c.l.b16 %v1257
    %v3850 = vunpack.c.h.b16 %v1257
    %v3851 = vunpack.c.l.b16 %v1258
    %v3852 = vunpack.c.h.b16 %v1258
    %v3853 = vunpack.c.l.b16 %v1259
    %v3854 = vunpack.c.h.b16 %v1259
    %v3855 = vunpack.c.l.b16 %v1260
    %v3856 = vunpack.c.h.b16 %v1260
    %v3857 = vunpack.c.l.b16 %v1261
    %v3858 = vunpack.c.h.b16 %v1261
    %v3859 = vunpack.c.l.b16 %v1262
    %v3860 = vunpack.c.h.b16 %v1262
    %v3861 = vunpack.c.l.b16 %v1263
    %v3862 = vunpack.c.h.b16 %v1263
    %v3863 = vunpack.c.l.b16 %v1264
    %v3864 = vunpack.c.h.b16 %v1264
    %v3865 = vunpack.c.l.b16 %v1265
    %v3866 = vunpack.c.h.b16 %v1265
    %v3867 = vunpack.c.l.b16 %v1266
    %v3868 = vunpack.c.h.b16 %v1266
    %v3869 = vunpack.c.l.b16 %v1267
    %v3870 = vunpack.c.h.b16 %v1267
    %v3871 = vunpack.c.l.b16 %v1268
    %v3872 = vunpack.c.h.b16 %v1268
    %v3873 = vunpack.c.l.b16 %v1269
    %v3874 = vunpack.c.h.b16 %v1269
    %v3875 = vunpack.c.l.b16 %v1270
    %v3876 = vunpack.c.h.b16 %v1270
    %v3877 = vunpack.c.l.b16 %v1271
    %v3878 = vunpack.c.h.b16 %v1271
    %v3879 = vunpack.c.l.b16 %v1272
    %v3880 = vunpack.c.h.b16 %v1272
    %v3881 = vunpack.c.l.b16 %v1273
    %v3882 = vunpack.c.h.b16 %v1273
    %v3883 = vunpack.c.l.b16 %v1274
    %v3884 = vunpack.c.h.b16 %v1274
    %v3885 = vunpack.c.l.b16 %v1275
    %v3886 = vunpack.c.h.b16 %v1275
    %v3887 = vunpack.c.l.b16 %v1276
    %v3888 = vunpack.c.h.b16 %v1276
    %v3889 = vunpack.c.l.b16 %v1277
    %v3890 = vunpack.c.h.b16 %v1277
    %v3891 = vunpack.c.l.b16 %v1278
    %v3892 = vunpack.c.h.b16 %v1278
    %v3893 = vunpack.c.l.b16 %v1279
    %v3894 = vunpack.c.h.b16 %v1279
    %v3895 = vunpack.c.l.b16 %v1280
    %v3896 = vunpack.c.h.b16 %v1280
    %v3897 = vunpack.c.l.b16 %v1281
    %v3898 = vunpack.c.h.b16 %v1281
    %v3899 = vunpack.c.l.b16 %v1282
    %v3900 = vunpack.c.h.b16 %v1282
    %v3901 = vunpack.c.l.b16 %v1283
    %v3902 = vunpack.c.h.b16 %v1283
    %v3903 = vunpack.c.l.b16 %v1284
    %v3904 = vunpack.c.h.b16 %v1284
    %v3905 = vunpack.c.l.b16 %v1285
    %v3906 = vunpack.c.h.b16 %v1285
    %v3907 = vunpack.c.l.b16 %v1286
    %v3908 = vunpack.c.h.b16 %v1286
    %v3909 = vunpack.c.l.b16 %v1287
    %v3910 = vunpack.c.h.b16 %v1287
    %v3911 = vunpack.c.l.b16 %v1288
    %v3912 = vunpack.c.h.b16 %v1288
    %v3913 = vunpack.c.l.b16 %v1289
    %v3914 = vunpack.c.h.b16 %v1289
    %v3915 = vunpack.c.l.b16 %v1290
    %v3916 = vunpack.c.h.b16 %v1290
    %v3917 = vunpack.c.l.b16 %v1291
    %v3918 = vunpack.c.h.b16 %v1291
    %v3919 = vunpack.c.l.b16 %v1292
    %v3920 = vunpack.c.h.b16 %v1292
    %v3921 = vunpack.c.l.b16 %v1293
    %v3922 = vunpack.c.h.b16 %v1293
    %v3923 = vunpack.c.l.b16 %v1294
    %v3924 = vunpack.c.h.b16 %v1294
    %v3925 = vunpack.c.l.b16 %v1295
    %v3926 = vunpack.c.h.b16 %v1295
    %v3927 = vunpack.c.l.b16 %v1296
    %v3928 = vunpack.c.h.b16 %v1296
    %v3929 = vunpack.c.l.b16 %v1297
    %v3930 = vunpack.c.h.b16 %v1297
    %v3931 = vunpack.c.l.b16 %v1298
    %v3932 = vunpack.c.h.b16 %v1298
    %v3933 = vunpack.c.l.b16 %v1299
    %v3934 = vunpack.c.h.b16 %v1299
    %v3935 = vunpack.c.l.b16 %v1300
    %v3936 = vunpack.c.h.b16 %v1300
    %v3937 = vunpack.c.l.b16 %v1301
    %v3938 = vunpack.c.h.b16 %v1301
    %v3939 = vunpack.c.l.b16 %v1302
    %v3940 = vunpack.c.h.b16 %v1302
    %v3941 = vunpack.c.l.b16 %v1303
    %v3942 = vunpack.c.h.b16 %v1303
    %v3943 = vunpack.c.l.b16 %v1304
    %v3944 = vunpack.c.h.b16 %v1304
    %v3945 = vunpack.c.l.b16 %v1305
    %v3946 = vunpack.c.h.b16 %v1305
    %v3947 = vunpack.c.l.b16 %v1306
    %v3948 = vunpack.c.h.b16 %v1306
    %v3949 = vunpack.c.l.b16 %v1307
    %v3950 = vunpack.c.h.b16 %v1307
    %v3951 = vunpack.c.l.b16 %v1308
    %v3952 = vunpack.c.h.b16 %v1308
    %v3953 = vunpack.c.l.b16 %v1309
    %v3954 = vunpack.c.h.b16 %v1309
    %v3955 = vunpack.c.l.b16 %v1310
    %v3956 = vunpack.c.h.b16 %v1310
    %v3957 = vunpack.c.l.b16 %v1311
    %v3958 = vunpack.c.h.b16 %v1311
    %v3959 = vunpack.c.l.b16 %v1312
    %v3960 = vunpack.c.h.b16 %v1312
    %v3961 = vunpack.c.l.b16 %v1313
    %v3962 = vunpack.c.h.b16 %v1313
    %v3963 = vunpack.c.l.b16 %v1314
    %v3964 = vunpack.c.h.b16 %v1314
    %v3965 = vunpack.c.l.b16 %v1315
    %v3966 = vunpack.c.h.b16 %v1315
    %v3967 = vunpack.c.l.b16 %v1316
    %v3968 = vunpack.c.h.b16 %v1316
    %v3969 = vunpack.c.l.b16 %v1317
    %v3970 = vunpack.c.h.b16 %v1317
    %v3971 = vunpack.c.l.b16 %v1318
    %v3972 = vunpack.c.h.b16 %v1318
    %v3973 = vunpack.c.l.b16 %v1319
    %v3974 = vunpack.c.h.b16 %v1319
    %v3975 = vunpack.c.l.b16 %v1320
    %v3976 = vunpack.c.h.b16 %v1320
    %v3977 = vunpack.c.l.b16 %v1321
    %v3978 = vunpack.c.h.b16 %v1321
    %v3979 = vunpack.c.l.b16 %v1322
    %v3980 = vunpack.c.h.b16 %v1322
    %v3981 = vunpack.c.l.b16 %v1323
    %v3982 = vunpack.c.h.b16 %v1323
    %v3983 = vunpack.c.l.b16 %v1324
    %v3984 = vunpack.c.h.b16 %v1324
    %v3985 = vunpack.c.l.b16 %v1325
    %v3986 = vunpack.c.h.b16 %v1325
    %v3987 = vunpack.c.l.b16 %v1326
    %v3988 = vunpack.c.h.b16 %v1326
    %v3989 = vunpack.c.l.b16 %v1327
    %v3990 = vunpack.c.h.b16 %v1327
    %v3991 = vunpack.c.l.b16 %v1328
    %v3992 = vunpack.c.h.b16 %v1328
    %v3993 = vunpack.c.l.b16 %v1329
    %v3994 = vunpack.c.h.b16 %v1329
    %v3995 = vunpack.c.l.b16 %v1330
    %v3996 = vunpack.c.h.b16 %v1330
    %v3997 = vunpack.c.l.b16 %v1331
    %v3998 = vunpack.c.h.b16 %v1331
    %v3999 = vunpack.c.l.b16 %v1332
    %v4000 = vunpack.c.h.b16 %v1332
    %v4001 = vunpack.c.l.b16 %v1333
    %v4002 = vunpack.c.h.b16 %v1333
    %v4003 = vunpack.c.l.b16 %v1334
    %v4004 = vunpack.c.h.b16 %v1334
    %v4005 = vunpack.c.l.b16 %v1335
    %v4006 = vunpack.c.h.b16 %v1335
    %v4007 = vunpack.c.l.b16 %v1336
    %v4008 = vunpack.c.h.b16 %v1336
    %v4009 = vunpack.c.l.b16 %v1337
    %v4010 = vunpack.c.h.b16 %v1337
    %v4011 = vunpack.c.l.b16 %v1338
    %v4012 = vunpack.c.h.b16 %v1338
    %v4013 = vunpack.c.l.b16 %v1339
    %v4014 = vunpack.c.h.b16 %v1339
    %v4015 = vunpack.c.l.b16 %v1340
    %v4016 = vunpack.c.h.b16 %v1340
    %v4017 = vunpack.c.l.b16 %v1341
    %v4018 = vunpack.c.h.b16 %v1341
    %v4019 = vunpack.c.l.b16 %v1342
    %v4020 = vunpack.c.h.b16 %v1342
    %v4021 = vunpack.c.l.b16 %v1343
    %v4022 = vunpack.c.h.b16 %v1343
    %v4023 = vunpack.c.l.b16 %v1344
    %v4024 = vunpack.c.h.b16 %v1344
    %v4025 = vunpack.c.l.b16 %v1345
    %v4026 = vunpack.c.h.b16 %v1345
    %v4027 = vunpack.c.l.b16 %v1346
    %v4028 = vunpack.c.h.b16 %v1346
    %v4029 = vunpack.c.l.b16 %v1347
    %v4030 = vunpack.c.h.b16 %v1347
    %v4031 = vunpack.c.l.b16 %v1348
    %v4032 = vunpack.c.h.b16 %v1348
    %v4033 = vunpack.c.l.b16 %v1349
    %v4034 = vunpack.c.h.b16 %v1349
    %v4035 = vunpack.c.l.b16 %v1350
    %v4036 = vunpack.c.h.b16 %v1350
    %v4037 = vunpack.c.l.b16 %v1351
    %v4038 = vunpack.c.h.b16 %v1351
    %v4039 = vunpack.c.l.b16 %v1352
    %v4040 = vunpack.c.h.b16 %v1352
    %v4041 = vunpack.c.l.b16 %v1353
    %v4042 = vunpack.c.h.b16 %v1353
    %v4043 = vunpack.c.l.b16 %v1354
    %v4044 = vunpack.c.h.b16 %v1354
    %v4045 = vunpack.c.l.b16 %v1355
    %v4046 = vunpack.c.h.b16 %v1355
    %v4047 = vunpack.c.l.b16 %v1356
    %v4048 = vunpack.c.h.b16 %v1356
    %v4049 = vunpack.c.l.b16 %v1357
    %v4050 = vunpack.c.h.b16 %v1357
    %v4051 = vunpack.c.l.b16 %v1358
    %v4052 = vunpack.c.h.b16 %v1358
    %v4053 = vunpack.c.l.b16 %v1359
    %v4054 = vunpack.c.h.b16 %v1359
    %v4055 = vunpack.c.l.b16 %v1360
    %v4056 = vunpack.c.h.b16 %v1360
    %v4057 = vunpack.c.l.b16 %v1361
    %v4058 = vunpack.c.h.b16 %v1361
    %v4059 = vunpack.c.l.b16 %v1362
    %v4060 = vunpack.c.h.b16 %v1362
    %v4061 = vunpack.c.l.b16 %v1363
    %v4062 = vunpack.c.h.b16 %v1363
    %v4063 = vunpack.c.l.b16 %v1364
    %v4064 = vunpack.c.h.b16 %v1364
    %v4065 = vunpack.c.l.b16 %v1365
    %v4066 = vunpack.c.h.b16 %v1365
    %v4067 = vunpack.c.l.b16 %v1366
    %v4068 = vunpack.c.h.b16 %v1366
    %v4069 = vunpack.c.l.b16 %v1367
    %v4070 = vunpack.c.h.b16 %v1367
    %v4071 = vunpack.c.l.b16 %v1368
    %v4072 = vunpack.c.h.b16 %v1368
    %v4073 = vunpack.c.l.b16 %v1369
    %v4074 = vunpack.c.h.b16 %v1369
    %v4075 = vunpack.c.l.b16 %v1370
    %v4076 = vunpack.c.h.b16 %v1370
    %v4077 = vunpack.c.l.b16 %v1371
    %v4078 = vunpack.c.h.b16 %v1371
    %v4079 = vunpack.c.l.b16 %v1372
    %v4080 = vunpack.c.h.b16 %v1372
    %v4081 = vunpack.c.l.b16 %v1373
    %v4082 = vunpack.c.h.b16 %v1373
    %v4083 = vunpack.c.l.b16 %v1374
    %v4084 = vunpack.c.h.b16 %v1374
    %v4085 = vunpack.c.l.b16 %v1375
    %v4086 = vunpack.c.h.b16 %v1375
    %v4087 = vunpack.c.l.b16 %v1376
    %v4088 = vunpack.c.h.b16 %v1376
    %v4089 = vunpack.c.l.b16 %v1377
    %v4090 = vunpack.c.h.b16 %v1377
    %v4091 = vunpack.c.l.b16 %v1378
    %v4092 = vunpack.c.h.b16 %v1378
    %v4093 = vunpack.c.l.b16 %v1379
    %v4094 = vunpack.c.h.b16 %v1379
    %v4095 = vunpack.c.l.b16 %v1380
    %v4096 = vunpack.c.h.b16 %v1380
    %v4097 = vunpack.c.l.b16 %v1381
    %v4098 = vunpack.c.h.b16 %v1381
    %v4099 = vunpack.c.l.b16 %v1382
    %v4100 = vunpack.c.h.b16 %v1382
    %v4101 = vunpack.c.l.b16 %v1383
    %v4102 = vunpack.c.h.b16 %v1383
    %v4103 = vunpack.c.l.b16 %v1384
    %v4104 = vunpack.c.h.b16 %v1384
    %v4105 = vunpack.c.l.b16 %v1385
    %v4106 = vunpack.c.h.b16 %v1385
    %v4107 = vunpack.c.l.b16 %v1386
    %v4108 = vunpack.c.h.b16 %v1386
    %v4109 = vunpack.c.l.b16 %v1387
    %v4110 = vunpack.c.h.b16 %v1387
    %v4111 = vunpack.c.l.b16 %v1388
    %v4112 = vunpack.c.h.b16 %v1388
    %v4113 = vunpack.c.l.b16 %v1389
    %v4114 = vunpack.c.h.b16 %v1389
    %v4115 = vunpack.c.l.b16 %v1390
    %v4116 = vunpack.c.h.b16 %v1390
    %v4117 = vunpack.c.l.b16 %v1391
    %v4118 = vunpack.c.h.b16 %v1391
    %v4119 = vunpack.c.l.b16 %v1392
    %v4120 = vunpack.c.h.b16 %v1392
    %v4121 = vunpack.c.l.b16 %v1393
    %v4122 = vunpack.c.h.b16 %v1393
    %v4123 = vunpack.c.l.b16 %v1394
    %v4124 = vunpack.c.h.b16 %v1394
    %v4125 = vunpack.c.l.b16 %v1395
    %v4126 = vunpack.c.h.b16 %v1395
    %v4127 = vunpack.c.l.b16 %v1396
    %v4128 = vunpack.c.h.b16 %v1396
    %v4129 = vunpack.c.l.b16 %v1397
    %v4130 = vunpack.c.h.b16 %v1397
    %v4131 = vunpack.c.l.b16 %v1398
    %v4132 = vunpack.c.h.b16 %v1398
    %v4133 = vunpack.c.l.b16 %v1399
    %v4134 = vunpack.c.h.b16 %v1399
    %v4135 = vunpack.c.l.b16 %v1400
    %v4136 = vunpack.c.h.b16 %v1400
    %v4137 = vunpack.c.l.b16 %v1401
    %v4138 = vunpack.c.h.b16 %v1401
    %v4139 = vunpack.c.l.b16 %v1402
    %v4140 = vunpack.c.h.b16 %v1402
    %v4141 = vunpack.c.l.b16 %v1403
    %v4142 = vunpack.c.h.b16 %v1403
    %v4143 = vunpack.c.l.b16 %v1404
    %v4144 = vunpack.c.h.b16 %v1404
    %v4145 = vunpack.c.l.b16 %v1405
    %v4146 = vunpack.c.h.b16 %v1405
    %v4147 = vunpack.c.l.b16 %v1406
    %v4148 = vunpack.c.h.b16 %v1406
    %v4149 = vunpack.c.l.b16 %v1407
    %v4150 = vunpack.c.h.b16 %v1407
    %v4151 = vunpack.c.l.b16 %v1408
    %v4152 = vunpack.c.h.b16 %v1408
    %v4153 = vunpack.c.l.b16 %v1409
    %v4154 = vunpack.c.h.b16 %v1409
    %v4155 = vunpack.c.l.b16 %v1410
    %v4156 = vunpack.c.h.b16 %v1410
    %v4157 = vunpack.c.l.b16 %v1411
    %v4158 = vunpack.c.h.b16 %v1411
    %v4159 = vunpack.c.l.b16 %v1412
    %v4160 = vunpack.c.h.b16 %v1412
    %v4161 = vunpack.c.l.b16 %v1413
    %v4162 = vunpack.c.h.b16 %v1413
    %v4163 = vunpack.c.l.b16 %v1414
    %v4164 = vunpack.c.h.b16 %v1414
    %v4165 = vunpack.c.l.b16 %v1415
    %v4166 = vunpack.c.h.b16 %v1415
    %v4167 = vunpack.c.l.b16 %v1416
    %v4168 = vunpack.c.h.b16 %v1416
    %v4169 = vunpack.c.l.b16 %v1417
    %v4170 = vunpack.c.h.b16 %v1417
    %v4171 = vunpack.c.l.b16 %v1418
    %v4172 = vunpack.c.h.b16 %v1418
    %v4173 = vunpack.c.l.b16 %v1419
    %v4174 = vunpack.c.h.b16 %v1419
    %v4175 = vunpack.c.l.b16 %v1420
    %v4176 = vunpack.c.h.b16 %v1420
    %v4177 = vunpack.c.l.b16 %v1421
    %v4178 = vunpack.c.h.b16 %v1421
    %v4179 = vunpack.c.l.b16 %v1422
    %v4180 = vunpack.c.h.b16 %v1422
    %v4181 = vunpack.c.l.b16 %v1423
    %v4182 = vunpack.c.h.b16 %v1423
    %v4183 = vunpack.c.l.b16 %v1424
    %v4184 = vunpack.c.h.b16 %v1424
    %v4185 = vunpack.c.l.b16 %v1425
    %v4186 = vunpack.c.h.b16 %v1425
    %v4187 = vunpack.c.l.b16 %v1426
    %v4188 = vunpack.c.h.b16 %v1426
    %v4189 = vunpack.c.l.b16 %v1427
    %v4190 = vunpack.c.h.b16 %v1427
    %v4191 = vunpack.c.l.b16 %v1428
    %v4192 = vunpack.c.h.b16 %v1428
    %v4193 = vunpack.c.l.b16 %v1429
    %v4194 = vunpack.c.h.b16 %v1429
    %v4195 = vunpack.c.l.b16 %v1430
    %v4196 = vunpack.c.h.b16 %v1430
    %v4197 = vunpack.c.l.b16 %v1431
    %v4198 = vunpack.c.h.b16 %v1431
    %v4199 = vunpack.c.l.b16 %v1432
    %v4200 = vunpack.c.h.b16 %v1432
    %v4201 = vunpack.c.l.b16 %v1433
    %v4202 = vunpack.c.h.b16 %v1433
    %v4203 = vunpack.c.l.b16 %v1434
    %v4204 = vunpack.c.h.b16 %v1434
    %v4205 = vunpack.c.l.b16 %v1435
    %v4206 = vunpack.c.h.b16 %v1435
    %v4207 = vunpack.c.l.b16 %v1436
    %v4208 = vunpack.c.h.b16 %v1436
    %v4209 = vunpack.c.l.b16 %v1437
    %v4210 = vunpack.c.h.b16 %v1437
    %v4211 = vunpack.c.l.b16 %v1438
    %v4212 = vunpack.c.h.b16 %v1438
    %v4213 = vunpack.c.l.b16 %v1439
    %v4214 = vunpack.c.h.b16 %v1439
    %v4215 = vunpack.c.l.b16 %v1440
    %v4216 = vunpack.c.h.b16 %v1440
    %v4217 = vunpack.c.l.b16 %v1441
    %v4218 = vunpack.c.h.b16 %v1441
    %v4219 = vunpack.c.l.b16 %v1442
    %v4220 = vunpack.c.h.b16 %v1442
    %v4221 = vunpack.c.l.b16 %v1443
    %v4222 = vunpack.c.h.b16 %v1443
    %v4223 = vunpack.c.l.b16 %v1444
    %v4224 = vunpack.c.h.b16 %v1444
    %v4225 = vunpack.c.l.b16 %v1445
    %v4226 = vunpack.c.h.b16 %v1445
    %v4227 = vunpack.c.l.b16 %v1446
    %v4228 = vunpack.c.h.b16 %v1446
    %v4229 = vunpack.c.l.b16 %v1447
    %v4230 = vunpack.c.h.b16 %v1447
    %v4231 = vunpack.c.l.b16 %v1448
    %v4232 = vunpack.c.h.b16 %v1448
    %v4233 = vunpack.c.l.b16 %v1449
    %v4234 = vunpack.c.h.b16 %v1449
    %v4235 = vunpack.c.l.b16 %v1450
    %v4236 = vunpack.c.h.b16 %v1450
    %v4237 = vunpack.c.l.b16 %v1451
    %v4238 = vunpack.c.h.b16 %v1451
    %v4239 = vunpack.c.l.b16 %v1452
    %v4240 = vunpack.c.h.b16 %v1452
    %v4241 = vunpack.c.l.b16 %v1453
    %v4242 = vunpack.c.h.b16 %v1453
    %v4243 = vunpack.c.l.b16 %v1454
    %v4244 = vunpack.c.h.b16 %v1454
    %v4245 = vunpack.c.l.b16 %v1455
    %v4246 = vunpack.c.h.b16 %v1455
    %v4247 = vunpack.c.l.b16 %v1456
    %v4248 = vunpack.c.h.b16 %v1456
    %v4249 = vunpack.c.l.b16 %v1457
    %v4250 = vunpack.c.h.b16 %v1457
    %v4251 = vunpack.c.l.b16 %v1458
    %v4252 = vunpack.c.h.b16 %v1458
    %v4253 = vunpack.c.l.b16 %v1459
    %v4254 = vunpack.c.h.b16 %v1459
    %v4255 = vunpack.c.l.b16 %v1460
    %v4256 = vunpack.c.h.b16 %v1460
    %v4257 = vunpack.c.l.b16 %v1461
    %v4258 = vunpack.c.h.b16 %v1461
    %v4259 = vunpack.c.l.b16 %v1462
    %v4260 = vunpack.c.h.b16 %v1462
    %v4261 = vunpack.c.l.b16 %v1463
    %v4262 = vunpack.c.h.b16 %v1463
    %v4263 = vunpack.c.l.b16 %v1464
    %v4264 = vunpack.c.h.b16 %v1464
    %v4265 = vunpack.c.l.b16 %v1465
    %v4266 = vunpack.c.h.b16 %v1465
    %v4267 = vunpack.c.l.b16 %v1466
    %v4268 = vunpack.c.h.b16 %v1466
    %v4269 = vunpack.c.l.b16 %v1467
    %v4270 = vunpack.c.h.b16 %v1467
    %v4271 = vunpack.c.l.b16 %v1468
    %v4272 = vunpack.c.h.b16 %v1468
    %v4273 = vunpack.c.l.b16 %v1469
    %v4274 = vunpack.c.h.b16 %v1469
    %v4275 = vunpack.c.l.b16 %v1470
    %v4276 = vunpack.c.h.b16 %v1470
    %v4277 = vunpack.c.l.b16 %v1471
    %v4278 = vunpack.c.h.b16 %v1471
    %v4279 = vunpack.c.l.b16 %v1472
    %v4280 = vunpack.c.h.b16 %v1472
    %v4281 = vunpack.c.l.b16 %v1473
    %v4282 = vunpack.c.h.b16 %v1473
    %v4283 = vunpack.c.l.b16 %v1474
    %v4284 = vunpack.c.h.b16 %v1474
    %v4285 = vunpack.c.l.b16 %v1475
    %v4286 = vunpack.c.h.b16 %v1475
    %v4287 = vunpack.c.l.b16 %v1476
    %v4288 = vunpack.c.h.b16 %v1476
    %v4289 = vunpack.c.l.b16 %v1477
    %v4290 = vunpack.c.h.b16 %v1477
    %v4291 = vunpack.c.l.b16 %v1478
    %v4292 = vunpack.c.h.b16 %v1478
    %v4293 = vunpack.c.l.b16 %v1479
    %v4294 = vunpack.c.h.b16 %v1479
    %v4295 = vunpack.c.l.b16 %v1480
    %v4296 = vunpack.c.h.b16 %v1480
    %v4297 = vunpack.c.l.b16 %v1481
    %v4298 = vunpack.c.h.b16 %v1481
    %v4299 = vunpack.c.l.b16 %v1482
    %v4300 = vunpack.c.h.b16 %v1482
    %v4301 = vunpack.c.l.b16 %v1483
    %v4302 = vunpack.c.h.b16 %v1483
    %v4303 = vunpack.c.l.b16 %v1484
    %v4304 = vunpack.c.h.b16 %v1484
    %v4305 = vunpack.c.l.b16 %v1485
    %v4306 = vunpack.c.h.b16 %v1485
    %v4307 = vunpack.c.l.b16 %v1486
    %v4308 = vunpack.c.h.b16 %v1486
    %v4309 = vunpack.c.l.b16 %v1487
    %v4310 = vunpack.c.h.b16 %v1487
    %v4311 = vunpack.c.l.b16 %v1488
    %v4312 = vunpack.c.h.b16 %v1488
    %v4313 = vunpack.c.l.b16 %v1489
    %v4314 = vunpack.c.h.b16 %v1489
    %v4315 = vunpack.c.l.b16 %v1490
    %v4316 = vunpack.c.h.b16 %v1490
    %v4317 = vunpack.c.l.b16 %v1491
    %v4318 = vunpack.c.h.b16 %v1491
    %v4319 = vunpack.c.l.b16 %v1492
    %v4320 = vunpack.c.h.b16 %v1492
    %v4321 = vunpack.c.l.b16 %v1493
    %v4322 = vunpack.c.h.b16 %v1493
    %v4323 = vunpack.c.l.b16 %v1494
    %v4324 = vunpack.c.h.b16 %v1494
    %v4325 = vunpack.c.l.b16 %v1495
    %v4326 = vunpack.c.h.b16 %v1495
    %v4327 = vunpack.c.l.b16 %v1496
    %v4328 = vunpack.c.h.b16 %v1496
    %v4329 = vunpack.c.l.b16 %v1497
    %v4330 = vunpack.c.h.b16 %v1497
    %v4331 = vunpack.c.l.b16 %v1498
    %v4332 = vunpack.c.h.b16 %v1498
    %v4333 = vunpack.c.l.b16 %v1499
    %v4334 = vunpack.c.h.b16 %v1499
    %v4335 = vunpack.c.l.b16 %v1500
    %v4336 = vunpack.c.h.b16 %v1500
    %v4337 = vunpack.c.l.b16 %v1501
    %v4338 = vunpack.c.h.b16 %v1501
    %v4339 = vunpack.c.l.b16 %v1502
    %v4340 = vunpack.c.h.b16 %v1502
    %v4341 = vunpack.c.l.b16 %v1503
    %v4342 = vunpack.c.h.b16 %v1503
    %v4343 = vunpack.c.l.b16 %v1504
    %v4344 = vunpack.c.h.b16 %v1504
    %v4345 = vunpack.c.l.b16 %v1505
    %v4346 = vunpack.c.h.b16 %v1505
    %v4347 = vunpack.c.l.b16 %v1506
    %v4348 = vunpack.c.h.b16 %v1506
    %v4349 = vunpack.c.l.b16 %v1507
    %v4350 = vunpack.c.h.b16 %v1507
    %v4351 = vunpack.c.l.b16 %v1508
    %v4352 = vunpack.c.h.b16 %v1508
    %v4353 = vunpack.c.l.b16 %v1509
    %v4354 = vunpack.c.h.b16 %v1509
    %v4355 = vunpack.c.l.b16 %v1510
    %v4356 = vunpack.c.h.b16 %v1510
    %v4357 = vunpack.c.l.b16 %v1511
    %v4358 = vunpack.c.h.b16 %v1511
    %v4359 = vunpack.c.l.b16 %v1512
    %v4360 = vunpack.c.h.b16 %v1512
    %v4361 = vunpack.c.l.b16 %v1513
    %v4362 = vunpack.c.h.b16 %v1513
    %v4363 = vunpack.c.l.b16 %v1514
    %v4364 = vunpack.c.h.b16 %v1514
    %v4365 = vunpack.c.l.b16 %v1515
    %v4366 = vunpack.c.h.b16 %v1515
    %v4367 = vunpack.c.l.b16 %v1516
    %v4368 = vunpack.c.h.b16 %v1516
    %v4369 = vunpack.c.l.b16 %v1517
    %v4370 = vunpack.c.h.b16 %v1517
    %v4371 = vunpack.c.l.b16 %v1518
    %v4372 = vunpack.c.h.b16 %v1518
    %v4373 = vunpack.c.l.b16 %v1519
    %v4374 = vunpack.c.h.b16 %v1519
    %v4375 = vunpack.c.l.b16 %v1520
    %v4376 = vunpack.c.h.b16 %v1520
    %v4377 = vunpack.c.l.b16 %v1521
    %v4378 = vunpack.c.h.b16 %v1521
    %v4379 = vunpack.c.l.b16 %v1522
    %v4380 = vunpack.c.h.b16 %v1522
    %v4381 = vunpack.c.l.b16 %v1523
    %v4382 = vunpack.c.h.b16 %v1523
    %v4383 = vunpack.c.l.b16 %v1524
    %v4384 = vunpack.c.h.b16 %v1524
    %v4385 = vunpack.c.l.b16 %v1525
    %v4386 = vunpack.c.h.b16 %v1525
    %v4387 = vunpack.c.l.b16 %v1526
    %v4388 = vunpack.c.h.b16 %v1526
    %v4389 = vunpack.c.l.b16 %v1527
    %v4390 = vunpack.c.h.b16 %v1527
    %v4391 = vunpack.c.l.b16 %v1528
    %v4392 = vunpack.c.h.b16 %v1528
    %v4393 = vunpack.c.l.b16 %v1529
    %v4394 = vunpack.c.h.b16 %v1529
    %v4395 = vunpack.c.l.b16 %v1530
    %v4396 = vunpack.c.h.b16 %v1530
    %v4397 = vunpack.c.l.b16 %v1531
    %v4398 = vunpack.c.h.b16 %v1531
    %v4399 = vunpack.c.l.b16 %v1532
    %v4400 = vunpack.c.h.b16 %v1532
    %v4401 = vunpack.c.l.b16 %v1533
    %v4402 = vunpack.c.h.b16 %v1533
    %v4403 = vunpack.c.l.b16 %v1534
    %v4404 = vunpack.c.h.b16 %v1534
    %v4405 = vunpack.c.l.b16 %v1535
    %v4406 = vunpack.c.h.b16 %v1535
    %v4407 = vunpack.c.l.b16 %v1536
    %v4408 = vunpack.c.h.b16 %v1536
    %v4409 = vunpack.c.l.b16 %v1537
    %v4410 = vunpack.c.h.b16 %v1537
    %v4411 = vunpack.c.l.b16 %v1538
    %v4412 = vunpack.c.h.b16 %v1538
    %v4413 = vunpack.c.l.b16 %v1539
    %v4414 = vunpack.c.h.b16 %v1539
    %v4415 = vunpack.c.l.b16 %v1540
    %v4416 = vunpack.c.h.b16 %v1540
    %v4417 = vunpack.c.l.b16 %v1541
    %v4418 = vunpack.c.h.b16 %v1541
    %v4419 = vunpack.c.l.b16 %v1542
    %v4420 = vunpack.c.h.b16 %v1542
    %v4421 = vunpack.c.l.b16 %v1543
    %v4422 = vunpack.c.h.b16 %v1543
    %v4423 = vunpack.c.l.b16 %v1544
    %v4424 = vunpack.c.h.b16 %v1544
    %v4425 = vunpack.c.l.b16 %v1545
    %v4426 = vunpack.c.h.b16 %v1545
    %v4427 = vunpack.c.l.b16 %v1546
    %v4428 = vunpack.c.h.b16 %v1546
    %v4429 = vunpack.c.l.b16 %v1547
    %v4430 = vunpack.c.h.b16 %v1547
    %v4431 = vunpack.c.l.b16 %v1548
    %v4432 = vunpack.c.h.b16 %v1548
    %v4433 = vunpack.c.l.b16 %v1549
    %v4434 = vunpack.c.h.b16 %v1549
    %v4435 = vunpack.c.l.b16 %v1550
    %v4436 = vunpack.c.h.b16 %v1550
    %v4437 = vunpack.c.l.b16 %v1551
    %v4438 = vunpack.c.h.b16 %v1551
    %v4439 = vunpack.c.l.b16 %v1552
    %v4440 = vunpack.c.h.b16 %v1552
    %v4441 = vunpack.c.l.b16 %v1553
    %v4442 = vunpack.c.h.b16 %v1553
    %v4443 = vunpack.c.l.b16 %v1554
    %v4444 = vunpack.c.h.b16 %v1554
    %v4445 = vunpack.c.l.b16 %v1555
    %v4446 = vunpack.c.h.b16 %v1555
    %v4447 = vunpack.c.l.b16 %v1556
    %v4448 = vunpack.c.h.b16 %v1556
    %v4449 = vunpack.c.l.b16 %v1557
    %v4450 = vunpack.c.h.b16 %v1557
    %v4451 = vunpack.c.l.b16 %v1558
    %v4452 = vunpack.c.h.b16 %v1558
    %v4453 = vunpack.c.l.b16 %v1559
    %v4454 = vunpack.c.h.b16 %v1559
    %v4455 = vunpack.c.l.b16 %v1560
    %v4456 = vunpack.c.h.b16 %v1560
    %v4457 = vunpack.c.l.b16 %v1561
    %v4458 = vunpack.c.h.b16 %v1561
    %v4459 = vunpack.c.l.b16 %v1562
    %v4460 = vunpack.c.h.b16 %v1562
    %v4461 = vunpack.c.l.b16 %v1563
    %v4462 = vunpack.c.h.b16 %v1563
    %v4463 = vunpack.c.l.b16 %v1564
    %v4464 = vunpack.c.h.b16 %v1564
    %v4465 = vunpack.c.l.b16 %v1565
    %v4466 = vunpack.c.h.b16 %v1565
    %v4467 = vunpack.c.l.b16 %v1566
    %v4468 = vunpack.c.h.b16 %v1566
    %v4469 = vunpack.c.l.b16 %v1567
    %v4470 = vunpack.c.h.b16 %v1567
    %v4471 = vunpack.c.l.b16 %v1568
    %v4472 = vunpack.c.h.b16 %v1568
    %v4473 = vunpack.c.l.b16 %v1569
    %v4474 = vunpack.c.h.b16 %v1569
    %v4475 = vunpack.c.l.b16 %v1570
    %v4476 = vunpack.c.h.b16 %v1570
    %v4477 = vunpack.c.l.b16 %v1571
    %v4478 = vunpack.c.h.b16 %v1571
    %v4479 = vunpack.c.l.b16 %v1572
    %v4480 = vunpack.c.h.b16 %v1572
    %v4481 = vunpack.c.l.b16 %v1573
    %v4482 = vunpack.c.h.b16 %v1573
    %v4483 = vunpack.c.l.b16 %v1574
    %v4484 = vunpack.c.h.b16 %v1574
    %v4485 = vunpack.c.l.b16 %v1575
    %v4486 = vunpack.c.h.b16 %v1575
    %v4487 = vunpack.c.l.b16 %v1576
    %v4488 = vunpack.c.h.b16 %v1576
    %v4489 = vunpack.c.l.b16 %v1577
    %v4490 = vunpack.c.h.b16 %v1577
    %v4491 = vunpack.c.l.b16 %v1578
    %v4492 = vunpack.c.h.b16 %v1578
    %v4493 = vunpack.c.l.b16 %v1579
    %v4494 = vunpack.c.h.b16 %v1579
    %v4495 = vunpack.c.l.b16 %v1580
    %v4496 = vunpack.c.h.b16 %v1580
    %v4497 = vunpack.c.l.b16 %v1581
    %v4498 = vunpack.c.h.b16 %v1581
    %v4499 = vunpack.c.l.b16 %v1582
    %v4500 = vunpack.c.h.b16 %v1582
    %v4501 = vunpack.c.l.b16 %v1583
    %v4502 = vunpack.c.h.b16 %v1583
    %v4503 = vunpack.c.l.b16 %v1584
    %v4504 = vunpack.c.h.b16 %v1584
    %v4505 = vunpack.c.l.b16 %v1585
    %v4506 = vunpack.c.h.b16 %v1585
    %v4507 = vunpack.c.l.b16 %v1586
    %v4508 = vunpack.c.h.b16 %v1586
    %v4509 = vunpack.c.l.b16 %v1587
    %v4510 = vunpack.c.h.b16 %v1587
    %v4511 = vunpack.c.l.b16 %v1588
    %v4512 = vunpack.c.h.b16 %v1588
    %v4513 = vunpack.c.l.b16 %v1589
    %v4514 = vunpack.c.h.b16 %v1589
    %v4515 = vunpack.c.l.b16 %v1590
    %v4516 = vunpack.c.h.b16 %v1590
    %v4517 = vunpack.c.l.b16 %v1591
    %v4518 = vunpack.c.h.b16 %v1591
    %v4519 = vunpack.c.l.b16 %v1592
    %v4520 = vunpack.c.h.b16 %v1592
    %v4521 = vunpack.c.l.b16 %v1593
    %v4522 = vunpack.c.h.b16 %v1593
    %v4523 = vunpack.c.l.b16 %v1594
    %v4524 = vunpack.c.h.b16 %v1594
    %v4525 = vunpack.c.l.b16 %v1595
    %v4526 = vunpack.c.h.b16 %v1595
    %v4527 = vunpack.c.l.b16 %v1596
    %v4528 = vunpack.c.h.b16 %v1596
    %v4529 = vunpack.c.l.b16 %v1597
    %v4530 = vunpack.c.h.b16 %v1597
    %v4531 = vunpack.c.l.b16 %v1598
    %v4532 = vunpack.c.h.b16 %v1598
    %v4533 = vunpack.c.l.b16 %v1599
    %v4534 = vunpack.c.h.b16 %v1599
    %v4535 = vunpack.c.l.b16 %v1600
    %v4536 = vunpack.c.h.b16 %v1600
    %v4537 = vunpack.c.l.b16 %v1601
    %v4538 = vunpack.c.h.b16 %v1601
    %v4539 = vunpack.c.l.b16 %v1602
    %v4540 = vunpack.c.h.b16 %v1602
    %v4541 = vunpack.c.l.b16 %v1603
    %v4542 = vunpack.c.h.b16 %v1603
    %v4543 = vunpack.c.l.b16 %v1604
    %v4544 = vunpack.c.h.b16 %v1604
    %v4545 = vunpack.c.l.b16 %v1605
    %v4546 = vunpack.c.h.b16 %v1605
    %v4547 = vunpack.c.l.b16 %v1606
    %v4548 = vunpack.c.h.b16 %v1606
    %v4549 = vunpack.c.l.b16 %v1607
    %v4550 = vunpack.c.h.b16 %v1607
    %v4551 = vunpack.c.l.b16 %v1608
    %v4552 = vunpack.c.h.b16 %v1608
    %v4553 = vunpack.c.l.b16 %v1609
    %v4554 = vunpack.c.h.b16 %v1609
    %v4555 = vunpack.c.l.b16 %v1610
    %v4556 = vunpack.c.h.b16 %v1610
    %v4557 = vunpack.c.l.b16 %v1611
    %v4558 = vunpack.c.h.b16 %v1611
    %v4559 = vunpack.c.l.b16 %v1612
    %v4560 = vunpack.c.h.b16 %v1612
    %v4561 = vunpack.c.l.b16 %v1613
    %v4562 = vunpack.c.h.b16 %v1613
    %v4563 = vunpack.c.l.b16 %v1614
    %v4564 = vunpack.c.h.b16 %v1614
    %v4565 = vunpack.c.l.b16 %v1615
    %v4566 = vunpack.c.h.b16 %v1615
    %v4567 = vunpack.c.l.b16 %v1616
    %v4568 = vunpack.c.h.b16 %v1616
    %v4569 = vunpack.c.l.b16 %v1617
    %v4570 = vunpack.c.h.b16 %v1617
    %v4571 = vunpack.c.l.b16 %v1618
    %v4572 = vunpack.c.h.b16 %v1618
    %v4573 = vunpack.c.l.b16 %v1619
    %v4574 = vunpack.c.h.b16 %v1619
    %v4575 = vunpack.c.l.b16 %v1620
    %v4576 = vunpack.c.h.b16 %v1620
    %v4577 = vunpack.c.l.b16 %v1621
    %v4578 = vunpack.c.h.b16 %v1621
    %v4579 = vunpack.c.l.b16 %v1622
    %v4580 = vunpack.c.h.b16 %v1622
    %v4581 = vunpack.c.l.b16 %v1623
    %v4582 = vunpack.c.h.b16 %v1623
    %v4583 = vunpack.c.l.b16 %v1624
    %v4584 = vunpack.c.h.b16 %v1624
    %v4585 = vunpack.c.l.b16 %v1625
    %v4586 = vunpack.c.h.b16 %v1625
    %v4587 = vunpack.c.l.b16 %v1626
    %v4588 = vunpack.c.h.b16 %v1626
    %v4589 = vunpack.c.l.b16 %v1627
    %v4590 = vunpack.c.h.b16 %v1627
    %v4591 = vunpack.c.l.b16 %v1628
    %v4592 = vunpack.c.h.b16 %v1628
    %v4593 = vunpack.c.l.b16 %v1629
    %v4594 = vunpack.c.h.b16 %v1629
    %v4595 = vunpack.c.l.b16 %v1630
    %v4596 = vunpack.c.h.b16 %v1630
    %v4597 = vunpack.c.l.b16 %v1631
    %v4598 = vunpack.c.h.b16 %v1631
    %v4599 = vunpack.c.l.b16 %v1632
    %v4600 = vunpack.c.h.b16 %v1632
    %v4601 = vunpack.c.l.b16 %v1633
    %v4602 = vunpack.c.h.b16 %v1633
    %v4603 = vunpack.c.l.b16 %v1634
    %v4604 = vunpack.c.h.b16 %v1634
    %v4605 = vunpack.c.l.b16 %v1635
    %v4606 = vunpack.c.h.b16 %v1635
    %v4607 = vunpack.c.l.b16 %v1636
    %v4608 = vunpack.c.h.b16 %v1636
    %v4609 = vunpack.c.l.b16 %v1637
    %v4610 = vunpack.c.h.b16 %v1637
    %v4611 = vunpack.c.l.b16 %v1638
    %v4612 = vunpack.c.h.b16 %v1638
    %v4613 = vunpack.c.l.b16 %v1639
    %v4614 = vunpack.c.h.b16 %v1639
    %v4615 = vunpack.c.l.b16 %v1640
    %v4616 = vunpack.c.h.b16 %v1640
    %v4617 = vunpack.c.l.b16 %v1641
    %v4618 = vunpack.c.h.b16 %v1641
    %v4619 = vunpack.c.l.b16 %v1642
    %v4620 = vunpack.c.h.b16 %v1642
    %v4621 = vunpack.c.l.b16 %v1643
    %v4622 = vunpack.c.h.b16 %v1643
    %v4623 = vunpack.c.l.b16 %v1644
    %v4624 = vunpack.c.h.b16 %v1644
    %v4625 = vunpack.c.l.b16 %v1645
    %v4626 = vunpack.c.h.b16 %v1645
    %v4627 = vunpack.c.l.b16 %v1646
    %v4628 = vunpack.c.h.b16 %v1646
    %v4629 = vunpack.c.l.b16 %v1647
    %v4630 = vunpack.c.h.b16 %v1647
    %v4631 = vunpack.c.l.b16 %v1648
    %v4632 = vunpack.c.h.b16 %v1648
    %v4633 = vunpack.c.l.b16 %v1649
    %v4634 = vunpack.c.h.b16 %v1649
    %v4635 = vunpack.c.l.b16 %v1650
    %v4636 = vunpack.c.h.b16 %v1650
    %v4637 = vunpack.c.l.b16 %v1651
    %v4638 = vunpack.c.h.b16 %v1651
    %v4639 = vunpack.c.l.b16 %v1652
    %v4640 = vunpack.c.h.b16 %v1652
    %v4641 = vunpack.c.l.b16 %v1653
    %v4642 = vunpack.c.h.b16 %v1653
    %v4643 = vunpack.c.l.b16 %v1654
    %v4644 = vunpack.c.h.b16 %v1654
    %v4645 = vunpack.c.l.b16 %v1655
    %v4646 = vunpack.c.h.b16 %v1655
    %v4647 = vunpack.c.l.b16 %v1656
    %v4648 = vunpack.c.h.b16 %v1656
    %v4649 = vunpack.c.l.b16 %v1657
    %v4650 = vunpack.c.h.b16 %v1657
    %v4651 = vunpack.c.l.b16 %v1658
    %v4652 = vunpack.c.h.b16 %v1658
    %v4653 = vunpack.c.l.b16 %v1659
    %v4654 = vunpack.c.h.b16 %v1659
    %v4655 = vunpack.c.l.b16 %v1660
    %v4656 = vunpack.c.h.b16 %v1660
    %v4657 = vunpack.c.l.b16 %v1661
    %v4658 = vunpack.c.h.b16 %v1661
    %v4659 = vunpack.c.l.b16 %v1662
    %v4660 = vunpack.c.h.b16 %v1662
    %v4661 = vunpack.c.l.b16 %v1663
    %v4662 = vunpack.c.h.b16 %v1663
    %v4663 = vunpack.c.l.b16 %v1664
    %v4664 = vunpack.c.h.b16 %v1664
    %v4665 = vunpack.c.l.b16 %v1665
    %v4666 = vunpack.c.h.b16 %v1665
    %v4667 = vunpack.c.l.b16 %v1666
    %v4668 = vunpack.c.h.b16 %v1666
    %v4669 = vunpack.c.l.b16 %v1667
    %v4670 = vunpack.c.h.b16 %v1667
    %v4671 = vunpack.c.l.b16 %v1668
    %v4672 = vunpack.c.h.b16 %v1668
    %v4673 = vunpack.c.l.b16 %v1669
    %v4674 = vunpack.c.h.b16 %v1669
    %v4675 = vunpack.c.l.b16 %v1670
    %v4676 = vunpack.c.h.b16 %v1670
    %v4677 = vunpack.c.l.b16 %v1671
    %v4678 = vunpack.c.h.b16 %v1671
    %v4679 = vunpack.c.l.b16 %v1672
    %v4680 = vunpack.c.h.b16 %v1672
    %v4681 = vunpack.c.l.b16 %v1673
    %v4682 = vunpack.c.h.b16 %v1673
    %v4683 = vunpack.c.l.b16 %v1674
    %v4684 = vunpack.c.h.b16 %v1674
    %v4685 = vunpack.c.l.b16 %v1675
    %v4686 = vunpack.c.h.b16 %v1675
    %v4687 = vunpack.c.l.b16 %v1676
    %v4688 = vunpack.c.h.b16 %v1676
    %v4689 = vunpack.c.l.b16 %v1677
    %v4690 = vunpack.c.h.b16 %v1677
    %v4691 = vunpack.c.l.b16 %v1678
    %v4692 = vunpack.c.h.b16 %v1678
    %v4693 = vunpack.c.l.b16 %v1679
    %v4694 = vunpack.c.h.b16 %v1679
    %v4695 = vunpack.c.l.b16 %v1680
    %v4696 = vunpack.c.h.b16 %v1680
    %v4697 = vunpack.c.l.b16 %v1681
    %v4698 = vunpack.c.h.b16 %v1681
    %v4699 = vunpack.c.l.b16 %v1682
    %v4700 = vunpack.c.h.b16 %v1682
    %v4701 = vunpack.c.l.b16 %v1683
    %v4702 = vunpack.c.h.b16 %v1683
    %v4703 = vunpack.c.l.b16 %v1684
    %v4704 = vunpack.c.h.b16 %v1684
    %v4705 = vunpack.c.l.b16 %v1685
    %v4706 = vunpack.c.h.b16 %v1685
    %v4707 = vunpack.c.l.b16 %v1686
    %v4708 = vunpack.c.h.b16 %v1686
    %v4709 = vunpack.c.l.b16 %v1687
    %v4710 = vunpack.c.h.b16 %v1687
    %v4711 = vunpack.c.l.b16 %v1688
    %v4712 = vunpack.c.h.b16 %v1688
    %v4713 = vunpack.c.l.b16 %v1689
    %v4714 = vunpack.c.h.b16 %v1689
    %v4715 = vunpack.c.l.b16 %v1690
    %v4716 = vunpack.c.h.b16 %v1690
    %v4717 = vunpack.c.l.b16 %v1691
    %v4718 = vunpack.c.h.b16 %v1691
    %v4719 = vunpack.c.l.b16 %v1692
    %v4720 = vunpack.c.h.b16 %v1692
    %v4721 = vunpack.c.l.b16 %v1693
    %v4722 = vunpack.c.h.b16 %v1693
    %v4723 = vunpack.c.l.b16 %v1694
    %v4724 = vunpack.c.h.b16 %v1694
    %v4725 = vunpack.c.l.b16 %v1695
    %v4726 = vunpack.c.h.b16 %v1695
    %v4727 = vunpack.c.l.b16 %v1696
    %v4728 = vunpack.c.h.b16 %v1696
    %v4729 = vunpack.c.l.b16 %v1697
    %v4730 = vunpack.c.h.b16 %v1697
    %v4731 = vunpack.c.l.b16 %v1698
    %v4732 = vunpack.c.h.b16 %v1698
    %v4733 = vunpack.c.l.b16 %v1699
    %v4734 = vunpack.c.h.b16 %v1699
    %v4735 = vunpack.c.l.b16 %v1700
    %v4736 = vunpack.c.h.b16 %v1700
    %v4737 = vunpack.c.l.b16 %v1701
    %v4738 = vunpack.c.h.b16 %v1701
    %v4739 = vunpack.c.l.b16 %v1702
    %v4740 = vunpack.c.h.b16 %v1702
    %v4741 = vunpack.c.l.b16 %v1703
    %v4742 = vunpack.c.h.b16 %v1703
    %v4743 = vunpack.c.l.b16 %v1704
    %v4744 = vunpack.c.h.b16 %v1704
    %v4745 = vunpack.c.l.b16 %v1705
    %v4746 = vunpack.c.h.b16 %v1705
    %v4747 = vunpack.c.l.b16 %v1706
    %v4748 = vunpack.c.h.b16 %v1706
    %v4749 = vunpack.c.l.b16 %v1707
    %v4750 = vunpack.c.h.b16 %v1707
    %v4751 = vunpack.c.l.b16 %v1708
    %v4752 = vunpack.c.h.b16 %v1708
    %v4753 = vunpack.c.l.b16 %v1709
    %v4754 = vunpack.c.h.b16 %v1709
    %v4755 = vunpack.c.l.b16 %v1710
    %v4756 = vunpack.c.h.b16 %v1710
    %v4757 = vunpack.c.l.b16 %v1711
    %v4758 = vunpack.c.h.b16 %v1711
    %v4759 = vunpack.c.l.b16 %v1712
    %v4760 = vunpack.c.h.b16 %v1712
    %v4761 = vunpack.c.l.b16 %v1713
    %v4762 = vunpack.c.h.b16 %v1713
    %v4763 = vunpack.c.l.b16 %v1714
    %v4764 = vunpack.c.h.b16 %v1714
    %v4765 = vunpack.c.l.b16 %v1715
    %v4766 = vunpack.c.h.b16 %v1715
    %v4767 = vunpack.c.l.b16 %v1716
    %v4768 = vunpack.c.h.b16 %v1716
    %v4769 = vunpack.c.l.b16 %v1717
    %v4770 = vunpack.c.h.b16 %v1717
    %v4771 = vunpack.c.l.b16 %v1718
    %v4772 = vunpack.c.h.b16 %v1718
    %v4773 = vunpack.c.l.b16 %v1719
    %v4774 = vunpack.c.h.b16 %v1719
    %v4775 = vunpack.c.l.b16 %v1720
    %v4776 = vunpack.c.h.b16 %v1720
    %v4777 = vunpack.c.l.b16 %v1721
    %v4778 = vunpack.c.h.b16 %v1721
    %v4779 = vunpack.c.l.b16 %v1722
    %v4780 = vunpack.c.h.b16 %v1722
    %v4781 = vunpack.c.l.b16 %v1723
    %v4782 = vunpack.c.h.b16 %v1723
    %v4783 = vunpack.c.l.b16 %v1724
    %v4784 = vunpack.c.h.b16 %v1724
    %v4785 = vunpack.c.l.b16 %v1725
    %v4786 = vunpack.c.h.b16 %v1725
    %v4787 = vunpack.c.l.b16 %v1726
    %v4788 = vunpack.c.h.b16 %v1726
    %v4789 = vunpack.c.l.b16 %v1727
    %v4790 = vunpack.c.h.b16 %v1727
    %v4791 = vunpack.c.l.b16 %v1728
    %v4792 = vunpack.c.h.b16 %v1728
    %v4793 = vunpack.c.l.b16 %v1729
    %v4794 = vunpack.c.h.b16 %v1729
    %v4795 = vunpack.c.l.b16 %v1730
    %v4796 = vunpack.c.h.b16 %v1730
    %v4797 = vunpack.c.l.b16 %v1731
    %v4798 = vunpack.c.h.b16 %v1731
    %v4799 = vunpack.c.l.b16 %v1732
    %v4800 = vunpack.c.h.b16 %v1732
    %v4801 = vunpack.c.l.b16 %v1733
    %v4802 = vunpack.c.h.b16 %v1733
    %v4803 = vunpack.c.l.b16 %v1734
    %v4804 = vunpack.c.h.b16 %v1734
    %v4805 = vunpack.c.l.b16 %v1735
    %v4806 = vunpack.c.h.b16 %v1735
    %v4807 = vunpack.c.l.b16 %v1736
    %v4808 = vunpack.c.h.b16 %v1736
    %v4809 = vunpack.c.l.b16 %v1737
    %v4810 = vunpack.c.h.b16 %v1737
    %v4811 = vunpack.c.l.b16 %v1738
    %v4812 = vunpack.c.h.b16 %v1738
    %v4813 = vunpack.c.l.b16 %v1739
    %v4814 = vunpack.c.h.b16 %v1739
    %v4815 = vunpack.c.l.b16 %v1740
    %v4816 = vunpack.c.h.b16 %v1740
    %v4817 = vunpack.c.l.b16 %v1741
    %v4818 = vunpack.c.h.b16 %v1741
    %v4819 = vunpack.c.l.b16 %v1742
    %v4820 = vunpack.c.h.b16 %v1742
    %v4821 = vunpack.c.l.b16 %v1743
    %v4822 = vunpack.c.h.b16 %v1743
    %v4823 = vunpack.c.l.b16 %v1744
    %v4824 = vunpack.c.h.b16 %v1744
    %v4825 = vunpack.c.l.b16 %v1745
    %v4826 = vunpack.c.h.b16 %v1745
    %v4827 = vunpack.c.l.b16 %v1746
    %v4828 = vunpack.c.h.b16 %v1746
    %v4829 = vunpack.c.l.b16 %v1747
    %v4830 = vunpack.c.h.b16 %v1747
    %v4831 = vunpack.c.l.b16 %v1748
    %v4832 = vunpack.c.h.b16 %v1748
    %v4833 = vunpack.c.l.b16 %v1749
    %v4834 = vunpack.c.h.b16 %v1749
    %v4835 = vunpack.c.l.b16 %v1750
    %v4836 = vunpack.c.h.b16 %v1750
    %v4837 = vunpack.c.l.b16 %v1751
    %v4838 = vunpack.c.h.b16 %v1751
    %v4839 = vunpack.c.l.b16 %v1752
    %v4840 = vunpack.c.h.b16 %v1752
    %v4841 = vunpack.c.l.b16 %v1753
    %v4842 = vunpack.c.h.b16 %v1753
    %v4843 = vunpack.c.l.b16 %v1754
    %v4844 = vunpack.c.h.b16 %v1754
    %v4845 = vunpack.c.l.b16 %v1755
    %v4846 = vunpack.c.h.b16 %v1755
    %v4847 = vunpack.c.l.b16 %v1756
    %v4848 = vunpack.c.h.b16 %v1756
    %v4849 = vunpack.c.l.b16 %v1757
    %v4850 = vunpack.c.h.b16 %v1757
    %v4851 = vunpack.c.l.b16 %v1758
    %v4852 = vunpack.c.h.b16 %v1758
    %v4853 = vunpack.c.l.b16 %v1759
    %v4854 = vunpack.c.h.b16 %v1759
    %v4855 = vunpack.c.l.b16 %v1760
    %v4856 = vunpack.c.h.b16 %v1760
    %v4857 = vunpack.c.l.b16 %v1761
    %v4858 = vunpack.c.h.b16 %v1761
    %v4859 = vunpack.c.l.b16 %v1762
    %v4860 = vunpack.c.h.b16 %v1762
    %v4861 = vunpack.c.l.b16 %v1763
    %v4862 = vunpack.c.h.b16 %v1763
    %v4863 = vunpack.c.l.b16 %v1764
    %v4864 = vunpack.c.h.b16 %v1764
    %v4865 = vunpack.c.l.b16 %v1765
    %v4866 = vunpack.c.h.b16 %v1765
    %v4867 = vunpack.c.l.b16 %v1766
    %v4868 = vunpack.c.h.b16 %v1766
    %v4869 = vunpack.c.l.b16 %v1767
    %v4870 = vunpack.c.h.b16 %v1767
    %v4871 = vunpack.c.l.b16 %v1768
    %v4872 = vunpack.c.h.b16 %v1768
    %v4873 = vunpack.c.l.b16 %v1769
    %v4874 = vunpack.c.h.b16 %v1769
    %v4875 = vunpack.c.l.b16 %v1770
    %v4876 = vunpack.c.h.b16 %v1770
    %v4877 = vunpack.c.l.b16 %v1771
    %v4878 = vunpack.c.h.b16 %v1771
    %v4879 = vunpack.c.l.b16 %v1772
    %v4880 = vunpack.c.h.b16 %v1772
    %v4881 = vunpack.c.l.b16 %v1773
    %v4882 = vunpack.c.h.b16 %v1773
    %v4883 = vunpack.c.l.b16 %v1774
    %v4884 = vunpack.c.h.b16 %v1774
    %v4885 = vunpack.c.l.b16 %v1775
    %v4886 = vunpack.c.h.b16 %v1775
    %v4887 = vunpack.c.l.b16 %v1776
    %v4888 = vunpack.c.h.b16 %v1776
    %v4889 = vunpack.c.l.b16 %v1777
    %v4890 = vunpack.c.h.b16 %v1777
    %v4891 = vunpack.c.l.b16 %v1778
    %v4892 = vunpack.c.h.b16 %v1778
    %v4893 = vunpack.c.l.b16 %v1779
    %v4894 = vunpack.c.h.b16 %v1779
    %v4895 = vunpack.c.l.b16 %v1780
    %v4896 = vunpack.c.h.b16 %v1780
    %v4897 = vunpack.c.l.b16 %v1781
    %v4898 = vunpack.c.h.b16 %v1781
    %v4899 = vunpack.c.l.b16 %v1782
    %v4900 = vunpack.c.h.b16 %v1782
    %v4901 = vunpack.c.l.b16 %v1783
    %v4902 = vunpack.c.h.b16 %v1783
    %v4903 = vunpack.c.l.b16 %v1784
    %v4904 = vunpack.c.h.b16 %v1784
    %v4905 = vunpack.c.l.b16 %v1785
    %v4906 = vunpack.c.h.b16 %v1785
    %v4907 = vunpack.c.l.b16 %v1786
    %v4908 = vunpack.c.h.b16 %v1786
    %v4909 = vunpack.c.l.b16 %v1787
    %v4910 = vunpack.c.h.b16 %v1787
    %v4911 = vunpack.c.l.b16 %v1788
    %v4912 = vunpack.c.h.b16 %v1788
    %v4913 = vunpack.c.l.b16 %v1789
    %v4914 = vunpack.c.h.b16 %v1789
    %v4915 = vunpack.c.l.b16 %v1790
    %v4916 = vunpack.c.h.b16 %v1790
    %v4917 = vunpack.c.l.b16 %v1791
    %v4918 = vunpack.c.h.b16 %v1791
    %v4919 = vunpack.c.l.b16 %v1792
    %v4920 = vunpack.c.h.b16 %v1792
    %v4921 = vunpack.c.l.b16 %v1793
    %v4922 = vunpack.c.h.b16 %v1793
    %v4923 = vunpack.c.l.b16 %v1794
    %v4924 = vunpack.c.h.b16 %v1794
    %v4925 = vunpack.c.l.b16 %v1795
    %v4926 = vunpack.c.h.b16 %v1795
    %v4927 = vunpack.c.l.b16 %v1796
    %v4928 = vunpack.c.h.b16 %v1796
    %v4929 = vunpack.c.l.b16 %v1797
    %v4930 = vunpack.c.h.b16 %v1797
    %v4931 = vunpack.c.l.b16 %v1798
    %v4932 = vunpack.c.h.b16 %v1798
    %v4933 = vunpack.c.l.b16 %v1799
    %v4934 = vunpack.c.h.b16 %v1799
    %v4935 = vunpack.c.l.b16 %v1800
    %v4936 = vunpack.c.h.b16 %v1800
    %v4937 = vunpack.c.l.b16 %v1801
    %v4938 = vunpack.c.h.b16 %v1801
    %v4939 = vunpack.c.l.b16 %v1802
    %v4940 = vunpack.c.h.b16 %v1802
    %v4941 = vunpack.c.l.b16 %v1803
    %v4942 = vunpack.c.h.b16 %v1803
    %v4943 = vunpack.c.l.b16 %v1804
    %v4944 = vunpack.c.h.b16 %v1804
    %v4945 = vunpack.c.l.b16 %v1805
    %v4946 = vunpack.c.h.b16 %v1805
    %v4947 = vunpack.c.l.b16 %v1806
    %v4948 = vunpack.c.h.b16 %v1806
    %v4949 = vunpack.c.l.b16 %v1807
    %v4950 = vunpack.c.h.b16 %v1807
    %v4951 = vunpack.c.l.b16 %v1808
    %v4952 = vunpack.c.h.b16 %v1808
    %v4953 = vunpack.c.l.b16 %v1809
    %v4954 = vunpack.c.h.b16 %v1809
    %v4955 = vunpack.c.l.b16 %v1810
    %v4956 = vunpack.c.h.b16 %v1810
    %v4957 = vunpack.c.l.b16 %v1811
    %v4958 = vunpack.c.h.b16 %v1811
    %v4959 = vunpack.c.l.b16 %v1812
    %v4960 = vunpack.c.h.b16 %v1812
    %v4961 = vunpack.c.l.b16 %v1813
    %v4962 = vunpack.c.h.b16 %v1813
    %v4963 = vunpack.c.l.b16 %v1814
    %v4964 = vunpack.c.h.b16 %v1814
    %v4965 = vunpack.c.l.b16 %v1815
    %v4966 = vunpack.c.h.b16 %v1815
    %v4967 = vunpack.c.l.b16 %v1816
    %v4968 = vunpack.c.h.b16 %v1816
    %v4969 = vunpack.c.l.b16 %v1817
    %v4970 = vunpack.c.h.b16 %v1817
    %v4971 = vunpack.c.l.b16 %v1818
    %v4972 = vunpack.c.h.b16 %v1818
    %v4973 = vunpack.c.l.b16 %v1819
    %v4974 = vunpack.c.h.b16 %v1819
    %v4975 = vunpack.c.l.b16 %v1820
    %v4976 = vunpack.c.h.b16 %v1820
    %v4977 = vunpack.c.l.b16 %v1821
    %v4978 = vunpack.c.h.b16 %v1821
    %v4979 = vunpack.c.l.b16 %v1822
    %v4980 = vunpack.c.h.b16 %v1822
    %v4981 = vunpack.c.l.b16 %v1823
    %v4982 = vunpack.c.h.b16 %v1823
    %v4983 = vunpack.c.l.b16 %v1824
    %v4984 = vunpack.c.h.b16 %v1824
    %v4985 = vunpack.c.l.b16 %v1825
    %v4986 = vunpack.c.h.b16 %v1825
    %v4987 = vunpack.c.l.b16 %v1826
    %v4988 = vunpack.c.h.b16 %v1826
    %v4989 = vunpack.c.l.b16 %v1827
    %v4990 = vunpack.c.h.b16 %v1827
    %v4991 = vunpack.c.l.b16 %v1828
    %v4992 = vunpack.c.h.b16 %v1828
    %v4993 = vunpack.c.l.b16 %v1829
    %v4994 = vunpack.c.h.b16 %v1829
    %v4995 = vunpack.c.l.b16 %v1830
    %v4996 = vunpack.c.h.b16 %v1830
    %v4997 = vunpack.c.l.b16 %v1831
    %v4998 = vunpack.c.h.b16 %v1831
    %v4999 = vunpack.c.l.b16 %v1832
    %v5000 = vunpack.c.h.b16 %v1832
    %v5001 = vunpack.c.l.b16 %v1833
    %v5002 = vunpack.c.h.b16 %v1833
    %v5003 = vunpack.c.l.b16 %v1834
    %v5004 = vunpack.c.h.b16 %v1834
    %v5005 = vunpack.c.l.b16 %v1835
    %v5006 = vunpack.c.h.b16 %v1835
    %v5007 = vunpack.c.l.b16 %v1836
    %v5008 = vunpack.c.h.b16 %v1836
    %v5009 = vunpack.c.l.b16 %v1837
    %v5010 = vunpack.c.h.b16 %v1837
    %v5011 = vunpack.c.l.b16 %v1838
    %v5012 = vunpack.c.h.b16 %v1838
    %v5013 = vunpack.c.l.b16 %v1839
    %v5014 = vunpack.c.h.b16 %v1839
    %v5015 = vunpack.c.l.b16 %v1840
    %v5016 = vunpack.c.h.b16 %v1840
    %v5017 = vunpack.c.l.b16 %v1841
    %v5018 = vunpack.c.h.b16 %v1841
    %v5019 = vunpack.c.l.b16 %v1842
    %v5020 = vunpack.c.h.b16 %v1842
    %v5021 = vunpack.c.l.b16 %v1843
    %v5022 = vunpack.c.h.b16 %v1843
    %v5023 = vunpack.c.l.b16 %v1844
    %v5024 = vunpack.c.h.b16 %v1844
    %v5025 = vunpack.c.l.b16 %v1845
    %v5026 = vunpack.c.h.b16 %v1845
    %v5027 = vunpack.c.l.b16 %v1846
    %v5028 = vunpack.c.h.b16 %v1846
    %v5029 = vunpack.c.l.b16 %v1847
    %v5030 = vunpack.c.h.b16 %v1847
    %v5031 = vunpack.c.l.b16 %v1848
    %v5032 = vunpack.c.h.b16 %v1848
    %v5033 = vunpack.c.l.b16 %v1849
    %v5034 = vunpack.c.h.b16 %v1849
    %v5035 = vpack.c.b16 %v2995, %v2987
    %v5036 = vpack.c.b16 %v2996, %v2988
    %v5037 = vpack.c.b16 %v2997, %v2989
    %v5038 = vpack.c.b16 %v2998, %v2990
    %v5039 = vpack.c.b16 %v2999, %v2991
    %v5040 = vpack.c.b16 %v3000, %v2992
    %v5041 = vpack.c.b16 %v3001, %v2993
    %v5042 = vpack.c.b16 %v3002, %v2994
    %v5043 = vpack.c.b16 %v3011, %v3003
    %v5044 = vpack.c.b16 %v3012, %v3004
    %v5045 = vpack.c.b16 %v3013, %v3005
    %v5046 = vpack.c.b16 %v3014, %v3006
    %v5047 = vpack.c.b16 %v3015, %v3007
    %v5048 = vpack.c.b16 %v3016, %v3008
    %v5049 = vpack.c.b16 %v3017, %v3009
    %v5050 = vpack.c.b16 %v3018, %v3010
    %v5051 = vpack.c.b16 %v3027, %v3019
    %v5052 = vpack.c.b16 %v3028, %v3020
    %v5053 = vpack.c.b16 %v3029, %v3021
    %v5054 = vpack.c.b16 %v3030, %v3022
    %v5055 = vpack.c.b16 %v3031, %v3023
    %v5056 = vpack.c.b16 %v3032, %v3024
    %v5057 = vpack.c.b16 %v3033, %v3025
    %v5058 = vpack.c.b16 %v3034, %v3026
    %v5059 = vpack.c.b16 %v3043, %v3035
    %v5060 = vpack.c.b16 %v3044, %v3036
    %v5061 = vpack.c.b16 %v3045, %v3037
    %v5062 = vpack.c.b16 %v3046, %v3038
    %v5063 = vpack.c.b16 %v3047, %v3039
    %v5064 = vpack.c.b16 %v3048, %v3040
    %v5065 = vpack.c.b16 %v3049, %v3041
    %v5066 = vpack.c.b16 %v3050, %v3042
    %v5067 = vpack.c.b16 %v3059, %v3051
    %v5068 = vpack.c.b16 %v3060, %v3052
    %v5069 = vpack.c.b16 %v3061, %v3053
    %v5070 = vpack.c.b16 %v3062, %v3054
    %v5071 = vpack.c.b16 %v3063, %v3055
    %v5072 = vpack.c.b16 %v3064, %v3056
    %v5073 = vpack.c.b16 %v3065, %v3057
    %v5074 = vpack.c.b16 %v3066, %v3058
    %v5075 = vpack.c.b16 %v3075, %v3067
    %v5076 = vpack.c.b16 %v3076, %v3068
    %v5077 = vpack.c.b16 %v3077, %v3069
    %v5078 = vpack.c.b16 %v3078, %v3070
    %v5079 = vpack.c.b16 %v3079, %v3071
    %v5080 = vpack.c.b16 %v3080, %v3072
    %v5081 = vpack.c.b16 %v3081, %v3073
    %v5082 = vpack.c.b16 %v3082, %v3074
    %v5083 = vpack.c.b16 %v3091, %v3083
    %v5084 = vpack.c.b16 %v3092, %v3084
    %v5085 = vpack.c.b16 %v3093, %v3085
    %v5086 = vpack.c.b16 %v3094, %v3086
    %v5087 = vpack.c.b16 %v3095, %v3087
    %v5088 = vpack.c.b16 %v3096, %v3088
    %v5089 = vpack.c.b16 %v3097, %v3089
    %v5090 = vpack.c.b16 %v3098, %v3090
    %v5091 = vpack.c.b16 %v3107, %v3099
    %v5092 = vpack.c.b16 %v3108, %v3100
    %v5093 = vpack.c.b16 %v3109, %v3101
    %v5094 = vpack.c.b16 %v3110, %v3102
    %v5095 = vpack.c.b16 %v3111, %v3103
    %v5096 = vpack.c.b16 %v3112, %v3104
    %v5097 = vpack.c.b16 %v3113, %v3105
    %v5098 = vpack.c.b16 %v3114, %v3106
    %v5099 = vpack.c.b16 %v3123, %v3115
    %v5100 = vpack.c.b16 %v3124, %v3116
    %v5101 = vpack.c.b16 %v3125, %v3117
    %v5102 = vpack.c.b16 %v3126, %v3118
    %v5103 = vpack.c.b16 %v3127, %v3119
    %v5104 = vpack.c.b16 %v3128, %v3120
    %v5105 = vpack.c.b16 %v3129, %v3121
    %v5106 = vpack.c.b16 %v3130, %v3122
    %v5107 = vpack.c.b16 %v3139, %v3131
    %v5108 = vpack.c.b16 %v3140, %v3132
    %v5109 = vpack.c.b16 %v3141, %v3133
    %v5110 = vpack.c.b16 %v3142, %v3134
    %v5111 = vpack.c.b16 %v3143, %v3135
    %v5112 = vpack.c.b16 %v3144, %v3136
    %v5113 = vpack.c.b16 %v3145, %v3137
    %v5114 = vpack.c.b16 %v3146, %v3138
    %v5115 = vpack.c.b16 %v3155, %v3147
    %v5116 = vpack.c.b16 %v3156, %v3148
    %v5117 = vpack.c.b16 %v3157, %v3149
    %v5118 = vpack.c.b16 %v3158, %v3150
    %v5119 = vpack.c.b16 %v3159, %v3151
    %v5120 = vpack.c.b16 %v3160, %v3152
    %v5121 = vpack.c.b16 %v3161, %v3153
    %v5122 = vpack.c.b16 %v3162, %v3154
    %v5123 = vpack.c.b16 %v3171, %v3163
    %v5124 = vpack.c.b16 %v3172, %v3164
    %v5125 = vpack.c.b16 %v3173, %v3165
    %v5126 = vpack.c.b16 %v3174, %v3166
    %v5127 = vpack.c.b16 %v3175, %v3167
    %v5128 = vpack.c.b16 %v3176, %v3168
    %v5129 = vpack.c.b16 %v3177, %v3169
    %v5130 = vpack.c.b16 %v3178, %v3170
    %v5131 = vpack.c.b16 %v3187, %v3179
    %v5132 = vpack.c.b16 %v3188, %v3180
    %v5133 = vpack.c.b16 %v3189, %v3181
    %v5134 = vpack.c.b16 %v3190, %v3182
    %v5135 = vpack.c.b16 %v3191, %v3183
    %v5136 = vpack.c.b16 %v3192, %v3184
    %v5137 = vpack.c.b16 %v3193, %v3185
    %v5138 = vpack.c.b16 %v3194, %v3186
    %v5139 = vpack.c.b16 %v3203, %v3195
    %v5140 = vpack.c.b16 %v3204, %v3196
    %v5141 = vpack.c.b16 %v3205, %v3197
    %v5142 = vpack.c.b16 %v3206, %v3198
    %v5143 = vpack.c.b16 %v3207, %v3199
    %v5144 = vpack.c.b16 %v3208, %v3200
    %v5145 = vpack.c.b16 %v3209, %v3201
    %v5146 = vpack.c.b16 %v3210, %v3202
    %v5147 = vpack.c.b16 %v3219, %v3211
    %v5148 = vpack.c.b16 %v3220, %v3212
    %v5149 = vpack.c.b16 %v3221, %v3213
    %v5150 = vpack.c.b16 %v3222, %v3214
    %v5151 = vpack.c.b16 %v3223, %v3215
    %v5152 = vpack.c.b16 %v3224, %v3216
    %v5153 = vpack.c.b16 %v3225, %v3217
    %v5154 = vpack.c.b16 %v3226, %v3218
    %v5155 = vpack.c.b16 %v3235, %v3227
    %v5156 = vpack.c.b16 %v3236, %v3228
    %v5157 = vpack.c.b16 %v3237, %v3229
    %v5158 = vpack.c.b16 %v3238, %v3230
    %v5159 = vpack.c.b16 %v3239, %v3231
    %v5160 = vpack.c.b16 %v3240, %v3232
    %v5161 = vpack.c.b16 %v3241, %v3233
    %v5162 = vpack.c.b16 %v3242, %v3234
    %v5163 = vpack.c.b16 %v3251, %v3243
    %v5164 = vpack.c.b16 %v3252, %v3244
    %v5165 = vpack.c.b16 %v3253, %v3245
    %v5166 = vpack.c.b16 %v3254, %v3246
    %v5167 = vpack.c.b16 %v3255, %v3247
    %v5168 = vpack.c.b16 %v3256, %v3248
    %v5169 = vpack.c.b16 %v3257, %v3249
    %v5170 = vpack.c.b16 %v3258, %v3250
    %v5171 = vpack.c.b16 %v3267, %v3259
    %v5172 = vpack.c.b16 %v3268, %v3260
    %v5173 = vpack.c.b16 %v3269, %v3261
    %v5174 = vpack.c.b16 %v3270, %v3262
    %v5175 = vpack.c.b16 %v3271, %v3263
    %v5176 = vpack.c.b16 %v3272, %v3264
    %v5177 = vpack.c.b16 %v3273, %v3265
    %v5178 = vpack.c.b16 %v3274, %v3266
    %v5179 = vpack.c.b16 %v3283, %v3275
    %v5180 = vpack.c.b16 %v3284, %v3276
    %v5181 = vpack.c.b16 %v3285, %v3277
    %v5182 = vpack.c.b16 %v3286, %v3278
    %v5183 = vpack.c.b16 %v3287, %v3279
    %v5184 = vpack.c.b16 %v3288, %v3280
    %v5185 = vpack.c.b16 %v3289, %v3281
    %v5186 = vpack.c.b16 %v3290, %v3282
    %v5187 = vpack.c.b16 %v3299, %v3291
    %v5188 = vpack.c.b16 %v3300, %v3292
    %v5189 = vpack.c.b16 %v3301, %v3293
    %v5190 = vpack.c.b16 %v3302, %v3294
    %v5191 = vpack.c.b16 %v3303, %v3295
    %v5192 = vpack.c.b16 %v3304, %v3296
    %v5193 = vpack.c.b16 %v3305, %v3297
    %v5194 = vpack.c.b16 %v3306, %v3298
    %v5195 = vpack.c.b16 %v3315, %v3307
    %v5196 = vpack.c.b16 %v3316, %v3308
    %v5197 = vpack.c.b16 %v3317, %v3309
    %v5198 = vpack.c.b16 %v3318, %v3310
    %v5199 = vpack.c.b16 %v3319, %v3311
    %v5200 = vpack.c.b16 %v3320, %v3312
    %v5201 = vpack.c.b16 %v3321, %v3313
    %v5202 = vpack.c.b16 %v3322, %v3314
    %v5203 = vpack.c.b16 %v3331, %v3323
    %v5204 = vpack.c.b16 %v3332, %v3324
    %v5205 = vpack.c.b16 %v3333, %v3325
    %v5206 = vpack.c.b16 %v3334, %v3326
    %v5207 = vpack.c.b16 %v3335, %v3327
    %v5208 = vpack.c.b16 %v3336, %v3328
    %v5209 = vpack.c.b16 %v3337, %v3329
    %v5210 = vpack.c.b16 %v3338, %v3330
    %v5211 = vpack.c.b16 %v3347, %v3339
    %v5212 = vpack.c.b16 %v3348, %v3340
    %v5213 = vpack.c.b16 %v3349, %v3341
    %v5214 = vpack.c.b16 %v3350, %v3342
    %v5215 = vpack.c.b16 %v3351, %v3343
    %v5216 = vpack.c.b16 %v3352, %v3344
    %v5217 = vpack.c.b16 %v3353, %v3345
    %v5218 = vpack.c.b16 %v3354, %v3346
    %v5219 = vpack.c.b16 %v3363, %v3355
    %v5220 = vpack.c.b16 %v3364, %v3356
    %v5221 = vpack.c.b16 %v3365, %v3357
    %v5222 = vpack.c.b16 %v3366, %v3358
    %v5223 = vpack.c.b16 %v3367, %v3359
    %v5224 = vpack.c.b16 %v3368, %v3360
    %v5225 = vpack.c.b16 %v3369, %v3361
    %v5226 = vpack.c.b16 %v3370, %v3362
    %v5227 = vpack.c.b16 %v3379, %v3371
    %v5228 = vpack.c.b16 %v3380, %v3372
    %v5229 = vpack.c.b16 %v3381, %v3373
    %v5230 = vpack.c.b16 %v3382, %v3374
    %v5231 = vpack.c.b16 %v3383, %v3375
    %v5232 = vpack.c.b16 %v3384, %v3376
    %v5233 = vpack.c.b16 %v3385, %v3377
    %v5234 = vpack.c.b16 %v3386, %v3378
    %v5235 = vpack.c.b16 %v3395, %v3387
    %v5236 = vpack.c.b16 %v3396, %v3388
    %v5237 = vpack.c.b16 %v3397, %v3389
    %v5238 = vpack.c.b16 %v3398, %v3390
    %v5239 = vpack.c.b16 %v3399, %v3391
    %v5240 = vpack.c.b16 %v3400, %v3392
    %v5241 = vpack.c.b16 %v3401, %v3393
    %v5242 = vpack.c.b16 %v3402, %v3394
    %v5243 = vpack.c.b16 %v3411, %v3403
    %v5244 = vpack.c.b16 %v3412, %v3404
    %v5245 = vpack.c.b16 %v3413, %v3405
    %v5246 = vpack.c.b16 %v3414, %v3406
    %v5247 = vpack.c.b16 %v3415, %v3407
    %v5248 = vpack.c.b16 %v3416, %v3408
    %v5249 = vpack.c.b16 %v3417, %v3409
    %v5250 = vpack.c.b16 %v3418, %v3410
    %v5251 = vpack.c.b16 %v3427, %v3419
    %v5252 = vpack.c.b16 %v3428, %v3420
    %v5253 = vpack.c.b16 %v3429, %v3421
    %v5254 = vpack.c.b16 %v3430, %v3422
    %v5255 = vpack.c.b16 %v3431, %v3423
    %v5256 = vpack.c.b16 %v3432, %v3424
    %v5257 = vpack.c.b16 %v3433, %v3425
    %v5258 = vpack.c.b16 %v3434, %v3426
    %v5259 = vpack.c.b16 %v3443, %v3435
    %v5260 = vpack.c.b16 %v3444, %v3436
    %v5261 = vpack.c.b16 %v3445, %v3437
    %v5262 = vpack.c.b16 %v3446, %v3438
    %v5263 = vpack.c.b16 %v3447, %v3439
    %v5264 = vpack.c.b16 %v3448, %v3440
    %v5265 = vpack.c.b16 %v3449, %v3441
    %v5266 = vpack.c.b16 %v3450, %v3442
    %v5267 = vpack.c.b16 %v3459, %v3451
    %v5268 = vpack.c.b16 %v3460, %v3452
    %v5269 = vpack.c.b16 %v3461, %v3453
    %v5270 = vpack.c.b16 %v3462, %v3454
    %v5271 = vpack.c.b16 %v3463, %v3455
    %v5272 = vpack.c.b16 %v3464, %v3456
    %v5273 = vpack.c.b16 %v3465, %v3457
    %v5274 = vpack.c.b16 %v3466, %v3458
    %v5275 = vpack.c.b16 %v3475, %v3467
    %v5276 = vpack.c.b16 %v3476, %v3468
    %v5277 = vpack.c.b16 %v3477, %v3469
    %v5278 = vpack.c.b16 %v3478, %v3470
    %v5279 = vpack.c.b16 %v3479, %v3471
    %v5280 = vpack.c.b16 %v3480, %v3472
    %v5281 = vpack.c.b16 %v3481, %v3473
    %v5282 = vpack.c.b16 %v3482, %v3474
    %v5283 = vpack.c.b16 %v3491, %v3483
    %v5284 = vpack.c.b16 %v3492, %v3484
    %v5285 = vpack.c.b16 %v3493, %v3485
    %v5286 = vpack.c.b16 %v3494, %v3486
    %v5287 = vpack.c.b16 %v3495, %v3487
    %v5288 = vpack.c.b16 %v3496, %v3488
    %v5289 = vpack.c.b16 %v3497, %v3489
    %v5290 = vpack.c.b16 %v3498, %v3490
    %v5291 = vpack.c.b16 %v3507, %v3499
    %v5292 = vpack.c.b16 %v3508, %v3500
    %v5293 = vpack.c.b16 %v3509, %v3501
    %v5294 = vpack.c.b16 %v3510, %v3502
    %v5295 = vpack.c.b16 %v3511, %v3503
    %v5296 = vpack.c.b16 %v3512, %v3504
    %v5297 = vpack.c.b16 %v3513, %v3505
    %v5298 = vpack.c.b16 %v3514, %v3506
    %v5299 = vpack.c.b16 %v3523, %v3515
    %v5300 = vpack.c.b16 %v3524, %v3516
    %v5301 = vpack.c.b16 %v3525, %v3517
    %v5302 = vpack.c.b16 %v3526, %v3518
    %v5303 = vpack.c.b16 %v3527, %v3519
    %v5304 = vpack.c.b16 %v3528, %v3520
    %v5305 = vpack.c.b16 %v3529, %v3521
    %v5306 = vpack.c.b16 %v3530, %v3522
    %v5307 = vpack.c.b16 %v3539, %v3531
    %v5308 = vpack.c.b16 %v3540, %v3532
    %v5309 = vpack.c.b16 %v3541, %v3533
    %v5310 = vpack.c.b16 %v3542, %v3534
    %v5311 = vpack.c.b16 %v3543, %v3535
    %v5312 = vpack.c.b16 %v3544, %v3536
    %v5313 = vpack.c.b16 %v3545, %v3537
    %v5314 = vpack.c.b16 %v3546, %v3538
    %v5315 = vpack.c.b16 %v3555, %v3547
    %v5316 = vpack.c.b16 %v3556, %v3548
    %v5317 = vpack.c.b16 %v3557, %v3549
    %v5318 = vpack.c.b16 %v3558, %v3550
    %v5319 = vpack.c.b16 %v3559, %v3551
    %v5320 = vpack.c.b16 %v3560, %v3552
    %v5321 = vpack.c.b16 %v3561, %v3553
    %v5322 = vpack.c.b16 %v3562, %v3554
    %v5323 = vpack.c.b16 %v3571, %v3563
    %v5324 = vpack.c.b16 %v3572, %v3564
    %v5325 = vpack.c.b16 %v3573, %v3565
    %v5326 = vpack.c.b16 %v3574, %v3566
    %v5327 = vpack.c.b16 %v3575, %v3567
    %v5328 = vpack.c.b16 %v3576, %v3568
    %v5329 = vpack.c.b16 %v3577, %v3569
    %v5330 = vpack.c.b16 %v3578, %v3570
    %v5331 = vpack.c.b16 %v3587, %v3579
    %v5332 = vpack.c.b16 %v3588, %v3580
    %v5333 = vpack.c.b16 %v3589, %v3581
    %v5334 = vpack.c.b16 %v3590, %v3582
    %v5335 = vpack.c.b16 %v3591, %v3583
    %v5336 = vpack.c.b16 %v3592, %v3584
    %v5337 = vpack.c.b16 %v3593, %v3585
    %v5338 = vpack.c.b16 %v3594, %v3586
    %v5339 = vpack.c.b16 %v3603, %v3595
    %v5340 = vpack.c.b16 %v3604, %v3596
    %v5341 = vpack.c.b16 %v3605, %v3597
    %v5342 = vpack.c.b16 %v3606, %v3598
    %v5343 = vpack.c.b16 %v3607, %v3599
    %v5344 = vpack.c.b16 %v3608, %v3600
    %v5345 = vpack.c.b16 %v3609, %v3601
    %v5346 = vpack.c.b16 %v3610, %v3602
    %v5347 = vpack.c.b16 %v3619, %v3611
    %v5348 = vpack.c.b16 %v3620, %v3612
    %v5349 = vpack.c.b16 %v3621, %v3613
    %v5350 = vpack.c.b16 %v3622, %v3614
    %v5351 = vpack.c.b16 %v3623, %v3615
    %v5352 = vpack.c.b16 %v3624, %v3616
    %v5353 = vpack.c.b16 %v3625, %v3617
    %v5354 = vpack.c.b16 %v3626, %v3618
    %v5355 = vpack.c.b16 %v3635, %v3627
    %v5356 = vpack.c.b16 %v3636, %v3628
    %v5357 = vpack.c.b16 %v3637, %v3629
    %v5358 = vpack.c.b16 %v3638, %v3630
    %v5359 = vpack.c.b16 %v3639, %v3631
    %v5360 = vpack.c.b16 %v3640, %v3632
    %v5361 = vpack.c.b16 %v3641, %v3633
    %v5362 = vpack.c.b16 %v3642, %v3634
    %v5363 = vpack.c.b16 %v3651, %v3643
    %v5364 = vpack.c.b16 %v3652, %v3644
    %v5365 = vpack.c.b16 %v3653, %v3645
    %v5366 = vpack.c.b16 %v3654, %v3646
    %v5367 = vpack.c.b16 %v3655, %v3647
    %v5368 = vpack.c.b16 %v3656, %v3648
    %v5369 = vpack.c.b16 %v3657, %v3649
    %v5370 = vpack.c.b16 %v3658, %v3650
    %v5371 = vpack.c.b16 %v3667, %v3659
    %v5372 = vpack.c.b16 %v3668, %v3660
    %v5373 = vpack.c.b16 %v3669, %v3661
    %v5374 = vpack.c.b16 %v3670, %v3662
    %v5375 = vpack.c.b16 %v3671, %v3663
    %v5376 = vpack.c.b16 %v3672, %v3664
    %v5377 = vpack.c.b16 %v3673, %v3665
    %v5378 = vpack.c.b16 %v3674, %v3666
    %v5379 = vpack.c.b16 %v3683, %v3675
    %v5380 = vpack.c.b16 %v3684, %v3676
    %v5381 = vpack.c.b16 %v3685, %v3677
    %v5382 = vpack.c.b16 %v3686, %v3678
    %v5383 = vpack.c.b16 %v3687, %v3679
    %v5384 = vpack.c.b16 %v3688, %v3680
    %v5385 = vpack.c.b16 %v3689, %v3681
    %v5386 = vpack.c.b16 %v3690, %v3682
    %v5387 = vpack.c.b16 %v3699, %v3691
    %v5388 = vpack.c.b16 %v3700, %v3692
    %v5389 = vpack.c.b16 %v3701, %v3693
    %v5390 = vpack.c.b16 %v3702, %v3694
    %v5391 = vpack.c.b16 %v3703, %v3695
    %v5392 = vpack.c.b16 %v3704, %v3696
    %v5393 = vpack.c.b16 %v3705, %v3697
    %v5394 = vpack.c.b16 %v3706, %v3698
    %v5395 = vpack.c.b16 %v3715, %v3707
    %v5396 = vpack.c.b16 %v3716, %v3708
    %v5397 = vpack.c.b16 %v3717, %v3709
    %v5398 = vpack.c.b16 %v3718, %v3710
    %v5399 = vpack.c.b16 %v3719, %v3711
    %v5400 = vpack.c.b16 %v3720, %v3712
    %v5401 = vpack.c.b16 %v3721, %v3713
    %v5402 = vpack.c.b16 %v3722, %v3714
    %v5403 = vpack.c.b16 %v3731, %v3723
    %v5404 = vpack.c.b16 %v3732, %v3724
    %v5405 = vpack.c.b16 %v3733, %v3725
    %v5406 = vpack.c.b16 %v3734, %v3726
    %v5407 = vpack.c.b16 %v3735, %v3727
    %v5408 = vpack.c.b16 %v3736, %v3728
    %v5409 = vpack.c.b16 %v3737, %v3729
    %v5410 = vpack.c.b16 %v3738, %v3730
    %v5411 = vpack.c.b16 %v3747, %v3739
    %v5412 = vpack.c.b16 %v3748, %v3740
    %v5413 = vpack.c.b16 %v3749, %v3741
    %v5414 = vpack.c.b16 %v3750, %v3742
    %v5415 = vpack.c.b16 %v3751, %v3743
    %v5416 = vpack.c.b16 %v3752, %v3744
    %v5417 = vpack.c.b16 %v3753, %v3745
    %v5418 = vpack.c.b16 %v3754, %v3746
    %v5419 = vpack.c.b16 %v3763, %v3755
    %v5420 = vpack.c.b16 %v3764, %v3756
    %v5421 = vpack.c.b16 %v3765, %v3757
    %v5422 = vpack.c.b16 %v3766, %v3758
    %v5423 = vpack.c.b16 %v3767, %v3759
    %v5424 = vpack.c.b16 %v3768, %v3760
    %v5425 = vpack.c.b16 %v3769, %v3761
    %v5426 = vpack.c.b16 %v3770, %v3762
    %v5427 = vpack.c.b16 %v3779, %v3771
    %v5428 = vpack.c.b16 %v3780, %v3772
    %v5429 = vpack.c.b16 %v3781, %v3773
    %v5430 = vpack.c.b16 %v3782, %v3774
    %v5431 = vpack.c.b16 %v3783, %v3775
    %v5432 = vpack.c.b16 %v3784, %v3776
    %v5433 = vpack.c.b16 %v3785, %v3777
    %v5434 = vpack.c.b16 %v3786, %v3778
    %v5435 = vpack.c.b16 %v3795, %v3787
    %v5436 = vpack.c.b16 %v3796, %v3788
    %v5437 = vpack.c.b16 %v3797, %v3789
    %v5438 = vpack.c.b16 %v3798, %v3790
    %v5439 = vpack.c.b16 %v3799, %v3791
    %v5440 = vpack.c.b16 %v3800, %v3792
    %v5441 = vpack.c.b16 %v3801, %v3793
    %v5442 = vpack.c.b16 %v3802, %v3794
    %v5443 = vpack.c.b16 %v3811, %v3803
    %v5444 = vpack.c.b16 %v3812, %v3804
    %v5445 = vpack.c.b16 %v3813, %v3805
    %v5446 = vpack.c.b16 %v3814, %v3806
    %v5447 = vpack.c.b16 %v3815, %v3807
    %v5448 = vpack.c.b16 %v3816, %v3808
    %v5449 = vpack.c.b16 %v3817, %v3809
    %v5450 = vpack.c.b16 %v3818, %v3810
    %v5451 = vpack.c.b16 %v3827, %v3819
    %v5452 = vpack.c.b16 %v3828, %v3820
    %v5453 = vpack.c.b16 %v3829, %v3821
    %v5454 = vpack.c.b16 %v3830, %v3822
    %v5455 = vpack.c.b16 %v3831, %v3823
    %v5456 = vpack.c.b16 %v3832, %v3824
    %v5457 = vpack.c.b16 %v3833, %v3825
    %v5458 = vpack.c.b16 %v3834, %v3826
    %v5459 = vpack.c.b16 %v3843, %v3835
    %v5460 = vpack.c.b16 %v3844, %v3836
    %v5461 = vpack.c.b16 %v3845, %v3837
    %v5462 = vpack.c.b16 %v3846, %v3838
    %v5463 = vpack.c.b16 %v3847, %v3839
    %v5464 = vpack.c.b16 %v3848, %v3840
    %v5465 = vpack.c.b16 %v3849, %v3841
    %v5466 = vpack.c.b16 %v3850, %v3842
    %v5467 = vpack.c.b16 %v3859, %v3851
    %v5468 = vpack.c.b16 %v3860, %v3852
    %v5469 = vpack.c.b16 %v3861, %v3853
    %v5470 = vpack.c.b16 %v3862, %v3854
    %v5471 = vpack.c.b16 %v3863, %v3855
    %v5472 = vpack.c.b16 %v3864, %v3856
    %v5473 = vpack.c.b16 %v3865, %v3857
    %v5474 = vpack.c.b16 %v3866, %v3858
    %v5475 = vpack.c.b16 %v3875, %v3867
    %v5476 = vpack.c.b16 %v3876, %v3868
    %v5477 = vpack.c.b16 %v3877, %v3869
    %v5478 = vpack.c.b16 %v3878, %v3870
    %v5479 = vpack.c.b16 %v3879, %v3871
    %v5480 = vpack.c.b16 %v3880, %v3872
    %v5481 = vpack.c.b16 %v3881, %v3873
    %v5482 = vpack.c.b16 %v3882, %v3874
    %v5483 = vpack.c.b16 %v3891, %v3883
    %v5484 = vpack.c.b16 %v3892, %v3884
    %v5485 = vpack.c.b16 %v3893, %v3885
    %v5486 = vpack.c.b16 %v3894, %v3886
    %v5487 = vpack.c.b16 %v3895, %v3887
    %v5488 = vpack.c.b16 %v3896, %v3888
    %v5489 = vpack.c.b16 %v3897, %v3889
    %v5490 = vpack.c.b16 %v3898, %v3890
    %v5491 = vpack.c.b16 %v3907, %v3899
    %v5492 = vpack.c.b16 %v3908, %v3900
    %v5493 = vpack.c.b16 %v3909, %v3901
    %v5494 = vpack.c.b16 %v3910, %v3902
    %v5495 = vpack.c.b16 %v3911, %v3903
    %v5496 = vpack.c.b16 %v3912, %v3904
    %v5497 = vpack.c.b16 %v3913, %v3905
    %v5498 = vpack.c.b16 %v3914, %v3906
    %v5499 = vpack.c.b16 %v3923, %v3915
    %v5500 = vpack.c.b16 %v3924, %v3916
    %v5501 = vpack.c.b16 %v3925, %v3917
    %v5502 = vpack.c.b16 %v3926, %v3918
    %v5503 = vpack.c.b16 %v3927, %v3919
    %v5504 = vpack.c.b16 %v3928, %v3920
    %v5505 = vpack.c.b16 %v3929, %v3921
    %v5506 = vpack.c.b16 %v3930, %v3922
    %v5507 = vpack.c.b16 %v3939, %v3931
    %v5508 = vpack.c.b16 %v3940, %v3932
    %v5509 = vpack.c.b16 %v3941, %v3933
    %v5510 = vpack.c.b16 %v3942, %v3934
    %v5511 = vpack.c.b16 %v3943, %v3935
    %v5512 = vpack.c.b16 %v3944, %v3936
    %v5513 = vpack.c.b16 %v3945, %v3937
    %v5514 = vpack.c.b16 %v3946, %v3938
    %v5515 = vpack.c.b16 %v3955, %v3947
    %v5516 = vpack.c.b16 %v3956, %v3948
    %v5517 = vpack.c.b16 %v3957, %v3949
    %v5518 = vpack.c.b16 %v3958, %v3950
    %v5519 = vpack.c.b16 %v3959, %v3951
    %v5520 = vpack.c.b16 %v3960, %v3952
    %v5521 = vpack.c.b16 %v3961, %v3953
    %v5522 = vpack.c.b16 %v3962, %v3954
    %v5523 = vpack.c.b16 %v3971, %v3963
    %v5524 = vpack.c.b16 %v3972, %v3964
    %v5525 = vpack.c.b16 %v3973, %v3965
    %v5526 = vpack.c.b16 %v3974, %v3966
    %v5527 = vpack.c.b16 %v3975, %v3967
    %v5528 = vpack.c.b16 %v3976, %v3968
    %v5529 = vpack.c.b16 %v3977, %v3969
    %v5530 = vpack.c.b16 %v3978, %v3970
    %v5531 = vpack.c.b16 %v3987, %v3979
    %v5532 = vpack.c.b16 %v3988, %v3980
    %v5533 = vpack.c.b16 %v3989, %v3981
    %v5534 = vpack.c.b16 %v3990, %v3982
    %v5535 = vpack.c.b16 %v3991, %v3983
    %v5536 = vpack.c.b16 %v3992, %v3984
    %v5537 = vpack.c.b16 %v3993, %v3985
    %v5538 = vpack.c.b16 %v3994, %v3986
    %v5539 = vpack.c.b16 %v4003, %v3995
    %v5540 = vpack.c.b16 %v4004, %v3996
    %v5541 = vpack.c.b16 %v4005, %v3997
    %v5542 = vpack.c.b16 %v4006, %v3998
    %v5543 = vpack.c.b16 %v4007, %v3999
    %v5544 = vpack.c.b16 %v4008, %v4000
    %v5545 = vpack.c.b16 %v4009, %v4001
    %v5546 = vpack.c.b16 %v4010, %v4002
    %v5547 = vpack.c.b16 %v4019, %v4011
    %v5548 = vpack.c.b16 %v4020, %v4012
    %v5549 = vpack.c.b16 %v4021, %v4013
    %v5550 = vpack.c.b16 %v4022, %v4014
    %v5551 = vpack.c.b16 %v4023, %v4015
    %v5552 = vpack.c.b16 %v4024, %v4016
    %v5553 = vpack.c.b16 %v4025, %v4017
    %v5554 = vpack.c.b16 %v4026, %v4018
    %v5555 = vpack.c.b16 %v4035, %v4027
    %v5556 = vpack.c.b16 %v4036, %v4028
    %v5557 = vpack.c.b16 %v4037, %v4029
    %v5558 = vpack.c.b16 %v4038, %v4030
    %v5559 = vpack.c.b16 %v4039, %v4031
    %v5560 = vpack.c.b16 %v4040, %v4032
    %v5561 = vpack.c.b16 %v4041, %v4033
    %v5562 = vpack.c.b16 %v4042, %v4034
    %v5563 = vpack.c.b16 %v4051, %v4043
    %v5564 = vpack.c.b16 %v4052, %v4044
    %v5565 = vpack.c.b16 %v4053, %v4045
    %v5566 = vpack.c.b16 %v4054, %v4046
    %v5567 = vpack.c.b16 %v4055, %v4047
    %v5568 = vpack.c.b16 %v4056, %v4048
    %v5569 = vpack.c.b16 %v4057, %v4049
    %v5570 = vpack.c.b16 %v4058, %v4050
    %v5571 = vpack.c.b16 %v4067, %v4059
    %v5572 = vpack.c.b16 %v4068, %v4060
    %v5573 = vpack.c.b16 %v4069, %v4061
    %v5574 = vpack.c.b16 %v4070, %v4062
    %v5575 = vpack.c.b16 %v4071, %v4063
    %v5576 = vpack.c.b16 %v4072, %v4064
    %v5577 = vpack.c.b16 %v4073, %v4065
    %v5578 = vpack.c.b16 %v4074, %v4066
    %v5579 = vpack.c.b16 %v4083, %v4075
    %v5580 = vpack.c.b16 %v4084, %v4076
    %v5581 = vpack.c.b16 %v4085, %v4077
    %v5582 = vpack.c.b16 %v4086, %v4078
    %v5583 = vpack.c.b16 %v4087, %v4079
    %v5584 = vpack.c.b16 %v4088, %v4080
    %v5585 = vpack.c.b16 %v4089, %v4081
    %v5586 = vpack.c.b16 %v4090, %v4082
    %v5587 = vpack.c.b16 %v4099, %v4091
    %v5588 = vpack.c.b16 %v4100, %v4092
    %v5589 = vpack.c.b16 %v4101, %v4093
    %v5590 = vpack.c.b16 %v4102, %v4094
    %v5591 = vpack.c.b16 %v4103, %v4095
    %v5592 = vpack.c.b16 %v4104, %v4096
    %v5593 = vpack.c.b16 %v4105, %v4097
    %v5594 = vpack.c.b16 %v4106, %v4098
    %v5595 = vpack.c.b16 %v4115, %v4107
    %v5596 = vpack.c.b16 %v4116, %v4108
    %v5597 = vpack.c.b16 %v4117, %v4109
    %v5598 = vpack.c.b16 %v4118, %v4110
    %v5599 = vpack.c.b16 %v4119, %v4111
    %v5600 = vpack.c.b16 %v4120, %v4112
    %v5601 = vpack.c.b16 %v4121, %v4113
    %v5602 = vpack.c.b16 %v4122, %v4114
    %v5603 = vpack.c.b16 %v4131, %v4123
    %v5604 = vpack.c.b16 %v4132, %v4124
    %v5605 = vpack.c.b16 %v4133, %v4125
    %v5606 = vpack.c.b16 %v4134, %v4126
    %v5607 = vpack.c.b16 %v4135, %v4127
    %v5608 = vpack.c.b16 %v4136, %v4128
    %v5609 = vpack.c.b16 %v4137, %v4129
    %v5610 = vpack.c.b16 %v4138, %v4130
    %v5611 = vpack.c.b16 %v4147, %v4139
    %v5612 = vpack.c.b16 %v4148, %v4140
    %v5613 = vpack.c.b16 %v4149, %v4141
    %v5614 = vpack.c.b16 %v4150, %v4142
    %v5615 = vpack.c.b16 %v4151, %v4143
    %v5616 = vpack.c.b16 %v4152, %v4144
    %v5617 = vpack.c.b16 %v4153, %v4145
    %v5618 = vpack.c.b16 %v4154, %v4146
    %v5619 = vpack.c.b16 %v4163, %v4155
    %v5620 = vpack.c.b16 %v4164, %v4156
    %v5621 = vpack.c.b16 %v4165, %v4157
    %v5622 = vpack.c.b16 %v4166, %v4158
    %v5623 = vpack.c.b16 %v4167, %v4159
    %v5624 = vpack.c.b16 %v4168, %v4160
    %v5625 = vpack.c.b16 %v4169, %v4161
    %v5626 = vpack.c.b16 %v4170, %v4162
    %v5627 = vpack.c.b16 %v4179, %v4171
    %v5628 = vpack.c.b16 %v4180, %v4172
    %v5629 = vpack.c.b16 %v4181, %v4173
    %v5630 = vpack.c.b16 %v4182, %v4174
    %v5631 = vpack.c.b16 %v4183, %v4175
    %v5632 = vpack.c.b16 %v4184, %v4176
    %v5633 = vpack.c.b16 %v4185, %v4177
    %v5634 = vpack.c.b16 %v4186, %v4178
    %v5635 = vpack.c.b16 %v4195, %v4187
    %v5636 = vpack.c.b16 %v4196, %v4188
    %v5637 = vpack.c.b16 %v4197, %v4189
    %v5638 = vpack.c.b16 %v4198, %v4190
    %v5639 = vpack.c.b16 %v4199, %v4191
    %v5640 = vpack.c.b16 %v4200, %v4192
    %v5641 = vpack.c.b16 %v4201, %v4193
    %v5642 = vpack.c.b16 %v4202, %v4194
    %v5643 = vpack.c.b16 %v4211, %v4203
    %v5644 = vpack.c.b16 %v4212, %v4204
    %v5645 = vpack.c.b16 %v4213, %v4205
    %v5646 = vpack.c.b16 %v4214, %v4206
    %v5647 = vpack.c.b16 %v4215, %v4207
    %v5648 = vpack.c.b16 %v4216, %v4208
    %v5649 = vpack.c.b16 %v4217, %v4209
    %v5650 = vpack.c.b16 %v4218, %v4210
    %v5651 = vpack.c.b16 %v4227, %v4219
    %v5652 = vpack.c.b16 %v4228, %v4220
    %v5653 = vpack.c.b16 %v4229, %v4221
    %v5654 = vpack.c.b16 %v4230, %v4222
    %v5655 = vpack.c.b16 %v4231, %v4223
    %v5656 = vpack.c.b16 %v4232, %v4224
    %v5657 = vpack.c.b16 %v4233, %v4225
    %v5658 = vpack.c.b16 %v4234, %v4226
    %v5659 = vpack.c.b16 %v4243, %v4235
    %v5660 = vpack.c.b16 %v4244, %v4236
    %v5661 = vpack.c.b16 %v4245, %v4237
    %v5662 = vpack.c.b16 %v4246, %v4238
    %v5663 = vpack.c.b16 %v4247, %v4239
    %v5664 = vpack.c.b16 %v4248, %v4240
    %v5665 = vpack.c.b16 %v4249, %v4241
    %v5666 = vpack.c.b16 %v4250, %v4242
    %v5667 = vpack.c.b16 %v4259, %v4251
    %v5668 = vpack.c.b16 %v4260, %v4252
    %v5669 = vpack.c.b16 %v4261, %v4253
    %v5670 = vpack.c.b16 %v4262, %v4254
    %v5671 = vpack.c.b16 %v4263, %v4255
    %v5672 = vpack.c.b16 %v4264, %v4256
    %v5673 = vpack.c.b16 %v4265, %v4257
    %v5674 = vpack.c.b16 %v4266, %v4258
    %v5675 = vpack.c.b16 %v4275, %v4267
    %v5676 = vpack.c.b16 %v4276, %v4268
    %v5677 = vpack.c.b16 %v4277, %v4269
    %v5678 = vpack.c.b16 %v4278, %v4270
    %v5679 = vpack.c.b16 %v4279, %v4271
    %v5680 = vpack.c.b16 %v4280, %v4272
    %v5681 = vpack.c.b16 %v4281, %v4273
    %v5682 = vpack.c.b16 %v4282, %v4274
    %v5683 = vpack.c.b16 %v4291, %v4283
    %v5684 = vpack.c.b16 %v4292, %v4284
    %v5685 = vpack.c.b16 %v4293, %v4285
    %v5686 = vpack.c.b16 %v4294, %v4286
    %v5687 = vpack.c.b16 %v4295, %v4287
    %v5688 = vpack.c.b16 %v4296, %v4288
    %v5689 = vpack.c.b16 %v4297, %v4289
    %v5690 = vpack.c.b16 %v4298, %v4290
    %v5691 = vpack.c.b16 %v4307, %v4299
    %v5692 = vpack.c.b16 %v4308, %v4300
    %v5693 = vpack.c.b16 %v4309, %v4301
    %v5694 = vpack.c.b16 %v4310, %v4302
    %v5695 = vpack.c.b16 %v4311, %v4303
    %v5696 = vpack.c.b16 %v4312, %v4304
    %v5697 = vpack.c.b16 %v4313, %v4305
    %v5698 = vpack.c.b16 %v4314, %v4306
    %v5699 = vpack.c.b16 %v4323, %v4315
    %v5700 = vpack.c.b16 %v4324, %v4316
    %v5701 = vpack.c.b16 %v4325, %v4317
    %v5702 = vpack.c.b16 %v4326, %v4318
    %v5703 = vpack.c.b16 %v4327, %v4319
    %v5704 = vpack.c.b16 %v4328, %v4320
    %v5705 = vpack.c.b16 %v4329, %v4321
    %v5706 = vpack.c.b16 %v4330, %v4322
    %v5707 = vpack.c.b16 %v4339, %v4331
    %v5708 = vpack.c.b16 %v4340, %v4332
    %v5709 = vpack.c.b16 %v4341, %v4333
    %v5710 = vpack.c.b16 %v4342, %v4334
    %v5711 = vpack.c.b16 %v4343, %v4335
    %v5712 = vpack.c.b16 %v4344, %v4336
    %v5713 = vpack.c.b16 %v4345, %v4337
    %v5714 = vpack.c.b16 %v4346, %v4338
    %v5715 = vpack.c.b16 %v4355, %v4347
    %v5716 = vpack.c.b16 %v4356, %v4348
    %v5717 = vpack.c.b16 %v4357, %v4349
    %v5718 = vpack.c.b16 %v4358, %v4350
    %v5719 = vpack.c.b16 %v4359, %v4351
    %v5720 = vpack.c.b16 %v4360, %v4352
    %v5721 = vpack.c.b16 %v4361, %v4353
    %v5722 = vpack.c.b16 %v4362, %v4354
    %v5723 = vpack.c.b16 %v4371, %v4363
    %v5724 = vpack.c.b16 %v4372, %v4364
    %v5725 = vpack.c.b16 %v4373, %v4365
    %v5726 = vpack.c.b16 %v4374, %v4366
    %v5727 = vpack.c.b16 %v4375, %v4367
    %v5728 = vpack.c.b16 %v4376, %v4368
    %v5729 = vpack.c.b16 %v4377, %v4369
    %v5730 = vpack.c.b16 %v4378, %v4370
    %v5731 = vpack.c.b16 %v4387, %v4379
    %v5732 = vpack.c.b16 %v4388, %v4380
    %v5733 = vpack.c.b16 %v4389, %v4381
    %v5734 = vpack.c.b16 %v4390, %v4382
    %v5735 = vpack.c.b16 %v4391, %v4383
    %v5736 = vpack.c.b16 %v4392, %v4384
    %v5737 = vpack.c.b16 %v4393, %v4385
    %v5738 = vpack.c.b16 %v4394, %v4386
    %v5739 = vpack.c.b16 %v4403, %v4395
    %v5740 = vpack.c.b16 %v4404, %v4396
    %v5741 = vpack.c.b16 %v4405, %v4397
    %v5742 = vpack.c.b16 %v4406, %v4398
    %v5743 = vpack.c.b16 %v4407, %v4399
    %v5744 = vpack.c.b16 %v4408, %v4400
    %v5745 = vpack.c.b16 %v4409, %v4401
    %v5746 = vpack.c.b16 %v4410, %v4402
    %v5747 = vpack.c.b16 %v4419, %v4411
    %v5748 = vpack.c.b16 %v4420, %v4412
    %v5749 = vpack.c.b16 %v4421, %v4413
    %v5750 = vpack.c.b16 %v4422, %v4414
    %v5751 = vpack.c.b16 %v4423, %v4415
    %v5752 = vpack.c.b16 %v4424, %v4416
    %v5753 = vpack.c.b16 %v4425, %v4417
    %v5754 = vpack.c.b16 %v4426, %v4418
    %v5755 = vpack.c.b16 %v4435, %v4427
    %v5756 = vpack.c.b16 %v4436, %v4428
    %v5757 = vpack.c.b16 %v4437, %v4429
    %v5758 = vpack.c.b16 %v4438, %v4430
    %v5759 = vpack.c.b16 %v4439, %v4431
    %v5760 = vpack.c.b16 %v4440, %v4432
    %v5761 = vpack.c.b16 %v4441, %v4433
    %v5762 = vpack.c.b16 %v4442, %v4434
    %v5763 = vpack.c.b16 %v4451, %v4443
    %v5764 = vpack.c.b16 %v4452, %v4444
    %v5765 = vpack.c.b16 %v4453, %v4445
    %v5766 = vpack.c.b16 %v4454, %v4446
    %v5767 = vpack.c.b16 %v4455, %v4447
    %v5768 = vpack.c.b16 %v4456, %v4448
    %v5769 = vpack.c.b16 %v4457, %v4449
    %v5770 = vpack.c.b16 %v4458, %v4450
    %v5771 = vpack.c.b16 %v4467, %v4459
    %v5772 = vpack.c.b16 %v4468, %v4460
    %v5773 = vpack.c.b16 %v4469, %v4461
    %v5774 = vpack.c.b16 %v4470, %v4462
    %v5775 = vpack.c.b16 %v4471, %v4463
    %v5776 = vpack.c.b16 %v4472, %v4464
    %v5777 = vpack.c.b16 %v4473, %v4465
    %v5778 = vpack.c.b16 %v4474, %v4466
    %v5779 = vpack.c.b16 %v4483, %v4475
    %v5780 = vpack.c.b16 %v4484, %v4476
    %v5781 = vpack.c.b16 %v4485, %v4477
    %v5782 = vpack.c.b16 %v4486, %v4478
    %v5783 = vpack.c.b16 %v4487, %v4479
    %v5784 = vpack.c.b16 %v4488, %v4480
    %v5785 = vpack.c.b16 %v4489, %v4481
    %v5786 = vpack.c.b16 %v4490, %v4482
    %v5787 = vpack.c.b16 %v4499, %v4491
    %v5788 = vpack.c.b16 %v4500, %v4492
    %v5789 = vpack.c.b16 %v4501, %v4493
    %v5790 = vpack.c.b16 %v4502, %v4494
    %v5791 = vpack.c.b16 %v4503, %v4495
    %v5792 = vpack.c.b16 %v4504, %v4496
    %v5793 = vpack.c.b16 %v4505, %v4497
    %v5794 = vpack.c.b16 %v4506, %v4498
    %v5795 = vpack.c.b16 %v4515, %v4507
    %v5796 = vpack.c.b16 %v4516, %v4508
    %v5797 = vpack.c.b16 %v4517, %v4509
    %v5798 = vpack.c.b16 %v4518, %v4510
    %v5799 = vpack.c.b16 %v4519, %v4511
    %v5800 = vpack.c.b16 %v4520, %v4512
    %v5801 = vpack.c.b16 %v4521, %v4513
    %v5802 = vpack.c.b16 %v4522, %v4514
    %v5803 = vpack.c.b16 %v4531, %v4523
    %v5804 = vpack.c.b16 %v4532, %v4524
    %v5805 = vpack.c.b16 %v4533, %v4525
    %v5806 = vpack.c.b16 %v4534, %v4526
    %v5807 = vpack.c.b16 %v4535, %v4527
    %v5808 = vpack.c.b16 %v4536, %v4528
    %v5809 = vpack.c.b16 %v4537, %v4529
    %v5810 = vpack.c.b16 %v4538, %v4530
    %v5811 = vpack.c.b16 %v4547, %v4539
    %v5812 = vpack.c.b16 %v4548, %v4540
    %v5813 = vpack.c.b16 %v4549, %v4541
    %v5814 = vpack.c.b16 %v4550, %v4542
    %v5815 = vpack.c.b16 %v4551, %v4543
    %v5816 = vpack.c.b16 %v4552, %v4544
    %v5817 = vpack.c.b16 %v4553, %v4545
    %v5818 = vpack.c.b16 %v4554, %v4546
    %v5819 = vpack.c.b16 %v4563, %v4555
    %v5820 = vpack.c.b16 %v4564, %v4556
    %v5821 = vpack.c.b16 %v4565, %v4557
    %v5822 = vpack.c.b16 %v4566, %v4558
    %v5823 = vpack.c.b16 %v4567, %v4559
    %v5824 = vpack.c.b16 %v4568, %v4560
    %v5825 = vpack.c.b16 %v4569, %v4561
    %v5826 = vpack.c.b16 %v4570, %v4562
    %v5827 = vpack.c.b16 %v4579, %v4571
    %v5828 = vpack.c.b16 %v4580, %v4572
    %v5829 = vpack.c.b16 %v4581, %v4573
    %v5830 = vpack.c.b16 %v4582, %v4574
    %v5831 = vpack.c.b16 %v4583, %v4575
    %v5832 = vpack.c.b16 %v4584, %v4576
    %v5833 = vpack.c.b16 %v4585, %v4577
    %v5834 = vpack.c.b16 %v4586, %v4578
    %v5835 = vpack.c.b16 %v4595, %v4587
    %v5836 = vpack.c.b16 %v4596, %v4588
    %v5837 = vpack.c.b16 %v4597, %v4589
    %v5838 = vpack.c.b16 %v4598, %v4590
    %v5839 = vpack.c.b16 %v4599, %v4591
    %v5840 = vpack.c.b16 %v4600, %v4592
    %v5841 = vpack.c.b16 %v4601, %v4593
    %v5842 = vpack.c.b16 %v4602, %v4594
    %v5843 = vpack.c.b16 %v4611, %v4603
    %v5844 = vpack.c.b16 %v4612, %v4604
    %v5845 = vpack.c.b16 %v4613, %v4605
    %v5846 = vpack.c.b16 %v4614, %v4606
    %v5847 = vpack.c.b16 %v4615, %v4607
    %v5848 = vpack.c.b16 %v4616, %v4608
    %v5849 = vpack.c.b16 %v4617, %v4609
    %v5850 = vpack.c.b16 %v4618, %v4610
    %v5851 = vpack.c.b16 %v4627, %v4619
    %v5852 = vpack.c.b16 %v4628, %v4620
    %v5853 = vpack.c.b16 %v4629, %v4621
    %v5854 = vpack.c.b16 %v4630, %v4622
    %v5855 = vpack.c.b16 %v4631, %v4623
    %v5856 = vpack.c.b16 %v4632, %v4624
    %v5857 = vpack.c.b16 %v4633, %v4625
    %v5858 = vpack.c.b16 %v4634, %v4626
    %v5859 = vpack.c.b16 %v4643, %v4635
    %v5860 = vpack.c.b16 %v4644, %v4636
    %v5861 = vpack.c.b16 %v4645, %v4637
    %v5862 = vpack.c.b16 %v4646, %v4638
    %v5863 = vpack.c.b16 %v4647, %v4639
    %v5864 = vpack.c.b16 %v4648, %v4640
    %v5865 = vpack.c.b16 %v4649, %v4641
    %v5866 = vpack.c.b16 %v4650, %v4642
    %v5867 = vpack.c.b16 %v4659, %v4651
    %v5868 = vpack.c.b16 %v4660, %v4652
    %v5869 = vpack.c.b16 %v4661, %v4653
    %v5870 = vpack.c.b16 %v4662, %v4654
    %v5871 = vpack.c.b16 %v4663, %v4655
    %v5872 = vpack.c.b16 %v4664, %v4656
    %v5873 = vpack.c.b16 %v4665, %v4657
    %v5874 = vpack.c.b16 %v4666, %v4658
    %v5875 = vpack.c.b16 %v4675, %v4667
    %v5876 = vpack.c.b16 %v4676, %v4668
    %v5877 = vpack.c.b16 %v4677, %v4669
    %v5878 = vpack.c.b16 %v4678, %v4670
    %v5879 = vpack.c.b16 %v4679, %v4671
    %v5880 = vpack.c.b16 %v4680, %v4672
    %v5881 = vpack.c.b16 %v4681, %v4673
    %v5882 = vpack.c.b16 %v4682, %v4674
    %v5883 = vpack.c.b16 %v4691, %v4683
    %v5884 = vpack.c.b16 %v4692, %v4684
    %v5885 = vpack.c.b16 %v4693, %v4685
    %v5886 = vpack.c.b16 %v4694, %v4686
    %v5887 = vpack.c.b16 %v4695, %v4687
    %v5888 = vpack.c.b16 %v4696, %v4688
    %v5889 = vpack.c.b16 %v4697, %v4689
    %v5890 = vpack.c.b16 %v4698, %v4690
    %v5891 = vpack.c.b16 %v4707, %v4699
    %v5892 = vpack.c.b16 %v4708, %v4700
    %v5893 = vpack.c.b16 %v4709, %v4701
    %v5894 = vpack.c.b16 %v4710, %v4702
    %v5895 = vpack.c.b16 %v4711, %v4703
    %v5896 = vpack.c.b16 %v4712, %v4704
    %v5897 = vpack.c.b16 %v4713, %v4705
    %v5898 = vpack.c.b16 %v4714, %v4706
    %v5899 = vpack.c.b16 %v4723, %v4715
    %v5900 = vpack.c.b16 %v4724, %v4716
    %v5901 = vpack.c.b16 %v4725, %v4717
    %v5902 = vpack.c.b16 %v4726, %v4718
    %v5903 = vpack.c.b16 %v4727, %v4719
    %v5904 = vpack.c.b16 %v4728, %v4720
    %v5905 = vpack.c.b16 %v4729, %v4721
    %v5906 = vpack.c.b16 %v4730, %v4722
    %v5907 = vpack.c.b16 %v4739, %v4731
    %v5908 = vpack.c.b16 %v4740, %v4732
    %v5909 = vpack.c.b16 %v4741, %v4733
    %v5910 = vpack.c.b16 %v4742, %v4734
    %v5911 = vpack.c.b16 %v4743, %v4735
    %v5912 = vpack.c.b16 %v4744, %v4736
    %v5913 = vpack.c.b16 %v4745, %v4737
    %v5914 = vpack.c.b16 %v4746, %v4738
    %v5915 = vpack.c.b16 %v4755, %v4747
    %v5916 = vpack.c.b16 %v4756, %v4748
    %v5917 = vpack.c.b16 %v4757, %v4749
    %v5918 = vpack.c.b16 %v4758, %v4750
    %v5919 = vpack.c.b16 %v4759, %v4751
    %v5920 = vpack.c.b16 %v4760, %v4752
    %v5921 = vpack.c.b16 %v4761, %v4753
    %v5922 = vpack.c.b16 %v4762, %v4754
    %v5923 = vpack.c.b16 %v4771, %v4763
    %v5924 = vpack.c.b16 %v4772, %v4764
    %v5925 = vpack.c.b16 %v4773, %v4765
    %v5926 = vpack.c.b16 %v4774, %v4766
    %v5927 = vpack.c.b16 %v4775, %v4767
    %v5928 = vpack.c.b16 %v4776, %v4768
    %v5929 = vpack.c.b16 %v4777, %v4769
    %v5930 = vpack.c.b16 %v4778, %v4770
    %v5931 = vpack.c.b16 %v4787, %v4779
    %v5932 = vpack.c.b16 %v4788, %v4780
    %v5933 = vpack.c.b16 %v4789, %v4781
    %v5934 = vpack.c.b16 %v4790, %v4782
    %v5935 = vpack.c.b16 %v4791, %v4783
    %v5936 = vpack.c.b16 %v4792, %v4784
    %v5937 = vpack.c.b16 %v4793, %v4785
    %v5938 = vpack.c.b16 %v4794, %v4786
    %v5939 = vpack.c.b16 %v4803, %v4795
    %v5940 = vpack.c.b16 %v4804, %v4796
    %v5941 = vpack.c.b16 %v4805, %v4797
    %v5942 = vpack.c.b16 %v4806, %v4798
    %v5943 = vpack.c.b16 %v4807, %v4799
    %v5944 = vpack.c.b16 %v4808, %v4800
    %v5945 = vpack.c.b16 %v4809, %v4801
    %v5946 = vpack.c.b16 %v4810, %v4802
    %v5947 = vpack.c.b16 %v4819, %v4811
    %v5948 = vpack.c.b16 %v4820, %v4812
    %v5949 = vpack.c.b16 %v4821, %v4813
    %v5950 = vpack.c.b16 %v4822, %v4814
    %v5951 = vpack.c.b16 %v4823, %v4815
    %v5952 = vpack.c.b16 %v4824, %v4816
    %v5953 = vpack.c.b16 %v4825, %v4817
    %v5954 = vpack.c.b16 %v4826, %v4818
    %v5955 = vpack.c.b16 %v4835, %v4827
    %v5956 = vpack.c.b16 %v4836, %v4828
    %v5957 = vpack.c.b16 %v4837, %v4829
    %v5958 = vpack.c.b16 %v4838, %v4830
    %v5959 = vpack.c.b16 %v4839, %v4831
    %v5960 = vpack.c.b16 %v4840, %v4832
    %v5961 = vpack.c.b16 %v4841, %v4833
    %v5962 = vpack.c.b16 %v4842, %v4834
    %v5963 = vpack.c.b16 %v4851, %v4843
    %v5964 = vpack.c.b16 %v4852, %v4844
    %v5965 = vpack.c.b16 %v4853, %v4845
    %v5966 = vpack.c.b16 %v4854, %v4846
    %v5967 = vpack.c.b16 %v4855, %v4847
    %v5968 = vpack.c.b16 %v4856, %v4848
    %v5969 = vpack.c.b16 %v4857, %v4849
    %v5970 = vpack.c.b16 %v4858, %v4850
    %v5971 = vpack.c.b16 %v4867, %v4859
    %v5972 = vpack.c.b16 %v4868, %v4860
    %v5973 = vpack.c.b16 %v4869, %v4861
    %v5974 = vpack.c.b16 %v4870, %v4862
    %v5975 = vpack.c.b16 %v4871, %v4863
    %v5976 = vpack.c.b16 %v4872, %v4864
    %v5977 = vpack.c.b16 %v4873, %v4865
    %v5978 = vpack.c.b16 %v4874, %v4866
    %v5979 = vpack.c.b16 %v4883, %v4875
    %v5980 = vpack.c.b16 %v4884, %v4876
    %v5981 = vpack.c.b16 %v4885, %v4877
    %v5982 = vpack.c.b16 %v4886, %v4878
    %v5983 = vpack.c.b16 %v4887, %v4879
    %v5984 = vpack.c.b16 %v4888, %v4880
    %v5985 = vpack.c.b16 %v4889, %v4881
    %v5986 = vpack.c.b16 %v4890, %v4882
    %v5987 = vpack.c.b16 %v4899, %v4891
    %v5988 = vpack.c.b16 %v4900, %v4892
    %v5989 = vpack.c.b16 %v4901, %v4893
    %v5990 = vpack.c.b16 %v4902, %v4894
    %v5991 = vpack.c.b16 %v4903, %v4895
    %v5992 = vpack.c.b16 %v4904, %v4896
    %v5993 = vpack.c.b16 %v4905, %v4897
    %v5994 = vpack.c.b16 %v4906, %v4898
    %v5995 = vpack.c.b16 %v4915, %v4907
    %v5996 = vpack.c.b16 %v4916, %v4908
    %v5997 = vpack.c.b16 %v4917, %v4909
    %v5998 = vpack.c.b16 %v4918, %v4910
    %v5999 = vpack.c.b16 %v4919, %v4911
    %v6000 = vpack.c.b16 %v4920, %v4912
    %v6001 = vpack.c.b16 %v4921, %v4913
    %v6002 = vpack.c.b16 %v4922, %v4914
    %v6003 = vpack.c.b16 %v4931, %v4923
    %v6004 = vpack.c.b16 %v4932, %v4924
    %v6005 = vpack.c.b16 %v4933, %v4925
    %v6006 = vpack.c.b16 %v4934, %v4926
    %v6007 = vpack.c.b16 %v4935, %v4927
    %v6008 = vpack.c.b16 %v4936, %v4928
    %v6009 = vpack.c.b16 %v4937, %v4929
    %v6010 = vpack.c.b16 %v4938, %v4930
    %v6011 = vpack.c.b16 %v4947, %v4939
    %v6012 = vpack.c.b16 %v4948, %v4940
    %v6013 = vpack.c.b16 %v4949, %v4941
    %v6014 = vpack.c.b16 %v4950, %v4942
    %v6015 = vpack.c.b16 %v4951, %v4943
    %v6016 = vpack.c.b16 %v4952, %v4944
    %v6017 = vpack.c.b16 %v4953, %v4945
    %v6018 = vpack.c.b16 %v4954, %v4946
    %v6019 = vpack.c.b16 %v4963, %v4955
    %v6020 = vpack.c.b16 %v4964, %v4956
    %v6021 = vpack.c.b16 %v4965, %v4957
    %v6022 = vpack.c.b16 %v4966, %v4958
    %v6023 = vpack.c.b16 %v4967, %v4959
    %v6024 = vpack.c.b16 %v4968, %v4960
    %v6025 = vpack.c.b16 %v4969, %v4961
    %v6026 = vpack.c.b16 %v4970, %v4962
    %v6027 = vpack.c.b16 %v4979, %v4971
    %v6028 = vpack.c.b16 %v4980, %v4972
    %v6029 = vpack.c.b16 %v4981, %v4973
    %v6030 = vpack.c.b16 %v4982, %v4974
    %v6031 = vpack.c.b16 %v4983, %v4975
    %v6032 = vpack.c.b16 %v4984, %v4976
    %v6033 = vpack.c.b16 %v4985, %v4977
    %v6034 = vpack.c.b16 %v4986, %v4978
    %v6035 = vpack.c.b16 %v4995, %v4987
    %v6036 = vpack.c.b16 %v4996, %v4988
    %v6037 = vpack.c.b16 %v4997, %v4989
    %v6038 = vpack.c.b16 %v4998, %v4990
    %v6039 = vpack.c.b16 %v4999, %v4991
    %v6040 = vpack.c.b16 %v5000, %v4992
    %v6041 = vpack.c.b16 %v5001, %v4993
    %v6042 = vpack.c.b16 %v5002, %v4994
    %v6043 = vpack.c.b16 %v5011, %v5003
    %v6044 = vpack.c.b16 %v5012, %v5004
    %v6045 = vpack.c.b16 %v5013, %v5005
    %v6046 = vpack.c.b16 %v5014, %v5006
    %v6047 = vpack.c.b16 %v5015, %v5007
    %v6048 = vpack.c.b16 %v5016, %v5008
    %v6049 = vpack.c.b16 %v5017, %v5009
    %v6050 = vpack.c.b16 %v5018, %v5010
    %v6051 = vpack.c.b16 %v5027, %v5019
    %v6052 = vpack.c.b16 %v5028, %v5020
    %v6053 = vpack.c.b16 %v5029, %v5021
    %v6054 = vpack.c.b16 %v5030, %v5022
    %v6055 = vpack.c.b16 %v5031, %v5023
    %v6056 = vpack.c.b16 %v5032, %v5024
    %v6057 = vpack.c.b16 %v5033, %v5025
    %v6058 = vpack.c.b16 %v5034, %v5026
    %7083 = vmatprep.subr.bf16.mxu0 %v5092
    %7084 = vmatpush1.bf16.msra.mxu0 %v5091
    %7085 = vmatprep.subr.bf16.mxu0 %v5084
    %7086 = vmatpush1.bf16.msra.mxu0 %v5083
    %7087 = vmatprep.subr.bf16.mxu0 %v5076
    %7088 = vmatpush1.bf16.msra.mxu0 %v5075
    %7089 = vmatprep.subr.bf16.mxu0 %v5068
    %7090 = vmatpush1.bf16.msra.mxu0 %v5067
    %7091 = vmatprep.subr.bf16.mxu0 %v5060
    %7092 = vmatpush1.bf16.msra.mxu0 %v5059
    %7093 = vmatprep.subr.bf16.mxu0 %v5052
    %7094 = vmatpush1.bf16.msra.mxu0 %v5051
    %7095 = vmatprep.subr.bf16.mxu0 %v5044
    %7096 = vmatpush1.bf16.msra.mxu0 %v5043
    %7097 = vmatprep.subr.bf16.mxu0 %v5036
    %7098 = vmatpush1.bf16.msra.mxu0 %v5035
    %7099 = vmatprep.subr.bf16.mxu0 %v5156
    %7100 = vmatpush2.bf16.msra.mxu0 %v5155
    %7101 = vmatprep.subr.bf16.mxu0 %v5148
    %7102 = vmatpush2.bf16.msra.mxu0 %v5147
    %7103 = vmatprep.subr.bf16.mxu0 %v5140
    %7104 = vmatpush2.bf16.msra.mxu0 %v5139
    %7105 = vmatprep.subr.bf16.mxu0 %v5132
    %7106 = vmatpush2.bf16.msra.mxu0 %v5131
    %7107 = vmatprep.subr.bf16.mxu0 %v5124
    %7108 = vmatpush2.bf16.msra.mxu0 %v5123
    %7109 = vmatprep.subr.bf16.mxu0 %v5116
    %7110 = vmatpush2.bf16.msra.mxu0 %v5115
    %7111 = vmatprep.subr.bf16.mxu0 %v5108
    %7112 = vmatpush2.bf16.msra.mxu0 %v5107
    %7113 = vmatprep.subr.bf16.mxu0 %v5100
    %7114 = vmatpush2.bf16.msra.mxu0 %v5099
    %7115 = vmatprep.mubr.bf16.mxu0 %v1932
    %7116 = vmatmul.mubr.bf16.gmra.mxu0 %v1931
    %v7117 = vpop.f32.mrf.mxu0
    %v7118 = vadd.f32 0.0, %v7117
    %v7119 = vpop.f32.mrf.mxu0
    %v7120 = vadd.f32 0.0, %v7119
    %v7121 = vpop.f32.mrf.mxu0
    %v7122 = vpop.f32.mrf.mxu0
    %7123 = vdwg.mxu0
    %7124 = vmatprep.subr.bf16.mxu0 %v5220
    %7125 = vmatpush1.bf16.msra.mxu0 %v5219
    %7126 = vmatprep.subr.bf16.mxu0 %v5212
    %7127 = vmatpush1.bf16.msra.mxu0 %v5211
    %7128 = vmatprep.subr.bf16.mxu0 %v5204
    %7129 = vmatpush1.bf16.msra.mxu0 %v5203
    %7130 = vmatprep.subr.bf16.mxu0 %v5196
    %7131 = vmatpush1.bf16.msra.mxu0 %v5195
    %7132 = vmatprep.subr.bf16.mxu0 %v5188
    %7133 = vmatpush1.bf16.msra.mxu0 %v5187
    %7134 = vmatprep.subr.bf16.mxu0 %v5180
    %7135 = vmatpush1.bf16.msra.mxu0 %v5179
    %7136 = vmatprep.subr.bf16.mxu0 %v5172
    %7137 = vmatpush1.bf16.msra.mxu0 %v5171
    %7138 = vmatprep.subr.bf16.mxu0 %v5164
    %7139 = vmatpush1.bf16.msra.mxu0 %v5163
    %7140 = vmatprep.subr.bf16.mxu0 %v5284
    %7141 = vmatpush2.bf16.msra.mxu0 %v5283
    %7142 = vmatprep.subr.bf16.mxu0 %v5276
    %7143 = vmatpush2.bf16.msra.mxu0 %v5275
    %7144 = vmatprep.subr.bf16.mxu0 %v5268
    %7145 = vmatpush2.bf16.msra.mxu0 %v5267
    %7146 = vmatprep.subr.bf16.mxu0 %v5260
    %7147 = vmatpush2.bf16.msra.mxu0 %v5259
    %7148 = vmatprep.subr.bf16.mxu0 %v5252
    %7149 = vmatpush2.bf16.msra.mxu0 %v5251
    %7150 = vmatprep.subr.bf16.mxu0 %v5244
    %7151 = vmatpush2.bf16.msra.mxu0 %v5243
    %7152 = vmatprep.subr.bf16.mxu0 %v5236
    %7153 = vmatpush2.bf16.msra.mxu0 %v5235
    %7154 = vmatprep.subr.bf16.mxu0 %v5228
    %7155 = vmatpush2.bf16.msra.mxu0 %v5227
    %7156 = vmatprep.mubr.bf16.mxu0 %v1934
    %7157 = vmatmul.mubr.bf16.gmra.mxu0 %v1933
    %v7158 = vpop.f32.mrf.mxu0
    %v7159 = vadd.f32 %v7118, %v7158
    %v7160 = vpop.f32.mrf.mxu0
    %v7161 = vadd.f32 %v7120, %v7160
    %v7162 = vpop.f32.mrf.mxu0
    %v7163 = vpop.f32.mrf.mxu0
    %7164 = vdwg.mxu0
    %7165 = vmatprep.subr.bf16.mxu0 %v5348
    %7166 = vmatpush1.bf16.msra.mxu0 %v5347
    %7167 = vmatprep.subr.bf16.mxu0 %v5340
    %7168 = vmatpush1.bf16.msra.mxu0 %v5339
    %7169 = vmatprep.subr.bf16.mxu0 %v5332
    %7170 = vmatpush1.bf16.msra.mxu0 %v5331
    %7171 = vmatprep.subr.bf16.mxu0 %v5324
    %7172 = vmatpush1.bf16.msra.mxu0 %v5323
    %7173 = vmatprep.subr.bf16.mxu0 %v5316
    %7174 = vmatpush1.bf16.msra.mxu0 %v5315
    %7175 = vmatprep.subr.bf16.mxu0 %v5308
    %7176 = vmatpush1.bf16.msra.mxu0 %v5307
    %7177 = vmatprep.subr.bf16.mxu0 %v5300
    %7178 = vmatpush1.bf16.msra.mxu0 %v5299
    %7179 = vmatprep.subr.bf16.mxu0 %v5292
    %7180 = vmatpush1.bf16.msra.mxu0 %v5291
    %7181 = vmatprep.subr.bf16.mxu0 %v5412
    %7182 = vmatpush2.bf16.msra.mxu0 %v5411
    %7183 = vmatprep.subr.bf16.mxu0 %v5404
    %7184 = vmatpush2.bf16.msra.mxu0 %v5403
    %7185 = vmatprep.subr.bf16.mxu0 %v5396
    %7186 = vmatpush2.bf16.msra.mxu0 %v5395
    %7187 = vmatprep.subr.bf16.mxu0 %v5388
    %7188 = vmatpush2.bf16.msra.mxu0 %v5387
    %7189 = vmatprep.subr.bf16.mxu0 %v5380
    %7190 = vmatpush2.bf16.msra.mxu0 %v5379
    %7191 = vmatprep.subr.bf16.mxu0 %v5372
    %7192 = vmatpush2.bf16.msra.mxu0 %v5371
    %7193 = vmatprep.subr.bf16.mxu0 %v5364
    %7194 = vmatpush2.bf16.msra.mxu0 %v5363
    %7195 = vmatprep.subr.bf16.mxu0 %v5356
    %7196 = vmatpush2.bf16.msra.mxu0 %v5355
    %7197 = vmatprep.mubr.bf16.mxu0 %v1936
    %7198 = vmatmul.mubr.bf16.gmra.mxu0 %v1935
    %v7199 = vpop.f32.mrf.mxu0
    %v7200 = vadd.f32 %v7159, %v7199
    %v7201 = vpop.f32.mrf.mxu0
    %v7202 = vadd.f32 %v7161, %v7201
    %v7203 = vpop.f32.mrf.mxu0
    %v7204 = vpop.f32.mrf.mxu0
    %7205 = vdwg.mxu0
    %7206 = vmatprep.subr.bf16.mxu0 %v5476
    %7207 = vmatpush1.bf16.msra.mxu0 %v5475
    %7208 = vmatprep.subr.bf16.mxu0 %v5468
    %7209 = vmatpush1.bf16.msra.mxu0 %v5467
    %7210 = vmatprep.subr.bf16.mxu0 %v5460
    %7211 = vmatpush1.bf16.msra.mxu0 %v5459
    %7212 = vmatprep.subr.bf16.mxu0 %v5452
    %7213 = vmatpush1.bf16.msra.mxu0 %v5451
    %7214 = vmatprep.subr.bf16.mxu0 %v5444
    %7215 = vmatpush1.bf16.msra.mxu0 %v5443
    %7216 = vmatprep.subr.bf16.mxu0 %v5436
    %7217 = vmatpush1.bf16.msra.mxu0 %v5435
    %7218 = vmatprep.subr.bf16.mxu0 %v5428
    %7219 = vmatpush1.bf16.msra.mxu0 %v5427
    %7220 = vmatprep.subr.bf16.mxu0 %v5420
    %7221 = vmatpush1.bf16.msra.mxu0 %v5419
    %7222 = vmatprep.subr.bf16.mxu0 %v5540
    %7223 = vmatpush2.bf16.msra.mxu0 %v5539
    %7224 = vmatprep.subr.bf16.mxu0 %v5532
    %7225 = vmatpush2.bf16.msra.mxu0 %v5531
    %7226 = vmatprep.subr.bf16.mxu0 %v5524
    %7227 = vmatpush2.bf16.msra.mxu0 %v5523
    %7228 = vmatprep.subr.bf16.mxu0 %v5516
    %7229 = vmatpush2.bf16.msra.mxu0 %v5515
    %7230 = vmatprep.subr.bf16.mxu0 %v5508
    %7231 = vmatpush2.bf16.msra.mxu0 %v5507
    %7232 = vmatprep.subr.bf16.mxu0 %v5500
    %7233 = vmatpush2.bf16.msra.mxu0 %v5499
    %7234 = vmatprep.subr.bf16.mxu0 %v5492
    %7235 = vmatpush2.bf16.msra.mxu0 %v5491
    %7236 = vmatprep.subr.bf16.mxu0 %v5484
    %7237 = vmatpush2.bf16.msra.mxu0 %v5483
    %7238 = vmatprep.mubr.bf16.mxu0 %v1938
    %7239 = vmatmul.mubr.bf16.gmra.mxu0 %v1937
    %v7240 = vpop.f32.mrf.mxu0
    %v7241 = vadd.f32 %v7200, %v7240
    %v7242 = vpop.f32.mrf.mxu0
    %v7243 = vadd.f32 %v7202, %v7242
    %v7244 = vpop.f32.mrf.mxu0
    %v7245 = vpop.f32.mrf.mxu0
    %7246 = vdwg.mxu0
    %7247 = vmatprep.subr.bf16.mxu0 %v5604
    %7248 = vmatpush1.bf16.msra.mxu0 %v5603
    %7249 = vmatprep.subr.bf16.mxu0 %v5596
    %7250 = vmatpush1.bf16.msra.mxu0 %v5595
    %7251 = vmatprep.subr.bf16.mxu0 %v5588
    %7252 = vmatpush1.bf16.msra.mxu0 %v5587
    %7253 = vmatprep.subr.bf16.mxu0 %v5580
    %7254 = vmatpush1.bf16.msra.mxu0 %v5579
    %7255 = vmatprep.subr.bf16.mxu0 %v5572
    %7256 = vmatpush1.bf16.msra.mxu0 %v5571
    %7257 = vmatprep.subr.bf16.mxu0 %v5564
    %7258 = vmatpush1.bf16.msra.mxu0 %v5563
    %7259 = vmatprep.subr.bf16.mxu0 %v5556
    %7260 = vmatpush1.bf16.msra.mxu0 %v5555
    %7261 = vmatprep.subr.bf16.mxu0 %v5548
    %7262 = vmatpush1.bf16.msra.mxu0 %v5547
    %7263 = vmatprep.subr.bf16.mxu0 %v5668
    %7264 = vmatpush2.bf16.msra.mxu0 %v5667
    %7265 = vmatprep.subr.bf16.mxu0 %v5660
    %7266 = vmatpush2.bf16.msra.mxu0 %v5659
    %7267 = vmatprep.subr.bf16.mxu0 %v5652
    %7268 = vmatpush2.bf16.msra.mxu0 %v5651
    %7269 = vmatprep.subr.bf16.mxu0 %v5644
    %7270 = vmatpush2.bf16.msra.mxu0 %v5643
    %7271 = vmatprep.subr.bf16.mxu0 %v5636
    %7272 = vmatpush2.bf16.msra.mxu0 %v5635
    %7273 = vmatprep.subr.bf16.mxu0 %v5628
    %7274 = vmatpush2.bf16.msra.mxu0 %v5627
    %7275 = vmatprep.subr.bf16.mxu0 %v5620
    %7276 = vmatpush2.bf16.msra.mxu0 %v5619
    %7277 = vmatprep.subr.bf16.mxu0 %v5612
    %7278 = vmatpush2.bf16.msra.mxu0 %v5611
    %7279 = vmatprep.mubr.bf16.mxu0 %v1940
    %7280 = vmatmul.mubr.bf16.gmra.mxu0 %v1939
    %v7281 = vpop.f32.mrf.mxu0
    %v7282 = vadd.f32 %v7241, %v7281
    %v7283 = vpop.f32.mrf.mxu0
    %v7284 = vadd.f32 %v7243, %v7283
    %v7285 = vpop.f32.mrf.mxu0
    %v7286 = vpop.f32.mrf.mxu0
    %7287 = vdwg.mxu0
    %7288 = vmatprep.subr.bf16.mxu0 %v5732
    %7289 = vmatpush1.bf16.msra.mxu0 %v5731
    %7290 = vmatprep.subr.bf16.mxu0 %v5724
    %7291 = vmatpush1.bf16.msra.mxu0 %v5723
    %7292 = vmatprep.subr.bf16.mxu0 %v5716
    %7293 = vmatpush1.bf16.msra.mxu0 %v5715
    %7294 = vmatprep.subr.bf16.mxu0 %v5708
    %7295 = vmatpush1.bf16.msra.mxu0 %v5707
    %7296 = vmatprep.subr.bf16.mxu0 %v5700
    %7297 = vmatpush1.bf16.msra.mxu0 %v5699
    %7298 = vmatprep.subr.bf16.mxu0 %v5692
    %7299 = vmatpush1.bf16.msra.mxu0 %v5691
    %7300 = vmatprep.subr.bf16.mxu0 %v5684
    %7301 = vmatpush1.bf16.msra.mxu0 %v5683
    %7302 = vmatprep.subr.bf16.mxu0 %v5676
    %7303 = vmatpush1.bf16.msra.mxu0 %v5675
    %7304 = vmatprep.subr.bf16.mxu0 %v5796
    %7305 = vmatpush2.bf16.msra.mxu0 %v5795
    %7306 = vmatprep.subr.bf16.mxu0 %v5788
    %7307 = vmatpush2.bf16.msra.mxu0 %v5787
    %7308 = vmatprep.subr.bf16.mxu0 %v5780
    %7309 = vmatpush2.bf16.msra.mxu0 %v5779
    %7310 = vmatprep.subr.bf16.mxu0 %v5772
    %7311 = vmatpush2.bf16.msra.mxu0 %v5771
    %7312 = vmatprep.subr.bf16.mxu0 %v5764
    %7313 = vmatpush2.bf16.msra.mxu0 %v5763
    %7314 = vmatprep.subr.bf16.mxu0 %v5756
    %7315 = vmatpush2.bf16.msra.mxu0 %v5755
    %7316 = vmatprep.subr.bf16.mxu0 %v5748
    %7317 = vmatpush2.bf16.msra.mxu0 %v5747
    %7318 = vmatprep.subr.bf16.mxu0 %v5740
    %7319 = vmatpush2.bf16.msra.mxu0 %v5739
    %7320 = vmatprep.mubr.bf16.mxu0 %v1942
    %7321 = vmatmul.mubr.bf16.gmra.mxu0 %v1941
    %v7322 = vpop.f32.mrf.mxu0
    %v7323 = vadd.f32 %v7282, %v7322
    %v7324 = vpop.f32.mrf.mxu0
    %v7325 = vadd.f32 %v7284, %v7324
    %v7326 = vpop.f32.mrf.mxu0
    %v7327 = vpop.f32.mrf.mxu0
    %7328 = vdwg.mxu0
    %7329 = vmatprep.subr.bf16.mxu0 %v5860
    %7330 = vmatpush1.bf16.msra.mxu0 %v5859
    %7331 = vmatprep.subr.bf16.mxu0 %v5852
    %7332 = vmatpush1.bf16.msra.mxu0 %v5851
    %7333 = vmatprep.subr.bf16.mxu0 %v5844
    %7334 = vmatpush1.bf16.msra.mxu0 %v5843
    %7335 = vmatprep.subr.bf16.mxu0 %v5836
    %7336 = vmatpush1.bf16.msra.mxu0 %v5835
    %7337 = vmatprep.subr.bf16.mxu0 %v5828
    %7338 = vmatpush1.bf16.msra.mxu0 %v5827
    %7339 = vmatprep.subr.bf16.mxu0 %v5820
    %7340 = vmatpush1.bf16.msra.mxu0 %v5819
    %7341 = vmatprep.subr.bf16.mxu0 %v5812
    %7342 = vmatpush1.bf16.msra.mxu0 %v5811
    %7343 = vmatprep.subr.bf16.mxu0 %v5804
    %7344 = vmatpush1.bf16.msra.mxu0 %v5803
    %7345 = vmatprep.subr.bf16.mxu0 %v5924
    %7346 = vmatpush2.bf16.msra.mxu0 %v5923
    %7347 = vmatprep.subr.bf16.mxu0 %v5916
    %7348 = vmatpush2.bf16.msra.mxu0 %v5915
    %7349 = vmatprep.subr.bf16.mxu0 %v5908
    %7350 = vmatpush2.bf16.msra.mxu0 %v5907
    %7351 = vmatprep.subr.bf16.mxu0 %v5900
    %7352 = vmatpush2.bf16.msra.mxu0 %v5899
    %7353 = vmatprep.subr.bf16.mxu0 %v5892
    %7354 = vmatpush2.bf16.msra.mxu0 %v5891
    %7355 = vmatprep.subr.bf16.mxu0 %v5884
    %7356 = vmatpush2.bf16.msra.mxu0 %v5883
    %7357 = vmatprep.subr.bf16.mxu0 %v5876
    %7358 = vmatpush2.bf16.msra.mxu0 %v5875
    %7359 = vmatprep.subr.bf16.mxu0 %v5868
    %7360 = vmatpush2.bf16.msra.mxu0 %v5867
    %7361 = vmatprep.mubr.bf16.mxu0 %v1944
    %7362 = vmatmul.mubr.bf16.gmra.mxu0 %v1943
    %v7363 = vpop.f32.mrf.mxu0
    %v7364 = vadd.f32 %v7323, %v7363
    %v7365 = vpop.f32.mrf.mxu0
    %v7366 = vadd.f32 %v7325, %v7365
    %v7367 = vpop.f32.mrf.mxu0
    %v7368 = vpop.f32.mrf.mxu0
    %7369 = vdwg.mxu0
    %7370 = vmatprep.subr.bf16.mxu0 %v5988
    %7371 = vmatpush1.bf16.msra.mxu0 %v5987
    %7372 = vmatprep.subr.bf16.mxu0 %v5980
    %7373 = vmatpush1.bf16.msra.mxu0 %v5979
    %7374 = vmatprep.subr.bf16.mxu0 %v5972
    %7375 = vmatpush1.bf16.msra.mxu0 %v5971
    %7376 = vmatprep.subr.bf16.mxu0 %v5964
    %7377 = vmatpush1.bf16.msra.mxu0 %v5963
    %7378 = vmatprep.subr.bf16.mxu0 %v5956
    %7379 = vmatpush1.bf16.msra.mxu0 %v5955
    %7380 = vmatprep.subr.bf16.mxu0 %v5948
    %7381 = vmatpush1.bf16.msra.mxu0 %v5947
    %7382 = vmatprep.subr.bf16.mxu0 %v5940
    %7383 = vmatpush1.bf16.msra.mxu0 %v5939
    %7384 = vmatprep.subr.bf16.mxu0 %v5932
    %7385 = vmatpush1.bf16.msra.mxu0 %v5931
    %7386 = vmatprep.subr.bf16.mxu0 %v6052
    %7387 = vmatpush2.bf16.msra.mxu0 %v6051
    %7388 = vmatprep.subr.bf16.mxu0 %v6044
    %7389 = vmatpush2.bf16.msra.mxu0 %v6043
    %7390 = vmatprep.subr.bf16.mxu0 %v6036
    %7391 = vmatpush2.bf16.msra.mxu0 %v6035
    %7392 = vmatprep.subr.bf16.mxu0 %v6028
    %7393 = vmatpush2.bf16.msra.mxu0 %v6027
    %7394 = vmatprep.subr.bf16.mxu0 %v6020
    %7395 = vmatpush2.bf16.msra.mxu0 %v6019
    %7396 = vmatprep.subr.bf16.mxu0 %v6012
    %7397 = vmatpush2.bf16.msra.mxu0 %v6011
    %7398 = vmatprep.subr.bf16.mxu0 %v6004
    %7399 = vmatpush2.bf16.msra.mxu0 %v6003
    %7400 = vmatprep.subr.bf16.mxu0 %v5996
    %7401 = vmatpush2.bf16.msra.mxu0 %v5995
    %7402 = vmatprep.mubr.bf16.mxu0 %v1946
    %7403 = vmatmul.mubr.bf16.gmra.mxu0 %v1945
    %v7404 = vpop.f32.mrf.mxu0
    %v7405 = vadd.f32 %v7364, %v7404
    %v7406 = vpop.f32.mrf.mxu0
    %v7407 = vadd.f32 %v7366, %v7406
    %v7408 = vpop.f32.mrf.mxu0
    %v7409 = vpop.f32.mrf.mxu0
    %7410 = vdwg.mxu0
    %7411 = vmatprep.subr.bf16.mxu0 %v5094
    %7412 = vmatpush1.bf16.msra.mxu0 %v5093
    %7413 = vmatprep.subr.bf16.mxu0 %v5086
    %7414 = vmatpush1.bf16.msra.mxu0 %v5085
    %7415 = vmatprep.subr.bf16.mxu0 %v5078
    %7416 = vmatpush1.bf16.msra.mxu0 %v5077
    %7417 = vmatprep.subr.bf16.mxu0 %v5070
    %7418 = vmatpush1.bf16.msra.mxu0 %v5069
    %7419 = vmatprep.subr.bf16.mxu0 %v5062
    %7420 = vmatpush1.bf16.msra.mxu0 %v5061
    %7421 = vmatprep.subr.bf16.mxu0 %v5054
    %7422 = vmatpush1.bf16.msra.mxu0 %v5053
    %7423 = vmatprep.subr.bf16.mxu0 %v5046
    %7424 = vmatpush1.bf16.msra.mxu0 %v5045
    %7425 = vmatprep.subr.bf16.mxu0 %v5038
    %7426 = vmatpush1.bf16.msra.mxu0 %v5037
    %7427 = vmatprep.subr.bf16.mxu0 %v5158
    %7428 = vmatpush2.bf16.msra.mxu0 %v5157
    %7429 = vmatprep.subr.bf16.mxu0 %v5150
    %7430 = vmatpush2.bf16.msra.mxu0 %v5149
    %7431 = vmatprep.subr.bf16.mxu0 %v5142
    %7432 = vmatpush2.bf16.msra.mxu0 %v5141
    %7433 = vmatprep.subr.bf16.mxu0 %v5134
    %7434 = vmatpush2.bf16.msra.mxu0 %v5133
    %7435 = vmatprep.subr.bf16.mxu0 %v5126
    %7436 = vmatpush2.bf16.msra.mxu0 %v5125
    %7437 = vmatprep.subr.bf16.mxu0 %v5118
    %7438 = vmatpush2.bf16.msra.mxu0 %v5117
    %7439 = vmatprep.subr.bf16.mxu0 %v5110
    %7440 = vmatpush2.bf16.msra.mxu0 %v5109
    %7441 = vmatprep.subr.bf16.mxu0 %v5102
    %7442 = vmatpush2.bf16.msra.mxu0 %v5101
    %7443 = vmatprep.mubr.bf16.mxu0 %v1932
    %7444 = vmatmul.mubr.bf16.gmra.mxu0 %v1931
    %v7445 = vpop.f32.mrf.mxu0
    %v7446 = vadd.f32 0.0, %v7445
    %v7447 = vpop.f32.mrf.mxu0
    %v7448 = vadd.f32 0.0, %v7447
    %v7449 = vpop.f32.mrf.mxu0
    %v7450 = vpop.f32.mrf.mxu0
    %7451 = vdwg.mxu0
    %7452 = vmatprep.subr.bf16.mxu0 %v5222
    %7453 = vmatpush1.bf16.msra.mxu0 %v5221
    %7454 = vmatprep.subr.bf16.mxu0 %v5214
    %7455 = vmatpush1.bf16.msra.mxu0 %v5213
    %7456 = vmatprep.subr.bf16.mxu0 %v5206
    %7457 = vmatpush1.bf16.msra.mxu0 %v5205
    %7458 = vmatprep.subr.bf16.mxu0 %v5198
    %7459 = vmatpush1.bf16.msra.mxu0 %v5197
    %7460 = vmatprep.subr.bf16.mxu0 %v5190
    %7461 = vmatpush1.bf16.msra.mxu0 %v5189
    %7462 = vmatprep.subr.bf16.mxu0 %v5182
    %7463 = vmatpush1.bf16.msra.mxu0 %v5181
    %7464 = vmatprep.subr.bf16.mxu0 %v5174
    %7465 = vmatpush1.bf16.msra.mxu0 %v5173
    %7466 = vmatprep.subr.bf16.mxu0 %v5166
    %7467 = vmatpush1.bf16.msra.mxu0 %v5165
    %7468 = vmatprep.subr.bf16.mxu0 %v5286
    %7469 = vmatpush2.bf16.msra.mxu0 %v5285
    %7470 = vmatprep.subr.bf16.mxu0 %v5278
    %7471 = vmatpush2.bf16.msra.mxu0 %v5277
    %7472 = vmatprep.subr.bf16.mxu0 %v5270
    %7473 = vmatpush2.bf16.msra.mxu0 %v5269
    %7474 = vmatprep.subr.bf16.mxu0 %v5262
    %7475 = vmatpush2.bf16.msra.mxu0 %v5261
    %7476 = vmatprep.subr.bf16.mxu0 %v5254
    %7477 = vmatpush2.bf16.msra.mxu0 %v5253
    %7478 = vmatprep.subr.bf16.mxu0 %v5246
    %7479 = vmatpush2.bf16.msra.mxu0 %v5245
    %7480 = vmatprep.subr.bf16.mxu0 %v5238
    %7481 = vmatpush2.bf16.msra.mxu0 %v5237
    %7482 = vmatprep.subr.bf16.mxu0 %v5230
    %7483 = vmatpush2.bf16.msra.mxu0 %v5229
    %7484 = vmatprep.mubr.bf16.mxu0 %v1934
    %7485 = vmatmul.mubr.bf16.gmra.mxu0 %v1933
    %v7486 = vpop.f32.mrf.mxu0
    %v7487 = vadd.f32 %v7446, %v7486
    %v7488 = vpop.f32.mrf.mxu0
    %v7489 = vadd.f32 %v7448, %v7488
    %v7490 = vpop.f32.mrf.mxu0
    %v7491 = vpop.f32.mrf.mxu0
    %7492 = vdwg.mxu0
    %7493 = vmatprep.subr.bf16.mxu0 %v5350
    %7494 = vmatpush1.bf16.msra.mxu0 %v5349
    %7495 = vmatprep.subr.bf16.mxu0 %v5342
    %7496 = vmatpush1.bf16.msra.mxu0 %v5341
    %7497 = vmatprep.subr.bf16.mxu0 %v5334
    %7498 = vmatpush1.bf16.msra.mxu0 %v5333
    %7499 = vmatprep.subr.bf16.mxu0 %v5326
    %7500 = vmatpush1.bf16.msra.mxu0 %v5325
    %7501 = vmatprep.subr.bf16.mxu0 %v5318
    %7502 = vmatpush1.bf16.msra.mxu0 %v5317
    %7503 = vmatprep.subr.bf16.mxu0 %v5310
    %7504 = vmatpush1.bf16.msra.mxu0 %v5309
    %7505 = vmatprep.subr.bf16.mxu0 %v5302
    %7506 = vmatpush1.bf16.msra.mxu0 %v5301
    %7507 = vmatprep.subr.bf16.mxu0 %v5294
    %7508 = vmatpush1.bf16.msra.mxu0 %v5293
    %7509 = vmatprep.subr.bf16.mxu0 %v5414
    %7510 = vmatpush2.bf16.msra.mxu0 %v5413
    %7511 = vmatprep.subr.bf16.mxu0 %v5406
    %7512 = vmatpush2.bf16.msra.mxu0 %v5405
    %7513 = vmatprep.subr.bf16.mxu0 %v5398
    %7514 = vmatpush2.bf16.msra.mxu0 %v5397
    %7515 = vmatprep.subr.bf16.mxu0 %v5390
    %7516 = vmatpush2.bf16.msra.mxu0 %v5389
    %7517 = vmatprep.subr.bf16.mxu0 %v5382
    %7518 = vmatpush2.bf16.msra.mxu0 %v5381
    %7519 = vmatprep.subr.bf16.mxu0 %v5374
    %7520 = vmatpush2.bf16.msra.mxu0 %v5373
    %7521 = vmatprep.subr.bf16.mxu0 %v5366
    %7522 = vmatpush2.bf16.msra.mxu0 %v5365
    %7523 = vmatprep.subr.bf16.mxu0 %v5358
    %7524 = vmatpush2.bf16.msra.mxu0 %v5357
    %7525 = vmatprep.mubr.bf16.mxu0 %v1936
    %7526 = vmatmul.mubr.bf16.gmra.mxu0 %v1935
    %v7527 = vpop.f32.mrf.mxu0
    %v7528 = vadd.f32 %v7487, %v7527
    %v7529 = vpop.f32.mrf.mxu0
    %v7530 = vadd.f32 %v7489, %v7529
    %v7531 = vpop.f32.mrf.mxu0
    %v7532 = vpop.f32.mrf.mxu0
    %7533 = vdwg.mxu0
    %7534 = vmatprep.subr.bf16.mxu0 %v5478
    %7535 = vmatpush1.bf16.msra.mxu0 %v5477
    %7536 = vmatprep.subr.bf16.mxu0 %v5470
    %7537 = vmatpush1.bf16.msra.mxu0 %v5469
    %7538 = vmatprep.subr.bf16.mxu0 %v5462
    %7539 = vmatpush1.bf16.msra.mxu0 %v5461
    %7540 = vmatprep.subr.bf16.mxu0 %v5454
    %7541 = vmatpush1.bf16.msra.mxu0 %v5453
    %7542 = vmatprep.subr.bf16.mxu0 %v5446
    %7543 = vmatpush1.bf16.msra.mxu0 %v5445
    %7544 = vmatprep.subr.bf16.mxu0 %v5438
    %7545 = vmatpush1.bf16.msra.mxu0 %v5437
    %7546 = vmatprep.subr.bf16.mxu0 %v5430
    %7547 = vmatpush1.bf16.msra.mxu0 %v5429
    %7548 = vmatprep.subr.bf16.mxu0 %v5422
    %7549 = vmatpush1.bf16.msra.mxu0 %v5421
    %7550 = vmatprep.subr.bf16.mxu0 %v5542
    %7551 = vmatpush2.bf16.msra.mxu0 %v5541
    %7552 = vmatprep.subr.bf16.mxu0 %v5534
    %7553 = vmatpush2.bf16.msra.mxu0 %v5533
    %7554 = vmatprep.subr.bf16.mxu0 %v5526
    %7555 = vmatpush2.bf16.msra.mxu0 %v5525
    %7556 = vmatprep.subr.bf16.mxu0 %v5518
    %7557 = vmatpush2.bf16.msra.mxu0 %v5517
    %7558 = vmatprep.subr.bf16.mxu0 %v5510
    %7559 = vmatpush2.bf16.msra.mxu0 %v5509
    %7560 = vmatprep.subr.bf16.mxu0 %v5502
    %7561 = vmatpush2.bf16.msra.mxu0 %v5501
    %7562 = vmatprep.subr.bf16.mxu0 %v5494
    %7563 = vmatpush2.bf16.msra.mxu0 %v5493
    %7564 = vmatprep.subr.bf16.mxu0 %v5486
    %7565 = vmatpush2.bf16.msra.mxu0 %v5485
    %7566 = vmatprep.mubr.bf16.mxu0 %v1938
    %7567 = vmatmul.mubr.bf16.gmra.mxu0 %v1937
    %v7568 = vpop.f32.mrf.mxu0
    %v7569 = vadd.f32 %v7528, %v7568
    %v7570 = vpop.f32.mrf.mxu0
    %v7571 = vadd.f32 %v7530, %v7570
    %v7572 = vpop.f32.mrf.mxu0
    %v7573 = vpop.f32.mrf.mxu0
    %7574 = vdwg.mxu0
    %7575 = vmatprep.subr.bf16.mxu0 %v5606
    %7576 = vmatpush1.bf16.msra.mxu0 %v5605
    %7577 = vmatprep.subr.bf16.mxu0 %v5598
    %7578 = vmatpush1.bf16.msra.mxu0 %v5597
    %7579 = vmatprep.subr.bf16.mxu0 %v5590
    %7580 = vmatpush1.bf16.msra.mxu0 %v5589
    %7581 = vmatprep.subr.bf16.mxu0 %v5582
    %7582 = vmatpush1.bf16.msra.mxu0 %v5581
    %7583 = vmatprep.subr.bf16.mxu0 %v5574
    %7584 = vmatpush1.bf16.msra.mxu0 %v5573
    %7585 = vmatprep.subr.bf16.mxu0 %v5566
    %7586 = vmatpush1.bf16.msra.mxu0 %v5565
    %7587 = vmatprep.subr.bf16.mxu0 %v5558
    %7588 = vmatpush1.bf16.msra.mxu0 %v5557
    %7589 = vmatprep.subr.bf16.mxu0 %v5550
    %7590 = vmatpush1.bf16.msra.mxu0 %v5549
    %7591 = vmatprep.subr.bf16.mxu0 %v5670
    %7592 = vmatpush2.bf16.msra.mxu0 %v5669
    %7593 = vmatprep.subr.bf16.mxu0 %v5662
    %7594 = vmatpush2.bf16.msra.mxu0 %v5661
    %7595 = vmatprep.subr.bf16.mxu0 %v5654
    %7596 = vmatpush2.bf16.msra.mxu0 %v5653
    %7597 = vmatprep.subr.bf16.mxu0 %v5646
    %7598 = vmatpush2.bf16.msra.mxu0 %v5645
    %7599 = vmatprep.subr.bf16.mxu0 %v5638
    %7600 = vmatpush2.bf16.msra.mxu0 %v5637
    %7601 = vmatprep.subr.bf16.mxu0 %v5630
    %7602 = vmatpush2.bf16.msra.mxu0 %v5629
    %7603 = vmatprep.subr.bf16.mxu0 %v5622
    %7604 = vmatpush2.bf16.msra.mxu0 %v5621
    %7605 = vmatprep.subr.bf16.mxu0 %v5614
    %7606 = vmatpush2.bf16.msra.mxu0 %v5613
    %7607 = vmatprep.mubr.bf16.mxu0 %v1940
    %7608 = vmatmul.mubr.bf16.gmra.mxu0 %v1939
    %v7609 = vpop.f32.mrf.mxu0
    %v7610 = vadd.f32 %v7569, %v7609
    %v7611 = vpop.f32.mrf.mxu0
    %v7612 = vadd.f32 %v7571, %v7611
    %v7613 = vpop.f32.mrf.mxu0
    %v7614 = vpop.f32.mrf.mxu0
    %7615 = vdwg.mxu0
    %7616 = vmatprep.subr.bf16.mxu0 %v5734
    %7617 = vmatpush1.bf16.msra.mxu0 %v5733
    %7618 = vmatprep.subr.bf16.mxu0 %v5726
    %7619 = vmatpush1.bf16.msra.mxu0 %v5725
    %7620 = vmatprep.subr.bf16.mxu0 %v5718
    %7621 = vmatpush1.bf16.msra.mxu0 %v5717
    %7622 = vmatprep.subr.bf16.mxu0 %v5710
    %7623 = vmatpush1.bf16.msra.mxu0 %v5709
    %7624 = vmatprep.subr.bf16.mxu0 %v5702
    %7625 = vmatpush1.bf16.msra.mxu0 %v5701
    %7626 = vmatprep.subr.bf16.mxu0 %v5694
    %7627 = vmatpush1.bf16.msra.mxu0 %v5693
    %7628 = vmatprep.subr.bf16.mxu0 %v5686
    %7629 = vmatpush1.bf16.msra.mxu0 %v5685
    %7630 = vmatprep.subr.bf16.mxu0 %v5678
    %7631 = vmatpush1.bf16.msra.mxu0 %v5677
    %7632 = vmatprep.subr.bf16.mxu0 %v5798
    %7633 = vmatpush2.bf16.msra.mxu0 %v5797
    %7634 = vmatprep.subr.bf16.mxu0 %v5790
    %7635 = vmatpush2.bf16.msra.mxu0 %v5789
    %7636 = vmatprep.subr.bf16.mxu0 %v5782
    %7637 = vmatpush2.bf16.msra.mxu0 %v5781
    %7638 = vmatprep.subr.bf16.mxu0 %v5774
    %7639 = vmatpush2.bf16.msra.mxu0 %v5773
    %7640 = vmatprep.subr.bf16.mxu0 %v5766
    %7641 = vmatpush2.bf16.msra.mxu0 %v5765
    %7642 = vmatprep.subr.bf16.mxu0 %v5758
    %7643 = vmatpush2.bf16.msra.mxu0 %v5757
    %7644 = vmatprep.subr.bf16.mxu0 %v5750
    %7645 = vmatpush2.bf16.msra.mxu0 %v5749
    %7646 = vmatprep.subr.bf16.mxu0 %v5742
    %7647 = vmatpush2.bf16.msra.mxu0 %v5741
    %7648 = vmatprep.mubr.bf16.mxu0 %v1942
    %7649 = vmatmul.mubr.bf16.gmra.mxu0 %v1941
    %v7650 = vpop.f32.mrf.mxu0
    %v7651 = vadd.f32 %v7610, %v7650
    %v7652 = vpop.f32.mrf.mxu0
    %v7653 = vadd.f32 %v7612, %v7652
    %v7654 = vpop.f32.mrf.mxu0
    %v7655 = vpop.f32.mrf.mxu0
    %7656 = vdwg.mxu0
    %7657 = vmatprep.subr.bf16.mxu0 %v5862
    %7658 = vmatpush1.bf16.msra.mxu0 %v5861
    %7659 = vmatprep.subr.bf16.mxu0 %v5854
    %7660 = vmatpush1.bf16.msra.mxu0 %v5853
    %7661 = vmatprep.subr.bf16.mxu0 %v5846
    %7662 = vmatpush1.bf16.msra.mxu0 %v5845
    %7663 = vmatprep.subr.bf16.mxu0 %v5838
    %7664 = vmatpush1.bf16.msra.mxu0 %v5837
    %7665 = vmatprep.subr.bf16.mxu0 %v5830
    %7666 = vmatpush1.bf16.msra.mxu0 %v5829
    %7667 = vmatprep.subr.bf16.mxu0 %v5822
    %7668 = vmatpush1.bf16.msra.mxu0 %v5821
    %7669 = vmatprep.subr.bf16.mxu0 %v5814
    %7670 = vmatpush1.bf16.msra.mxu0 %v5813
    %7671 = vmatprep.subr.bf16.mxu0 %v5806
    %7672 = vmatpush1.bf16.msra.mxu0 %v5805
    %7673 = vmatprep.subr.bf16.mxu0 %v5926
    %7674 = vmatpush2.bf16.msra.mxu0 %v5925
    %7675 = vmatprep.subr.bf16.mxu0 %v5918
    %7676 = vmatpush2.bf16.msra.mxu0 %v5917
    %7677 = vmatprep.subr.bf16.mxu0 %v5910
    %7678 = vmatpush2.bf16.msra.mxu0 %v5909
    %7679 = vmatprep.subr.bf16.mxu0 %v5902
    %7680 = vmatpush2.bf16.msra.mxu0 %v5901
    %7681 = vmatprep.subr.bf16.mxu0 %v5894
    %7682 = vmatpush2.bf16.msra.mxu0 %v5893
    %7683 = vmatprep.subr.bf16.mxu0 %v5886
    %7684 = vmatpush2.bf16.msra.mxu0 %v5885
    %7685 = vmatprep.subr.bf16.mxu0 %v5878
    %7686 = vmatpush2.bf16.msra.mxu0 %v5877
    %7687 = vmatprep.subr.bf16.mxu0 %v5870
    %7688 = vmatpush2.bf16.msra.mxu0 %v5869
    %7689 = vmatprep.mubr.bf16.mxu0 %v1944
    %7690 = vmatmul.mubr.bf16.gmra.mxu0 %v1943
    %v7691 = vpop.f32.mrf.mxu0
    %v7692 = vadd.f32 %v7651, %v7691
    %v7693 = vpop.f32.mrf.mxu0
    %v7694 = vadd.f32 %v7653, %v7693
    %v7695 = vpop.f32.mrf.mxu0
    %v7696 = vpop.f32.mrf.mxu0
    %7697 = vdwg.mxu0
    %7698 = vmatprep.subr.bf16.mxu0 %v5990
    %7699 = vmatpush1.bf16.msra.mxu0 %v5989
    %7700 = vmatprep.subr.bf16.mxu0 %v5982
    %7701 = vmatpush1.bf16.msra.mxu0 %v5981
    %7702 = vmatprep.subr.bf16.mxu0 %v5974
    %7703 = vmatpush1.bf16.msra.mxu0 %v5973
    %7704 = vmatprep.subr.bf16.mxu0 %v5966
    %7705 = vmatpush1.bf16.msra.mxu0 %v5965
    %7706 = vmatprep.subr.bf16.mxu0 %v5958
    %7707 = vmatpush1.bf16.msra.mxu0 %v5957
    %7708 = vmatprep.subr.bf16.mxu0 %v5950
    %7709 = vmatpush1.bf16.msra.mxu0 %v5949
    %7710 = vmatprep.subr.bf16.mxu0 %v5942
    %7711 = vmatpush1.bf16.msra.mxu0 %v5941
    %7712 = vmatprep.subr.bf16.mxu0 %v5934
    %7713 = vmatpush1.bf16.msra.mxu0 %v5933
    %7714 = vmatprep.subr.bf16.mxu0 %v6054
    %7715 = vmatpush2.bf16.msra.mxu0 %v6053
    %7716 = vmatprep.subr.bf16.mxu0 %v6046
    %7717 = vmatpush2.bf16.msra.mxu0 %v6045
    %7718 = vmatprep.subr.bf16.mxu0 %v6038
    %7719 = vmatpush2.bf16.msra.mxu0 %v6037
    %7720 = vmatprep.subr.bf16.mxu0 %v6030
    %7721 = vmatpush2.bf16.msra.mxu0 %v6029
    %7722 = vmatprep.subr.bf16.mxu0 %v6022
    %7723 = vmatpush2.bf16.msra.mxu0 %v6021
    %7724 = vmatprep.subr.bf16.mxu0 %v6014
    %7725 = vmatpush2.bf16.msra.mxu0 %v6013
    %7726 = vmatprep.subr.bf16.mxu0 %v6006
    %7727 = vmatpush2.bf16.msra.mxu0 %v6005
    %7728 = vmatprep.subr.bf16.mxu0 %v5998
    %7729 = vmatpush2.bf16.msra.mxu0 %v5997
    %7730 = vmatprep.mubr.bf16.mxu0 %v1946
    %7731 = vmatmul.mubr.bf16.gmra.mxu0 %v1945
    %v7732 = vpop.f32.mrf.mxu0
    %v7733 = vadd.f32 %v7692, %v7732
    %v7734 = vpop.f32.mrf.mxu0
    %v7735 = vadd.f32 %v7694, %v7734
    %v7736 = vpop.f32.mrf.mxu0
    %v7737 = vpop.f32.mrf.mxu0
    %7738 = vdwg.mxu0
    %7739 = vmatprep.subr.bf16.mxu0 %v5096
    %7740 = vmatpush1.bf16.msra.mxu0 %v5095
    %7741 = vmatprep.subr.bf16.mxu0 %v5088
    %7742 = vmatpush1.bf16.msra.mxu0 %v5087
    %7743 = vmatprep.subr.bf16.mxu0 %v5080
    %7744 = vmatpush1.bf16.msra.mxu0 %v5079
    %7745 = vmatprep.subr.bf16.mxu0 %v5072
    %7746 = vmatpush1.bf16.msra.mxu0 %v5071
    %7747 = vmatprep.subr.bf16.mxu0 %v5064
    %7748 = vmatpush1.bf16.msra.mxu0 %v5063
    %7749 = vmatprep.subr.bf16.mxu0 %v5056
    %7750 = vmatpush1.bf16.msra.mxu0 %v5055
    %7751 = vmatprep.subr.bf16.mxu0 %v5048
    %7752 = vmatpush1.bf16.msra.mxu0 %v5047
    %7753 = vmatprep.subr.bf16.mxu0 %v5040
    %7754 = vmatpush1.bf16.msra.mxu0 %v5039
    %7755 = vmatprep.subr.bf16.mxu0 %v5160
    %7756 = vmatpush2.bf16.msra.mxu0 %v5159
    %7757 = vmatprep.subr.bf16.mxu0 %v5152
    %7758 = vmatpush2.bf16.msra.mxu0 %v5151
    %7759 = vmatprep.subr.bf16.mxu0 %v5144
    %7760 = vmatpush2.bf16.msra.mxu0 %v5143
    %7761 = vmatprep.subr.bf16.mxu0 %v5136
    %7762 = vmatpush2.bf16.msra.mxu0 %v5135
    %7763 = vmatprep.subr.bf16.mxu0 %v5128
    %7764 = vmatpush2.bf16.msra.mxu0 %v5127
    %7765 = vmatprep.subr.bf16.mxu0 %v5120
    %7766 = vmatpush2.bf16.msra.mxu0 %v5119
    %7767 = vmatprep.subr.bf16.mxu0 %v5112
    %7768 = vmatpush2.bf16.msra.mxu0 %v5111
    %7769 = vmatprep.subr.bf16.mxu0 %v5104
    %7770 = vmatpush2.bf16.msra.mxu0 %v5103
    %7771 = vmatprep.mubr.bf16.mxu0 %v1932
    %7772 = vmatmul.mubr.bf16.gmra.mxu0 %v1931
    %v7773 = vpop.f32.mrf.mxu0
    %v7774 = vadd.f32 0.0, %v7773
    %v7775 = vpop.f32.mrf.mxu0
    %v7776 = vadd.f32 0.0, %v7775
    %v7777 = vpop.f32.mrf.mxu0
    %v7778 = vpop.f32.mrf.mxu0
    %7779 = vdwg.mxu0
    %7780 = vmatprep.subr.bf16.mxu0 %v5224
    %7781 = vmatpush1.bf16.msra.mxu0 %v5223
    %7782 = vmatprep.subr.bf16.mxu0 %v5216
    %7783 = vmatpush1.bf16.msra.mxu0 %v5215
    %7784 = vmatprep.subr.bf16.mxu0 %v5208
    %7785 = vmatpush1.bf16.msra.mxu0 %v5207
    %7786 = vmatprep.subr.bf16.mxu0 %v5200
    %7787 = vmatpush1.bf16.msra.mxu0 %v5199
    %7788 = vmatprep.subr.bf16.mxu0 %v5192
    %7789 = vmatpush1.bf16.msra.mxu0 %v5191
    %7790 = vmatprep.subr.bf16.mxu0 %v5184
    %7791 = vmatpush1.bf16.msra.mxu0 %v5183
    %7792 = vmatprep.subr.bf16.mxu0 %v5176
    %7793 = vmatpush1.bf16.msra.mxu0 %v5175
    %7794 = vmatprep.subr.bf16.mxu0 %v5168
    %7795 = vmatpush1.bf16.msra.mxu0 %v5167
    %7796 = vmatprep.subr.bf16.mxu0 %v5288
    %7797 = vmatpush2.bf16.msra.mxu0 %v5287
    %7798 = vmatprep.subr.bf16.mxu0 %v5280
    %7799 = vmatpush2.bf16.msra.mxu0 %v5279
    %7800 = vmatprep.subr.bf16.mxu0 %v5272
    %7801 = vmatpush2.bf16.msra.mxu0 %v5271
    %7802 = vmatprep.subr.bf16.mxu0 %v5264
    %7803 = vmatpush2.bf16.msra.mxu0 %v5263
    %7804 = vmatprep.subr.bf16.mxu0 %v5256
    %7805 = vmatpush2.bf16.msra.mxu0 %v5255
    %7806 = vmatprep.subr.bf16.mxu0 %v5248
    %7807 = vmatpush2.bf16.msra.mxu0 %v5247
    %7808 = vmatprep.subr.bf16.mxu0 %v5240
    %7809 = vmatpush2.bf16.msra.mxu0 %v5239
    %7810 = vmatprep.subr.bf16.mxu0 %v5232
    %7811 = vmatpush2.bf16.msra.mxu0 %v5231
    %7812 = vmatprep.mubr.bf16.mxu0 %v1934
    %7813 = vmatmul.mubr.bf16.gmra.mxu0 %v1933
    %v7814 = vpop.f32.mrf.mxu0
    %v7815 = vadd.f32 %v7774, %v7814
    %v7816 = vpop.f32.mrf.mxu0
    %v7817 = vadd.f32 %v7776, %v7816
    %v7818 = vpop.f32.mrf.mxu0
    %v7819 = vpop.f32.mrf.mxu0
    %7820 = vdwg.mxu0
    %7821 = vmatprep.subr.bf16.mxu0 %v5352
    %7822 = vmatpush1.bf16.msra.mxu0 %v5351
    %7823 = vmatprep.subr.bf16.mxu0 %v5344
    %7824 = vmatpush1.bf16.msra.mxu0 %v5343
    %7825 = vmatprep.subr.bf16.mxu0 %v5336
    %7826 = vmatpush1.bf16.msra.mxu0 %v5335
    %7827 = vmatprep.subr.bf16.mxu0 %v5328
    %7828 = vmatpush1.bf16.msra.mxu0 %v5327
    %7829 = vmatprep.subr.bf16.mxu0 %v5320
    %7830 = vmatpush1.bf16.msra.mxu0 %v5319
    %7831 = vmatprep.subr.bf16.mxu0 %v5312
    %7832 = vmatpush1.bf16.msra.mxu0 %v5311
    %7833 = vmatprep.subr.bf16.mxu0 %v5304
    %7834 = vmatpush1.bf16.msra.mxu0 %v5303
    %7835 = vmatprep.subr.bf16.mxu0 %v5296
    %7836 = vmatpush1.bf16.msra.mxu0 %v5295
    %7837 = vmatprep.subr.bf16.mxu0 %v5416
    %7838 = vmatpush2.bf16.msra.mxu0 %v5415
    %7839 = vmatprep.subr.bf16.mxu0 %v5408
    %7840 = vmatpush2.bf16.msra.mxu0 %v5407
    %7841 = vmatprep.subr.bf16.mxu0 %v5400
    %7842 = vmatpush2.bf16.msra.mxu0 %v5399
    %7843 = vmatprep.subr.bf16.mxu0 %v5392
    %7844 = vmatpush2.bf16.msra.mxu0 %v5391
    %7845 = vmatprep.subr.bf16.mxu0 %v5384
    %7846 = vmatpush2.bf16.msra.mxu0 %v5383
    %7847 = vmatprep.subr.bf16.mxu0 %v5376
    %7848 = vmatpush2.bf16.msra.mxu0 %v5375
    %7849 = vmatprep.subr.bf16.mxu0 %v5368
    %7850 = vmatpush2.bf16.msra.mxu0 %v5367
    %7851 = vmatprep.subr.bf16.mxu0 %v5360
    %7852 = vmatpush2.bf16.msra.mxu0 %v5359
    %7853 = vmatprep.mubr.bf16.mxu0 %v1936
    %7854 = vmatmul.mubr.bf16.gmra.mxu0 %v1935
    %v7855 = vpop.f32.mrf.mxu0
    %v7856 = vadd.f32 %v7815, %v7855
    %v7857 = vpop.f32.mrf.mxu0
    %v7858 = vadd.f32 %v7817, %v7857
    %v7859 = vpop.f32.mrf.mxu0
    %v7860 = vpop.f32.mrf.mxu0
    %7861 = vdwg.mxu0
    %7862 = vmatprep.subr.bf16.mxu0 %v5480
    %7863 = vmatpush1.bf16.msra.mxu0 %v5479
    %7864 = vmatprep.subr.bf16.mxu0 %v5472
    %7865 = vmatpush1.bf16.msra.mxu0 %v5471
    %7866 = vmatprep.subr.bf16.mxu0 %v5464
    %7867 = vmatpush1.bf16.msra.mxu0 %v5463
    %7868 = vmatprep.subr.bf16.mxu0 %v5456
    %7869 = vmatpush1.bf16.msra.mxu0 %v5455
    %7870 = vmatprep.subr.bf16.mxu0 %v5448
    %7871 = vmatpush1.bf16.msra.mxu0 %v5447
    %7872 = vmatprep.subr.bf16.mxu0 %v5440
    %7873 = vmatpush1.bf16.msra.mxu0 %v5439
    %7874 = vmatprep.subr.bf16.mxu0 %v5432
    %7875 = vmatpush1.bf16.msra.mxu0 %v5431
    %7876 = vmatprep.subr.bf16.mxu0 %v5424
    %7877 = vmatpush1.bf16.msra.mxu0 %v5423
    %7878 = vmatprep.subr.bf16.mxu0 %v5544
    %7879 = vmatpush2.bf16.msra.mxu0 %v5543
    %7880 = vmatprep.subr.bf16.mxu0 %v5536
    %7881 = vmatpush2.bf16.msra.mxu0 %v5535
    %7882 = vmatprep.subr.bf16.mxu0 %v5528
    %7883 = vmatpush2.bf16.msra.mxu0 %v5527
    %7884 = vmatprep.subr.bf16.mxu0 %v5520
    %7885 = vmatpush2.bf16.msra.mxu0 %v5519
    %7886 = vmatprep.subr.bf16.mxu0 %v5512
    %7887 = vmatpush2.bf16.msra.mxu0 %v5511
    %7888 = vmatprep.subr.bf16.mxu0 %v5504
    %7889 = vmatpush2.bf16.msra.mxu0 %v5503
    %7890 = vmatprep.subr.bf16.mxu0 %v5496
    %7891 = vmatpush2.bf16.msra.mxu0 %v5495
    %7892 = vmatprep.subr.bf16.mxu0 %v5488
    %7893 = vmatpush2.bf16.msra.mxu0 %v5487
    %7894 = vmatprep.mubr.bf16.mxu0 %v1938
    %7895 = vmatmul.mubr.bf16.gmra.mxu0 %v1937
    %v7896 = vpop.f32.mrf.mxu0
    %v7897 = vadd.f32 %v7856, %v7896
    %v7898 = vpop.f32.mrf.mxu0
    %v7899 = vadd.f32 %v7858, %v7898
    %v7900 = vpop.f32.mrf.mxu0
    %v7901 = vpop.f32.mrf.mxu0
    %7902 = vdwg.mxu0
    %7903 = vmatprep.subr.bf16.mxu0 %v5608
    %7904 = vmatpush1.bf16.msra.mxu0 %v5607
    %7905 = vmatprep.subr.bf16.mxu0 %v5600
    %7906 = vmatpush1.bf16.msra.mxu0 %v5599
    %7907 = vmatprep.subr.bf16.mxu0 %v5592
    %7908 = vmatpush1.bf16.msra.mxu0 %v5591
    %7909 = vmatprep.subr.bf16.mxu0 %v5584
    %7910 = vmatpush1.bf16.msra.mxu0 %v5583
    %7911 = vmatprep.subr.bf16.mxu0 %v5576
    %7912 = vmatpush1.bf16.msra.mxu0 %v5575
    %7913 = vmatprep.subr.bf16.mxu0 %v5568
    %7914 = vmatpush1.bf16.msra.mxu0 %v5567
    %7915 = vmatprep.subr.bf16.mxu0 %v5560
    %7916 = vmatpush1.bf16.msra.mxu0 %v5559
    %7917 = vmatprep.subr.bf16.mxu0 %v5552
    %7918 = vmatpush1.bf16.msra.mxu0 %v5551
    %7919 = vmatprep.subr.bf16.mxu0 %v5672
    %7920 = vmatpush2.bf16.msra.mxu0 %v5671
    %7921 = vmatprep.subr.bf16.mxu0 %v5664
    %7922 = vmatpush2.bf16.msra.mxu0 %v5663
    %7923 = vmatprep.subr.bf16.mxu0 %v5656
    %7924 = vmatpush2.bf16.msra.mxu0 %v5655
    %7925 = vmatprep.subr.bf16.mxu0 %v5648
    %7926 = vmatpush2.bf16.msra.mxu0 %v5647
    %7927 = vmatprep.subr.bf16.mxu0 %v5640
    %7928 = vmatpush2.bf16.msra.mxu0 %v5639
    %7929 = vmatprep.subr.bf16.mxu0 %v5632
    %7930 = vmatpush2.bf16.msra.mxu0 %v5631
    %7931 = vmatprep.subr.bf16.mxu0 %v5624
    %7932 = vmatpush2.bf16.msra.mxu0 %v5623
    %7933 = vmatprep.subr.bf16.mxu0 %v5616
    %7934 = vmatpush2.bf16.msra.mxu0 %v5615
    %7935 = vmatprep.mubr.bf16.mxu0 %v1940
    %7936 = vmatmul.mubr.bf16.gmra.mxu0 %v1939
    %v7937 = vpop.f32.mrf.mxu0
    %v7938 = vadd.f32 %v7897, %v7937
    %v7939 = vpop.f32.mrf.mxu0
    %v7940 = vadd.f32 %v7899, %v7939
    %v7941 = vpop.f32.mrf.mxu0
    %v7942 = vpop.f32.mrf.mxu0
    %7943 = vdwg.mxu0
    %7944 = vmatprep.subr.bf16.mxu0 %v5736
    %7945 = vmatpush1.bf16.msra.mxu0 %v5735
    %7946 = vmatprep.subr.bf16.mxu0 %v5728
    %7947 = vmatpush1.bf16.msra.mxu0 %v5727
    %7948 = vmatprep.subr.bf16.mxu0 %v5720
    %7949 = vmatpush1.bf16.msra.mxu0 %v5719
    %7950 = vmatprep.subr.bf16.mxu0 %v5712
    %7951 = vmatpush1.bf16.msra.mxu0 %v5711
    %7952 = vmatprep.subr.bf16.mxu0 %v5704
    %7953 = vmatpush1.bf16.msra.mxu0 %v5703
    %7954 = vmatprep.subr.bf16.mxu0 %v5696
    %7955 = vmatpush1.bf16.msra.mxu0 %v5695
    %7956 = vmatprep.subr.bf16.mxu0 %v5688
    %7957 = vmatpush1.bf16.msra.mxu0 %v5687
    %7958 = vmatprep.subr.bf16.mxu0 %v5680
    %7959 = vmatpush1.bf16.msra.mxu0 %v5679
    %7960 = vmatprep.subr.bf16.mxu0 %v5800
    %7961 = vmatpush2.bf16.msra.mxu0 %v5799
    %7962 = vmatprep.subr.bf16.mxu0 %v5792
    %7963 = vmatpush2.bf16.msra.mxu0 %v5791
    %7964 = vmatprep.subr.bf16.mxu0 %v5784
    %7965 = vmatpush2.bf16.msra.mxu0 %v5783
    %7966 = vmatprep.subr.bf16.mxu0 %v5776
    %7967 = vmatpush2.bf16.msra.mxu0 %v5775
    %7968 = vmatprep.subr.bf16.mxu0 %v5768
    %7969 = vmatpush2.bf16.msra.mxu0 %v5767
    %7970 = vmatprep.subr.bf16.mxu0 %v5760
    %7971 = vmatpush2.bf16.msra.mxu0 %v5759
    %7972 = vmatprep.subr.bf16.mxu0 %v5752
    %7973 = vmatpush2.bf16.msra.mxu0 %v5751
    %7974 = vmatprep.subr.bf16.mxu0 %v5744
    %7975 = vmatpush2.bf16.msra.mxu0 %v5743
    %7976 = vmatprep.mubr.bf16.mxu0 %v1942
    %7977 = vmatmul.mubr.bf16.gmra.mxu0 %v1941
    %v7978 = vpop.f32.mrf.mxu0
    %v7979 = vadd.f32 %v7938, %v7978
    %v7980 = vpop.f32.mrf.mxu0
    %v7981 = vadd.f32 %v7940, %v7980
    %v7982 = vpop.f32.mrf.mxu0
    %v7983 = vpop.f32.mrf.mxu0
    %7984 = vdwg.mxu0
    %7985 = vmatprep.subr.bf16.mxu0 %v5864
    %7986 = vmatpush1.bf16.msra.mxu0 %v5863
    %7987 = vmatprep.subr.bf16.mxu0 %v5856
    %7988 = vmatpush1.bf16.msra.mxu0 %v5855
    %7989 = vmatprep.subr.bf16.mxu0 %v5848
    %7990 = vmatpush1.bf16.msra.mxu0 %v5847
    %7991 = vmatprep.subr.bf16.mxu0 %v5840
    %7992 = vmatpush1.bf16.msra.mxu0 %v5839
    %7993 = vmatprep.subr.bf16.mxu0 %v5832
    %7994 = vmatpush1.bf16.msra.mxu0 %v5831
    %7995 = vmatprep.subr.bf16.mxu0 %v5824
    %7996 = vmatpush1.bf16.msra.mxu0 %v5823
    %7997 = vmatprep.subr.bf16.mxu0 %v5816
    %7998 = vmatpush1.bf16.msra.mxu0 %v5815
    %7999 = vmatprep.subr.bf16.mxu0 %v5808
    %8000 = vmatpush1.bf16.msra.mxu0 %v5807
    %8001 = vmatprep.subr.bf16.mxu0 %v5928
    %8002 = vmatpush2.bf16.msra.mxu0 %v5927
    %8003 = vmatprep.subr.bf16.mxu0 %v5920
    %8004 = vmatpush2.bf16.msra.mxu0 %v5919
    %8005 = vmatprep.subr.bf16.mxu0 %v5912
    %8006 = vmatpush2.bf16.msra.mxu0 %v5911
    %8007 = vmatprep.subr.bf16.mxu0 %v5904
    %8008 = vmatpush2.bf16.msra.mxu0 %v5903
    %8009 = vmatprep.subr.bf16.mxu0 %v5896
    %8010 = vmatpush2.bf16.msra.mxu0 %v5895
    %8011 = vmatprep.subr.bf16.mxu0 %v5888
    %8012 = vmatpush2.bf16.msra.mxu0 %v5887
    %8013 = vmatprep.subr.bf16.mxu0 %v5880
    %8014 = vmatpush2.bf16.msra.mxu0 %v5879
    %8015 = vmatprep.subr.bf16.mxu0 %v5872
    %8016 = vmatpush2.bf16.msra.mxu0 %v5871
    %8017 = vmatprep.mubr.bf16.mxu0 %v1944
    %8018 = vmatmul.mubr.bf16.gmra.mxu0 %v1943
    %v8019 = vpop.f32.mrf.mxu0
    %v8020 = vadd.f32 %v7979, %v8019
    %v8021 = vpop.f32.mrf.mxu0
    %v8022 = vadd.f32 %v7981, %v8021
    %v8023 = vpop.f32.mrf.mxu0
    %v8024 = vpop.f32.mrf.mxu0
    %8025 = vdwg.mxu0
    %8026 = vmatprep.subr.bf16.mxu0 %v5992
    %8027 = vmatpush1.bf16.msra.mxu0 %v5991
    %8028 = vmatprep.subr.bf16.mxu0 %v5984
    %8029 = vmatpush1.bf16.msra.mxu0 %v5983
    %8030 = vmatprep.subr.bf16.mxu0 %v5976
    %8031 = vmatpush1.bf16.msra.mxu0 %v5975
    %8032 = vmatprep.subr.bf16.mxu0 %v5968
    %8033 = vmatpush1.bf16.msra.mxu0 %v5967
    %8034 = vmatprep.subr.bf16.mxu0 %v5960
    %8035 = vmatpush1.bf16.msra.mxu0 %v5959
    %8036 = vmatprep.subr.bf16.mxu0 %v5952
    %8037 = vmatpush1.bf16.msra.mxu0 %v5951
    %8038 = vmatprep.subr.bf16.mxu0 %v5944
    %8039 = vmatpush1.bf16.msra.mxu0 %v5943
    %8040 = vmatprep.subr.bf16.mxu0 %v5936
    %8041 = vmatpush1.bf16.msra.mxu0 %v5935
    %8042 = vmatprep.subr.bf16.mxu0 %v6056
    %8043 = vmatpush2.bf16.msra.mxu0 %v6055
    %8044 = vmatprep.subr.bf16.mxu0 %v6048
    %8045 = vmatpush2.bf16.msra.mxu0 %v6047
    %8046 = vmatprep.subr.bf16.mxu0 %v6040
    %8047 = vmatpush2.bf16.msra.mxu0 %v6039
    %8048 = vmatprep.subr.bf16.mxu0 %v6032
    %8049 = vmatpush2.bf16.msra.mxu0 %v6031
    %8050 = vmatprep.subr.bf16.mxu0 %v6024
    %8051 = vmatpush2.bf16.msra.mxu0 %v6023
    %8052 = vmatprep.subr.bf16.mxu0 %v6016
    %8053 = vmatpush2.bf16.msra.mxu0 %v6015
    %8054 = vmatprep.subr.bf16.mxu0 %v6008
    %8055 = vmatpush2.bf16.msra.mxu0 %v6007
    %8056 = vmatprep.subr.bf16.mxu0 %v6000
    %8057 = vmatpush2.bf16.msra.mxu0 %v5999
    %8058 = vmatprep.mubr.bf16.mxu0 %v1946
    %8059 = vmatmul.mubr.bf16.gmra.mxu0 %v1945
    %v8060 = vpop.f32.mrf.mxu0
    %v8061 = vadd.f32 %v8020, %v8060
    %v8062 = vpop.f32.mrf.mxu0
    %v8063 = vadd.f32 %v8022, %v8062
    %v8064 = vpop.f32.mrf.mxu0
    %v8065 = vpop.f32.mrf.mxu0
    %8066 = vdwg.mxu0
    %8067 = vmatprep.subr.bf16.mxu0 %v5098
    %8068 = vmatpush1.bf16.msra.mxu0 %v5097
    %8069 = vmatprep.subr.bf16.mxu0 %v5090
    %8070 = vmatpush1.bf16.msra.mxu0 %v5089
    %8071 = vmatprep.subr.bf16.mxu0 %v5082
    %8072 = vmatpush1.bf16.msra.mxu0 %v5081
    %8073 = vmatprep.subr.bf16.mxu0 %v5074
    %8074 = vmatpush1.bf16.msra.mxu0 %v5073
    %8075 = vmatprep.subr.bf16.mxu0 %v5066
    %8076 = vmatpush1.bf16.msra.mxu0 %v5065
    %8077 = vmatprep.subr.bf16.mxu0 %v5058
    %8078 = vmatpush1.bf16.msra.mxu0 %v5057
    %8079 = vmatprep.subr.bf16.mxu0 %v5050
    %8080 = vmatpush1.bf16.msra.mxu0 %v5049
    %8081 = vmatprep.subr.bf16.mxu0 %v5042
    %8082 = vmatpush1.bf16.msra.mxu0 %v5041
    %8083 = vmatprep.subr.bf16.mxu0 %v5162
    %8084 = vmatpush2.bf16.msra.mxu0 %v5161
    %8085 = vmatprep.subr.bf16.mxu0 %v5154
    %8086 = vmatpush2.bf16.msra.mxu0 %v5153
    %8087 = vmatprep.subr.bf16.mxu0 %v5146
    %8088 = vmatpush2.bf16.msra.mxu0 %v5145
    %8089 = vmatprep.subr.bf16.mxu0 %v5138
    %8090 = vmatpush2.bf16.msra.mxu0 %v5137
    %8091 = vmatprep.subr.bf16.mxu0 %v5130
    %8092 = vmatpush2.bf16.msra.mxu0 %v5129
    %8093 = vmatprep.subr.bf16.mxu0 %v5122
    %8094 = vmatpush2.bf16.msra.mxu0 %v5121
    %8095 = vmatprep.subr.bf16.mxu0 %v5114
    %8096 = vmatpush2.bf16.msra.mxu0 %v5113
    %8097 = vmatprep.subr.bf16.mxu0 %v5106
    %8098 = vmatpush2.bf16.msra.mxu0 %v5105
    %8099 = vmatprep.mubr.bf16.mxu0 %v1932
    %8100 = vmatmul.mubr.bf16.gmra.mxu0 %v1931
    %v8101 = vpop.f32.mrf.mxu0
    %v8102 = vadd.f32 0.0, %v8101
    %v8103 = vpop.f32.mrf.mxu0
    %v8104 = vadd.f32 0.0, %v8103
    %v8105 = vpop.f32.mrf.mxu0
    %v8106 = vpop.f32.mrf.mxu0
    %8107 = vdwg.mxu0
    %8108 = vmatprep.subr.bf16.mxu0 %v5226
    %8109 = vmatpush1.bf16.msra.mxu0 %v5225
    %8110 = vmatprep.subr.bf16.mxu0 %v5218
    %8111 = vmatpush1.bf16.msra.mxu0 %v5217
    %8112 = vmatprep.subr.bf16.mxu0 %v5210
    %8113 = vmatpush1.bf16.msra.mxu0 %v5209
    %8114 = vmatprep.subr.bf16.mxu0 %v5202
    %8115 = vmatpush1.bf16.msra.mxu0 %v5201
    %8116 = vmatprep.subr.bf16.mxu0 %v5194
    %8117 = vmatpush1.bf16.msra.mxu0 %v5193
    %8118 = vmatprep.subr.bf16.mxu0 %v5186
    %8119 = vmatpush1.bf16.msra.mxu0 %v5185
    %8120 = vmatprep.subr.bf16.mxu0 %v5178
    %8121 = vmatpush1.bf16.msra.mxu0 %v5177
    %8122 = vmatprep.subr.bf16.mxu0 %v5170
    %8123 = vmatpush1.bf16.msra.mxu0 %v5169
    %8124 = vmatprep.subr.bf16.mxu0 %v5290
    %8125 = vmatpush2.bf16.msra.mxu0 %v5289
    %8126 = vmatprep.subr.bf16.mxu0 %v5282
    %8127 = vmatpush2.bf16.msra.mxu0 %v5281
    %8128 = vmatprep.subr.bf16.mxu0 %v5274
    %8129 = vmatpush2.bf16.msra.mxu0 %v5273
    %8130 = vmatprep.subr.bf16.mxu0 %v5266
    %8131 = vmatpush2.bf16.msra.mxu0 %v5265
    %8132 = vmatprep.subr.bf16.mxu0 %v5258
    %8133 = vmatpush2.bf16.msra.mxu0 %v5257
    %8134 = vmatprep.subr.bf16.mxu0 %v5250
    %8135 = vmatpush2.bf16.msra.mxu0 %v5249
    %8136 = vmatprep.subr.bf16.mxu0 %v5242
    %8137 = vmatpush2.bf16.msra.mxu0 %v5241
    %8138 = vmatprep.subr.bf16.mxu0 %v5234
    %8139 = vmatpush2.bf16.msra.mxu0 %v5233
    %8140 = vmatprep.mubr.bf16.mxu0 %v1934
    %8141 = vmatmul.mubr.bf16.gmra.mxu0 %v1933
    %v8142 = vpop.f32.mrf.mxu0
    %v8143 = vadd.f32 %v8102, %v8142
    %v8144 = vpop.f32.mrf.mxu0
    %v8145 = vadd.f32 %v8104, %v8144
    %v8146 = vpop.f32.mrf.mxu0
    %v8147 = vpop.f32.mrf.mxu0
    %8148 = vdwg.mxu0
    %8149 = vmatprep.subr.bf16.mxu0 %v5354
    %8150 = vmatpush1.bf16.msra.mxu0 %v5353
    %8151 = vmatprep.subr.bf16.mxu0 %v5346
    %8152 = vmatpush1.bf16.msra.mxu0 %v5345
    %8153 = vmatprep.subr.bf16.mxu0 %v5338
    %8154 = vmatpush1.bf16.msra.mxu0 %v5337
    %8155 = vmatprep.subr.bf16.mxu0 %v5330
    %8156 = vmatpush1.bf16.msra.mxu0 %v5329
    %8157 = vmatprep.subr.bf16.mxu0 %v5322
    %8158 = vmatpush1.bf16.msra.mxu0 %v5321
    %8159 = vmatprep.subr.bf16.mxu0 %v5314
    %8160 = vmatpush1.bf16.msra.mxu0 %v5313
    %8161 = vmatprep.subr.bf16.mxu0 %v5306
    %8162 = vmatpush1.bf16.msra.mxu0 %v5305
    %8163 = vmatprep.subr.bf16.mxu0 %v5298
    %8164 = vmatpush1.bf16.msra.mxu0 %v5297
    %8165 = vmatprep.subr.bf16.mxu0 %v5418
    %8166 = vmatpush2.bf16.msra.mxu0 %v5417
    %8167 = vmatprep.subr.bf16.mxu0 %v5410
    %8168 = vmatpush2.bf16.msra.mxu0 %v5409
    %8169 = vmatprep.subr.bf16.mxu0 %v5402
    %8170 = vmatpush2.bf16.msra.mxu0 %v5401
    %8171 = vmatprep.subr.bf16.mxu0 %v5394
    %8172 = vmatpush2.bf16.msra.mxu0 %v5393
    %8173 = vmatprep.subr.bf16.mxu0 %v5386
    %8174 = vmatpush2.bf16.msra.mxu0 %v5385
    %8175 = vmatprep.subr.bf16.mxu0 %v5378
    %8176 = vmatpush2.bf16.msra.mxu0 %v5377
    %8177 = vmatprep.subr.bf16.mxu0 %v5370
    %8178 = vmatpush2.bf16.msra.mxu0 %v5369
    %8179 = vmatprep.subr.bf16.mxu0 %v5362
    %8180 = vmatpush2.bf16.msra.mxu0 %v5361
    %8181 = vmatprep.mubr.bf16.mxu0 %v1936
    %8182 = vmatmul.mubr.bf16.gmra.mxu0 %v1935
    %v8183 = vpop.f32.mrf.mxu0
    %v8184 = vadd.f32 %v8143, %v8183
    %v8185 = vpop.f32.mrf.mxu0
    %v8186 = vadd.f32 %v8145, %v8185
    %v8187 = vpop.f32.mrf.mxu0
    %v8188 = vpop.f32.mrf.mxu0
    %8189 = vdwg.mxu0
    %8190 = vmatprep.subr.bf16.mxu0 %v5482
    %8191 = vmatpush1.bf16.msra.mxu0 %v5481
    %8192 = vmatprep.subr.bf16.mxu0 %v5474
    %8193 = vmatpush1.bf16.msra.mxu0 %v5473
    %8194 = vmatprep.subr.bf16.mxu0 %v5466
    %8195 = vmatpush1.bf16.msra.mxu0 %v5465
    %8196 = vmatprep.subr.bf16.mxu0 %v5458
    %8197 = vmatpush1.bf16.msra.mxu0 %v5457
    %8198 = vmatprep.subr.bf16.mxu0 %v5450
    %8199 = vmatpush1.bf16.msra.mxu0 %v5449
    %8200 = vmatprep.subr.bf16.mxu0 %v5442
    %8201 = vmatpush1.bf16.msra.mxu0 %v5441
    %8202 = vmatprep.subr.bf16.mxu0 %v5434
    %8203 = vmatpush1.bf16.msra.mxu0 %v5433
    %8204 = vmatprep.subr.bf16.mxu0 %v5426
    %8205 = vmatpush1.bf16.msra.mxu0 %v5425
    %8206 = vmatprep.subr.bf16.mxu0 %v5546
    %8207 = vmatpush2.bf16.msra.mxu0 %v5545
    %8208 = vmatprep.subr.bf16.mxu0 %v5538
    %8209 = vmatpush2.bf16.msra.mxu0 %v5537
    %8210 = vmatprep.subr.bf16.mxu0 %v5530
    %8211 = vmatpush2.bf16.msra.mxu0 %v5529
    %8212 = vmatprep.subr.bf16.mxu0 %v5522
    %8213 = vmatpush2.bf16.msra.mxu0 %v5521
    %8214 = vmatprep.subr.bf16.mxu0 %v5514
    %8215 = vmatpush2.bf16.msra.mxu0 %v5513
    %8216 = vmatprep.subr.bf16.mxu0 %v5506
    %8217 = vmatpush2.bf16.msra.mxu0 %v5505
    %8218 = vmatprep.subr.bf16.mxu0 %v5498
    %8219 = vmatpush2.bf16.msra.mxu0 %v5497
    %8220 = vmatprep.subr.bf16.mxu0 %v5490
    %8221 = vmatpush2.bf16.msra.mxu0 %v5489
    %8222 = vmatprep.mubr.bf16.mxu0 %v1938
    %8223 = vmatmul.mubr.bf16.gmra.mxu0 %v1937
    %v8224 = vpop.f32.mrf.mxu0
    %v8225 = vadd.f32 %v8184, %v8224
    %v8226 = vpop.f32.mrf.mxu0
    %v8227 = vadd.f32 %v8186, %v8226
    %v8228 = vpop.f32.mrf.mxu0
    %v8229 = vpop.f32.mrf.mxu0
    %8230 = vdwg.mxu0
    %8231 = vmatprep.subr.bf16.mxu0 %v5610
    %8232 = vmatpush1.bf16.msra.mxu0 %v5609
    %8233 = vmatprep.subr.bf16.mxu0 %v5602
    %8234 = vmatpush1.bf16.msra.mxu0 %v5601
    %8235 = vmatprep.subr.bf16.mxu0 %v5594
    %8236 = vmatpush1.bf16.msra.mxu0 %v5593
    %8237 = vmatprep.subr.bf16.mxu0 %v5586
    %8238 = vmatpush1.bf16.msra.mxu0 %v5585
    %8239 = vmatprep.subr.bf16.mxu0 %v5578
    %8240 = vmatpush1.bf16.msra.mxu0 %v5577
    %8241 = vmatprep.subr.bf16.mxu0 %v5570
    %8242 = vmatpush1.bf16.msra.mxu0 %v5569
    %8243 = vmatprep.subr.bf16.mxu0 %v5562
    %8244 = vmatpush1.bf16.msra.mxu0 %v5561
    %8245 = vmatprep.subr.bf16.mxu0 %v5554
    %8246 = vmatpush1.bf16.msra.mxu0 %v5553
    %8247 = vmatprep.subr.bf16.mxu0 %v5674
    %8248 = vmatpush2.bf16.msra.mxu0 %v5673
    %8249 = vmatprep.subr.bf16.mxu0 %v5666
    %8250 = vmatpush2.bf16.msra.mxu0 %v5665
    %8251 = vmatprep.subr.bf16.mxu0 %v5658
    %8252 = vmatpush2.bf16.msra.mxu0 %v5657
    %8253 = vmatprep.subr.bf16.mxu0 %v5650
    %8254 = vmatpush2.bf16.msra.mxu0 %v5649
    %8255 = vmatprep.subr.bf16.mxu0 %v5642
    %8256 = vmatpush2.bf16.msra.mxu0 %v5641
    %8257 = vmatprep.subr.bf16.mxu0 %v5634
    %8258 = vmatpush2.bf16.msra.mxu0 %v5633
    %8259 = vmatprep.subr.bf16.mxu0 %v5626
    %8260 = vmatpush2.bf16.msra.mxu0 %v5625
    %8261 = vmatprep.subr.bf16.mxu0 %v5618
    %8262 = vmatpush2.bf16.msra.mxu0 %v5617
    %8263 = vmatprep.mubr.bf16.mxu0 %v1940
    %8264 = vmatmul.mubr.bf16.gmra.mxu0 %v1939
    %v8265 = vpop.f32.mrf.mxu0
    %v8266 = vadd.f32 %v8225, %v8265
    %v8267 = vpop.f32.mrf.mxu0
    %v8268 = vadd.f32 %v8227, %v8267
    %v8269 = vpop.f32.mrf.mxu0
    %v8270 = vpop.f32.mrf.mxu0
    %8271 = vdwg.mxu0
    %8272 = vmatprep.subr.bf16.mxu0 %v5738
    %8273 = vmatpush1.bf16.msra.mxu0 %v5737
    %8274 = vmatprep.subr.bf16.mxu0 %v5730
    %8275 = vmatpush1.bf16.msra.mxu0 %v5729
    %8276 = vmatprep.subr.bf16.mxu0 %v5722
    %8277 = vmatpush1.bf16.msra.mxu0 %v5721
    %8278 = vmatprep.subr.bf16.mxu0 %v5714
    %8279 = vmatpush1.bf16.msra.mxu0 %v5713
    %8280 = vmatprep.subr.bf16.mxu0 %v5706
    %8281 = vmatpush1.bf16.msra.mxu0 %v5705
    %8282 = vmatprep.subr.bf16.mxu0 %v5698
    %8283 = vmatpush1.bf16.msra.mxu0 %v5697
    %8284 = vmatprep.subr.bf16.mxu0 %v5690
    %8285 = vmatpush1.bf16.msra.mxu0 %v5689
    %8286 = vmatprep.subr.bf16.mxu0 %v5682
    %8287 = vmatpush1.bf16.msra.mxu0 %v5681
    %8288 = vmatprep.subr.bf16.mxu0 %v5802
    %8289 = vmatpush2.bf16.msra.mxu0 %v5801
    %8290 = vmatprep.subr.bf16.mxu0 %v5794
    %8291 = vmatpush2.bf16.msra.mxu0 %v5793
    %8292 = vmatprep.subr.bf16.mxu0 %v5786
    %8293 = vmatpush2.bf16.msra.mxu0 %v5785
    %8294 = vmatprep.subr.bf16.mxu0 %v5778
    %8295 = vmatpush2.bf16.msra.mxu0 %v5777
    %8296 = vmatprep.subr.bf16.mxu0 %v5770
    %8297 = vmatpush2.bf16.msra.mxu0 %v5769
    %8298 = vmatprep.subr.bf16.mxu0 %v5762
    %8299 = vmatpush2.bf16.msra.mxu0 %v5761
    %8300 = vmatprep.subr.bf16.mxu0 %v5754
    %8301 = vmatpush2.bf16.msra.mxu0 %v5753
    %8302 = vmatprep.subr.bf16.mxu0 %v5746
    %8303 = vmatpush2.bf16.msra.mxu0 %v5745
    %8304 = vmatprep.mubr.bf16.mxu0 %v1942
    %8305 = vmatmul.mubr.bf16.gmra.mxu0 %v1941
    %v8306 = vpop.f32.mrf.mxu0
    %v8307 = vadd.f32 %v8266, %v8306
    %v8308 = vpop.f32.mrf.mxu0
    %v8309 = vadd.f32 %v8268, %v8308
    %v8310 = vpop.f32.mrf.mxu0
    %v8311 = vpop.f32.mrf.mxu0
    %8312 = vdwg.mxu0
    %8313 = vmatprep.subr.bf16.mxu0 %v5866
    %8314 = vmatpush1.bf16.msra.mxu0 %v5865
    %8315 = vmatprep.subr.bf16.mxu0 %v5858
    %8316 = vmatpush1.bf16.msra.mxu0 %v5857
    %8317 = vmatprep.subr.bf16.mxu0 %v5850
    %8318 = vmatpush1.bf16.msra.mxu0 %v5849
    %8319 = vmatprep.subr.bf16.mxu0 %v5842
    %8320 = vmatpush1.bf16.msra.mxu0 %v5841
    %8321 = vmatprep.subr.bf16.mxu0 %v5834
    %8322 = vmatpush1.bf16.msra.mxu0 %v5833
    %8323 = vmatprep.subr.bf16.mxu0 %v5826
    %8324 = vmatpush1.bf16.msra.mxu0 %v5825
    %8325 = vmatprep.subr.bf16.mxu0 %v5818
    %8326 = vmatpush1.bf16.msra.mxu0 %v5817
    %8327 = vmatprep.subr.bf16.mxu0 %v5810
    %8328 = vmatpush1.bf16.msra.mxu0 %v5809
    %8329 = vmatprep.subr.bf16.mxu0 %v5930
    %8330 = vmatpush2.bf16.msra.mxu0 %v5929
    %8331 = vmatprep.subr.bf16.mxu0 %v5922
    %8332 = vmatpush2.bf16.msra.mxu0 %v5921
    %8333 = vmatprep.subr.bf16.mxu0 %v5914
    %8334 = vmatpush2.bf16.msra.mxu0 %v5913
    %8335 = vmatprep.subr.bf16.mxu0 %v5906
    %8336 = vmatpush2.bf16.msra.mxu0 %v5905
    %8337 = vmatprep.subr.bf16.mxu0 %v5898
    %8338 = vmatpush2.bf16.msra.mxu0 %v5897
    %8339 = vmatprep.subr.bf16.mxu0 %v5890
    %8340 = vmatpush2.bf16.msra.mxu0 %v5889
    %8341 = vmatprep.subr.bf16.mxu0 %v5882
    %8342 = vmatpush2.bf16.msra.mxu0 %v5881
    %8343 = vmatprep.subr.bf16.mxu0 %v5874
    %8344 = vmatpush2.bf16.msra.mxu0 %v5873
    %8345 = vmatprep.mubr.bf16.mxu0 %v1944
    %8346 = vmatmul.mubr.bf16.gmra.mxu0 %v1943
    %v8347 = vpop.f32.mrf.mxu0
    %v8348 = vadd.f32 %v8307, %v8347
    %v8349 = vpop.f32.mrf.mxu0
    %v8350 = vadd.f32 %v8309, %v8349
    %v8351 = vpop.f32.mrf.mxu0
    %v8352 = vpop.f32.mrf.mxu0
    %8353 = vdwg.mxu0
    %8354 = vmatprep.subr.bf16.mxu0 %v5994
    %8355 = vmatpush1.bf16.msra.mxu0 %v5993
    %8356 = vmatprep.subr.bf16.mxu0 %v5986
    %8357 = vmatpush1.bf16.msra.mxu0 %v5985
    %8358 = vmatprep.subr.bf16.mxu0 %v5978
    %8359 = vmatpush1.bf16.msra.mxu0 %v5977
    %8360 = vmatprep.subr.bf16.mxu0 %v5970
    %8361 = vmatpush1.bf16.msra.mxu0 %v5969
    %8362 = vmatprep.subr.bf16.mxu0 %v5962
    %8363 = vmatpush1.bf16.msra.mxu0 %v5961
    %8364 = vmatprep.subr.bf16.mxu0 %v5954
    %8365 = vmatpush1.bf16.msra.mxu0 %v5953
    %8366 = vmatprep.subr.bf16.mxu0 %v5946
    %8367 = vmatpush1.bf16.msra.mxu0 %v5945
    %8368 = vmatprep.subr.bf16.mxu0 %v5938
    %8369 = vmatpush1.bf16.msra.mxu0 %v5937
    %8370 = vmatprep.subr.bf16.mxu0 %v6058
    %8371 = vmatpush2.bf16.msra.mxu0 %v6057
    %8372 = vmatprep.subr.bf16.mxu0 %v6050
    %8373 = vmatpush2.bf16.msra.mxu0 %v6049
    %8374 = vmatprep.subr.bf16.mxu0 %v6042
    %8375 = vmatpush2.bf16.msra.mxu0 %v6041
    %8376 = vmatprep.subr.bf16.mxu0 %v6034
    %8377 = vmatpush2.bf16.msra.mxu0 %v6033
    %8378 = vmatprep.subr.bf16.mxu0 %v6026
    %8379 = vmatpush2.bf16.msra.mxu0 %v6025
    %8380 = vmatprep.subr.bf16.mxu0 %v6018
    %8381 = vmatpush2.bf16.msra.mxu0 %v6017
    %8382 = vmatprep.subr.bf16.mxu0 %v6010
    %8383 = vmatpush2.bf16.msra.mxu0 %v6009
    %8384 = vmatprep.subr.bf16.mxu0 %v6002
    %8385 = vmatpush2.bf16.msra.mxu0 %v6001
    %8386 = vmatprep.mubr.bf16.mxu0 %v1946
    %8387 = vmatmul.mubr.bf16.gmra.mxu0 %v1945
    %v8388 = vpop.f32.mrf.mxu0
    %v8389 = vadd.f32 %v8348, %v8388
    %v8390 = vpop.f32.mrf.mxu0
    %v8391 = vadd.f32 %v8350, %v8390
    %v8392 = vpop.f32.mrf.mxu0
    %v8393 = vpop.f32.mrf.mxu0
    %8394 = vdwg.mxu0
    %v8395 = vmul.f32 %v7405, 0.020408163
    %v8396 = vmul.f32 %v7407, 0.020408163
    %v8397 = vmul.f32 %v7733, 0.020408163
    %v8398 = vmul.f32 %v7735, 0.020408163
    %v8399 = vmul.f32 %v8061, 0.020408163
    %v8400 = vmul.f32 %v8063, 0.020408163
    %v8401 = vmul.f32 %v8389, 0.020408163
    %v8402 = vmul.f32 %v8391, 0.020408163
    %v8403 = vld [vmem:[#allocation5] sm:$0xff]
    %v8405 = vlaneseq
    %v8406 = vshrl.u32 %v8405, 7
    %v8407 = vsub.s32 0, %v8406
    %v8408 = vrot.slane %v8403, %v8407
    %v8409 = vlaneseq
    %v8410 = vshrl.u32 %v8409, 7
    %v8411 = vsub.s32 1, %v8410
    %v8412 = vrot.slane %v8403, %v8411
    %v8413 = vlaneseq
    %v8414 = vshrl.u32 %v8413, 7
    %v8415 = vsub.s32 2, %v8414
    %v8416 = vrot.slane %v8403, %v8415
    %v8417 = vlaneseq
    %v8418 = vshrl.u32 %v8417, 7
    %v8419 = vsub.s32 3, %v8418
    %v8420 = vrot.slane %v8403, %v8419
    %v8421 = vlaneseq
    %v8422 = vshrl.u32 %v8421, 7
    %v8423 = vsub.s32 4, %v8422
    %v8424 = vrot.slane %v8403, %v8423
    %v8425 = vlaneseq
    %v8426 = vshrl.u32 %v8425, 7
    %v8427 = vsub.s32 5, %v8426
    %v8428 = vrot.slane %v8403, %v8427
    %v8429 = vlaneseq
    %v8430 = vshrl.u32 %v8429, 7
    %v8431 = vsub.s32 6, %v8430
    %v8432 = vrot.slane %v8403, %v8431
    %v8433 = vlaneseq
    %v8434 = vshrl.u32 %v8433, 7
    %v8435 = vsub.s32 7, %v8434
    %v8436 = vrot.slane %v8403, %v8435
    %v8445 = vadd.f32 %v8395, %v8408
    %v8446 = vadd.f32 %v8396, %v8412
    %v8447 = vadd.f32 %v8397, %v8416
    %v8448 = vadd.f32 %v8398, %v8420
    %v8449 = vadd.f32 %v8399, %v8424
    %v8450 = vadd.f32 %v8400, %v8428
    %v8451 = vadd.f32 %v8401, %v8432
    %v8452 = vadd.f32 %v8402, %v8436
    %vm8453 = vcmp.gt.f32.partialorder %v8445, 0.0
    %vm8454 = vcmp.gt.f32.partialorder %v8446, 0.0
    %vm8455 = vcmp.gt.f32.partialorder %v8447, 0.0
    %vm8456 = vcmp.gt.f32.partialorder %v8448, 0.0
    %vm8457 = vcmp.gt.f32.partialorder %v8449, 0.0
    %vm8458 = vcmp.gt.f32.partialorder %v8450, 0.0
    %vm8459 = vcmp.gt.f32.partialorder %v8451, 0.0
    %vm8460 = vcmp.gt.f32.partialorder %v8452, 0.0
    %v8461 = vmul.f32 %v8445, 0.01
    %v8462 = vmul.f32 %v8446, 0.01
    %v8463 = vmul.f32 %v8447, 0.01
    %v8464 = vmul.f32 %v8448, 0.01
    %v8465 = vmul.f32 %v8449, 0.01
    %v8466 = vmul.f32 %v8450, 0.01
    %v8467 = vmul.f32 %v8451, 0.01
    %v8468 = vmul.f32 %v8452, 0.01
    %v8469 = vsel %vm8453, %v8445, %v8461
    %v8470 = vsel %vm8454, %v8446, %v8462
    %v8471 = vsel %vm8455, %v8447, %v8463
    %v8472 = vsel %vm8456, %v8448, %v8464
    %v8473 = vsel %vm8457, %v8449, %v8465
    %v8474 = vsel %vm8458, %v8450, %v8466
    %v8475 = vsel %vm8459, %v8451, %v8467
    %v8476 = vsel %vm8460, %v8452, %v8468
    %v8485 = vcombine.low %v8469, %v8470
    %v8486 = vcombine.low %v8471, %v8472
    %v8488 = vunpack.c.l.s4 1983009808
    %v8489 = vunpack.c.0.s8 %v8488
    %v8490 = vlaneseq
    %v8491 = vshrl.u32 %v8490, 7
    %v8492 = vsub.s32 %v8489, %v8491
    %v8493 = vrot.slane %v8485, %v8492
    %v8495 = vunpack.c.l.s4 1983009808
    %v8496 = vunpack.c.0.s8 %v8495
    %v8497 = vlaneseq
    %v8498 = vshrl.u32 %v8497, 7
    %v8499 = vsub.s32 %v8496, %v8498
    %v8500 = vrot.slane %v8486, %v8499
    %v8501 = vcombine.low %v8493, %v8500
    %v8502 = vcombine.low %v8473, %v8474
    %v8503 = vcombine.low %v8475, %v8476
    %v8505 = vunpack.c.l.s4 1983009808
    %v8506 = vunpack.c.0.s8 %v8505
    %v8507 = vlaneseq
    %v8508 = vshrl.u32 %v8507, 7
    %v8509 = vsub.s32 %v8506, %v8508
    %v8510 = vrot.slane %v8502, %v8509
    %v8512 = vunpack.c.l.s4 1983009808
    %v8513 = vunpack.c.0.s8 %v8512
    %v8514 = vlaneseq
    %v8515 = vshrl.u32 %v8514, 7
    %v8516 = vsub.s32 %v8513, %v8515
    %v8517 = vrot.slane %v8503, %v8516
    %v8518 = vcombine.low %v8510, %v8517
    %8521 = vst [vmem:[#allocation7] sm:$0xff] %v8501
    %8522 = vst [vmem:[#allocation7 + $0x8] sm:$0xff] %v8518
    // Predicated region
    $region22: #{tpu_custom_call.1} parent=1 // pred_check
      _
    $region23: #{tpu_custom_call.1} parent=1 // pred_check_branch
      %8524 = sbr.rel (0) target = $region25
    $region24: #{tpu_custom_call.1} parent=1 // pred_region
      %s8526 = ssub.s32 256, 256
      %8527 = vsyncadd [#allocation4], %s8526
      %s8529 = sshll.u32 [#allocation7], 4
      %s8530 = int_to_ptr.vmem [resolvable:$true] %s8529
      %8532 = dma.vmem_to_hbm [thread:$0]  %s8530, 256, %s3, [#allocation4]
    $region25: #{tpu_custom_call.1} parent=1 // pred_fallthru
      _
    // Predicated region
    $region26: #{tpu_custom_call.1} parent=1 // pred_check
      _
    $region27: #{tpu_custom_call.1} parent=1 // pred_check_branch
      %8534 = sbr.rel (0) target = $region29
    $region28: #{tpu_custom_call.1} parent=1 // pred_region
      %8535 = dma.done [#allocation4], 256
    $region29: #{tpu_custom_call.1} parent=1 // pred_fallthru
      _
    %8536 = vsyncpa [#allocation3], 1
    %8537 = vsyncpa [#allocation6], 1
    %8538 = vsyncpa [#allocation4], 1

</llo_original>
